<compile_context>
chip_gen: v7x
topology: tpu7x:2x2x1
jax: 0.10.0
libtpu: 0.0.40
codegen_flags: <defaults>
</compile_context>

<pallas_src>
import functools

import jax
import jax.numpy as jnp
from jax.experimental import pallas as pl
from jax.experimental.pallas import tpu as pltpu


# ---------------------------------------------------------------------------
# Pallas kernel: one tile of edges -> fused edge-update delta + node message,
# packed into one lane-dense 128-wide output block.
# ---------------------------------------------------------------------------
def _m3gnet_conv_tile_kernel(vij_ref, e_ref, rbf_ref,
                             w_vij_ref, wee_ref, wen_ref, b1_ref,
                             w2e_ref, b2e_ref, w2n_ref, b2n_ref, wrbf_ref,
                             out_ref):
    f32 = jnp.float32
    cdt = w_vij_ref.dtype                 # matmul compute dtype (bf16)
    De = w2e_ref.shape[-1] // 2           # edge feature dim
    Dv = w2n_ref.shape[-1] // 2           # node feature dim
    H2 = wee_ref.shape[-1]                # 2 * hidden (layers-half | gates-half)

    e_lo = e_ref[...]                     # bf16 edge stream (matmul operand)
    e_f32 = e_lo.astype(f32)

    # Shared layer-1: one K=2*Dv (=128), N=4*hidden (=256) matmul feeding BOTH
    # GatedMLPs: columns [0:2H] -> edge MLP [W1|G1], [2H:4H] -> node MLP [W1|G1].
    hv = jnp.dot(vij_ref[...], w_vij_ref[...],
                 preferred_element_type=f32) + b1_ref[...]

    # Both rbf weight functions in one lane-dense matmul: [tile, De + Dv].
    s = jnp.dot(rbf_ref[...], wrbf_ref[...], preferred_element_type=f32)

    # ------------- edge update (Eq. 4, uses ORIGINAL edge feats) -------------
    h_e = hv[:, :H2] + jnp.dot(e_lo, wee_ref[...], preferred_element_type=f32)
    h_e = h_e * jax.nn.sigmoid(h_e)                       # SiLU, both halves, f32
    z_e = jnp.dot(h_e.astype(cdt), w2e_ref[...],
                  preferred_element_type=f32) + b2e_ref[...]
    sig_e = jax.nn.sigmoid(z_e)                           # one full-vreg sigmoid
    # silu(layers) * sigmoid(gates) * rbf_scale_e
    d_e = z_e[:, :De] * sig_e[:, :De] * sig_e[:, De:] * s[:, :De]
    e_new = e_f32 + d_e                                   # updated edge feats

    # ------------- node message (Eq. 5, uses UPDATED edge feats) -------------
    h_n = hv[:, H2:] + jnp.dot(e_new.astype(cdt), wen_ref[...],
                               preferred_element_type=f32)
    h_n = h_n * jax.nn.sigmoid(h_n)
    z_n = jnp.dot(h_n.astype(cdt), w2n_ref[...],
                  preferred_element_type=f32) + b2n_ref[...]
    sig_n = jax.nn.sigmoid(z_n)
    mess = z_n[:, :Dv] * sig_n[:, :Dv] * sig_n[:, Dv:] * s[:, De:]

    # Single lane-dense (tile, De+Dv)=128-wide store: [edge delta | node message].
    out_ref[...] = jnp.concatenate([d_e, mess], axis=-1).astype(out_ref.dtype)


# ---------------------------------------------------------------------------
# Wrapper: build lane-dense streams, pad edges, call the kernel, add residuals.
# ---------------------------------------------------------------------------
def m3gnet_graph_conv_pallas(node_feat, edge_feat, rbf, src, dst, packed,
                             *, num_nodes, tile_e=1024,
                             compute_dtype=jnp.bfloat16,
                             vmem_limit_bytes=64 * 1024 * 1024):
    E, De = edge_feat.shape
    Dv = node_feat.shape[1]
    Dp = packed["w_rbf"].shape[0]           # padded degree (>= degree, mult of 8)
    H4 = packed["w_vij"].shape[1]           # 4 * hidden
    H2 = H4 // 2

    # Gather once and fold into a single lane-dense [E, 2*Dv]=128 bf16 stream.
    # (Node update uses the ORIGINAL node features, per the DGL code.)
    vij = jnp.concatenate([node_feat[src], node_feat[dst]],
                          axis=1).astype(compute_dtype)

    n_tiles = pl.cdiv(E, tile_e)
    # NOTE: on v7x an even n_tiles lets the 1-D "parallel" grid shard across both
    # TensorCores; not forced here to avoid an all-padding tile on v5e/v6e.
    e_pad = n_tiles * tile_e
    pad = e_pad - E
    vij = jnp.pad(vij, ((0, pad), (0, 0)))
    e_in = jnp.pad(edge_feat.astype(compute_dtype), ((0, pad), (0, 0)))
    rbf_p = jnp.pad(rbf, ((0, pad), (0, Dp - rbf.shape[1]))).astype(compute_dtype)

    row = lambda i: (i, 0)
    full = lambda i: (0, 0)

    out_p = pl.pallas_call(
        _m3gnet_conv_tile_kernel,
        out_shape=jax.ShapeDtypeStruct((e_pad, De + Dv), jnp.float32),
        grid=(n_tiles,),
        in_specs=[
            pl.BlockSpec((tile_e, 2 * Dv), row),   # vij  (vi | vj), bf16
            pl.BlockSpec((tile_e, De), row),       # e, bf16
            pl.BlockSpec((tile_e, Dp), row),       # rbf (zero-padded degree), bf16
            pl.BlockSpec((2 * Dv, H4), full),      # layer-1 weight for [vi;vj] (both MLPs)
            pl.BlockSpec((De, H2), full),          # layer-1 weight for e   (edge MLP)
            pl.BlockSpec((De, H2), full),          # layer-1 weight for e'  (node MLP)
            pl.BlockSpec((1, H4), full),           # layer-1 bias [edge b1|c1 | node b1|c1]
            pl.BlockSpec((H2, 2 * De), full),      # edge layer-2 block-diag [W2 0; 0 G2]
            pl.BlockSpec((1, 2 * De), full),       # edge layer-2 bias [b2 | c2]
            pl.BlockSpec((H2, 2 * Dv), full),      # node layer-2 block-diag
            pl.BlockSpec((1, 2 * Dv), full),       # node layer-2 bias
            pl.BlockSpec((Dp, De + Dv), full),     # rbf weight funcs [W_rbf_e | W_rbf_n]
        ],
        out_specs=pl.BlockSpec((tile_e, De + Dv), row),
        compiler_params=pltpu.CompilerParams(
            dimension_semantics=("parallel",),
            vmem_limit_bytes=vmem_limit_bytes),
    )(vij, e_in, rbf_p,
      packed["w_vij"], packed["w_e_edge"], packed["w_e_node"], packed["b1"],
      packed["w2_edge"], packed["b2_edge"], packed["w2_node"], packed["b2_node"],
      packed["w_rbf"])

    d_e = out_p[:E, :De]
    mess = out_p[:E, De:]
    e_new = edge_feat + d_e                                   # exact f32 residual
    v_new = node_feat + jax.ops.segment_sum(mess, dst, num_segments=num_nodes)
    return e_new, v_new


@functools.partial(jax.jit, static_argnames=("num_nodes", "tile_e"))
def m3gnet_block_forward(edge_feat, node_feat, state_feat, rbf, src, dst, packed,
                         *, num_nodes, tile_e=1024):
    e_new, v_new = m3gnet_graph_conv_pallas(
        node_feat, edge_feat, rbf, src, dst, packed,
        num_nodes=num_nodes, tile_e=tile_e)
    # include_state=False -> state passes through; dropout=None -> identity.
    return e_new, v_new, state_feat


# ---------------------------------------------------------------------------
# Parameter construction + packing into the fused kernel layout.
# ---------------------------------------------------------------------------
def make_gated_mlp_params(key, d_in, d_hidden, d_out, scale=0.1):
    ks = jax.random.split(key, 8)
    f = lambda k, shp: (scale * jax.random.normal(k, shp)).astype(jnp.float32)
    return {
        "w1": f(ks[0], (d_in, d_hidden)), "b1": f(ks[1], (d_hidden,)),
        "w2": f(ks[2], (d_hidden, d_out)), "b2": f(ks[3], (d_out,)),
        "g1": f(ks[4], (d_in, d_hidden)), "c1": f(ks[5], (d_hidden,)),
        "g2": f(ks[6], (d_hidden, d_out)), "c2": f(ks[7], (d_out,)),
    }


def _block_diag(a, b):
    ha, da = a.shape
    hb, db = b.shape
    out = jnp.zeros((ha + hb, da + db), a.dtype)
    out = out.at[:ha, :da].set(a)
    out = out.at[ha:, da:].set(b)
    return out


def pack_conv_params(params, dim_node, dim_edge, degree, degree_pad,
                     compute_dtype=jnp.bfloat16):
    """Re-layout natural GatedMLP / Linear params into the fused kernel layout.

    Weights (matmul operands) are stored in `compute_dtype` (bf16); biases stay f32.
    """
    pe, pn = params["edge_mlp"], params["node_mlp"]
    Dv = dim_node

    # Fused layer-1 of each GatedMLP: [Din, 2H] = [W1 | G1]; bias [b1 | c1].
    we_l1 = jnp.concatenate([pe["w1"], pe["g1"]], axis=1)
    wn_l1 = jnp.concatenate([pn["w1"], pn["g1"]], axis=1)
    be_l1 = jnp.concatenate([pe["b1"], pe["c1"]])
    bn_l1 = jnp.concatenate([pn["b1"], pn["c1"]])

    # Split layer-1 rows by input segment (input ordering = [vi | vj | e]):
    #   vi rows + vj rows stacked -> one K=2*Dv matmul against the [vi|vj] stream,
    #   columns regrouped across BOTH MLPs -> N = 4*hidden.
    w_vi = jnp.concatenate([we_l1[:Dv], wn_l1[:Dv]], axis=1)
    w_vj = jnp.concatenate([we_l1[Dv:2 * Dv], wn_l1[Dv:2 * Dv]], axis=1)
    w_vij = jnp.concatenate([w_vi, w_vj], axis=0)
    w_e_edge = we_l1[2 * Dv:]
    w_e_node = wn_l1[2 * Dv:]
    b1 = jnp.concatenate([be_l1, bn_l1])[None, :]

    # Layer-2: block-diagonal [W2 0; 0 G2] keeps the layers|gates halves packed.
    w2_edge = _block_diag(pe["w2"], pe["g2"])
    b2_edge = jnp.concatenate([pe["b2"], pe["c2"]])[None, :]
    w2_node = _block_diag(pn["w2"], pn["g2"])
    b2_node = jnp.concatenate([pn["b2"], pn["c2"]])[None, :]

    # rbf weight functions (no bias), side-by-side + zero-padded degree rows.
    w_rbf = jnp.concatenate([params["w_rbf_e"], params["w_rbf_n"]], axis=1)
    w_rbf = jnp.pad(w_rbf, ((0, degree_pad - degree), (0, 0)))

    cd = compute_dtype
    return {"w_vij": w_vij.astype(cd),
            "w_e_edge": w_e_edge.astype(cd), "w_e_node": w_e_node.astype(cd),
            "b1": b1.astype(jnp.float32),
            "w2_edge": w2_edge.astype(cd), "b2_edge": b2_edge.astype(jnp.float32),
            "w2_node": w2_node.astype(cd), "b2_node": b2_node.astype(jnp.float32),
            "w_rbf": w_rbf.astype(cd)}


# ---------------------------------------------------------------------------
# Pure-JAX f32 reference (mirrors the PyTorch module) for a correctness check.
# ---------------------------------------------------------------------------
def _gated_mlp_ref(x, p):
    h = jax.nn.silu(x @ p["w1"] + p["b1"])
    y = jax.nn.silu(h @ p["w2"] + p["b2"])
    hg = jax.nn.silu(x @ p["g1"] + p["c1"])
    g = jax.nn.sigmoid(hg @ p["g2"] + p["c2"])
    return y * g


def m3gnet_conv_ref(node_feat, edge_feat, rbf, src, dst, params, num_nodes):
    vi = node_feat[src]
    vj = node_feat[dst]
    x_e = jnp.concatenate([vi, vj, edge_feat], axis=1)
    e_new = edge_feat + _gated_mlp_ref(x_e, params["edge_mlp"]) * (rbf @ params["w_rbf_e"])
    x_n = jnp.concatenate([vi, vj, e_new], axis=1)
    mess = _gated_mlp_ref(x_n, params["node_mlp"]) * (rbf @ params["w_rbf_n"])
    v_new = node_feat + jax.ops.segment_sum(mess, dst, num_segments=num_nodes)
    return e_new, v_new


# ---------------------------------------------------------------------------
if __name__ == "__main__":
    # Small, deterministic problem sizes (M3GNet defaults: 64-dim feats, 64 hidden).
    N_ATOMS = 64
    N_BONDS = 300            # not a multiple of the tile -> exercises padding path
    DIM_NODE = 64
    DIM_EDGE = 64
    HIDDEN = 64              # conv_hiddens = [64]
    DEGREE = 9               # max_n * max_l radial basis functions
    DEGREE_PAD = 16
    DIN = 2 * DIM_NODE + DIM_EDGE

    root = jax.random.PRNGKey(0)
    keys = jax.random.split(root, 10)

    node_feat = jax.random.normal(keys[0], (N_ATOMS, DIM_NODE), dtype=jnp.float32)
    edge_feat = jax.random.normal(keys[1], (N_BONDS, DIM_EDGE), dtype=jnp.float32)
    rbf = jax.random.normal(keys[2], (N_BONDS, DEGREE), dtype=jnp.float32)
    state_feat = jax.random.normal(keys[3], (1, 16), dtype=jnp.float32)
    src = jax.random.randint(keys[4], (N_BONDS,), 0, N_ATOMS, dtype=jnp.int32)
    dst = jax.random.randint(keys[5], (N_BONDS,), 0, N_ATOMS, dtype=jnp.int32)

    params = {
        "edge_mlp": make_gated_mlp_params(keys[6], DIN, HIDDEN, DIM_EDGE),
        "node_mlp": make_gated_mlp_params(keys[7], DIN, HIDDEN, DIM_NODE),
        "w_rbf_e": (0.1 * jax.random.normal(keys[8], (DEGREE, DIM_EDGE))).astype(jnp.float32),
        "w_rbf_n": (0.1 * jax.random.normal(keys[9], (DEGREE, DIM_NODE))).astype(jnp.float32),
    }
    packed = pack_conv_params(params, DIM_NODE, DIM_EDGE, DEGREE, DEGREE_PAD)

    # f32 reference (matches the PyTorch module).
    e_ref, v_ref = m3gnet_conv_ref(node_feat, edge_feat, rbf, src, dst, params, N_ATOMS)

    # Run 1: default tile (1024 -> single grid step here).
    e_out, v_out, s_out = m3gnet_block_forward(
        edge_feat, node_feat, state_feat, rbf, src, dst, packed,
        num_nodes=N_ATOMS)
    jax.block_until_ready((e_out, v_out, s_out))

    assert e_out.shape == (N_BONDS, DIM_EDGE)
    assert v_out.shape == (N_ATOMS, DIM_NODE)
    assert s_out.shape == state_feat.shape
    # bf16 matmul operands -> relaxed tolerance vs the f32 reference.
    assert jnp.allclose(e_out, e_ref, rtol=2e-2, atol=2e-2)
    assert jnp.allclose(v_out, v_ref, rtol=2e-2, atol=2e-2)

    # Run 2: small tile -> multiple grid steps + padding path.
    e_out2, v_out2, _ = m3gnet_block_forward(
        edge_feat, node_feat, state_feat, rbf, src, dst, packed,
        num_nodes=N_ATOMS, tile_e=256)
    jax.block_until_ready((e_out2, v_out2))
    assert jnp.allclose(e_out2, e_ref, rtol=2e-2, atol=2e-2)
    assert jnp.allclose(v_out2, v_ref, rtol=2e-2, atol=2e-2)

    print("KERNEL_OK")
</pallas_src>

<mosaic_0001>
module attributes {stable_mosaic.version = 11 : i64} {
  func.func @_m3gnet_conv_tile_kernel(%arg0: i32, %arg1: memref<1024x128xbf16, #tpu.memory_space<vmem>>, %arg2: memref<1024x64xbf16, #tpu.memory_space<vmem>>, %arg3: memref<1024x16xbf16, #tpu.memory_space<vmem>>, %arg4: memref<128x256xbf16, #tpu.memory_space<vmem>>, %arg5: memref<64x128xbf16, #tpu.memory_space<vmem>>, %arg6: memref<64x128xbf16, #tpu.memory_space<vmem>>, %arg7: memref<1x256xf32, #tpu.memory_space<vmem>>, %arg8: memref<128x128xbf16, #tpu.memory_space<vmem>>, %arg9: memref<1x128xf32, #tpu.memory_space<vmem>>, %arg10: memref<128x128xbf16, #tpu.memory_space<vmem>>, %arg11: memref<1x128xf32, #tpu.memory_space<vmem>>, %arg12: memref<16x128xbf16, #tpu.memory_space<vmem>>, %arg13: memref<1024x128xf32, #tpu.memory_space<vmem>>) attributes {dimension_semantics = [#tpu.dimension_semantics<parallel>], iteration_bounds = array<i64: 1>, scalar_prefetch = 0 : i64, scratch_operands = 0 : i64, tpu.core_type = #tpu.core_type<tc>, window_params = [{transform_indices = @transform_0, window_bounds = array<i64: 1024, 128>}, {transform_indices = @transform_1, window_bounds = array<i64: 1024, 64>}, {transform_indices = @transform_2, window_bounds = array<i64: 1024, 16>}, {pipeline_mode = #tpu.pipeline_mode<synchronous>, transform_indices = @transform_3, window_bounds = array<i64: 128, 256>}, {pipeline_mode = #tpu.pipeline_mode<synchronous>, transform_indices = @transform_4, window_bounds = array<i64: 64, 128>}, {pipeline_mode = #tpu.pipeline_mode<synchronous>, transform_indices = @transform_5, window_bounds = array<i64: 64, 128>}, {pipeline_mode = #tpu.pipeline_mode<synchronous>, transform_indices = @transform_6, window_bounds = array<i64: 1, 256>}, {pipeline_mode = #tpu.pipeline_mode<synchronous>, transform_indices = @transform_7, window_bounds = array<i64: 128, 128>}, {pipeline_mode = #tpu.pipeline_mode<synchronous>, transform_indices = @transform_8, window_bounds = array<i64: 1, 128>}, {pipeline_mode = #tpu.pipeline_mode<synchronous>, transform_indices = @transform_9, window_bounds = array<i64: 128, 128>}, {pipeline_mode = #tpu.pipeline_mode<synchronous>, transform_indices = @transform_10, window_bounds = array<i64: 1, 128>}, {pipeline_mode = #tpu.pipeline_mode<synchronous>, transform_indices = @transform_11, window_bounds = array<i64: 16, 128>}, {transform_indices = @transform_12, window_bounds = array<i64: 1024, 128>}]} {
    %c0 = arith.constant 0 : index
    %c0_0 = arith.constant 0 : index
    %0 = vector.load %arg2[%c0, %c0_0] : memref<1024x64xbf16, #tpu.memory_space<vmem>>, vector<1024x64xbf16>
    %1 = arith.extf %0 : vector<1024x64xbf16> to vector<1024x64xf32>
    %c0_1 = arith.constant 0 : index
    %c0_2 = arith.constant 0 : index
    %2 = vector.load %arg1[%c0_1, %c0_2] : memref<1024x128xbf16, #tpu.memory_space<vmem>>, vector<1024x128xbf16>
    %c0_3 = arith.constant 0 : index
    %c0_4 = arith.constant 0 : index
    %3 = vector.load %arg4[%c0_3, %c0_4] : memref<128x256xbf16, #tpu.memory_space<vmem>>, vector<128x256xbf16>
    %cst = arith.constant dense<0.000000e+00> : vector<1024x256xf32>
    %4 = tpu.matmul %2, %3, %cst {dimension_numbers = #tpu.dot_dimension_numbers<[1], [0], [0], [1], [0, 0, 1, 1], [], []>} : vector<1024x128xbf16>, vector<128x256xbf16>, vector<1024x256xf32> -> vector<1024x256xf32>
    %c0_5 = arith.constant 0 : index
    %c0_6 = arith.constant 0 : index
    %5 = vector.load %arg7[%c0_5, %c0_6] : memref<1x256xf32, #tpu.memory_space<vmem>>, vector<1x256xf32>
    %6 = vector.broadcast %5 : vector<1x256xf32> to vector<1024x256xf32>
    %7 = arith.addf %4, %6 : vector<1024x256xf32>
    %c0_7 = arith.constant 0 : index
    %c0_8 = arith.constant 0 : index
    %8 = vector.load %arg3[%c0_7, %c0_8] : memref<1024x16xbf16, #tpu.memory_space<vmem>>, vector<1024x16xbf16>
    %c0_9 = arith.constant 0 : index
    %c0_10 = arith.constant 0 : index
    %9 = vector.load %arg12[%c0_9, %c0_10] : memref<16x128xbf16, #tpu.memory_space<vmem>>, vector<16x128xbf16>
    %cst_11 = arith.constant dense<0.000000e+00> : vector<1024x128xf32>
    %10 = tpu.matmul %8, %9, %cst_11 {dimension_numbers = #tpu.dot_dimension_numbers<[1], [0], [0], [1], [0, 0, 1, 1], [], []>} : vector<1024x16xbf16>, vector<16x128xbf16>, vector<1024x128xf32> -> vector<1024x128xf32>
    %11 = vector.extract_strided_slice %7 {offsets = [0, 0], sizes = [1024, 128], strides = [1, 1]} : vector<1024x256xf32> to vector<1024x128xf32>
    %c0_12 = arith.constant 0 : index
    %c0_13 = arith.constant 0 : index
    %12 = vector.load %arg5[%c0_12, %c0_13] : memref<64x128xbf16, #tpu.memory_space<vmem>>, vector<64x128xbf16>
    %cst_14 = arith.constant dense<0.000000e+00> : vector<1024x128xf32>
    %13 = tpu.matmul %0, %12, %cst_14 {dimension_numbers = #tpu.dot_dimension_numbers<[1], [0], [0], [1], [0, 0, 1, 1], [], []>} : vector<1024x64xbf16>, vector<64x128xbf16>, vector<1024x128xf32> -> vector<1024x128xf32>
    %14 = arith.addf %11, %13 : vector<1024x128xf32>
    %15 = arith.negf %14 : vector<1024x128xf32>
    %16 = math.exp %15 : vector<1024x128xf32>
    %cst_15 = arith.constant 1.000000e+00 : f32
    %17 = vector.broadcast %cst_15 : f32 to vector<1024x128xf32>
    %18 = arith.addf %17, %16 : vector<1024x128xf32>
    %19 = arith.divf %17, %18 : vector<1024x128xf32>
    %20 = arith.mulf %14, %19 : vector<1024x128xf32>
    %21 = arith.truncf %20 : vector<1024x128xf32> to vector<1024x128xbf16>
    %c0_16 = arith.constant 0 : index
    %c0_17 = arith.constant 0 : index
    %22 = vector.load %arg8[%c0_16, %c0_17] : memref<128x128xbf16, #tpu.memory_space<vmem>>, vector<128x128xbf16>
    %cst_18 = arith.constant dense<0.000000e+00> : vector<1024x128xf32>
    %23 = tpu.matmul %21, %22, %cst_18 {dimension_numbers = #tpu.dot_dimension_numbers<[1], [0], [0], [1], [0, 0, 1, 1], [], []>} : vector<1024x128xbf16>, vector<128x128xbf16>, vector<1024x128xf32> -> vector<1024x128xf32>
    %c0_19 = arith.constant 0 : index
    %c0_20 = arith.constant 0 : index
    %24 = vector.load %arg9[%c0_19, %c0_20] : memref<1x128xf32, #tpu.memory_space<vmem>>, vector<1x128xf32>
    %25 = vector.broadcast %24 : vector<1x128xf32> to vector<1024x128xf32>
    %26 = arith.addf %23, %25 : vector<1024x128xf32>
    %27 = arith.negf %26 : vector<1024x128xf32>
    %28 = math.exp %27 : vector<1024x128xf32>
    %cst_21 = arith.constant 1.000000e+00 : f32
    %29 = vector.broadcast %cst_21 : f32 to vector<1024x128xf32>
    %30 = arith.addf %29, %28 : vector<1024x128xf32>
    %31 = arith.divf %29, %30 : vector<1024x128xf32>
    %32 = vector.extract_strided_slice %26 {offsets = [0, 0], sizes = [1024, 64], strides = [1, 1]} : vector<1024x128xf32> to vector<1024x64xf32>
    %33 = vector.extract_strided_slice %31 {offsets = [0, 0], sizes = [1024, 64], strides = [1, 1]} : vector<1024x128xf32> to vector<1024x64xf32>
    %34 = arith.mulf %32, %33 : vector<1024x64xf32>
    %35 = vector.extract_strided_slice %31 {offsets = [0, 64], sizes = [1024, 64], strides = [1, 1]} : vector<1024x128xf32> to vector<1024x64xf32>
    %36 = arith.mulf %34, %35 : vector<1024x64xf32>
    %37 = vector.extract_strided_slice %10 {offsets = [0, 0], sizes = [1024, 64], strides = [1, 1]} : vector<1024x128xf32> to vector<1024x64xf32>
    %38 = arith.mulf %36, %37 : vector<1024x64xf32>
    %39 = arith.addf %1, %38 : vector<1024x64xf32>
    %40 = vector.extract_strided_slice %7 {offsets = [0, 128], sizes = [1024, 128], strides = [1, 1]} : vector<1024x256xf32> to vector<1024x128xf32>
    %41 = arith.truncf %39 : vector<1024x64xf32> to vector<1024x64xbf16>
    %c0_22 = arith.constant 0 : index
    %c0_23 = arith.constant 0 : index
    %42 = vector.load %arg6[%c0_22, %c0_23] : memref<64x128xbf16, #tpu.memory_space<vmem>>, vector<64x128xbf16>
    %cst_24 = arith.constant dense<0.000000e+00> : vector<1024x128xf32>
    %43 = tpu.matmul %41, %42, %cst_24 {dimension_numbers = #tpu.dot_dimension_numbers<[1], [0], [0], [1], [0, 0, 1, 1], [], []>} : vector<1024x64xbf16>, vector<64x128xbf16>, vector<1024x128xf32> -> vector<1024x128xf32>
    %44 = arith.addf %40, %43 : vector<1024x128xf32>
    %45 = arith.negf %44 : vector<1024x128xf32>
    %46 = math.exp %45 : vector<1024x128xf32>
    %cst_25 = arith.constant 1.000000e+00 : f32
    %47 = vector.broadcast %cst_25 : f32 to vector<1024x128xf32>
    %48 = arith.addf %47, %46 : vector<1024x128xf32>
    %49 = arith.divf %47, %48 : vector<1024x128xf32>
    %50 = arith.mulf %44, %49 : vector<1024x128xf32>
    %51 = arith.truncf %50 : vector<1024x128xf32> to vector<1024x128xbf16>
    %c0_26 = arith.constant 0 : index
    %c0_27 = arith.constant 0 : index
    %52 = vector.load %arg10[%c0_26, %c0_27] : memref<128x128xbf16, #tpu.memory_space<vmem>>, vector<128x128xbf16>
    %cst_28 = arith.constant dense<0.000000e+00> : vector<1024x128xf32>
    %53 = tpu.matmul %51, %52, %cst_28 {dimension_numbers = #tpu.dot_dimension_numbers<[1], [0], [0], [1], [0, 0, 1, 1], [], []>} : vector<1024x128xbf16>, vector<128x128xbf16>, vector<1024x128xf32> -> vector<1024x128xf32>
    %c0_29 = arith.constant 0 : index
    %c0_30 = arith.constant 0 : index
    %54 = vector.load %arg11[%c0_29, %c0_30] : memref<1x128xf32, #tpu.memory_space<vmem>>, vector<1x128xf32>
    %55 = vector.broadcast %54 : vector<1x128xf32> to vector<1024x128xf32>
    %56 = arith.addf %53, %55 : vector<1024x128xf32>
    %57 = arith.negf %56 : vector<1024x128xf32>
    %58 = math.exp %57 : vector<1024x128xf32>
    %cst_31 = arith.constant 1.000000e+00 : f32
    %59 = vector.broadcast %cst_31 : f32 to vector<1024x128xf32>
    %60 = arith.addf %59, %58 : vector<1024x128xf32>
    %61 = arith.divf %59, %60 : vector<1024x128xf32>
    %62 = vector.extract_strided_slice %56 {offsets = [0, 0], sizes = [1024, 64], strides = [1, 1]} : vector<1024x128xf32> to vector<1024x64xf32>
    %63 = vector.extract_strided_slice %61 {offsets = [0, 0], sizes = [1024, 64], strides = [1, 1]} : vector<1024x128xf32> to vector<1024x64xf32>
    %64 = arith.mulf %62, %63 : vector<1024x64xf32>
    %65 = vector.extract_strided_slice %61 {offsets = [0, 64], sizes = [1024, 64], strides = [1, 1]} : vector<1024x128xf32> to vector<1024x64xf32>
    %66 = arith.mulf %64, %65 : vector<1024x64xf32>
    %67 = vector.extract_strided_slice %10 {offsets = [0, 64], sizes = [1024, 64], strides = [1, 1]} : vector<1024x128xf32> to vector<1024x64xf32>
    %68 = arith.mulf %66, %67 : vector<1024x64xf32>
    %69 = tpu.concatenate %38, %68 in 1 : vector<1024x64xf32>, vector<1024x64xf32> -> vector<1024x128xf32>
    %c0_32 = arith.constant 0 : index
    %c0_33 = arith.constant 0 : index
    %70 = vector.load %arg13[%c0_32, %c0_33] : memref<1024x128xf32, #tpu.memory_space<vmem>>, vector<1024x128xf32>
    tpu.vector_store %arg13[%c0_32, %c0_33], %69 {strides = array<i32>} : memref<1024x128xf32, #tpu.memory_space<vmem>>, vector<1024x128xf32>,
    return
  }
  func.func @transform_0(%arg0: i32) -> (i32, i32) {
    %c0_i32 = arith.constant 0 : i32
    %c0_i32_0 = arith.constant 0 : i32
    return %arg0, %c0_i32 : i32, i32
  }
  func.func @transform_1(%arg0: i32) -> (i32, i32) {
    %c0_i32 = arith.constant 0 : i32
    %c0_i32_0 = arith.constant 0 : i32
    return %arg0, %c0_i32 : i32, i32
  }
  func.func @transform_2(%arg0: i32) -> (i32, i32) {
    %c0_i32 = arith.constant 0 : i32
    %c0_i32_0 = arith.constant 0 : i32
    return %arg0, %c0_i32 : i32, i32
  }
  func.func @transform_3(%arg0: i32) -> (i32, i32) {
    %c0_i32 = arith.constant 0 : i32
    %c0_i32_0 = arith.constant 0 : i32
    %c0_i32_1 = arith.constant 0 : i32
    return %c0_i32, %c0_i32_0 : i32, i32
  }
  func.func @transform_4(%arg0: i32) -> (i32, i32) {
    %c0_i32 = arith.constant 0 : i32
    %c0_i32_0 = arith.constant 0 : i32
    %c0_i32_1 = arith.constant 0 : i32
    return %c0_i32, %c0_i32_0 : i32, i32
  }
  func.func @transform_5(%arg0: i32) -> (i32, i32) {
    %c0_i32 = arith.constant 0 : i32
    %c0_i32_0 = arith.constant 0 : i32
    %c0_i32_1 = arith.constant 0 : i32
    return %c0_i32, %c0_i32_0 : i32, i32
  }
  func.func @transform_6(%arg0: i32) -> (i32, i32) {
    %c0_i32 = arith.constant 0 : i32
    %c0_i32_0 = arith.constant 0 : i32
    %c0_i32_1 = arith.constant 0 : i32
    return %c0_i32, %c0_i32_0 : i32, i32
  }
  func.func @transform_7(%arg0: i32) -> (i32, i32) {
    %c0_i32 = arith.constant 0 : i32
    %c0_i32_0 = arith.constant 0 : i32
    %c0_i32_1 = arith.constant 0 : i32
    return %c0_i32, %c0_i32_0 : i32, i32
  }
  func.func @transform_8(%arg0: i32) -> (i32, i32) {
    %c0_i32 = arith.constant 0 : i32
    %c0_i32_0 = arith.constant 0 : i32
    %c0_i32_1 = arith.constant 0 : i32
    return %c0_i32, %c0_i32_0 : i32, i32
  }
  func.func @transform_9(%arg0: i32) -> (i32, i32) {
    %c0_i32 = arith.constant 0 : i32
    %c0_i32_0 = arith.constant 0 : i32
    %c0_i32_1 = arith.constant 0 : i32
    return %c0_i32, %c0_i32_0 : i32, i32
  }
  func.func @transform_10(%arg0: i32) -> (i32, i32) {
    %c0_i32 = arith.constant 0 : i32
    %c0_i32_0 = arith.constant 0 : i32
    %c0_i32_1 = arith.constant 0 : i32
    return %c0_i32, %c0_i32_0 : i32, i32
  }
  func.func @transform_11(%arg0: i32) -> (i32, i32) {
    %c0_i32 = arith.constant 0 : i32
    %c0_i32_0 = arith.constant 0 : i32
    %c0_i32_1 = arith.constant 0 : i32
    return %c0_i32, %c0_i32_0 : i32, i32
  }
  func.func @transform_12(%arg0: i32) -> (i32, i32) {
    %c0_i32 = arith.constant 0 : i32
    %c0_i32_0 = arith.constant 0 : i32
    return %arg0, %c0_i32 : i32, i32
  }
}

</mosaic_0001>

<llo_original>
// kernel: m3gnet_block_forward.1
$region0: #{m3gnet_block_forward.1}
  #allocation0 [shape = 'u32[]', space=smem, size = 0x4, offset = 0x4, fixed_abs, tag = 'smem constant byte address 0x4 - core index']
  #allocation1 [shape = 'u32[144,128]{1,0:T(1,128)}', space=vmem, size = 0x12000, scoped, tag = 'internal scratch']
  %s0 = inlined_call_operand.hbm [shape: bf16[1024,128], index: 0, kind: input, shape index: {}]
  %s1 = inlined_call_operand.hbm [shape: bf16[1024,64], index: 1, kind: input, shape index: {}]
  %s2 = inlined_call_operand.hbm [shape: bf16[1024,16], index: 2, kind: input, shape index: {}]
  %s3 = inlined_call_operand.hbm [shape: bf16[128,256], index: 3, kind: input, shape index: {}]
  %s4 = inlined_call_operand.hbm [shape: bf16[64,128], index: 4, kind: input, shape index: {}]
  %s5 = inlined_call_operand.hbm [shape: bf16[64,128], index: 5, kind: input, shape index: {}]
  %s6 = inlined_call_operand.hbm [shape: f32[1,256], index: 6, kind: input, shape index: {}]
  %s7 = inlined_call_operand.hbm [shape: bf16[128,128], index: 7, kind: input, shape index: {}]
  %s8 = inlined_call_operand.hbm [shape: f32[1,128], index: 8, kind: input, shape index: {}]
  %s9 = inlined_call_operand.hbm [shape: bf16[128,128], index: 9, kind: input, shape index: {}]
  %s10 = inlined_call_operand.hbm [shape: f32[1,128], index: 10, kind: input, shape index: {}]
  %s11 = inlined_call_operand.hbm [shape: bf16[16,128], index: 11, kind: input, shape index: {}]
  %s12 = inlined_call_operand.hbm [shape: f32[1024,128], index: 12, kind: output, shape index: {}]
  %s13 = sld [smem:[#allocation0]]
  $region106: #{m3gnet_block_forward.1} parent=0
    _
  %s15 = ssub.s32 1, %s13
  %s16 = scalar_select 0, %s15, %s13
  $region1: #{m3gnet_block_forward.1} parent=0
    #allocation2 [shape = 'u8[262144]{0}', space=vmem, size = 0x40000, scoped, tag = 'input window, operand 0, single buffered']
    #allocation3 [shape = 's32[1]{0}', space=sflag, size = 0x4, scoped, tag = 'scoped memory for m3gnet_block_forward.1']
    #allocation4 [shape = 's32[1]{0}', space=sflag, size = 0x4, scoped, tag = 'scoped memory for m3gnet_block_forward.1']
    #allocation5 [shape = 'u8[262144]{0}', space=vmem, size = 0x40000, scoped, tag = 'input window, operand 1, single buffered']
    #allocation6 [shape = 's32[1]{0}', space=sflag, size = 0x4, scoped, tag = 'scoped memory for m3gnet_block_forward.1']
    #allocation7 [shape = 'u8[262144]{0}', space=vmem, size = 0x40000, scoped, tag = 'input window, operand 2, single buffered']
    #allocation8 [shape = 'u8[65536]{0}', space=vmem, size = 0x10000, scoped, tag = 'input window, operand 3, single buffered']
    #allocation9 [shape = 's32[1]{0}', space=sflag, size = 0x4, scoped, tag = 'scoped memory for m3gnet_block_forward.1']
    #allocation10 [shape = 'u8[16384]{0}', space=vmem, size = 0x4000, scoped, tag = 'input window, operand 4, single buffered']
    #allocation11 [shape = 'u8[16384]{0}', space=vmem, size = 0x4000, scoped, tag = 'input window, operand 5, single buffered']
    #allocation12 [shape = 's32[1]{0}', space=sflag, size = 0x4, scoped, tag = 'scoped memory for m3gnet_block_forward.1']
    #allocation13 [shape = 'u8[1024]{0}', space=vmem, size = 0x400, scoped, tag = 'input window, operand 6, single buffered']
    #allocation14 [shape = 'u8[32768]{0}', space=vmem, size = 0x8000, scoped, tag = 'input window, operand 7, single buffered']
    #allocation15 [shape = 's32[1]{0}', space=sflag, size = 0x4, scoped, tag = 'scoped memory for m3gnet_block_forward.1']
    #allocation16 [shape = 'u8[512]{0}', space=vmem, size = 0x400, scoped, tag = 'input window, operand 8, single buffered']
    #allocation17 [shape = 'u8[32768]{0}', space=vmem, size = 0x8000, scoped, tag = 'input window, operand 9, single buffered']
    #allocation18 [shape = 's32[1]{0}', space=sflag, size = 0x4, scoped, tag = 'scoped memory for m3gnet_block_forward.1']
    #allocation19 [shape = 'u8[512]{0}', space=vmem, size = 0x400, scoped, tag = 'input window, operand 10, single buffered']
    #allocation20 [shape = 'u8[4096]{0}', space=vmem, size = 0x1000, scoped, tag = 'input window, operand 11, single buffered']
    #allocation21 [shape = 's32[1]{0}', space=sflag, size = 0x4, scoped, tag = 'scoped memory for m3gnet_block_forward.1']
    #allocation22 [shape = 'u8[524288]{0}', space=vmem, size = 0x80000, scoped, tag = 'output window, operand 0, single buffered']
    %17 = vsyncpa [#allocation3], 0
    %18 = vsyncpa [#allocation6], 0
    %19 = vsyncpa [#allocation9], 0
    %20 = vsyncpa [#allocation12], 0
    %21 = vsyncpa [#allocation15], 0
    %22 = vsyncpa [#allocation18], 0
    %23 = vsyncpa [#allocation21], 0
    %24 = vsyncpa [#allocation4], 0
    // Predicated region
    $region2: #{m3gnet_block_forward.1} parent=1 // pred_check
      _
    $region3: #{m3gnet_block_forward.1} parent=1 // pred_check_branch
      %26 = sbr.rel (0) target = $region5
    $region4: #{m3gnet_block_forward.1} parent=1 // pred_region
      %s28 = ssub.s32 8192, 8192
      %29 = vsyncadd [#allocation3], %s28
      %s30 = sshll.u32 [#allocation2], 4
      %s31 = int_to_ptr.vmem [resolvable:$true] %s30
      %36 = dma.hbm_to_vmem [thread:$0]  %s0, 8192, %s31, [#allocation3], 64, 64, 4
    $region5: #{m3gnet_block_forward.1} parent=1 // pred_fallthru
      _
    // Predicated region
    $region6: #{m3gnet_block_forward.1} parent=1 // pred_check
      _
    $region7: #{m3gnet_block_forward.1} parent=1 // pred_check_branch
      %38 = sbr.rel (0) target = $region9
    $region8: #{m3gnet_block_forward.1} parent=1 // pred_region
      %s40 = ssub.s32 8192, 8192
      %41 = vsyncadd [#allocation6], %s40
      %s42 = sshll.u32 [#allocation5], 4
      %s43 = int_to_ptr.vmem [resolvable:$true] %s42
      %48 = dma.hbm_to_vmem [thread:$0]  %s1, 8192, %s43, [#allocation6], 64, 64, 4
    $region9: #{m3gnet_block_forward.1} parent=1 // pred_fallthru
      _
    // Predicated region
    $region10: #{m3gnet_block_forward.1} parent=1 // pred_check
      _
    $region11: #{m3gnet_block_forward.1} parent=1 // pred_check_branch
      %50 = sbr.rel (0) target = $region13
    $region12: #{m3gnet_block_forward.1} parent=1 // pred_region
      %s52 = ssub.s32 8192, 8192
      %53 = vsyncadd [#allocation6], %s52
      %s54 = sshll.u32 [#allocation7], 4
      %s55 = int_to_ptr.vmem [resolvable:$true] %s54
      %60 = dma.hbm_to_vmem [thread:$0]  %s2, 8192, %s55, [#allocation6], 64, 64, 4
    $region13: #{m3gnet_block_forward.1} parent=1 // pred_fallthru
      _
    // Predicated region
    $region14: #{m3gnet_block_forward.1} parent=1 // pred_check
      _
    $region15: #{m3gnet_block_forward.1} parent=1 // pred_check_branch
      %62 = sbr.rel (0) target = $region17
    $region16: #{m3gnet_block_forward.1} parent=1 // pred_region
      %s64 = ssub.s32 2048, 2048
      %65 = vsyncadd [#allocation9], %s64
      %s66 = sshll.u32 [#allocation8], 4
      %s67 = int_to_ptr.vmem [resolvable:$true] %s66
      %72 = dma.hbm_to_vmem [thread:$0]  %s3, 2048, %s67, [#allocation9], 128, 128, 8
    $region17: #{m3gnet_block_forward.1} parent=1 // pred_fallthru
      _
    // Predicated region
    $region18: #{m3gnet_block_forward.1} parent=1 // pred_check
      _
    $region19: #{m3gnet_block_forward.1} parent=1 // pred_check_branch
      %74 = sbr.rel (0) target = $region21
    $region20: #{m3gnet_block_forward.1} parent=1 // pred_region
      %s76 = ssub.s32 512, 512
      %77 = vsyncadd [#allocation9], %s76
      %s78 = sshll.u32 [#allocation10], 4
      %s79 = int_to_ptr.vmem [resolvable:$true] %s78
      %84 = dma.hbm_to_vmem [thread:$0]  %s4, 512, %s79, [#allocation9], 64, 64, 4
    $region21: #{m3gnet_block_forward.1} parent=1 // pred_fallthru
      _
    // Predicated region
    $region22: #{m3gnet_block_forward.1} parent=1 // pred_check
      _
    $region23: #{m3gnet_block_forward.1} parent=1 // pred_check_branch
      %86 = sbr.rel (0) target = $region25
    $region24: #{m3gnet_block_forward.1} parent=1 // pred_region
      %s88 = ssub.s32 512, 512
      %89 = vsyncadd [#allocation12], %s88
      %s90 = sshll.u32 [#allocation11], 4
      %s91 = int_to_ptr.vmem [resolvable:$true] %s90
      %96 = dma.hbm_to_vmem [thread:$0]  %s5, 512, %s91, [#allocation12], 64, 64, 4
    $region25: #{m3gnet_block_forward.1} parent=1 // pred_fallthru
      _
    // Predicated region
    $region26: #{m3gnet_block_forward.1} parent=1 // pred_check
      _
    $region27: #{m3gnet_block_forward.1} parent=1 // pred_check_branch
      %98 = sbr.rel (0) target = $region29
    $region28: #{m3gnet_block_forward.1} parent=1 // pred_region
      %s100 = ssub.s32 32, 32
      %101 = vsyncadd [#allocation12], %s100
      %s103 = sshll.u32 [#allocation13], 4
      %s104 = int_to_ptr.vmem [resolvable:$true] %s103
      %106 = dma.hbm_to_vmem [thread:$0]  %s6, 32, %s104, [#allocation12]
    $region29: #{m3gnet_block_forward.1} parent=1 // pred_fallthru
      _
    // Predicated region
    $region30: #{m3gnet_block_forward.1} parent=1 // pred_check
      _
    $region31: #{m3gnet_block_forward.1} parent=1 // pred_check_branch
      %108 = sbr.rel (0) target = $region33
    $region32: #{m3gnet_block_forward.1} parent=1 // pred_region
      %s110 = ssub.s32 1024, 1024
      %111 = vsyncadd [#allocation15], %s110
      %s112 = sshll.u32 [#allocation14], 4
      %s113 = int_to_ptr.vmem [resolvable:$true] %s112
      %118 = dma.hbm_to_vmem [thread:$0]  %s7, 1024, %s113, [#allocation15], 64, 64, 4
    $region33: #{m3gnet_block_forward.1} parent=1 // pred_fallthru
      _
    // Predicated region
    $region34: #{m3gnet_block_forward.1} parent=1 // pred_check
      _
    $region35: #{m3gnet_block_forward.1} parent=1 // pred_check_branch
      %120 = sbr.rel (0) target = $region37
    $region36: #{m3gnet_block_forward.1} parent=1 // pred_region
      %s122 = ssub.s32 16, 16
      %123 = vsyncadd [#allocation15], %s122
      %s125 = sshll.u32 [#allocation16], 4
      %s126 = int_to_ptr.vmem [resolvable:$true] %s125
      %128 = dma.hbm_to_vmem [thread:$0]  %s8, 16, %s126, [#allocation15]
    $region37: #{m3gnet_block_forward.1} parent=1 // pred_fallthru
      _
    // Predicated region
    $region38: #{m3gnet_block_forward.1} parent=1 // pred_check
      _
    $region39: #{m3gnet_block_forward.1} parent=1 // pred_check_branch
      %130 = sbr.rel (0) target = $region41
    $region40: #{m3gnet_block_forward.1} parent=1 // pred_region
      %s132 = ssub.s32 1024, 1024
      %133 = vsyncadd [#allocation18], %s132
      %s134 = sshll.u32 [#allocation17], 4
      %s135 = int_to_ptr.vmem [resolvable:$true] %s134
      %140 = dma.hbm_to_vmem [thread:$0]  %s9, 1024, %s135, [#allocation18], 64, 64, 4
    $region41: #{m3gnet_block_forward.1} parent=1 // pred_fallthru
      _
    // Predicated region
    $region42: #{m3gnet_block_forward.1} parent=1 // pred_check
      _
    $region43: #{m3gnet_block_forward.1} parent=1 // pred_check_branch
      %142 = sbr.rel (0) target = $region45
    $region44: #{m3gnet_block_forward.1} parent=1 // pred_region
      %s144 = ssub.s32 16, 16
      %145 = vsyncadd [#allocation18], %s144
      %s147 = sshll.u32 [#allocation19], 4
      %s148 = int_to_ptr.vmem [resolvable:$true] %s147
      %150 = dma.hbm_to_vmem [thread:$0]  %s10, 16, %s148, [#allocation18]
    $region45: #{m3gnet_block_forward.1} parent=1 // pred_fallthru
      _
    // Predicated region
    $region46: #{m3gnet_block_forward.1} parent=1 // pred_check
      _
    $region47: #{m3gnet_block_forward.1} parent=1 // pred_check_branch
      %152 = sbr.rel (0) target = $region49
    $region48: #{m3gnet_block_forward.1} parent=1 // pred_region
      %s154 = ssub.s32 128, 128
      %155 = vsyncadd [#allocation21], %s154
      %s156 = sshll.u32 [#allocation20], 4
      %s157 = int_to_ptr.vmem [resolvable:$true] %s156
      %162 = dma.hbm_to_vmem [thread:$0]  %s11, 128, %s157, [#allocation21], 64, 64, 4
    $region49: #{m3gnet_block_forward.1} parent=1 // pred_fallthru
      _
    // Predicated region
    $region50: #{m3gnet_block_forward.1} parent=1 // pred_check
      _
    $region51: #{m3gnet_block_forward.1} parent=1 // pred_check_branch
      %164 = sbr.rel (0) target = $region53
    $region52: #{m3gnet_block_forward.1} parent=1 // pred_region
      %165 = dma.done [#allocation3], 8192
    $region53: #{m3gnet_block_forward.1} parent=1 // pred_fallthru
      _
    // Predicated region
    $region54: #{m3gnet_block_forward.1} parent=1 // pred_check
      _
    $region55: #{m3gnet_block_forward.1} parent=1 // pred_check_branch
      %167 = sbr.rel (0) target = $region57
    $region56: #{m3gnet_block_forward.1} parent=1 // pred_region
      %168 = dma.done [#allocation6], 8192
    $region57: #{m3gnet_block_forward.1} parent=1 // pred_fallthru
      _
    // Predicated region
    $region58: #{m3gnet_block_forward.1} parent=1 // pred_check
      _
    $region59: #{m3gnet_block_forward.1} parent=1 // pred_check_branch
      %170 = sbr.rel (0) target = $region61
    $region60: #{m3gnet_block_forward.1} parent=1 // pred_region
      %171 = dma.done [#allocation6], 8192
    $region61: #{m3gnet_block_forward.1} parent=1 // pred_fallthru
      _
    // Predicated region
    $region62: #{m3gnet_block_forward.1} parent=1 // pred_check
      _
    $region63: #{m3gnet_block_forward.1} parent=1 // pred_check_branch
      %173 = sbr.rel (0) target = $region65
    $region64: #{m3gnet_block_forward.1} parent=1 // pred_region
      %174 = dma.done [#allocation9], 2048
    $region65: #{m3gnet_block_forward.1} parent=1 // pred_fallthru
      _
    // Predicated region
    $region66: #{m3gnet_block_forward.1} parent=1 // pred_check
      _
    $region67: #{m3gnet_block_forward.1} parent=1 // pred_check_branch
      %176 = sbr.rel (0) target = $region69
    $region68: #{m3gnet_block_forward.1} parent=1 // pred_region
      %177 = dma.done [#allocation9], 512
    $region69: #{m3gnet_block_forward.1} parent=1 // pred_fallthru
      _
    // Predicated region
    $region70: #{m3gnet_block_forward.1} parent=1 // pred_check
      _
    $region71: #{m3gnet_block_forward.1} parent=1 // pred_check_branch
      %179 = sbr.rel (0) target = $region73
    $region72: #{m3gnet_block_forward.1} parent=1 // pred_region
      %180 = dma.done [#allocation12], 512
    $region73: #{m3gnet_block_forward.1} parent=1 // pred_fallthru
      _
    // Predicated region
    $region74: #{m3gnet_block_forward.1} parent=1 // pred_check
      _
    $region75: #{m3gnet_block_forward.1} parent=1 // pred_check_branch
      %182 = sbr.rel (0) target = $region77
    $region76: #{m3gnet_block_forward.1} parent=1 // pred_region
      %183 = dma.done [#allocation12], 32
    $region77: #{m3gnet_block_forward.1} parent=1 // pred_fallthru
      _
    // Predicated region
    $region78: #{m3gnet_block_forward.1} parent=1 // pred_check
      _
    $region79: #{m3gnet_block_forward.1} parent=1 // pred_check_branch
      %185 = sbr.rel (0) target = $region81
    $region80: #{m3gnet_block_forward.1} parent=1 // pred_region
      %186 = dma.done [#allocation15], 1024
    $region81: #{m3gnet_block_forward.1} parent=1 // pred_fallthru
      _
    // Predicated region
    $region82: #{m3gnet_block_forward.1} parent=1 // pred_check
      _
    $region83: #{m3gnet_block_forward.1} parent=1 // pred_check_branch
      %188 = sbr.rel (0) target = $region85
    $region84: #{m3gnet_block_forward.1} parent=1 // pred_region
      %189 = dma.done [#allocation15], 16
    $region85: #{m3gnet_block_forward.1} parent=1 // pred_fallthru
      _
    // Predicated region
    $region86: #{m3gnet_block_forward.1} parent=1 // pred_check
      _
    $region87: #{m3gnet_block_forward.1} parent=1 // pred_check_branch
      %191 = sbr.rel (0) target = $region89
    $region88: #{m3gnet_block_forward.1} parent=1 // pred_region
      %192 = dma.done [#allocation18], 1024
    $region89: #{m3gnet_block_forward.1} parent=1 // pred_fallthru
      _
    // Predicated region
    $region90: #{m3gnet_block_forward.1} parent=1 // pred_check
      _
    $region91: #{m3gnet_block_forward.1} parent=1 // pred_check_branch
      %194 = sbr.rel (0) target = $region93
    $region92: #{m3gnet_block_forward.1} parent=1 // pred_region
      %195 = dma.done [#allocation18], 16
    $region93: #{m3gnet_block_forward.1} parent=1 // pred_fallthru
      _
    // Predicated region
    $region94: #{m3gnet_block_forward.1} parent=1 // pred_check
      _
    $region95: #{m3gnet_block_forward.1} parent=1 // pred_check_branch
      %197 = sbr.rel (0) target = $region97
    $region96: #{m3gnet_block_forward.1} parent=1 // pred_region
      %198 = dma.done [#allocation21], 128
    $region97: #{m3gnet_block_forward.1} parent=1 // pred_fallthru
      _
    %v200 = vld [vmem:[#allocation5] sm:$0xf]
    %v201 = vld [vmem:[#allocation5 + $0x4] sm:$0xf]
    %v202 = vld [vmem:[#allocation5 + $0x8] sm:$0xf]
    %v203 = vld [vmem:[#allocation5 + $0xc] sm:$0xf]
    %v204 = vld [vmem:[#allocation5 + $0x10] sm:$0xf]
    %v205 = vld [vmem:[#allocation5 + $0x14] sm:$0xf]
    %v206 = vld [vmem:[#allocation5 + $0x18] sm:$0xf]
    %v207 = vld [vmem:[#allocation5 + $0x1c] sm:$0xf]
    %v208 = vld [vmem:[#allocation5 + $0x20] sm:$0xf]
    %v209 = vld [vmem:[#allocation5 + $0x24] sm:$0xf]
    %v210 = vld [vmem:[#allocation5 + $0x28] sm:$0xf]
    %v211 = vld [vmem:[#allocation5 + $0x2c] sm:$0xf]
    %v212 = vld [vmem:[#allocation5 + $0x30] sm:$0xf]
    %v213 = vld [vmem:[#allocation5 + $0x34] sm:$0xf]
    %v214 = vld [vmem:[#allocation5 + $0x38] sm:$0xf]
    %v215 = vld [vmem:[#allocation5 + $0x3c] sm:$0xf]
    %v216 = vld [vmem:[#allocation5 + $0x40] sm:$0xf]
    %v217 = vld [vmem:[#allocation5 + $0x44] sm:$0xf]
    %v218 = vld [vmem:[#allocation5 + $0x48] sm:$0xf]
    %v219 = vld [vmem:[#allocation5 + $0x4c] sm:$0xf]
    %v220 = vld [vmem:[#allocation5 + $0x50] sm:$0xf]
    %v221 = vld [vmem:[#allocation5 + $0x54] sm:$0xf]
    %v222 = vld [vmem:[#allocation5 + $0x58] sm:$0xf]
    %v223 = vld [vmem:[#allocation5 + $0x5c] sm:$0xf]
    %v224 = vld [vmem:[#allocation5 + $0x60] sm:$0xf]
    %v225 = vld [vmem:[#allocation5 + $0x64] sm:$0xf]
    %v226 = vld [vmem:[#allocation5 + $0x68] sm:$0xf]
    %v227 = vld [vmem:[#allocation5 + $0x6c] sm:$0xf]
    %v228 = vld [vmem:[#allocation5 + $0x70] sm:$0xf]
    %v229 = vld [vmem:[#allocation5 + $0x74] sm:$0xf]
    %v230 = vld [vmem:[#allocation5 + $0x78] sm:$0xf]
    %v231 = vld [vmem:[#allocation5 + $0x7c] sm:$0xf]
    %v232 = vld [vmem:[#allocation5 + $0x80] sm:$0xf]
    %v233 = vld [vmem:[#allocation5 + $0x84] sm:$0xf]
    %v234 = vld [vmem:[#allocation5 + $0x88] sm:$0xf]
    %v235 = vld [vmem:[#allocation5 + $0x8c] sm:$0xf]
    %v236 = vld [vmem:[#allocation5 + $0x90] sm:$0xf]
    %v237 = vld [vmem:[#allocation5 + $0x94] sm:$0xf]
    %v238 = vld [vmem:[#allocation5 + $0x98] sm:$0xf]
    %v239 = vld [vmem:[#allocation5 + $0x9c] sm:$0xf]
    %v240 = vld [vmem:[#allocation5 + $0xa0] sm:$0xf]
    %v241 = vld [vmem:[#allocation5 + $0xa4] sm:$0xf]
    %v242 = vld [vmem:[#allocation5 + $0xa8] sm:$0xf]
    %v243 = vld [vmem:[#allocation5 + $0xac] sm:$0xf]
    %v244 = vld [vmem:[#allocation5 + $0xb0] sm:$0xf]
    %v245 = vld [vmem:[#allocation5 + $0xb4] sm:$0xf]
    %v246 = vld [vmem:[#allocation5 + $0xb8] sm:$0xf]
    %v247 = vld [vmem:[#allocation5 + $0xbc] sm:$0xf]
    %v248 = vld [vmem:[#allocation5 + $0xc0] sm:$0xf]
    %v249 = vld [vmem:[#allocation5 + $0xc4] sm:$0xf]
    %v250 = vld [vmem:[#allocation5 + $0xc8] sm:$0xf]
    %v251 = vld [vmem:[#allocation5 + $0xcc] sm:$0xf]
    %v252 = vld [vmem:[#allocation5 + $0xd0] sm:$0xf]
    %v253 = vld [vmem:[#allocation5 + $0xd4] sm:$0xf]
    %v254 = vld [vmem:[#allocation5 + $0xd8] sm:$0xf]
    %v255 = vld [vmem:[#allocation5 + $0xdc] sm:$0xf]
    %v256 = vld [vmem:[#allocation5 + $0xe0] sm:$0xf]
    %v257 = vld [vmem:[#allocation5 + $0xe4] sm:$0xf]
    %v258 = vld [vmem:[#allocation5 + $0xe8] sm:$0xf]
    %v259 = vld [vmem:[#allocation5 + $0xec] sm:$0xf]
    %v260 = vld [vmem:[#allocation5 + $0xf0] sm:$0xf]
    %v261 = vld [vmem:[#allocation5 + $0xf4] sm:$0xf]
    %v262 = vld [vmem:[#allocation5 + $0xf8] sm:$0xf]
    %v263 = vld [vmem:[#allocation5 + $0xfc] sm:$0xf]
    %v264 = vld [vmem:[#allocation5 + $0x100] sm:$0xf]
    %v265 = vld [vmem:[#allocation5 + $0x104] sm:$0xf]
    %v266 = vld [vmem:[#allocation5 + $0x108] sm:$0xf]
    %v267 = vld [vmem:[#allocation5 + $0x10c] sm:$0xf]
    %v268 = vld [vmem:[#allocation5 + $0x110] sm:$0xf]
    %v269 = vld [vmem:[#allocation5 + $0x114] sm:$0xf]
    %v270 = vld [vmem:[#allocation5 + $0x118] sm:$0xf]
    %v271 = vld [vmem:[#allocation5 + $0x11c] sm:$0xf]
    %v272 = vld [vmem:[#allocation5 + $0x120] sm:$0xf]
    %v273 = vld [vmem:[#allocation5 + $0x124] sm:$0xf]
    %v274 = vld [vmem:[#allocation5 + $0x128] sm:$0xf]
    %v275 = vld [vmem:[#allocation5 + $0x12c] sm:$0xf]
    %v276 = vld [vmem:[#allocation5 + $0x130] sm:$0xf]
    %v277 = vld [vmem:[#allocation5 + $0x134] sm:$0xf]
    %v278 = vld [vmem:[#allocation5 + $0x138] sm:$0xf]
    %v279 = vld [vmem:[#allocation5 + $0x13c] sm:$0xf]
    %v280 = vld [vmem:[#allocation5 + $0x140] sm:$0xf]
    %v281 = vld [vmem:[#allocation5 + $0x144] sm:$0xf]
    %v282 = vld [vmem:[#allocation5 + $0x148] sm:$0xf]
    %v283 = vld [vmem:[#allocation5 + $0x14c] sm:$0xf]
    %v284 = vld [vmem:[#allocation5 + $0x150] sm:$0xf]
    %v285 = vld [vmem:[#allocation5 + $0x154] sm:$0xf]
    %v286 = vld [vmem:[#allocation5 + $0x158] sm:$0xf]
    %v287 = vld [vmem:[#allocation5 + $0x15c] sm:$0xf]
    %v288 = vld [vmem:[#allocation5 + $0x160] sm:$0xf]
    %v289 = vld [vmem:[#allocation5 + $0x164] sm:$0xf]
    %v290 = vld [vmem:[#allocation5 + $0x168] sm:$0xf]
    %v291 = vld [vmem:[#allocation5 + $0x16c] sm:$0xf]
    %v292 = vld [vmem:[#allocation5 + $0x170] sm:$0xf]
    %v293 = vld [vmem:[#allocation5 + $0x174] sm:$0xf]
    %v294 = vld [vmem:[#allocation5 + $0x178] sm:$0xf]
    %v295 = vld [vmem:[#allocation5 + $0x17c] sm:$0xf]
    %v296 = vld [vmem:[#allocation5 + $0x180] sm:$0xf]
    %v297 = vld [vmem:[#allocation5 + $0x184] sm:$0xf]
    %v298 = vld [vmem:[#allocation5 + $0x188] sm:$0xf]
    %v299 = vld [vmem:[#allocation5 + $0x18c] sm:$0xf]
    %v300 = vld [vmem:[#allocation5 + $0x190] sm:$0xf]
    %v301 = vld [vmem:[#allocation5 + $0x194] sm:$0xf]
    %v302 = vld [vmem:[#allocation5 + $0x198] sm:$0xf]
    %v303 = vld [vmem:[#allocation5 + $0x19c] sm:$0xf]
    %v304 = vld [vmem:[#allocation5 + $0x1a0] sm:$0xf]
    %v305 = vld [vmem:[#allocation5 + $0x1a4] sm:$0xf]
    %v306 = vld [vmem:[#allocation5 + $0x1a8] sm:$0xf]
    %v307 = vld [vmem:[#allocation5 + $0x1ac] sm:$0xf]
    %v308 = vld [vmem:[#allocation5 + $0x1b0] sm:$0xf]
    %v309 = vld [vmem:[#allocation5 + $0x1b4] sm:$0xf]
    %v310 = vld [vmem:[#allocation5 + $0x1b8] sm:$0xf]
    %v311 = vld [vmem:[#allocation5 + $0x1bc] sm:$0xf]
    %v312 = vld [vmem:[#allocation5 + $0x1c0] sm:$0xf]
    %v313 = vld [vmem:[#allocation5 + $0x1c4] sm:$0xf]
    %v314 = vld [vmem:[#allocation5 + $0x1c8] sm:$0xf]
    %v315 = vld [vmem:[#allocation5 + $0x1cc] sm:$0xf]
    %v316 = vld [vmem:[#allocation5 + $0x1d0] sm:$0xf]
    %v317 = vld [vmem:[#allocation5 + $0x1d4] sm:$0xf]
    %v318 = vld [vmem:[#allocation5 + $0x1d8] sm:$0xf]
    %v319 = vld [vmem:[#allocation5 + $0x1dc] sm:$0xf]
    %v320 = vld [vmem:[#allocation5 + $0x1e0] sm:$0xf]
    %v321 = vld [vmem:[#allocation5 + $0x1e4] sm:$0xf]
    %v322 = vld [vmem:[#allocation5 + $0x1e8] sm:$0xf]
    %v323 = vld [vmem:[#allocation5 + $0x1ec] sm:$0xf]
    %v324 = vld [vmem:[#allocation5 + $0x1f0] sm:$0xf]
    %v325 = vld [vmem:[#allocation5 + $0x1f4] sm:$0xf]
    %v326 = vld [vmem:[#allocation5 + $0x1f8] sm:$0xf]
    %v327 = vld [vmem:[#allocation5 + $0x1fc] sm:$0xf]
    %v328 = vunpack.c.l.bf16 %v200
    %v329 = vunpack.c.l.bf16 %v201
    %v330 = vunpack.c.l.bf16 %v202
    %v331 = vunpack.c.l.bf16 %v203
    %v332 = vunpack.c.l.bf16 %v204
    %v333 = vunpack.c.l.bf16 %v205
    %v334 = vunpack.c.l.bf16 %v206
    %v335 = vunpack.c.l.bf16 %v207
    %v336 = vunpack.c.l.bf16 %v208
    %v337 = vunpack.c.l.bf16 %v209
    %v338 = vunpack.c.l.bf16 %v210
    %v339 = vunpack.c.l.bf16 %v211
    %v340 = vunpack.c.l.bf16 %v212
    %v341 = vunpack.c.l.bf16 %v213
    %v342 = vunpack.c.l.bf16 %v214
    %v343 = vunpack.c.l.bf16 %v215
    %v344 = vunpack.c.l.bf16 %v216
    %v345 = vunpack.c.l.bf16 %v217
    %v346 = vunpack.c.l.bf16 %v218
    %v347 = vunpack.c.l.bf16 %v219
    %v348 = vunpack.c.l.bf16 %v220
    %v349 = vunpack.c.l.bf16 %v221
    %v350 = vunpack.c.l.bf16 %v222
    %v351 = vunpack.c.l.bf16 %v223
    %v352 = vunpack.c.l.bf16 %v224
    %v353 = vunpack.c.l.bf16 %v225
    %v354 = vunpack.c.l.bf16 %v226
    %v355 = vunpack.c.l.bf16 %v227
    %v356 = vunpack.c.l.bf16 %v228
    %v357 = vunpack.c.l.bf16 %v229
    %v358 = vunpack.c.l.bf16 %v230
    %v359 = vunpack.c.l.bf16 %v231
    %v360 = vunpack.c.l.bf16 %v232
    %v361 = vunpack.c.l.bf16 %v233
    %v362 = vunpack.c.l.bf16 %v234
    %v363 = vunpack.c.l.bf16 %v235
    %v364 = vunpack.c.l.bf16 %v236
    %v365 = vunpack.c.l.bf16 %v237
    %v366 = vunpack.c.l.bf16 %v238
    %v367 = vunpack.c.l.bf16 %v239
    %v368 = vunpack.c.l.bf16 %v240
    %v369 = vunpack.c.l.bf16 %v241
    %v370 = vunpack.c.l.bf16 %v242
    %v371 = vunpack.c.l.bf16 %v243
    %v372 = vunpack.c.l.bf16 %v244
    %v373 = vunpack.c.l.bf16 %v245
    %v374 = vunpack.c.l.bf16 %v246
    %v375 = vunpack.c.l.bf16 %v247
    %v376 = vunpack.c.l.bf16 %v248
    %v377 = vunpack.c.l.bf16 %v249
    %v378 = vunpack.c.l.bf16 %v250
    %v379 = vunpack.c.l.bf16 %v251
    %v380 = vunpack.c.l.bf16 %v252
    %v381 = vunpack.c.l.bf16 %v253
    %v382 = vunpack.c.l.bf16 %v254
    %v383 = vunpack.c.l.bf16 %v255
    %v384 = vunpack.c.l.bf16 %v256
    %v385 = vunpack.c.l.bf16 %v257
    %v386 = vunpack.c.l.bf16 %v258
    %v387 = vunpack.c.l.bf16 %v259
    %v388 = vunpack.c.l.bf16 %v260
    %v389 = vunpack.c.l.bf16 %v261
    %v390 = vunpack.c.l.bf16 %v262
    %v391 = vunpack.c.l.bf16 %v263
    %v392 = vunpack.c.l.bf16 %v264
    %v393 = vunpack.c.l.bf16 %v265
    %v394 = vunpack.c.l.bf16 %v266
    %v395 = vunpack.c.l.bf16 %v267
    %v396 = vunpack.c.l.bf16 %v268
    %v397 = vunpack.c.l.bf16 %v269
    %v398 = vunpack.c.l.bf16 %v270
    %v399 = vunpack.c.l.bf16 %v271
    %v400 = vunpack.c.l.bf16 %v272
    %v401 = vunpack.c.l.bf16 %v273
    %v402 = vunpack.c.l.bf16 %v274
    %v403 = vunpack.c.l.bf16 %v275
    %v404 = vunpack.c.l.bf16 %v276
    %v405 = vunpack.c.l.bf16 %v277
    %v406 = vunpack.c.l.bf16 %v278
    %v407 = vunpack.c.l.bf16 %v279
    %v408 = vunpack.c.l.bf16 %v280
    %v409 = vunpack.c.l.bf16 %v281
    %v410 = vunpack.c.l.bf16 %v282
    %v411 = vunpack.c.l.bf16 %v283
    %v412 = vunpack.c.l.bf16 %v284
    %v413 = vunpack.c.l.bf16 %v285
    %v414 = vunpack.c.l.bf16 %v286
    %v415 = vunpack.c.l.bf16 %v287
    %v416 = vunpack.c.l.bf16 %v288
    %v417 = vunpack.c.l.bf16 %v289
    %v418 = vunpack.c.l.bf16 %v290
    %v419 = vunpack.c.l.bf16 %v291
    %v420 = vunpack.c.l.bf16 %v292
    %v421 = vunpack.c.l.bf16 %v293
    %v422 = vunpack.c.l.bf16 %v294
    %v423 = vunpack.c.l.bf16 %v295
    %v424 = vunpack.c.l.bf16 %v296
    %v425 = vunpack.c.l.bf16 %v297
    %v426 = vunpack.c.l.bf16 %v298
    %v427 = vunpack.c.l.bf16 %v299
    %v428 = vunpack.c.l.bf16 %v300
    %v429 = vunpack.c.l.bf16 %v301
    %v430 = vunpack.c.l.bf16 %v302
    %v431 = vunpack.c.l.bf16 %v303
    %v432 = vunpack.c.l.bf16 %v304
    %v433 = vunpack.c.l.bf16 %v305
    %v434 = vunpack.c.l.bf16 %v306
    %v435 = vunpack.c.l.bf16 %v307
    %v436 = vunpack.c.l.bf16 %v308
    %v437 = vunpack.c.l.bf16 %v309
    %v438 = vunpack.c.l.bf16 %v310
    %v439 = vunpack.c.l.bf16 %v311
    %v440 = vunpack.c.l.bf16 %v312
    %v441 = vunpack.c.l.bf16 %v313
    %v442 = vunpack.c.l.bf16 %v314
    %v443 = vunpack.c.l.bf16 %v315
    %v444 = vunpack.c.l.bf16 %v316
    %v445 = vunpack.c.l.bf16 %v317
    %v446 = vunpack.c.l.bf16 %v318
    %v447 = vunpack.c.l.bf16 %v319
    %v448 = vunpack.c.l.bf16 %v320
    %v449 = vunpack.c.l.bf16 %v321
    %v450 = vunpack.c.l.bf16 %v322
    %v451 = vunpack.c.l.bf16 %v323
    %v452 = vunpack.c.l.bf16 %v324
    %v453 = vunpack.c.l.bf16 %v325
    %v454 = vunpack.c.l.bf16 %v326
    %v455 = vunpack.c.l.bf16 %v327
    %v456 = vld [vmem:[#allocation2] sm:$0xf]
    %v457 = vld [vmem:[#allocation2 + $0x4] sm:$0xf]
    %v458 = vld [vmem:[#allocation2 + $0x8] sm:$0xf]
    %v459 = vld [vmem:[#allocation2 + $0xc] sm:$0xf]
    %v460 = vld [vmem:[#allocation2 + $0x10] sm:$0xf]
    %v461 = vld [vmem:[#allocation2 + $0x14] sm:$0xf]
    %v462 = vld [vmem:[#allocation2 + $0x18] sm:$0xf]
    %v463 = vld [vmem:[#allocation2 + $0x1c] sm:$0xf]
    %v464 = vld [vmem:[#allocation2 + $0x20] sm:$0xf]
    %v465 = vld [vmem:[#allocation2 + $0x24] sm:$0xf]
    %v466 = vld [vmem:[#allocation2 + $0x28] sm:$0xf]
    %v467 = vld [vmem:[#allocation2 + $0x2c] sm:$0xf]
    %v468 = vld [vmem:[#allocation2 + $0x30] sm:$0xf]
    %v469 = vld [vmem:[#allocation2 + $0x34] sm:$0xf]
    %v470 = vld [vmem:[#allocation2 + $0x38] sm:$0xf]
    %v471 = vld [vmem:[#allocation2 + $0x3c] sm:$0xf]
    %v472 = vld [vmem:[#allocation2 + $0x40] sm:$0xf]
    %v473 = vld [vmem:[#allocation2 + $0x44] sm:$0xf]
    %v474 = vld [vmem:[#allocation2 + $0x48] sm:$0xf]
    %v475 = vld [vmem:[#allocation2 + $0x4c] sm:$0xf]
    %v476 = vld [vmem:[#allocation2 + $0x50] sm:$0xf]
    %v477 = vld [vmem:[#allocation2 + $0x54] sm:$0xf]
    %v478 = vld [vmem:[#allocation2 + $0x58] sm:$0xf]
    %v479 = vld [vmem:[#allocation2 + $0x5c] sm:$0xf]
    %v480 = vld [vmem:[#allocation2 + $0x60] sm:$0xf]
    %v481 = vld [vmem:[#allocation2 + $0x64] sm:$0xf]
    %v482 = vld [vmem:[#allocation2 + $0x68] sm:$0xf]
    %v483 = vld [vmem:[#allocation2 + $0x6c] sm:$0xf]
    %v484 = vld [vmem:[#allocation2 + $0x70] sm:$0xf]
    %v485 = vld [vmem:[#allocation2 + $0x74] sm:$0xf]
    %v486 = vld [vmem:[#allocation2 + $0x78] sm:$0xf]
    %v487 = vld [vmem:[#allocation2 + $0x7c] sm:$0xf]
    %v488 = vld [vmem:[#allocation2 + $0x80] sm:$0xf]
    %v489 = vld [vmem:[#allocation2 + $0x84] sm:$0xf]
    %v490 = vld [vmem:[#allocation2 + $0x88] sm:$0xf]
    %v491 = vld [vmem:[#allocation2 + $0x8c] sm:$0xf]
    %v492 = vld [vmem:[#allocation2 + $0x90] sm:$0xf]
    %v493 = vld [vmem:[#allocation2 + $0x94] sm:$0xf]
    %v494 = vld [vmem:[#allocation2 + $0x98] sm:$0xf]
    %v495 = vld [vmem:[#allocation2 + $0x9c] sm:$0xf]
    %v496 = vld [vmem:[#allocation2 + $0xa0] sm:$0xf]
    %v497 = vld [vmem:[#allocation2 + $0xa4] sm:$0xf]
    %v498 = vld [vmem:[#allocation2 + $0xa8] sm:$0xf]
    %v499 = vld [vmem:[#allocation2 + $0xac] sm:$0xf]
    %v500 = vld [vmem:[#allocation2 + $0xb0] sm:$0xf]
    %v501 = vld [vmem:[#allocation2 + $0xb4] sm:$0xf]
    %v502 = vld [vmem:[#allocation2 + $0xb8] sm:$0xf]
    %v503 = vld [vmem:[#allocation2 + $0xbc] sm:$0xf]
    %v504 = vld [vmem:[#allocation2 + $0xc0] sm:$0xf]
    %v505 = vld [vmem:[#allocation2 + $0xc4] sm:$0xf]
    %v506 = vld [vmem:[#allocation2 + $0xc8] sm:$0xf]
    %v507 = vld [vmem:[#allocation2 + $0xcc] sm:$0xf]
    %v508 = vld [vmem:[#allocation2 + $0xd0] sm:$0xf]
    %v509 = vld [vmem:[#allocation2 + $0xd4] sm:$0xf]
    %v510 = vld [vmem:[#allocation2 + $0xd8] sm:$0xf]
    %v511 = vld [vmem:[#allocation2 + $0xdc] sm:$0xf]
    %v512 = vld [vmem:[#allocation2 + $0xe0] sm:$0xf]
    %v513 = vld [vmem:[#allocation2 + $0xe4] sm:$0xf]
    %v514 = vld [vmem:[#allocation2 + $0xe8] sm:$0xf]
    %v515 = vld [vmem:[#allocation2 + $0xec] sm:$0xf]
    %v516 = vld [vmem:[#allocation2 + $0xf0] sm:$0xf]
    %v517 = vld [vmem:[#allocation2 + $0xf4] sm:$0xf]
    %v518 = vld [vmem:[#allocation2 + $0xf8] sm:$0xf]
    %v519 = vld [vmem:[#allocation2 + $0xfc] sm:$0xf]
    %v520 = vld [vmem:[#allocation2 + $0x100] sm:$0xf]
    %v521 = vld [vmem:[#allocation2 + $0x104] sm:$0xf]
    %v522 = vld [vmem:[#allocation2 + $0x108] sm:$0xf]
    %v523 = vld [vmem:[#allocation2 + $0x10c] sm:$0xf]
    %v524 = vld [vmem:[#allocation2 + $0x110] sm:$0xf]
    %v525 = vld [vmem:[#allocation2 + $0x114] sm:$0xf]
    %v526 = vld [vmem:[#allocation2 + $0x118] sm:$0xf]
    %v527 = vld [vmem:[#allocation2 + $0x11c] sm:$0xf]
    %v528 = vld [vmem:[#allocation2 + $0x120] sm:$0xf]
    %v529 = vld [vmem:[#allocation2 + $0x124] sm:$0xf]
    %v530 = vld [vmem:[#allocation2 + $0x128] sm:$0xf]
    %v531 = vld [vmem:[#allocation2 + $0x12c] sm:$0xf]
    %v532 = vld [vmem:[#allocation2 + $0x130] sm:$0xf]
    %v533 = vld [vmem:[#allocation2 + $0x134] sm:$0xf]
    %v534 = vld [vmem:[#allocation2 + $0x138] sm:$0xf]
    %v535 = vld [vmem:[#allocation2 + $0x13c] sm:$0xf]
    %v536 = vld [vmem:[#allocation2 + $0x140] sm:$0xf]
    %v537 = vld [vmem:[#allocation2 + $0x144] sm:$0xf]
    %v538 = vld [vmem:[#allocation2 + $0x148] sm:$0xf]
    %v539 = vld [vmem:[#allocation2 + $0x14c] sm:$0xf]
    %v540 = vld [vmem:[#allocation2 + $0x150] sm:$0xf]
    %v541 = vld [vmem:[#allocation2 + $0x154] sm:$0xf]
    %v542 = vld [vmem:[#allocation2 + $0x158] sm:$0xf]
    %v543 = vld [vmem:[#allocation2 + $0x15c] sm:$0xf]
    %v544 = vld [vmem:[#allocation2 + $0x160] sm:$0xf]
    %v545 = vld [vmem:[#allocation2 + $0x164] sm:$0xf]
    %v546 = vld [vmem:[#allocation2 + $0x168] sm:$0xf]
    %v547 = vld [vmem:[#allocation2 + $0x16c] sm:$0xf]
    %v548 = vld [vmem:[#allocation2 + $0x170] sm:$0xf]
    %v549 = vld [vmem:[#allocation2 + $0x174] sm:$0xf]
    %v550 = vld [vmem:[#allocation2 + $0x178] sm:$0xf]
    %v551 = vld [vmem:[#allocation2 + $0x17c] sm:$0xf]
    %v552 = vld [vmem:[#allocation2 + $0x180] sm:$0xf]
    %v553 = vld [vmem:[#allocation2 + $0x184] sm:$0xf]
    %v554 = vld [vmem:[#allocation2 + $0x188] sm:$0xf]
    %v555 = vld [vmem:[#allocation2 + $0x18c] sm:$0xf]
    %v556 = vld [vmem:[#allocation2 + $0x190] sm:$0xf]
    %v557 = vld [vmem:[#allocation2 + $0x194] sm:$0xf]
    %v558 = vld [vmem:[#allocation2 + $0x198] sm:$0xf]
    %v559 = vld [vmem:[#allocation2 + $0x19c] sm:$0xf]
    %v560 = vld [vmem:[#allocation2 + $0x1a0] sm:$0xf]
    %v561 = vld [vmem:[#allocation2 + $0x1a4] sm:$0xf]
    %v562 = vld [vmem:[#allocation2 + $0x1a8] sm:$0xf]
    %v563 = vld [vmem:[#allocation2 + $0x1ac] sm:$0xf]
    %v564 = vld [vmem:[#allocation2 + $0x1b0] sm:$0xf]
    %v565 = vld [vmem:[#allocation2 + $0x1b4] sm:$0xf]
    %v566 = vld [vmem:[#allocation2 + $0x1b8] sm:$0xf]
    %v567 = vld [vmem:[#allocation2 + $0x1bc] sm:$0xf]
    %v568 = vld [vmem:[#allocation2 + $0x1c0] sm:$0xf]
    %v569 = vld [vmem:[#allocation2 + $0x1c4] sm:$0xf]
    %v570 = vld [vmem:[#allocation2 + $0x1c8] sm:$0xf]
    %v571 = vld [vmem:[#allocation2 + $0x1cc] sm:$0xf]
    %v572 = vld [vmem:[#allocation2 + $0x1d0] sm:$0xf]
    %v573 = vld [vmem:[#allocation2 + $0x1d4] sm:$0xf]
    %v574 = vld [vmem:[#allocation2 + $0x1d8] sm:$0xf]
    %v575 = vld [vmem:[#allocation2 + $0x1dc] sm:$0xf]
    %v576 = vld [vmem:[#allocation2 + $0x1e0] sm:$0xf]
    %v577 = vld [vmem:[#allocation2 + $0x1e4] sm:$0xf]
    %v578 = vld [vmem:[#allocation2 + $0x1e8] sm:$0xf]
    %v579 = vld [vmem:[#allocation2 + $0x1ec] sm:$0xf]
    %v580 = vld [vmem:[#allocation2 + $0x1f0] sm:$0xf]
    %v581 = vld [vmem:[#allocation2 + $0x1f4] sm:$0xf]
    %v582 = vld [vmem:[#allocation2 + $0x1f8] sm:$0xf]
    %v583 = vld [vmem:[#allocation2 + $0x1fc] sm:$0xf]
    %v584 = vld [vmem:[#allocation8] sm:$0xff]
    %v585 = vld [vmem:[#allocation8 + $0x8] sm:$0xff]
    %v586 = vld [vmem:[#allocation8 + $0x10] sm:$0xff]
    %v587 = vld [vmem:[#allocation8 + $0x18] sm:$0xff]
    %v588 = vld [vmem:[#allocation8 + $0x20] sm:$0xff]
    %v589 = vld [vmem:[#allocation8 + $0x28] sm:$0xff]
    %v590 = vld [vmem:[#allocation8 + $0x30] sm:$0xff]
    %v591 = vld [vmem:[#allocation8 + $0x38] sm:$0xff]
    %v592 = vld [vmem:[#allocation8 + $0x40] sm:$0xff]
    %v593 = vld [vmem:[#allocation8 + $0x48] sm:$0xff]
    %v594 = vld [vmem:[#allocation8 + $0x50] sm:$0xff]
    %v595 = vld [vmem:[#allocation8 + $0x58] sm:$0xff]
    %v596 = vld [vmem:[#allocation8 + $0x60] sm:$0xff]
    %v597 = vld [vmem:[#allocation8 + $0x68] sm:$0xff]
    %v598 = vld [vmem:[#allocation8 + $0x70] sm:$0xff]
    %v599 = vld [vmem:[#allocation8 + $0x78] sm:$0xff]
    %v600 = vld [vmem:[#allocation13] sm:$0x3]
    %v602 = vlaneseq
    %v603 = vshrl.u32 %v602, 7
    %v604 = vsub.s32 0, %v603
    %v605 = vrot.slane %v600, %v604
    %v606 = vlaneseq
    %v607 = vshrl.u32 %v606, 7
    %v608 = vsub.s32 1, %v607
    %v609 = vrot.slane %v600, %v608
    %v740 = vunpack.c.l.b16 %v456
    %v741 = vunpack.c.l.b16 %v457
    %v742 = vunpack.c.l.b16 %v458
    %v743 = vunpack.c.l.b16 %v459
    %v744 = vunpack.c.l.b16 %v460
    %v745 = vunpack.c.l.b16 %v461
    %v746 = vunpack.c.l.b16 %v462
    %v747 = vunpack.c.l.b16 %v463
    %v748 = vunpack.c.l.b16 %v464
    %v749 = vunpack.c.l.b16 %v465
    %v750 = vunpack.c.l.b16 %v466
    %v751 = vunpack.c.l.b16 %v467
    %v752 = vunpack.c.l.b16 %v468
    %v753 = vunpack.c.l.b16 %v469
    %v754 = vunpack.c.l.b16 %v470
    %v755 = vunpack.c.l.b16 %v471
    %v756 = vunpack.c.l.b16 %v472
    %v757 = vunpack.c.l.b16 %v473
    %v758 = vunpack.c.l.b16 %v474
    %v759 = vunpack.c.l.b16 %v475
    %v760 = vunpack.c.l.b16 %v476
    %v761 = vunpack.c.l.b16 %v477
    %v762 = vunpack.c.l.b16 %v478
    %v763 = vunpack.c.l.b16 %v479
    %v764 = vunpack.c.l.b16 %v480
    %v765 = vunpack.c.l.b16 %v481
    %v766 = vunpack.c.l.b16 %v482
    %v767 = vunpack.c.l.b16 %v483
    %v768 = vunpack.c.l.b16 %v484
    %v769 = vunpack.c.l.b16 %v485
    %v770 = vunpack.c.l.b16 %v486
    %v771 = vunpack.c.l.b16 %v487
    %v772 = vunpack.c.l.b16 %v488
    %v773 = vunpack.c.l.b16 %v489
    %v774 = vunpack.c.l.b16 %v490
    %v775 = vunpack.c.l.b16 %v491
    %v776 = vunpack.c.l.b16 %v492
    %v777 = vunpack.c.l.b16 %v493
    %v778 = vunpack.c.l.b16 %v494
    %v779 = vunpack.c.l.b16 %v495
    %v780 = vunpack.c.l.b16 %v496
    %v781 = vunpack.c.l.b16 %v497
    %v782 = vunpack.c.l.b16 %v498
    %v783 = vunpack.c.l.b16 %v499
    %v784 = vunpack.c.l.b16 %v500
    %v785 = vunpack.c.l.b16 %v501
    %v786 = vunpack.c.l.b16 %v502
    %v787 = vunpack.c.l.b16 %v503
    %v788 = vunpack.c.l.b16 %v504
    %v789 = vunpack.c.l.b16 %v505
    %v790 = vunpack.c.l.b16 %v506
    %v791 = vunpack.c.l.b16 %v507
    %v792 = vunpack.c.l.b16 %v508
    %v793 = vunpack.c.l.b16 %v509
    %v794 = vunpack.c.l.b16 %v510
    %v795 = vunpack.c.l.b16 %v511
    %v796 = vunpack.c.l.b16 %v512
    %v797 = vunpack.c.l.b16 %v513
    %v798 = vunpack.c.l.b16 %v514
    %v799 = vunpack.c.l.b16 %v515
    %v800 = vunpack.c.l.b16 %v516
    %v801 = vunpack.c.l.b16 %v517
    %v802 = vunpack.c.l.b16 %v518
    %v803 = vunpack.c.l.b16 %v519
    %v804 = vunpack.c.l.b16 %v520
    %v805 = vunpack.c.l.b16 %v521
    %v806 = vunpack.c.l.b16 %v522
    %v807 = vunpack.c.l.b16 %v523
    %v808 = vunpack.c.l.b16 %v524
    %v809 = vunpack.c.l.b16 %v525
    %v810 = vunpack.c.l.b16 %v526
    %v811 = vunpack.c.l.b16 %v527
    %v812 = vunpack.c.l.b16 %v528
    %v813 = vunpack.c.l.b16 %v529
    %v814 = vunpack.c.l.b16 %v530
    %v815 = vunpack.c.l.b16 %v531
    %v816 = vunpack.c.l.b16 %v532
    %v817 = vunpack.c.l.b16 %v533
    %v818 = vunpack.c.l.b16 %v534
    %v819 = vunpack.c.l.b16 %v535
    %v820 = vunpack.c.l.b16 %v536
    %v821 = vunpack.c.l.b16 %v537
    %v822 = vunpack.c.l.b16 %v538
    %v823 = vunpack.c.l.b16 %v539
    %v824 = vunpack.c.l.b16 %v540
    %v825 = vunpack.c.l.b16 %v541
    %v826 = vunpack.c.l.b16 %v542
    %v827 = vunpack.c.l.b16 %v543
    %v828 = vunpack.c.l.b16 %v544
    %v829 = vunpack.c.l.b16 %v545
    %v830 = vunpack.c.l.b16 %v546
    %v831 = vunpack.c.l.b16 %v547
    %v832 = vunpack.c.l.b16 %v548
    %v833 = vunpack.c.l.b16 %v549
    %v834 = vunpack.c.l.b16 %v550
    %v835 = vunpack.c.l.b16 %v551
    %v836 = vunpack.c.l.b16 %v552
    %v837 = vunpack.c.l.b16 %v553
    %v838 = vunpack.c.l.b16 %v554
    %v839 = vunpack.c.l.b16 %v555
    %v840 = vunpack.c.l.b16 %v556
    %v841 = vunpack.c.l.b16 %v557
    %v842 = vunpack.c.l.b16 %v558
    %v843 = vunpack.c.l.b16 %v559
    %v844 = vunpack.c.l.b16 %v560
    %v845 = vunpack.c.l.b16 %v561
    %v846 = vunpack.c.l.b16 %v562
    %v847 = vunpack.c.l.b16 %v563
    %v848 = vunpack.c.l.b16 %v564
    %v849 = vunpack.c.l.b16 %v565
    %v850 = vunpack.c.l.b16 %v566
    %v851 = vunpack.c.l.b16 %v567
    %v852 = vunpack.c.l.b16 %v568
    %v853 = vunpack.c.l.b16 %v569
    %v854 = vunpack.c.l.b16 %v570
    %v855 = vunpack.c.l.b16 %v571
    %v856 = vunpack.c.l.b16 %v572
    %v857 = vunpack.c.l.b16 %v573
    %v858 = vunpack.c.l.b16 %v574
    %v859 = vunpack.c.l.b16 %v575
    %v860 = vunpack.c.l.b16 %v576
    %v861 = vunpack.c.l.b16 %v577
    %v862 = vunpack.c.l.b16 %v578
    %v863 = vunpack.c.l.b16 %v579
    %v864 = vunpack.c.l.b16 %v580
    %v865 = vunpack.c.l.b16 %v581
    %v866 = vunpack.c.l.b16 %v582
    %v867 = vunpack.c.l.b16 %v583
    %v868 = vpack.c.b16 %v741, %v740
    %v869 = vpack.c.b16 %v743, %v742
    %v870 = vpack.c.b16 %v745, %v744
    %v871 = vpack.c.b16 %v747, %v746
    %v872 = vpack.c.b16 %v749, %v748
    %v873 = vpack.c.b16 %v751, %v750
    %v874 = vpack.c.b16 %v753, %v752
    %v875 = vpack.c.b16 %v755, %v754
    %v876 = vpack.c.b16 %v757, %v756
    %v877 = vpack.c.b16 %v759, %v758
    %v878 = vpack.c.b16 %v761, %v760
    %v879 = vpack.c.b16 %v763, %v762
    %v880 = vpack.c.b16 %v765, %v764
    %v881 = vpack.c.b16 %v767, %v766
    %v882 = vpack.c.b16 %v769, %v768
    %v883 = vpack.c.b16 %v771, %v770
    %v884 = vpack.c.b16 %v773, %v772
    %v885 = vpack.c.b16 %v775, %v774
    %v886 = vpack.c.b16 %v777, %v776
    %v887 = vpack.c.b16 %v779, %v778
    %v888 = vpack.c.b16 %v781, %v780
    %v889 = vpack.c.b16 %v783, %v782
    %v890 = vpack.c.b16 %v785, %v784
    %v891 = vpack.c.b16 %v787, %v786
    %v892 = vpack.c.b16 %v789, %v788
    %v893 = vpack.c.b16 %v791, %v790
    %v894 = vpack.c.b16 %v793, %v792
    %v895 = vpack.c.b16 %v795, %v794
    %v896 = vpack.c.b16 %v797, %v796
    %v897 = vpack.c.b16 %v799, %v798
    %v898 = vpack.c.b16 %v801, %v800
    %v899 = vpack.c.b16 %v803, %v802
    %v900 = vpack.c.b16 %v805, %v804
    %v901 = vpack.c.b16 %v807, %v806
    %v902 = vpack.c.b16 %v809, %v808
    %v903 = vpack.c.b16 %v811, %v810
    %v904 = vpack.c.b16 %v813, %v812
    %v905 = vpack.c.b16 %v815, %v814
    %v906 = vpack.c.b16 %v817, %v816
    %v907 = vpack.c.b16 %v819, %v818
    %v908 = vpack.c.b16 %v821, %v820
    %v909 = vpack.c.b16 %v823, %v822
    %v910 = vpack.c.b16 %v825, %v824
    %v911 = vpack.c.b16 %v827, %v826
    %v912 = vpack.c.b16 %v829, %v828
    %v913 = vpack.c.b16 %v831, %v830
    %v914 = vpack.c.b16 %v833, %v832
    %v915 = vpack.c.b16 %v835, %v834
    %v916 = vpack.c.b16 %v837, %v836
    %v917 = vpack.c.b16 %v839, %v838
    %v918 = vpack.c.b16 %v841, %v840
    %v919 = vpack.c.b16 %v843, %v842
    %v920 = vpack.c.b16 %v845, %v844
    %v921 = vpack.c.b16 %v847, %v846
    %v922 = vpack.c.b16 %v849, %v848
    %v923 = vpack.c.b16 %v851, %v850
    %v924 = vpack.c.b16 %v853, %v852
    %v925 = vpack.c.b16 %v855, %v854
    %v926 = vpack.c.b16 %v857, %v856
    %v927 = vpack.c.b16 %v859, %v858
    %v928 = vpack.c.b16 %v861, %v860
    %v929 = vpack.c.b16 %v863, %v862
    %v930 = vpack.c.b16 %v865, %v864
    %v931 = vpack.c.b16 %v867, %v866
    %v1012 = vunpack.c.l.b16 %v584
    %v1013 = vunpack.c.h.b16 %v584
    %v1014 = vunpack.c.l.b16 %v585
    %v1015 = vunpack.c.h.b16 %v585
    %v1016 = vunpack.c.l.b16 %v586
    %v1017 = vunpack.c.h.b16 %v586
    %v1018 = vunpack.c.l.b16 %v587
    %v1019 = vunpack.c.h.b16 %v587
    %v1020 = vunpack.c.l.b16 %v588
    %v1021 = vunpack.c.h.b16 %v588
    %v1022 = vunpack.c.l.b16 %v589
    %v1023 = vunpack.c.h.b16 %v589
    %v1024 = vunpack.c.l.b16 %v590
    %v1025 = vunpack.c.h.b16 %v590
    %v1026 = vunpack.c.l.b16 %v591
    %v1027 = vunpack.c.h.b16 %v591
    %v1028 = vunpack.c.l.b16 %v592
    %v1029 = vunpack.c.h.b16 %v592
    %v1030 = vunpack.c.l.b16 %v593
    %v1031 = vunpack.c.h.b16 %v593
    %v1032 = vunpack.c.l.b16 %v594
    %v1033 = vunpack.c.h.b16 %v594
    %v1034 = vunpack.c.l.b16 %v595
    %v1035 = vunpack.c.h.b16 %v595
    %v1036 = vunpack.c.l.b16 %v596
    %v1037 = vunpack.c.h.b16 %v596
    %v1038 = vunpack.c.l.b16 %v597
    %v1039 = vunpack.c.h.b16 %v597
    %v1040 = vunpack.c.l.b16 %v598
    %v1041 = vunpack.c.h.b16 %v598
    %v1042 = vunpack.c.l.b16 %v599
    %v1043 = vunpack.c.h.b16 %v599
    %v1044 = vpack.c.b16 %v1014, %v1012
    %v1045 = vpack.c.b16 %v1015, %v1013
    %v1046 = vpack.c.b16 %v1018, %v1016
    %v1047 = vpack.c.b16 %v1019, %v1017
    %v1048 = vpack.c.b16 %v1022, %v1020
    %v1049 = vpack.c.b16 %v1023, %v1021
    %v1050 = vpack.c.b16 %v1026, %v1024
    %v1051 = vpack.c.b16 %v1027, %v1025
    %v1052 = vpack.c.b16 %v1030, %v1028
    %v1053 = vpack.c.b16 %v1031, %v1029
    %v1054 = vpack.c.b16 %v1034, %v1032
    %v1055 = vpack.c.b16 %v1035, %v1033
    %v1056 = vpack.c.b16 %v1038, %v1036
    %v1057 = vpack.c.b16 %v1039, %v1037
    %v1058 = vpack.c.b16 %v1042, %v1040
    %v1059 = vpack.c.b16 %v1043, %v1041
    %1076 = vmatprep.subr.bf16.mxu0 %v1045
    %1077 = vmatpush1.bf16.msra.mxu0 %v1044
    %1078 = vmatprep.subr.bf16.mxu0 %v1047
    %1079 = vmatpush1.bf16.msra.mxu0 %v1046
    %1080 = vmatprep.subr.bf16.mxu0 %v1049
    %1081 = vmatpush1.bf16.msra.mxu0 %v1048
    %1082 = vmatprep.subr.bf16.mxu0 %v1051
    %1083 = vmatpush1.bf16.msra.mxu0 %v1050
    %1084 = vmatprep.subr.bf16.mxu0 %v1053
    %1085 = vmatpush1.bf16.msra.mxu0 %v1052
    %1086 = vmatprep.subr.bf16.mxu0 %v1055
    %1087 = vmatpush1.bf16.msra.mxu0 %v1054
    %1088 = vmatprep.subr.bf16.mxu0 %v1057
    %1089 = vmatpush1.bf16.msra.mxu0 %v1056
    %1090 = vmatprep.subr.bf16.mxu0 %v1059
    %1091 = vmatpush1.bf16.msra.mxu0 %v1058
    %1092 = vmatprep.subr.bf16.mxu0 0
    %1093 = vmatpush1.bf16.msra.mxu0 0
    %1094 = vmatprep.subr.bf16.mxu0 0
    %1095 = vmatpush1.bf16.msra.mxu0 0
    %1096 = vmatprep.subr.bf16.mxu0 0
    %1097 = vmatpush1.bf16.msra.mxu0 0
    %1098 = vmatprep.subr.bf16.mxu0 0
    %1099 = vmatpush1.bf16.msra.mxu0 0
    %1100 = vmatprep.subr.bf16.mxu0 0
    %1101 = vmatpush1.bf16.msra.mxu0 0
    %1102 = vmatprep.subr.bf16.mxu0 0
    %1103 = vmatpush1.bf16.msra.mxu0 0
    %1104 = vmatprep.subr.bf16.mxu0 0
    %1105 = vmatpush1.bf16.msra.mxu0 0
    %1106 = vmatprep.subr.bf16.mxu0 0
    %1107 = vmatpush1.bf16.msra.mxu0 0
    %1108 = vmatprep.mubr.bf16.mxu0 0
    %1109 = vmatmul.mubr.bf16.gmra.mrb[0].mxu0 %v868
    %v1110 = vpop.f32.mrb[0].mxu0
    %v1111 = vadd.f32 %v605, %v1110
    %v1112 = vpop.f32.mrb[0].mxu0
    %v1113 = vadd.f32 %v609, %v1112
    %v1114 = vpop.f32.mrb[0].mxu0
    %v1115 = vadd.f32 %v605, %v1114
    %v1116 = vpop.f32.mrb[0].mxu0
    %v1117 = vadd.f32 %v609, %v1116
    %1118 = vmatprep.mubr.bf16.mxu0 0
    %1119 = vmatmul.mubr.bf16.gmra.mrb[0].mxu0 %v869
    %v1120 = vpop.f32.mrb[0].mxu0
    %v1121 = vadd.f32 %v605, %v1120
    %v1122 = vpop.f32.mrb[0].mxu0
    %v1123 = vadd.f32 %v609, %v1122
    %v1124 = vpop.f32.mrb[0].mxu0
    %v1125 = vadd.f32 %v605, %v1124
    %v1126 = vpop.f32.mrb[0].mxu0
    %v1127 = vadd.f32 %v609, %v1126
    %1128 = vmatprep.mubr.bf16.mxu0 0
    %1129 = vmatmul.mubr.bf16.gmra.mrb[0].mxu0 %v870
    %v1130 = vpop.f32.mrb[0].mxu0
    %v1131 = vadd.f32 %v605, %v1130
    %v1132 = vpop.f32.mrb[0].mxu0
    %v1133 = vadd.f32 %v609, %v1132
    %v1134 = vpop.f32.mrb[0].mxu0
    %v1135 = vadd.f32 %v605, %v1134
    %v1136 = vpop.f32.mrb[0].mxu0
    %v1137 = vadd.f32 %v609, %v1136
    %1138 = vmatprep.mubr.bf16.mxu0 0
    %1139 = vmatmul.mubr.bf16.gmra.mrb[0].mxu0 %v871
    %v1140 = vpop.f32.mrb[0].mxu0
    %v1141 = vadd.f32 %v605, %v1140
    %v1142 = vpop.f32.mrb[0].mxu0
    %v1143 = vadd.f32 %v609, %v1142
    %v1144 = vpop.f32.mrb[0].mxu0
    %v1145 = vadd.f32 %v605, %v1144
    %v1146 = vpop.f32.mrb[0].mxu0
    %v1147 = vadd.f32 %v609, %v1146
    %1148 = vmatprep.mubr.bf16.mxu0 0
    %1149 = vmatmul.mubr.bf16.gmra.mrb[0].mxu0 %v872
    %v1150 = vpop.f32.mrb[0].mxu0
    %v1151 = vadd.f32 %v605, %v1150
    %v1152 = vpop.f32.mrb[0].mxu0
    %v1153 = vadd.f32 %v609, %v1152
    %v1154 = vpop.f32.mrb[0].mxu0
    %v1155 = vadd.f32 %v605, %v1154
    %v1156 = vpop.f32.mrb[0].mxu0
    %v1157 = vadd.f32 %v609, %v1156
    %1158 = vmatprep.mubr.bf16.mxu0 0
    %1159 = vmatmul.mubr.bf16.gmra.mrb[0].mxu0 %v873
    %v1160 = vpop.f32.mrb[0].mxu0
    %v1161 = vadd.f32 %v605, %v1160
    %v1162 = vpop.f32.mrb[0].mxu0
    %v1163 = vadd.f32 %v609, %v1162
    %v1164 = vpop.f32.mrb[0].mxu0
    %v1165 = vadd.f32 %v605, %v1164
    %v1166 = vpop.f32.mrb[0].mxu0
    %v1167 = vadd.f32 %v609, %v1166
    %1168 = vmatprep.mubr.bf16.mxu0 0
    %1169 = vmatmul.mubr.bf16.gmra.mrb[0].mxu0 %v874
    %v1170 = vpop.f32.mrb[0].mxu0
    %v1171 = vadd.f32 %v605, %v1170
    %v1172 = vpop.f32.mrb[0].mxu0
    %v1173 = vadd.f32 %v609, %v1172
    %v1174 = vpop.f32.mrb[0].mxu0
    %v1175 = vadd.f32 %v605, %v1174
    %v1176 = vpop.f32.mrb[0].mxu0
    %v1177 = vadd.f32 %v609, %v1176
    %1178 = vmatprep.mubr.bf16.mxu0 0
    %1179 = vmatmul.mubr.bf16.gmra.mrb[0].mxu0 %v875
    %v1180 = vpop.f32.mrb[0].mxu0
    %v1181 = vadd.f32 %v605, %v1180
    %v1182 = vpop.f32.mrb[0].mxu0
    %v1183 = vadd.f32 %v609, %v1182
    %v1184 = vpop.f32.mrb[0].mxu0
    %v1185 = vadd.f32 %v605, %v1184
    %v1186 = vpop.f32.mrb[0].mxu0
    %v1187 = vadd.f32 %v609, %v1186
    %1188 = vmatprep.mubr.bf16.mxu0 0
    %1189 = vmatmul.mubr.bf16.gmra.mrb[0].mxu0 %v876
    %v1190 = vpop.f32.mrb[0].mxu0
    %v1191 = vadd.f32 %v605, %v1190
    %v1192 = vpop.f32.mrb[0].mxu0
    %v1193 = vadd.f32 %v609, %v1192
    %v1194 = vpop.f32.mrb[0].mxu0
    %v1195 = vadd.f32 %v605, %v1194
    %v1196 = vpop.f32.mrb[0].mxu0
    %v1197 = vadd.f32 %v609, %v1196
    %1198 = vmatprep.mubr.bf16.mxu0 0
    %1199 = vmatmul.mubr.bf16.gmra.mrb[0].mxu0 %v877
    %v1200 = vpop.f32.mrb[0].mxu0
    %v1201 = vadd.f32 %v605, %v1200
    %v1202 = vpop.f32.mrb[0].mxu0
    %v1203 = vadd.f32 %v609, %v1202
    %v1204 = vpop.f32.mrb[0].mxu0
    %v1205 = vadd.f32 %v605, %v1204
    %v1206 = vpop.f32.mrb[0].mxu0
    %v1207 = vadd.f32 %v609, %v1206
    %1208 = vmatprep.mubr.bf16.mxu0 0
    %1209 = vmatmul.mubr.bf16.gmra.mrb[0].mxu0 %v878
    %v1210 = vpop.f32.mrb[0].mxu0
    %v1211 = vadd.f32 %v605, %v1210
    %v1212 = vpop.f32.mrb[0].mxu0
    %v1213 = vadd.f32 %v609, %v1212
    %v1214 = vpop.f32.mrb[0].mxu0
    %v1215 = vadd.f32 %v605, %v1214
    %v1216 = vpop.f32.mrb[0].mxu0
    %v1217 = vadd.f32 %v609, %v1216
    %1218 = vmatprep.mubr.bf16.mxu0 0
    %1219 = vmatmul.mubr.bf16.gmra.mrb[0].mxu0 %v879
    %v1220 = vpop.f32.mrb[0].mxu0
    %v1221 = vadd.f32 %v605, %v1220
    %v1222 = vpop.f32.mrb[0].mxu0
    %v1223 = vadd.f32 %v609, %v1222
    %v1224 = vpop.f32.mrb[0].mxu0
    %v1225 = vadd.f32 %v605, %v1224
    %v1226 = vpop.f32.mrb[0].mxu0
    %v1227 = vadd.f32 %v609, %v1226
    %1228 = vmatprep.mubr.bf16.mxu0 0
    %1229 = vmatmul.mubr.bf16.gmra.mrb[0].mxu0 %v880
    %v1230 = vpop.f32.mrb[0].mxu0
    %v1231 = vadd.f32 %v605, %v1230
    %v1232 = vpop.f32.mrb[0].mxu0
    %v1233 = vadd.f32 %v609, %v1232
    %v1234 = vpop.f32.mrb[0].mxu0
    %v1235 = vadd.f32 %v605, %v1234
    %v1236 = vpop.f32.mrb[0].mxu0
    %v1237 = vadd.f32 %v609, %v1236
    %1238 = vmatprep.mubr.bf16.mxu0 0
    %1239 = vmatmul.mubr.bf16.gmra.mrb[0].mxu0 %v881
    %v1240 = vpop.f32.mrb[0].mxu0
    %v1241 = vadd.f32 %v605, %v1240
    %v1242 = vpop.f32.mrb[0].mxu0
    %v1243 = vadd.f32 %v609, %v1242
    %v1244 = vpop.f32.mrb[0].mxu0
    %v1245 = vadd.f32 %v605, %v1244
    %v1246 = vpop.f32.mrb[0].mxu0
    %v1247 = vadd.f32 %v609, %v1246
    %1248 = vmatprep.mubr.bf16.mxu0 0
    %1249 = vmatmul.mubr.bf16.gmra.mrb[0].mxu0 %v882
    %v1250 = vpop.f32.mrb[0].mxu0
    %v1251 = vadd.f32 %v605, %v1250
    %v1252 = vpop.f32.mrb[0].mxu0
    %v1253 = vadd.f32 %v609, %v1252
    %v1254 = vpop.f32.mrb[0].mxu0
    %v1255 = vadd.f32 %v605, %v1254
    %v1256 = vpop.f32.mrb[0].mxu0
    %v1257 = vadd.f32 %v609, %v1256
    %1258 = vmatprep.mubr.bf16.mxu0 0
    %1259 = vmatmul.mubr.bf16.gmra.mrb[0].mxu0 %v883
    %v1260 = vpop.f32.mrb[0].mxu0
    %v1261 = vadd.f32 %v605, %v1260
    %v1262 = vpop.f32.mrb[0].mxu0
    %v1263 = vadd.f32 %v609, %v1262
    %v1264 = vpop.f32.mrb[0].mxu0
    %v1265 = vadd.f32 %v605, %v1264
    %v1266 = vpop.f32.mrb[0].mxu0
    %v1267 = vadd.f32 %v609, %v1266
    %1268 = vmatprep.mubr.bf16.mxu0 0
    %1269 = vmatmul.mubr.bf16.gmra.mrb[0].mxu0 %v884
    %v1270 = vpop.f32.mrb[0].mxu0
    %v1271 = vadd.f32 %v605, %v1270
    %v1272 = vpop.f32.mrb[0].mxu0
    %v1273 = vadd.f32 %v609, %v1272
    %v1274 = vpop.f32.mrb[0].mxu0
    %v1275 = vadd.f32 %v605, %v1274
    %v1276 = vpop.f32.mrb[0].mxu0
    %v1277 = vadd.f32 %v609, %v1276
    %1278 = vmatprep.mubr.bf16.mxu0 0
    %1279 = vmatmul.mubr.bf16.gmra.mrb[0].mxu0 %v885
    %v1280 = vpop.f32.mrb[0].mxu0
    %v1281 = vadd.f32 %v605, %v1280
    %v1282 = vpop.f32.mrb[0].mxu0
    %v1283 = vadd.f32 %v609, %v1282
    %v1284 = vpop.f32.mrb[0].mxu0
    %v1285 = vadd.f32 %v605, %v1284
    %v1286 = vpop.f32.mrb[0].mxu0
    %v1287 = vadd.f32 %v609, %v1286
    %1288 = vmatprep.mubr.bf16.mxu0 0
    %1289 = vmatmul.mubr.bf16.gmra.mrb[0].mxu0 %v886
    %v1290 = vpop.f32.mrb[0].mxu0
    %v1291 = vadd.f32 %v605, %v1290
    %v1292 = vpop.f32.mrb[0].mxu0
    %v1293 = vadd.f32 %v609, %v1292
    %v1294 = vpop.f32.mrb[0].mxu0
    %v1295 = vadd.f32 %v605, %v1294
    %v1296 = vpop.f32.mrb[0].mxu0
    %v1297 = vadd.f32 %v609, %v1296
    %1298 = vmatprep.mubr.bf16.mxu0 0
    %1299 = vmatmul.mubr.bf16.gmra.mrb[0].mxu0 %v887
    %v1300 = vpop.f32.mrb[0].mxu0
    %v1301 = vadd.f32 %v605, %v1300
    %v1302 = vpop.f32.mrb[0].mxu0
    %v1303 = vadd.f32 %v609, %v1302
    %v1304 = vpop.f32.mrb[0].mxu0
    %v1305 = vadd.f32 %v605, %v1304
    %v1306 = vpop.f32.mrb[0].mxu0
    %v1307 = vadd.f32 %v609, %v1306
    %1308 = vmatprep.mubr.bf16.mxu0 0
    %1309 = vmatmul.mubr.bf16.gmra.mrb[0].mxu0 %v888
    %v1310 = vpop.f32.mrb[0].mxu0
    %v1311 = vadd.f32 %v605, %v1310
    %v1312 = vpop.f32.mrb[0].mxu0
    %v1313 = vadd.f32 %v609, %v1312
    %v1314 = vpop.f32.mrb[0].mxu0
    %v1315 = vadd.f32 %v605, %v1314
    %v1316 = vpop.f32.mrb[0].mxu0
    %v1317 = vadd.f32 %v609, %v1316
    %1318 = vmatprep.mubr.bf16.mxu0 0
    %1319 = vmatmul.mubr.bf16.gmra.mrb[0].mxu0 %v889
    %v1320 = vpop.f32.mrb[0].mxu0
    %v1321 = vadd.f32 %v605, %v1320
    %v1322 = vpop.f32.mrb[0].mxu0
    %v1323 = vadd.f32 %v609, %v1322
    %v1324 = vpop.f32.mrb[0].mxu0
    %v1325 = vadd.f32 %v605, %v1324
    %v1326 = vpop.f32.mrb[0].mxu0
    %v1327 = vadd.f32 %v609, %v1326
    %1328 = vmatprep.mubr.bf16.mxu0 0
    %1329 = vmatmul.mubr.bf16.gmra.mrb[0].mxu0 %v890
    %v1330 = vpop.f32.mrb[0].mxu0
    %v1331 = vadd.f32 %v605, %v1330
    %v1332 = vpop.f32.mrb[0].mxu0
    %v1333 = vadd.f32 %v609, %v1332
    %v1334 = vpop.f32.mrb[0].mxu0
    %v1335 = vadd.f32 %v605, %v1334
    %v1336 = vpop.f32.mrb[0].mxu0
    %v1337 = vadd.f32 %v609, %v1336
    %1338 = vmatprep.mubr.bf16.mxu0 0
    %1339 = vmatmul.mubr.bf16.gmra.mrb[0].mxu0 %v891
    %v1340 = vpop.f32.mrb[0].mxu0
    %v1341 = vadd.f32 %v605, %v1340
    %v1342 = vpop.f32.mrb[0].mxu0
    %v1343 = vadd.f32 %v609, %v1342
    %v1344 = vpop.f32.mrb[0].mxu0
    %v1345 = vadd.f32 %v605, %v1344
    %v1346 = vpop.f32.mrb[0].mxu0
    %v1347 = vadd.f32 %v609, %v1346
    %1348 = vmatprep.mubr.bf16.mxu0 0
    %1349 = vmatmul.mubr.bf16.gmra.mrb[0].mxu0 %v892
    %v1350 = vpop.f32.mrb[0].mxu0
    %v1351 = vadd.f32 %v605, %v1350
    %v1352 = vpop.f32.mrb[0].mxu0
    %v1353 = vadd.f32 %v609, %v1352
    %v1354 = vpop.f32.mrb[0].mxu0
    %v1355 = vadd.f32 %v605, %v1354
    %v1356 = vpop.f32.mrb[0].mxu0
    %v1357 = vadd.f32 %v609, %v1356
    %1358 = vmatprep.mubr.bf16.mxu0 0
    %1359 = vmatmul.mubr.bf16.gmra.mrb[0].mxu0 %v893
    %v1360 = vpop.f32.mrb[0].mxu0
    %v1361 = vadd.f32 %v605, %v1360
    %v1362 = vpop.f32.mrb[0].mxu0
    %v1363 = vadd.f32 %v609, %v1362
    %v1364 = vpop.f32.mrb[0].mxu0
    %v1365 = vadd.f32 %v605, %v1364
    %v1366 = vpop.f32.mrb[0].mxu0
    %v1367 = vadd.f32 %v609, %v1366
    %1368 = vmatprep.mubr.bf16.mxu0 0
    %1369 = vmatmul.mubr.bf16.gmra.mrb[0].mxu0 %v894
    %v1370 = vpop.f32.mrb[0].mxu0
    %v1371 = vadd.f32 %v605, %v1370
    %v1372 = vpop.f32.mrb[0].mxu0
    %v1373 = vadd.f32 %v609, %v1372
    %v1374 = vpop.f32.mrb[0].mxu0
    %v1375 = vadd.f32 %v605, %v1374
    %v1376 = vpop.f32.mrb[0].mxu0
    %v1377 = vadd.f32 %v609, %v1376
    %1378 = vmatprep.mubr.bf16.mxu0 0
    %1379 = vmatmul.mubr.bf16.gmra.mrb[0].mxu0 %v895
    %v1380 = vpop.f32.mrb[0].mxu0
    %v1381 = vadd.f32 %v605, %v1380
    %v1382 = vpop.f32.mrb[0].mxu0
    %v1383 = vadd.f32 %v609, %v1382
    %v1384 = vpop.f32.mrb[0].mxu0
    %v1385 = vadd.f32 %v605, %v1384
    %v1386 = vpop.f32.mrb[0].mxu0
    %v1387 = vadd.f32 %v609, %v1386
    %1388 = vmatprep.mubr.bf16.mxu0 0
    %1389 = vmatmul.mubr.bf16.gmra.mrb[0].mxu0 %v896
    %v1390 = vpop.f32.mrb[0].mxu0
    %v1391 = vadd.f32 %v605, %v1390
    %v1392 = vpop.f32.mrb[0].mxu0
    %v1393 = vadd.f32 %v609, %v1392
    %v1394 = vpop.f32.mrb[0].mxu0
    %v1395 = vadd.f32 %v605, %v1394
    %v1396 = vpop.f32.mrb[0].mxu0
    %v1397 = vadd.f32 %v609, %v1396
    %1398 = vmatprep.mubr.bf16.mxu0 0
    %1399 = vmatmul.mubr.bf16.gmra.mrb[0].mxu0 %v897
    %v1400 = vpop.f32.mrb[0].mxu0
    %v1401 = vadd.f32 %v605, %v1400
    %v1402 = vpop.f32.mrb[0].mxu0
    %v1403 = vadd.f32 %v609, %v1402
    %v1404 = vpop.f32.mrb[0].mxu0
    %v1405 = vadd.f32 %v605, %v1404
    %v1406 = vpop.f32.mrb[0].mxu0
    %v1407 = vadd.f32 %v609, %v1406
    %1408 = vmatprep.mubr.bf16.mxu0 0
    %1409 = vmatmul.mubr.bf16.gmra.mrb[0].mxu0 %v898
    %v1410 = vpop.f32.mrb[0].mxu0
    %v1411 = vadd.f32 %v605, %v1410
    %v1412 = vpop.f32.mrb[0].mxu0
    %v1413 = vadd.f32 %v609, %v1412
    %v1414 = vpop.f32.mrb[0].mxu0
    %v1415 = vadd.f32 %v605, %v1414
    %v1416 = vpop.f32.mrb[0].mxu0
    %v1417 = vadd.f32 %v609, %v1416
    %1418 = vmatprep.mubr.bf16.mxu0 0
    %1419 = vmatmul.mubr.bf16.gmra.mrb[0].mxu0 %v899
    %v1420 = vpop.f32.mrb[0].mxu0
    %v1421 = vadd.f32 %v605, %v1420
    %v1422 = vpop.f32.mrb[0].mxu0
    %v1423 = vadd.f32 %v609, %v1422
    %v1424 = vpop.f32.mrb[0].mxu0
    %v1425 = vadd.f32 %v605, %v1424
    %v1426 = vpop.f32.mrb[0].mxu0
    %v1427 = vadd.f32 %v609, %v1426
    %1428 = vmatprep.mubr.bf16.mxu0 0
    %1429 = vmatmul.mubr.bf16.gmra.mrb[0].mxu0 %v900
    %v1430 = vpop.f32.mrb[0].mxu0
    %v1431 = vadd.f32 %v605, %v1430
    %v1432 = vpop.f32.mrb[0].mxu0
    %v1433 = vadd.f32 %v609, %v1432
    %v1434 = vpop.f32.mrb[0].mxu0
    %v1435 = vadd.f32 %v605, %v1434
    %v1436 = vpop.f32.mrb[0].mxu0
    %v1437 = vadd.f32 %v609, %v1436
    %1438 = vmatprep.mubr.bf16.mxu0 0
    %1439 = vmatmul.mubr.bf16.gmra.mrb[0].mxu0 %v901
    %v1440 = vpop.f32.mrb[0].mxu0
    %v1441 = vadd.f32 %v605, %v1440
    %v1442 = vpop.f32.mrb[0].mxu0
    %v1443 = vadd.f32 %v609, %v1442
    %v1444 = vpop.f32.mrb[0].mxu0
    %v1445 = vadd.f32 %v605, %v1444
    %v1446 = vpop.f32.mrb[0].mxu0
    %v1447 = vadd.f32 %v609, %v1446
    %1448 = vmatprep.mubr.bf16.mxu0 0
    %1449 = vmatmul.mubr.bf16.gmra.mrb[0].mxu0 %v902
    %v1450 = vpop.f32.mrb[0].mxu0
    %v1451 = vadd.f32 %v605, %v1450
    %v1452 = vpop.f32.mrb[0].mxu0
    %v1453 = vadd.f32 %v609, %v1452
    %v1454 = vpop.f32.mrb[0].mxu0
    %v1455 = vadd.f32 %v605, %v1454
    %v1456 = vpop.f32.mrb[0].mxu0
    %v1457 = vadd.f32 %v609, %v1456
    %1458 = vmatprep.mubr.bf16.mxu0 0
    %1459 = vmatmul.mubr.bf16.gmra.mrb[0].mxu0 %v903
    %v1460 = vpop.f32.mrb[0].mxu0
    %v1461 = vadd.f32 %v605, %v1460
    %v1462 = vpop.f32.mrb[0].mxu0
    %v1463 = vadd.f32 %v609, %v1462
    %v1464 = vpop.f32.mrb[0].mxu0
    %v1465 = vadd.f32 %v605, %v1464
    %v1466 = vpop.f32.mrb[0].mxu0
    %v1467 = vadd.f32 %v609, %v1466
    %1468 = vmatprep.mubr.bf16.mxu0 0
    %1469 = vmatmul.mubr.bf16.gmra.mrb[0].mxu0 %v904
    %v1470 = vpop.f32.mrb[0].mxu0
    %v1471 = vadd.f32 %v605, %v1470
    %v1472 = vpop.f32.mrb[0].mxu0
    %v1473 = vadd.f32 %v609, %v1472
    %v1474 = vpop.f32.mrb[0].mxu0
    %v1475 = vadd.f32 %v605, %v1474
    %v1476 = vpop.f32.mrb[0].mxu0
    %v1477 = vadd.f32 %v609, %v1476
    %1478 = vmatprep.mubr.bf16.mxu0 0
    %1479 = vmatmul.mubr.bf16.gmra.mrb[0].mxu0 %v905
    %v1480 = vpop.f32.mrb[0].mxu0
    %v1481 = vadd.f32 %v605, %v1480
    %v1482 = vpop.f32.mrb[0].mxu0
    %v1483 = vadd.f32 %v609, %v1482
    %v1484 = vpop.f32.mrb[0].mxu0
    %v1485 = vadd.f32 %v605, %v1484
    %v1486 = vpop.f32.mrb[0].mxu0
    %v1487 = vadd.f32 %v609, %v1486
    %1488 = vmatprep.mubr.bf16.mxu0 0
    %1489 = vmatmul.mubr.bf16.gmra.mrb[0].mxu0 %v906
    %v1490 = vpop.f32.mrb[0].mxu0
    %v1491 = vadd.f32 %v605, %v1490
    %v1492 = vpop.f32.mrb[0].mxu0
    %v1493 = vadd.f32 %v609, %v1492
    %v1494 = vpop.f32.mrb[0].mxu0
    %v1495 = vadd.f32 %v605, %v1494
    %v1496 = vpop.f32.mrb[0].mxu0
    %v1497 = vadd.f32 %v609, %v1496
    %1498 = vmatprep.mubr.bf16.mxu0 0
    %1499 = vmatmul.mubr.bf16.gmra.mrb[0].mxu0 %v907
    %v1500 = vpop.f32.mrb[0].mxu0
    %v1501 = vadd.f32 %v605, %v1500
    %v1502 = vpop.f32.mrb[0].mxu0
    %v1503 = vadd.f32 %v609, %v1502
    %v1504 = vpop.f32.mrb[0].mxu0
    %v1505 = vadd.f32 %v605, %v1504
    %v1506 = vpop.f32.mrb[0].mxu0
    %v1507 = vadd.f32 %v609, %v1506
    %1508 = vmatprep.mubr.bf16.mxu0 0
    %1509 = vmatmul.mubr.bf16.gmra.mrb[0].mxu0 %v908
    %v1510 = vpop.f32.mrb[0].mxu0
    %v1511 = vadd.f32 %v605, %v1510
    %v1512 = vpop.f32.mrb[0].mxu0
    %v1513 = vadd.f32 %v609, %v1512
    %v1514 = vpop.f32.mrb[0].mxu0
    %v1515 = vadd.f32 %v605, %v1514
    %v1516 = vpop.f32.mrb[0].mxu0
    %v1517 = vadd.f32 %v609, %v1516
    %1518 = vmatprep.mubr.bf16.mxu0 0
    %1519 = vmatmul.mubr.bf16.gmra.mrb[0].mxu0 %v909
    %v1520 = vpop.f32.mrb[0].mxu0
    %v1521 = vadd.f32 %v605, %v1520
    %v1522 = vpop.f32.mrb[0].mxu0
    %v1523 = vadd.f32 %v609, %v1522
    %v1524 = vpop.f32.mrb[0].mxu0
    %v1525 = vadd.f32 %v605, %v1524
    %v1526 = vpop.f32.mrb[0].mxu0
    %v1527 = vadd.f32 %v609, %v1526
    %1528 = vmatprep.mubr.bf16.mxu0 0
    %1529 = vmatmul.mubr.bf16.gmra.mrb[0].mxu0 %v910
    %v1530 = vpop.f32.mrb[0].mxu0
    %v1531 = vadd.f32 %v605, %v1530
    %v1532 = vpop.f32.mrb[0].mxu0
    %v1533 = vadd.f32 %v609, %v1532
    %v1534 = vpop.f32.mrb[0].mxu0
    %v1535 = vadd.f32 %v605, %v1534
    %v1536 = vpop.f32.mrb[0].mxu0
    %v1537 = vadd.f32 %v609, %v1536
    %1538 = vmatprep.mubr.bf16.mxu0 0
    %1539 = vmatmul.mubr.bf16.gmra.mrb[0].mxu0 %v911
    %v1540 = vpop.f32.mrb[0].mxu0
    %v1541 = vadd.f32 %v605, %v1540
    %v1542 = vpop.f32.mrb[0].mxu0
    %v1543 = vadd.f32 %v609, %v1542
    %v1544 = vpop.f32.mrb[0].mxu0
    %v1545 = vadd.f32 %v605, %v1544
    %v1546 = vpop.f32.mrb[0].mxu0
    %v1547 = vadd.f32 %v609, %v1546
    %1548 = vmatprep.mubr.bf16.mxu0 0
    %1549 = vmatmul.mubr.bf16.gmra.mrb[0].mxu0 %v912
    %v1550 = vpop.f32.mrb[0].mxu0
    %v1551 = vadd.f32 %v605, %v1550
    %v1552 = vpop.f32.mrb[0].mxu0
    %v1553 = vadd.f32 %v609, %v1552
    %v1554 = vpop.f32.mrb[0].mxu0
    %v1555 = vadd.f32 %v605, %v1554
    %v1556 = vpop.f32.mrb[0].mxu0
    %v1557 = vadd.f32 %v609, %v1556
    %1558 = vmatprep.mubr.bf16.mxu0 0
    %1559 = vmatmul.mubr.bf16.gmra.mrb[0].mxu0 %v913
    %v1560 = vpop.f32.mrb[0].mxu0
    %v1561 = vadd.f32 %v605, %v1560
    %v1562 = vpop.f32.mrb[0].mxu0
    %v1563 = vadd.f32 %v609, %v1562
    %v1564 = vpop.f32.mrb[0].mxu0
    %v1565 = vadd.f32 %v605, %v1564
    %v1566 = vpop.f32.mrb[0].mxu0
    %v1567 = vadd.f32 %v609, %v1566
    %1568 = vmatprep.mubr.bf16.mxu0 0
    %1569 = vmatmul.mubr.bf16.gmra.mrb[0].mxu0 %v914
    %v1570 = vpop.f32.mrb[0].mxu0
    %v1571 = vadd.f32 %v605, %v1570
    %v1572 = vpop.f32.mrb[0].mxu0
    %v1573 = vadd.f32 %v609, %v1572
    %v1574 = vpop.f32.mrb[0].mxu0
    %v1575 = vadd.f32 %v605, %v1574
    %v1576 = vpop.f32.mrb[0].mxu0
    %v1577 = vadd.f32 %v609, %v1576
    %1578 = vmatprep.mubr.bf16.mxu0 0
    %1579 = vmatmul.mubr.bf16.gmra.mrb[0].mxu0 %v915
    %v1580 = vpop.f32.mrb[0].mxu0
    %v1581 = vadd.f32 %v605, %v1580
    %v1582 = vpop.f32.mrb[0].mxu0
    %v1583 = vadd.f32 %v609, %v1582
    %v1584 = vpop.f32.mrb[0].mxu0
    %v1585 = vadd.f32 %v605, %v1584
    %v1586 = vpop.f32.mrb[0].mxu0
    %v1587 = vadd.f32 %v609, %v1586
    %1588 = vmatprep.mubr.bf16.mxu0 0
    %1589 = vmatmul.mubr.bf16.gmra.mrb[0].mxu0 %v916
    %v1590 = vpop.f32.mrb[0].mxu0
    %v1591 = vadd.f32 %v605, %v1590
    %v1592 = vpop.f32.mrb[0].mxu0
    %v1593 = vadd.f32 %v609, %v1592
    %v1594 = vpop.f32.mrb[0].mxu0
    %v1595 = vadd.f32 %v605, %v1594
    %v1596 = vpop.f32.mrb[0].mxu0
    %v1597 = vadd.f32 %v609, %v1596
    %1598 = vmatprep.mubr.bf16.mxu0 0
    %1599 = vmatmul.mubr.bf16.gmra.mrb[0].mxu0 %v917
    %v1600 = vpop.f32.mrb[0].mxu0
    %v1601 = vadd.f32 %v605, %v1600
    %v1602 = vpop.f32.mrb[0].mxu0
    %v1603 = vadd.f32 %v609, %v1602
    %v1604 = vpop.f32.mrb[0].mxu0
    %v1605 = vadd.f32 %v605, %v1604
    %v1606 = vpop.f32.mrb[0].mxu0
    %v1607 = vadd.f32 %v609, %v1606
    %1608 = vmatprep.mubr.bf16.mxu0 0
    %1609 = vmatmul.mubr.bf16.gmra.mrb[0].mxu0 %v918
    %v1610 = vpop.f32.mrb[0].mxu0
    %v1611 = vadd.f32 %v605, %v1610
    %v1612 = vpop.f32.mrb[0].mxu0
    %v1613 = vadd.f32 %v609, %v1612
    %v1614 = vpop.f32.mrb[0].mxu0
    %v1615 = vadd.f32 %v605, %v1614
    %v1616 = vpop.f32.mrb[0].mxu0
    %v1617 = vadd.f32 %v609, %v1616
    %1618 = vmatprep.mubr.bf16.mxu0 0
    %1619 = vmatmul.mubr.bf16.gmra.mrb[0].mxu0 %v919
    %v1620 = vpop.f32.mrb[0].mxu0
    %v1621 = vadd.f32 %v605, %v1620
    %v1622 = vpop.f32.mrb[0].mxu0
    %v1623 = vadd.f32 %v609, %v1622
    %v1624 = vpop.f32.mrb[0].mxu0
    %v1625 = vadd.f32 %v605, %v1624
    %v1626 = vpop.f32.mrb[0].mxu0
    %v1627 = vadd.f32 %v609, %v1626
    %1628 = vmatprep.mubr.bf16.mxu0 0
    %1629 = vmatmul.mubr.bf16.gmra.mrb[0].mxu0 %v920
    %v1630 = vpop.f32.mrb[0].mxu0
    %v1631 = vadd.f32 %v605, %v1630
    %v1632 = vpop.f32.mrb[0].mxu0
    %v1633 = vadd.f32 %v609, %v1632
    %v1634 = vpop.f32.mrb[0].mxu0
    %v1635 = vadd.f32 %v605, %v1634
    %v1636 = vpop.f32.mrb[0].mxu0
    %v1637 = vadd.f32 %v609, %v1636
    %1638 = vmatprep.mubr.bf16.mxu0 0
    %1639 = vmatmul.mubr.bf16.gmra.mrb[0].mxu0 %v921
    %v1640 = vpop.f32.mrb[0].mxu0
    %v1641 = vadd.f32 %v605, %v1640
    %v1642 = vpop.f32.mrb[0].mxu0
    %v1643 = vadd.f32 %v609, %v1642
    %v1644 = vpop.f32.mrb[0].mxu0
    %v1645 = vadd.f32 %v605, %v1644
    %v1646 = vpop.f32.mrb[0].mxu0
    %v1647 = vadd.f32 %v609, %v1646
    %1648 = vmatprep.mubr.bf16.mxu0 0
    %1649 = vmatmul.mubr.bf16.gmra.mrb[0].mxu0 %v922
    %v1650 = vpop.f32.mrb[0].mxu0
    %v1651 = vadd.f32 %v605, %v1650
    %v1652 = vpop.f32.mrb[0].mxu0
    %v1653 = vadd.f32 %v609, %v1652
    %v1654 = vpop.f32.mrb[0].mxu0
    %v1655 = vadd.f32 %v605, %v1654
    %v1656 = vpop.f32.mrb[0].mxu0
    %v1657 = vadd.f32 %v609, %v1656
    %1658 = vmatprep.mubr.bf16.mxu0 0
    %1659 = vmatmul.mubr.bf16.gmra.mrb[0].mxu0 %v923
    %v1660 = vpop.f32.mrb[0].mxu0
    %v1661 = vadd.f32 %v605, %v1660
    %v1662 = vpop.f32.mrb[0].mxu0
    %v1663 = vadd.f32 %v609, %v1662
    %v1664 = vpop.f32.mrb[0].mxu0
    %v1665 = vadd.f32 %v605, %v1664
    %v1666 = vpop.f32.mrb[0].mxu0
    %v1667 = vadd.f32 %v609, %v1666
    %1668 = vmatprep.mubr.bf16.mxu0 0
    %1669 = vmatmul.mubr.bf16.gmra.mrb[0].mxu0 %v924
    %v1670 = vpop.f32.mrb[0].mxu0
    %v1671 = vadd.f32 %v605, %v1670
    %v1672 = vpop.f32.mrb[0].mxu0
    %v1673 = vadd.f32 %v609, %v1672
    %v1674 = vpop.f32.mrb[0].mxu0
    %v1675 = vadd.f32 %v605, %v1674
    %v1676 = vpop.f32.mrb[0].mxu0
    %v1677 = vadd.f32 %v609, %v1676
    %1678 = vmatprep.mubr.bf16.mxu0 0
    %1679 = vmatmul.mubr.bf16.gmra.mrb[0].mxu0 %v925
    %v1680 = vpop.f32.mrb[0].mxu0
    %v1681 = vadd.f32 %v605, %v1680
    %v1682 = vpop.f32.mrb[0].mxu0
    %v1683 = vadd.f32 %v609, %v1682
    %v1684 = vpop.f32.mrb[0].mxu0
    %v1685 = vadd.f32 %v605, %v1684
    %v1686 = vpop.f32.mrb[0].mxu0
    %v1687 = vadd.f32 %v609, %v1686
    %1688 = vmatprep.mubr.bf16.mxu0 0
    %1689 = vmatmul.mubr.bf16.gmra.mrb[0].mxu0 %v926
    %v1690 = vpop.f32.mrb[0].mxu0
    %v1691 = vadd.f32 %v605, %v1690
    %v1692 = vpop.f32.mrb[0].mxu0
    %v1693 = vadd.f32 %v609, %v1692
    %v1694 = vpop.f32.mrb[0].mxu0
    %v1695 = vadd.f32 %v605, %v1694
    %v1696 = vpop.f32.mrb[0].mxu0
    %v1697 = vadd.f32 %v609, %v1696
    %1698 = vmatprep.mubr.bf16.mxu0 0
    %1699 = vmatmul.mubr.bf16.gmra.mrb[0].mxu0 %v927
    %v1700 = vpop.f32.mrb[0].mxu0
    %v1701 = vadd.f32 %v605, %v1700
    %v1702 = vpop.f32.mrb[0].mxu0
    %v1703 = vadd.f32 %v609, %v1702
    %v1704 = vpop.f32.mrb[0].mxu0
    %v1705 = vadd.f32 %v605, %v1704
    %v1706 = vpop.f32.mrb[0].mxu0
    %v1707 = vadd.f32 %v609, %v1706
    %1708 = vmatprep.mubr.bf16.mxu0 0
    %1709 = vmatmul.mubr.bf16.gmra.mrb[0].mxu0 %v928
    %v1710 = vpop.f32.mrb[0].mxu0
    %v1711 = vadd.f32 %v605, %v1710
    %v1712 = vpop.f32.mrb[0].mxu0
    %v1713 = vadd.f32 %v609, %v1712
    %v1714 = vpop.f32.mrb[0].mxu0
    %v1715 = vadd.f32 %v605, %v1714
    %v1716 = vpop.f32.mrb[0].mxu0
    %v1717 = vadd.f32 %v609, %v1716
    %1718 = vmatprep.mubr.bf16.mxu0 0
    %1719 = vmatmul.mubr.bf16.gmra.mrb[0].mxu0 %v929
    %v1720 = vpop.f32.mrb[0].mxu0
    %v1721 = vadd.f32 %v605, %v1720
    %v1722 = vpop.f32.mrb[0].mxu0
    %v1723 = vadd.f32 %v609, %v1722
    %v1724 = vpop.f32.mrb[0].mxu0
    %v1725 = vadd.f32 %v605, %v1724
    %v1726 = vpop.f32.mrb[0].mxu0
    %v1727 = vadd.f32 %v609, %v1726
    %1728 = vmatprep.mubr.bf16.mxu0 0
    %1729 = vmatmul.mubr.bf16.gmra.mrb[0].mxu0 %v930
    %v1730 = vpop.f32.mrb[0].mxu0
    %v1731 = vadd.f32 %v605, %v1730
    %v1732 = vpop.f32.mrb[0].mxu0
    %v1733 = vadd.f32 %v609, %v1732
    %v1734 = vpop.f32.mrb[0].mxu0
    %v1735 = vadd.f32 %v605, %v1734
    %v1736 = vpop.f32.mrb[0].mxu0
    %v1737 = vadd.f32 %v609, %v1736
    %1738 = vmatprep.mubr.bf16.mxu0 0
    %1739 = vmatmul.mubr.bf16.gmra.mrb[0].mxu0 %v931
    %v1740 = vpop.f32.mrb[0].mxu0
    %v1741 = vadd.f32 %v605, %v1740
    %v1742 = vpop.f32.mrb[0].mxu0
    %v1743 = vadd.f32 %v609, %v1742
    %v1744 = vpop.f32.mrb[0].mxu0
    %v1745 = vadd.f32 %v605, %v1744
    %v1746 = vpop.f32.mrb[0].mxu0
    %v1747 = vadd.f32 %v609, %v1746
    %1748 = vdwg.mxu0
    %v1749 = vld [vmem:[#allocation7] sm:$0xf]
    %v1750 = vld [vmem:[#allocation7 + $0x4] sm:$0xf]
    %v1751 = vld [vmem:[#allocation7 + $0x8] sm:$0xf]
    %v1752 = vld [vmem:[#allocation7 + $0xc] sm:$0xf]
    %v1753 = vld [vmem:[#allocation7 + $0x10] sm:$0xf]
    %v1754 = vld [vmem:[#allocation7 + $0x14] sm:$0xf]
    %v1755 = vld [vmem:[#allocation7 + $0x18] sm:$0xf]
    %v1756 = vld [vmem:[#allocation7 + $0x1c] sm:$0xf]
    %v1757 = vld [vmem:[#allocation7 + $0x20] sm:$0xf]
    %v1758 = vld [vmem:[#allocation7 + $0x24] sm:$0xf]
    %v1759 = vld [vmem:[#allocation7 + $0x28] sm:$0xf]
    %v1760 = vld [vmem:[#allocation7 + $0x2c] sm:$0xf]
    %v1761 = vld [vmem:[#allocation7 + $0x30] sm:$0xf]
    %v1762 = vld [vmem:[#allocation7 + $0x34] sm:$0xf]
    %v1763 = vld [vmem:[#allocation7 + $0x38] sm:$0xf]
    %v1764 = vld [vmem:[#allocation7 + $0x3c] sm:$0xf]
    %v1765 = vld [vmem:[#allocation7 + $0x40] sm:$0xf]
    %v1766 = vld [vmem:[#allocation7 + $0x44] sm:$0xf]
    %v1767 = vld [vmem:[#allocation7 + $0x48] sm:$0xf]
    %v1768 = vld [vmem:[#allocation7 + $0x4c] sm:$0xf]
    %v1769 = vld [vmem:[#allocation7 + $0x50] sm:$0xf]
    %v1770 = vld [vmem:[#allocation7 + $0x54] sm:$0xf]
    %v1771 = vld [vmem:[#allocation7 + $0x58] sm:$0xf]
    %v1772 = vld [vmem:[#allocation7 + $0x5c] sm:$0xf]
    %v1773 = vld [vmem:[#allocation7 + $0x60] sm:$0xf]
    %v1774 = vld [vmem:[#allocation7 + $0x64] sm:$0xf]
    %v1775 = vld [vmem:[#allocation7 + $0x68] sm:$0xf]
    %v1776 = vld [vmem:[#allocation7 + $0x6c] sm:$0xf]
    %v1777 = vld [vmem:[#allocation7 + $0x70] sm:$0xf]
    %v1778 = vld [vmem:[#allocation7 + $0x74] sm:$0xf]
    %v1779 = vld [vmem:[#allocation7 + $0x78] sm:$0xf]
    %v1780 = vld [vmem:[#allocation7 + $0x7c] sm:$0xf]
    %v1781 = vld [vmem:[#allocation7 + $0x80] sm:$0xf]
    %v1782 = vld [vmem:[#allocation7 + $0x84] sm:$0xf]
    %v1783 = vld [vmem:[#allocation7 + $0x88] sm:$0xf]
    %v1784 = vld [vmem:[#allocation7 + $0x8c] sm:$0xf]
    %v1785 = vld [vmem:[#allocation7 + $0x90] sm:$0xf]
    %v1786 = vld [vmem:[#allocation7 + $0x94] sm:$0xf]
    %v1787 = vld [vmem:[#allocation7 + $0x98] sm:$0xf]
    %v1788 = vld [vmem:[#allocation7 + $0x9c] sm:$0xf]
    %v1789 = vld [vmem:[#allocation7 + $0xa0] sm:$0xf]
    %v1790 = vld [vmem:[#allocation7 + $0xa4] sm:$0xf]
    %v1791 = vld [vmem:[#allocation7 + $0xa8] sm:$0xf]
    %v1792 = vld [vmem:[#allocation7 + $0xac] sm:$0xf]
    %v1793 = vld [vmem:[#allocation7 + $0xb0] sm:$0xf]
    %v1794 = vld [vmem:[#allocation7 + $0xb4] sm:$0xf]
    %v1795 = vld [vmem:[#allocation7 + $0xb8] sm:$0xf]
    %v1796 = vld [vmem:[#allocation7 + $0xbc] sm:$0xf]
    %v1797 = vld [vmem:[#allocation7 + $0xc0] sm:$0xf]
    %v1798 = vld [vmem:[#allocation7 + $0xc4] sm:$0xf]
    %v1799 = vld [vmem:[#allocation7 + $0xc8] sm:$0xf]
    %v1800 = vld [vmem:[#allocation7 + $0xcc] sm:$0xf]
    %v1801 = vld [vmem:[#allocation7 + $0xd0] sm:$0xf]
    %v1802 = vld [vmem:[#allocation7 + $0xd4] sm:$0xf]
    %v1803 = vld [vmem:[#allocation7 + $0xd8] sm:$0xf]
    %v1804 = vld [vmem:[#allocation7 + $0xdc] sm:$0xf]
    %v1805 = vld [vmem:[#allocation7 + $0xe0] sm:$0xf]
    %v1806 = vld [vmem:[#allocation7 + $0xe4] sm:$0xf]
    %v1807 = vld [vmem:[#allocation7 + $0xe8] sm:$0xf]
    %v1808 = vld [vmem:[#allocation7 + $0xec] sm:$0xf]
    %v1809 = vld [vmem:[#allocation7 + $0xf0] sm:$0xf]
    %v1810 = vld [vmem:[#allocation7 + $0xf4] sm:$0xf]
    %v1811 = vld [vmem:[#allocation7 + $0xf8] sm:$0xf]
    %v1812 = vld [vmem:[#allocation7 + $0xfc] sm:$0xf]
    %v1813 = vld [vmem:[#allocation7 + $0x100] sm:$0xf]
    %v1814 = vld [vmem:[#allocation7 + $0x104] sm:$0xf]
    %v1815 = vld [vmem:[#allocation7 + $0x108] sm:$0xf]
    %v1816 = vld [vmem:[#allocation7 + $0x10c] sm:$0xf]
    %v1817 = vld [vmem:[#allocation7 + $0x110] sm:$0xf]
    %v1818 = vld [vmem:[#allocation7 + $0x114] sm:$0xf]
    %v1819 = vld [vmem:[#allocation7 + $0x118] sm:$0xf]
    %v1820 = vld [vmem:[#allocation7 + $0x11c] sm:$0xf]
    %v1821 = vld [vmem:[#allocation7 + $0x120] sm:$0xf]
    %v1822 = vld [vmem:[#allocation7 + $0x124] sm:$0xf]
    %v1823 = vld [vmem:[#allocation7 + $0x128] sm:$0xf]
    %v1824 = vld [vmem:[#allocation7 + $0x12c] sm:$0xf]
    %v1825 = vld [vmem:[#allocation7 + $0x130] sm:$0xf]
    %v1826 = vld [vmem:[#allocation7 + $0x134] sm:$0xf]
    %v1827 = vld [vmem:[#allocation7 + $0x138] sm:$0xf]
    %v1828 = vld [vmem:[#allocation7 + $0x13c] sm:$0xf]
    %v1829 = vld [vmem:[#allocation7 + $0x140] sm:$0xf]
    %v1830 = vld [vmem:[#allocation7 + $0x144] sm:$0xf]
    %v1831 = vld [vmem:[#allocation7 + $0x148] sm:$0xf]
    %v1832 = vld [vmem:[#allocation7 + $0x14c] sm:$0xf]
    %v1833 = vld [vmem:[#allocation7 + $0x150] sm:$0xf]
    %v1834 = vld [vmem:[#allocation7 + $0x154] sm:$0xf]
    %v1835 = vld [vmem:[#allocation7 + $0x158] sm:$0xf]
    %v1836 = vld [vmem:[#allocation7 + $0x15c] sm:$0xf]
    %v1837 = vld [vmem:[#allocation7 + $0x160] sm:$0xf]
    %v1838 = vld [vmem:[#allocation7 + $0x164] sm:$0xf]
    %v1839 = vld [vmem:[#allocation7 + $0x168] sm:$0xf]
    %v1840 = vld [vmem:[#allocation7 + $0x16c] sm:$0xf]
    %v1841 = vld [vmem:[#allocation7 + $0x170] sm:$0xf]
    %v1842 = vld [vmem:[#allocation7 + $0x174] sm:$0xf]
    %v1843 = vld [vmem:[#allocation7 + $0x178] sm:$0xf]
    %v1844 = vld [vmem:[#allocation7 + $0x17c] sm:$0xf]
    %v1845 = vld [vmem:[#allocation7 + $0x180] sm:$0xf]
    %v1846 = vld [vmem:[#allocation7 + $0x184] sm:$0xf]
    %v1847 = vld [vmem:[#allocation7 + $0x188] sm:$0xf]
    %v1848 = vld [vmem:[#allocation7 + $0x18c] sm:$0xf]
    %v1849 = vld [vmem:[#allocation7 + $0x190] sm:$0xf]
    %v1850 = vld [vmem:[#allocation7 + $0x194] sm:$0xf]
    %v1851 = vld [vmem:[#allocation7 + $0x198] sm:$0xf]
    %v1852 = vld [vmem:[#allocation7 + $0x19c] sm:$0xf]
    %v1853 = vld [vmem:[#allocation7 + $0x1a0] sm:$0xf]
    %v1854 = vld [vmem:[#allocation7 + $0x1a4] sm:$0xf]
    %v1855 = vld [vmem:[#allocation7 + $0x1a8] sm:$0xf]
    %v1856 = vld [vmem:[#allocation7 + $0x1ac] sm:$0xf]
    %v1857 = vld [vmem:[#allocation7 + $0x1b0] sm:$0xf]
    %v1858 = vld [vmem:[#allocation7 + $0x1b4] sm:$0xf]
    %v1859 = vld [vmem:[#allocation7 + $0x1b8] sm:$0xf]
    %v1860 = vld [vmem:[#allocation7 + $0x1bc] sm:$0xf]
    %v1861 = vld [vmem:[#allocation7 + $0x1c0] sm:$0xf]
    %v1862 = vld [vmem:[#allocation7 + $0x1c4] sm:$0xf]
    %v1863 = vld [vmem:[#allocation7 + $0x1c8] sm:$0xf]
    %v1864 = vld [vmem:[#allocation7 + $0x1cc] sm:$0xf]
    %v1865 = vld [vmem:[#allocation7 + $0x1d0] sm:$0xf]
    %v1866 = vld [vmem:[#allocation7 + $0x1d4] sm:$0xf]
    %v1867 = vld [vmem:[#allocation7 + $0x1d8] sm:$0xf]
    %v1868 = vld [vmem:[#allocation7 + $0x1dc] sm:$0xf]
    %v1869 = vld [vmem:[#allocation7 + $0x1e0] sm:$0xf]
    %v1870 = vld [vmem:[#allocation7 + $0x1e4] sm:$0xf]
    %v1871 = vld [vmem:[#allocation7 + $0x1e8] sm:$0xf]
    %v1872 = vld [vmem:[#allocation7 + $0x1ec] sm:$0xf]
    %v1873 = vld [vmem:[#allocation7 + $0x1f0] sm:$0xf]
    %v1874 = vld [vmem:[#allocation7 + $0x1f4] sm:$0xf]
    %v1875 = vld [vmem:[#allocation7 + $0x1f8] sm:$0xf]
    %v1876 = vld [vmem:[#allocation7 + $0x1fc] sm:$0xf]
    %v1877 = vld [vmem:[#allocation20] sm:$0xf]
    %v1878 = vld [vmem:[#allocation20 + $0x4] sm:$0xf]
    %v2007 = vunpack.c.l.b16 %v1749
    %v2008 = vunpack.c.l.b16 %v1750
    %v2009 = vunpack.c.l.b16 %v1751
    %v2010 = vunpack.c.l.b16 %v1752
    %v2011 = vunpack.c.l.b16 %v1753
    %v2012 = vunpack.c.l.b16 %v1754
    %v2013 = vunpack.c.l.b16 %v1755
    %v2014 = vunpack.c.l.b16 %v1756
    %v2015 = vunpack.c.l.b16 %v1757
    %v2016 = vunpack.c.l.b16 %v1758
    %v2017 = vunpack.c.l.b16 %v1759
    %v2018 = vunpack.c.l.b16 %v1760
    %v2019 = vunpack.c.l.b16 %v1761
    %v2020 = vunpack.c.l.b16 %v1762
    %v2021 = vunpack.c.l.b16 %v1763
    %v2022 = vunpack.c.l.b16 %v1764
    %v2023 = vunpack.c.l.b16 %v1765
    %v2024 = vunpack.c.l.b16 %v1766
    %v2025 = vunpack.c.l.b16 %v1767
    %v2026 = vunpack.c.l.b16 %v1768
    %v2027 = vunpack.c.l.b16 %v1769
    %v2028 = vunpack.c.l.b16 %v1770
    %v2029 = vunpack.c.l.b16 %v1771
    %v2030 = vunpack.c.l.b16 %v1772
    %v2031 = vunpack.c.l.b16 %v1773
    %v2032 = vunpack.c.l.b16 %v1774
    %v2033 = vunpack.c.l.b16 %v1775
    %v2034 = vunpack.c.l.b16 %v1776
    %v2035 = vunpack.c.l.b16 %v1777
    %v2036 = vunpack.c.l.b16 %v1778
    %v2037 = vunpack.c.l.b16 %v1779
    %v2038 = vunpack.c.l.b16 %v1780
    %v2039 = vunpack.c.l.b16 %v1781
    %v2040 = vunpack.c.l.b16 %v1782
    %v2041 = vunpack.c.l.b16 %v1783
    %v2042 = vunpack.c.l.b16 %v1784
    %v2043 = vunpack.c.l.b16 %v1785
    %v2044 = vunpack.c.l.b16 %v1786
    %v2045 = vunpack.c.l.b16 %v1787
    %v2046 = vunpack.c.l.b16 %v1788
    %v2047 = vunpack.c.l.b16 %v1789
    %v2048 = vunpack.c.l.b16 %v1790
    %v2049 = vunpack.c.l.b16 %v1791
    %v2050 = vunpack.c.l.b16 %v1792
    %v2051 = vunpack.c.l.b16 %v1793
    %v2052 = vunpack.c.l.b16 %v1794
    %v2053 = vunpack.c.l.b16 %v1795
    %v2054 = vunpack.c.l.b16 %v1796
    %v2055 = vunpack.c.l.b16 %v1797
    %v2056 = vunpack.c.l.b16 %v1798
    %v2057 = vunpack.c.l.b16 %v1799
    %v2058 = vunpack.c.l.b16 %v1800
    %v2059 = vunpack.c.l.b16 %v1801
    %v2060 = vunpack.c.l.b16 %v1802
    %v2061 = vunpack.c.l.b16 %v1803
    %v2062 = vunpack.c.l.b16 %v1804
    %v2063 = vunpack.c.l.b16 %v1805
    %v2064 = vunpack.c.l.b16 %v1806
    %v2065 = vunpack.c.l.b16 %v1807
    %v2066 = vunpack.c.l.b16 %v1808
    %v2067 = vunpack.c.l.b16 %v1809
    %v2068 = vunpack.c.l.b16 %v1810
    %v2069 = vunpack.c.l.b16 %v1811
    %v2070 = vunpack.c.l.b16 %v1812
    %v2071 = vunpack.c.l.b16 %v1813
    %v2072 = vunpack.c.l.b16 %v1814
    %v2073 = vunpack.c.l.b16 %v1815
    %v2074 = vunpack.c.l.b16 %v1816
    %v2075 = vunpack.c.l.b16 %v1817
    %v2076 = vunpack.c.l.b16 %v1818
    %v2077 = vunpack.c.l.b16 %v1819
    %v2078 = vunpack.c.l.b16 %v1820
    %v2079 = vunpack.c.l.b16 %v1821
    %v2080 = vunpack.c.l.b16 %v1822
    %v2081 = vunpack.c.l.b16 %v1823
    %v2082 = vunpack.c.l.b16 %v1824
    %v2083 = vunpack.c.l.b16 %v1825
    %v2084 = vunpack.c.l.b16 %v1826
    %v2085 = vunpack.c.l.b16 %v1827
    %v2086 = vunpack.c.l.b16 %v1828
    %v2087 = vunpack.c.l.b16 %v1829
    %v2088 = vunpack.c.l.b16 %v1830
    %v2089 = vunpack.c.l.b16 %v1831
    %v2090 = vunpack.c.l.b16 %v1832
    %v2091 = vunpack.c.l.b16 %v1833
    %v2092 = vunpack.c.l.b16 %v1834
    %v2093 = vunpack.c.l.b16 %v1835
    %v2094 = vunpack.c.l.b16 %v1836
    %v2095 = vunpack.c.l.b16 %v1837
    %v2096 = vunpack.c.l.b16 %v1838
    %v2097 = vunpack.c.l.b16 %v1839
    %v2098 = vunpack.c.l.b16 %v1840
    %v2099 = vunpack.c.l.b16 %v1841
    %v2100 = vunpack.c.l.b16 %v1842
    %v2101 = vunpack.c.l.b16 %v1843
    %v2102 = vunpack.c.l.b16 %v1844
    %v2103 = vunpack.c.l.b16 %v1845
    %v2104 = vunpack.c.l.b16 %v1846
    %v2105 = vunpack.c.l.b16 %v1847
    %v2106 = vunpack.c.l.b16 %v1848
    %v2107 = vunpack.c.l.b16 %v1849
    %v2108 = vunpack.c.l.b16 %v1850
    %v2109 = vunpack.c.l.b16 %v1851
    %v2110 = vunpack.c.l.b16 %v1852
    %v2111 = vunpack.c.l.b16 %v1853
    %v2112 = vunpack.c.l.b16 %v1854
    %v2113 = vunpack.c.l.b16 %v1855
    %v2114 = vunpack.c.l.b16 %v1856
    %v2115 = vunpack.c.l.b16 %v1857
    %v2116 = vunpack.c.l.b16 %v1858
    %v2117 = vunpack.c.l.b16 %v1859
    %v2118 = vunpack.c.l.b16 %v1860
    %v2119 = vunpack.c.l.b16 %v1861
    %v2120 = vunpack.c.l.b16 %v1862
    %v2121 = vunpack.c.l.b16 %v1863
    %v2122 = vunpack.c.l.b16 %v1864
    %v2123 = vunpack.c.l.b16 %v1865
    %v2124 = vunpack.c.l.b16 %v1866
    %v2125 = vunpack.c.l.b16 %v1867
    %v2126 = vunpack.c.l.b16 %v1868
    %v2127 = vunpack.c.l.b16 %v1869
    %v2128 = vunpack.c.l.b16 %v1870
    %v2129 = vunpack.c.l.b16 %v1871
    %v2130 = vunpack.c.l.b16 %v1872
    %v2131 = vunpack.c.l.b16 %v1873
    %v2132 = vunpack.c.l.b16 %v1874
    %v2133 = vunpack.c.l.b16 %v1875
    %v2134 = vunpack.c.l.b16 %v1876
    %v2135 = vpack.c.b16 %v2008, %v2007
    %v2136 = vpack.c.b16 %v2010, %v2009
    %v2137 = vpack.c.b16 %v2012, %v2011
    %v2138 = vpack.c.b16 %v2014, %v2013
    %v2139 = vpack.c.b16 %v2016, %v2015
    %v2140 = vpack.c.b16 %v2018, %v2017
    %v2141 = vpack.c.b16 %v2020, %v2019
    %v2142 = vpack.c.b16 %v2022, %v2021
    %v2143 = vpack.c.b16 %v2024, %v2023
    %v2144 = vpack.c.b16 %v2026, %v2025
    %v2145 = vpack.c.b16 %v2028, %v2027
    %v2146 = vpack.c.b16 %v2030, %v2029
    %v2147 = vpack.c.b16 %v2032, %v2031
    %v2148 = vpack.c.b16 %v2034, %v2033
    %v2149 = vpack.c.b16 %v2036, %v2035
    %v2150 = vpack.c.b16 %v2038, %v2037
    %v2151 = vpack.c.b16 %v2040, %v2039
    %v2152 = vpack.c.b16 %v2042, %v2041
    %v2153 = vpack.c.b16 %v2044, %v2043
    %v2154 = vpack.c.b16 %v2046, %v2045
    %v2155 = vpack.c.b16 %v2048, %v2047
    %v2156 = vpack.c.b16 %v2050, %v2049
    %v2157 = vpack.c.b16 %v2052, %v2051
    %v2158 = vpack.c.b16 %v2054, %v2053
    %v2159 = vpack.c.b16 %v2056, %v2055
    %v2160 = vpack.c.b16 %v2058, %v2057
    %v2161 = vpack.c.b16 %v2060, %v2059
    %v2162 = vpack.c.b16 %v2062, %v2061
    %v2163 = vpack.c.b16 %v2064, %v2063
    %v2164 = vpack.c.b16 %v2066, %v2065
    %v2165 = vpack.c.b16 %v2068, %v2067
    %v2166 = vpack.c.b16 %v2070, %v2069
    %v2167 = vpack.c.b16 %v2072, %v2071
    %v2168 = vpack.c.b16 %v2074, %v2073
    %v2169 = vpack.c.b16 %v2076, %v2075
    %v2170 = vpack.c.b16 %v2078, %v2077
    %v2171 = vpack.c.b16 %v2080, %v2079
    %v2172 = vpack.c.b16 %v2082, %v2081
    %v2173 = vpack.c.b16 %v2084, %v2083
    %v2174 = vpack.c.b16 %v2086, %v2085
    %v2175 = vpack.c.b16 %v2088, %v2087
    %v2176 = vpack.c.b16 %v2090, %v2089
    %v2177 = vpack.c.b16 %v2092, %v2091
    %v2178 = vpack.c.b16 %v2094, %v2093
    %v2179 = vpack.c.b16 %v2096, %v2095
    %v2180 = vpack.c.b16 %v2098, %v2097
    %v2181 = vpack.c.b16 %v2100, %v2099
    %v2182 = vpack.c.b16 %v2102, %v2101
    %v2183 = vpack.c.b16 %v2104, %v2103
    %v2184 = vpack.c.b16 %v2106, %v2105
    %v2185 = vpack.c.b16 %v2108, %v2107
    %v2186 = vpack.c.b16 %v2110, %v2109
    %v2187 = vpack.c.b16 %v2112, %v2111
    %v2188 = vpack.c.b16 %v2114, %v2113
    %v2189 = vpack.c.b16 %v2116, %v2115
    %v2190 = vpack.c.b16 %v2118, %v2117
    %v2191 = vpack.c.b16 %v2120, %v2119
    %v2192 = vpack.c.b16 %v2122, %v2121
    %v2193 = vpack.c.b16 %v2124, %v2123
    %v2194 = vpack.c.b16 %v2126, %v2125
    %v2195 = vpack.c.b16 %v2128, %v2127
    %v2196 = vpack.c.b16 %v2130, %v2129
    %v2197 = vpack.c.b16 %v2132, %v2131
    %v2198 = vpack.c.b16 %v2134, %v2133
    %v2201 = vunpack.c.l.b16 %v1877
    %v2202 = vunpack.c.l.b16 %v1878
    %v2203 = vpack.c.b16 %v2202, %v2201
    %vm2205 = vcmask 130048
    %v2207 = vsel %vm2205, %v2135, 0
    %v2210 = vsel %vm2205, %v2136, 0
    %v2213 = vsel %vm2205, %v2137, 0
    %v2216 = vsel %vm2205, %v2138, 0
    %v2219 = vsel %vm2205, %v2139, 0
    %v2222 = vsel %vm2205, %v2140, 0
    %v2225 = vsel %vm2205, %v2141, 0
    %v2228 = vsel %vm2205, %v2142, 0
    %v2231 = vsel %vm2205, %v2143, 0
    %v2234 = vsel %vm2205, %v2144, 0
    %v2237 = vsel %vm2205, %v2145, 0
    %v2240 = vsel %vm2205, %v2146, 0
    %v2243 = vsel %vm2205, %v2147, 0
    %v2246 = vsel %vm2205, %v2148, 0
    %v2249 = vsel %vm2205, %v2149, 0
    %v2252 = vsel %vm2205, %v2150, 0
    %v2255 = vsel %vm2205, %v2151, 0
    %v2258 = vsel %vm2205, %v2152, 0
    %v2261 = vsel %vm2205, %v2153, 0
    %v2264 = vsel %vm2205, %v2154, 0
    %v2267 = vsel %vm2205, %v2155, 0
    %v2270 = vsel %vm2205, %v2156, 0
    %v2273 = vsel %vm2205, %v2157, 0
    %v2276 = vsel %vm2205, %v2158, 0
    %v2279 = vsel %vm2205, %v2159, 0
    %v2282 = vsel %vm2205, %v2160, 0
    %v2285 = vsel %vm2205, %v2161, 0
    %v2288 = vsel %vm2205, %v2162, 0
    %v2291 = vsel %vm2205, %v2163, 0
    %v2294 = vsel %vm2205, %v2164, 0
    %v2297 = vsel %vm2205, %v2165, 0
    %v2300 = vsel %vm2205, %v2166, 0
    %v2303 = vsel %vm2205, %v2167, 0
    %v2306 = vsel %vm2205, %v2168, 0
    %v2309 = vsel %vm2205, %v2169, 0
    %v2312 = vsel %vm2205, %v2170, 0
    %v2315 = vsel %vm2205, %v2171, 0
    %v2318 = vsel %vm2205, %v2172, 0
    %v2321 = vsel %vm2205, %v2173, 0
    %v2324 = vsel %vm2205, %v2174, 0
    %v2327 = vsel %vm2205, %v2175, 0
    %v2330 = vsel %vm2205, %v2176, 0
    %v2333 = vsel %vm2205, %v2177, 0
    %v2336 = vsel %vm2205, %v2178, 0
    %v2339 = vsel %vm2205, %v2179, 0
    %v2342 = vsel %vm2205, %v2180, 0
    %v2345 = vsel %vm2205, %v2181, 0
    %v2348 = vsel %vm2205, %v2182, 0
    %v2351 = vsel %vm2205, %v2183, 0
    %v2354 = vsel %vm2205, %v2184, 0
    %v2357 = vsel %vm2205, %v2185, 0
    %v2360 = vsel %vm2205, %v2186, 0
    %v2363 = vsel %vm2205, %v2187, 0
    %v2366 = vsel %vm2205, %v2188, 0
    %v2369 = vsel %vm2205, %v2189, 0
    %v2372 = vsel %vm2205, %v2190, 0
    %v2375 = vsel %vm2205, %v2191, 0
    %v2378 = vsel %vm2205, %v2192, 0
    %v2381 = vsel %vm2205, %v2193, 0
    %v2384 = vsel %vm2205, %v2194, 0
    %v2387 = vsel %vm2205, %v2195, 0
    %v2390 = vsel %vm2205, %v2196, 0
    %v2393 = vsel %vm2205, %v2197, 0
    %v2396 = vsel %vm2205, %v2198, 0
    %2398 = vmatprep.subr.bf16.mxu0 0
    %2399 = vmatpush1.bf16.msra.mxu0 %v2203
    %2400 = vmatprep.subr.bf16.mxu0 0
    %2401 = vmatpush1.bf16.msra.mxu0 0
    %2402 = vmatprep.subr.bf16.mxu0 0
    %2403 = vmatpush1.bf16.msra.mxu0 0
    %2404 = vmatprep.subr.bf16.mxu0 0
    %2405 = vmatpush1.bf16.msra.mxu0 0
    %2406 = vmatprep.subr.bf16.mxu0 0
    %2407 = vmatpush1.bf16.msra.mxu0 0
    %2408 = vmatprep.subr.bf16.mxu0 0
    %2409 = vmatpush1.bf16.msra.mxu0 0
    %2410 = vmatprep.subr.bf16.mxu0 0
    %2411 = vmatpush1.bf16.msra.mxu0 0
    %2412 = vmatprep.subr.bf16.mxu0 0
    %2413 = vmatpush1.bf16.msra.mxu0 0
    %2414 = vmatprep.subr.bf16.mxu0 0
    %2415 = vmatpush1.bf16.msra.mxu0 0
    %2416 = vmatprep.subr.bf16.mxu0 0
    %2417 = vmatpush1.bf16.msra.mxu0 0
    %2418 = vmatprep.subr.bf16.mxu0 0
    %2419 = vmatpush1.bf16.msra.mxu0 0
    %2420 = vmatprep.subr.bf16.mxu0 0
    %2421 = vmatpush1.bf16.msra.mxu0 0
    %2422 = vmatprep.subr.bf16.mxu0 0
    %2423 = vmatpush1.bf16.msra.mxu0 0
    %2424 = vmatprep.subr.bf16.mxu0 0
    %2425 = vmatpush1.bf16.msra.mxu0 0
    %2426 = vmatprep.subr.bf16.mxu0 0
    %2427 = vmatpush1.bf16.msra.mxu0 0
    %2428 = vmatprep.subr.bf16.mxu0 0
    %2429 = vmatpush1.bf16.msra.mxu0 0
    %2430 = vmatprep.mubr.bf16.mxu0 0
    %2431 = vmatmul.mubr.bf16.gmra.mrb[0].mxu0 %v2207
    %v2432 = vpop.f32.mrb[0].mxu0
    %v2433 = vadd.f32 0.0, %v2432
    %v2434 = vpop.f32.mrb[0].mxu0
    %v2435 = vpop.f32.mrb[0].mxu0
    %v2436 = vadd.f32 0.0, %v2435
    %v2437 = vpop.f32.mrb[0].mxu0
    %2438 = vmatprep.mubr.bf16.mxu0 0
    %2439 = vmatmul.mubr.bf16.gmra.mrb[0].mxu0 %v2210
    %v2440 = vpop.f32.mrb[0].mxu0
    %v2441 = vadd.f32 0.0, %v2440
    %v2442 = vpop.f32.mrb[0].mxu0
    %v2443 = vpop.f32.mrb[0].mxu0
    %v2444 = vadd.f32 0.0, %v2443
    %v2445 = vpop.f32.mrb[0].mxu0
    %2446 = vmatprep.mubr.bf16.mxu0 0
    %2447 = vmatmul.mubr.bf16.gmra.mrb[0].mxu0 %v2213
    %v2448 = vpop.f32.mrb[0].mxu0
    %v2449 = vadd.f32 0.0, %v2448
    %v2450 = vpop.f32.mrb[0].mxu0
    %v2451 = vpop.f32.mrb[0].mxu0
    %v2452 = vadd.f32 0.0, %v2451
    %v2453 = vpop.f32.mrb[0].mxu0
    %2454 = vmatprep.mubr.bf16.mxu0 0
    %2455 = vmatmul.mubr.bf16.gmra.mrb[0].mxu0 %v2216
    %v2456 = vpop.f32.mrb[0].mxu0
    %v2457 = vadd.f32 0.0, %v2456
    %v2458 = vpop.f32.mrb[0].mxu0
    %v2459 = vpop.f32.mrb[0].mxu0
    %v2460 = vadd.f32 0.0, %v2459
    %v2461 = vpop.f32.mrb[0].mxu0
    %2462 = vmatprep.mubr.bf16.mxu0 0
    %2463 = vmatmul.mubr.bf16.gmra.mrb[0].mxu0 %v2219
    %v2464 = vpop.f32.mrb[0].mxu0
    %v2465 = vadd.f32 0.0, %v2464
    %v2466 = vpop.f32.mrb[0].mxu0
    %v2467 = vpop.f32.mrb[0].mxu0
    %v2468 = vadd.f32 0.0, %v2467
    %v2469 = vpop.f32.mrb[0].mxu0
    %2470 = vmatprep.mubr.bf16.mxu0 0
    %2471 = vmatmul.mubr.bf16.gmra.mrb[0].mxu0 %v2222
    %v2472 = vpop.f32.mrb[0].mxu0
    %v2473 = vadd.f32 0.0, %v2472
    %v2474 = vpop.f32.mrb[0].mxu0
    %v2475 = vpop.f32.mrb[0].mxu0
    %v2476 = vadd.f32 0.0, %v2475
    %v2477 = vpop.f32.mrb[0].mxu0
    %2478 = vmatprep.mubr.bf16.mxu0 0
    %2479 = vmatmul.mubr.bf16.gmra.mrb[0].mxu0 %v2225
    %v2480 = vpop.f32.mrb[0].mxu0
    %v2481 = vadd.f32 0.0, %v2480
    %v2482 = vpop.f32.mrb[0].mxu0
    %v2483 = vpop.f32.mrb[0].mxu0
    %v2484 = vadd.f32 0.0, %v2483
    %v2485 = vpop.f32.mrb[0].mxu0
    %2486 = vmatprep.mubr.bf16.mxu0 0
    %2487 = vmatmul.mubr.bf16.gmra.mrb[0].mxu0 %v2228
    %v2488 = vpop.f32.mrb[0].mxu0
    %v2489 = vadd.f32 0.0, %v2488
    %v2490 = vpop.f32.mrb[0].mxu0
    %v2491 = vpop.f32.mrb[0].mxu0
    %v2492 = vadd.f32 0.0, %v2491
    %v2493 = vpop.f32.mrb[0].mxu0
    %2494 = vmatprep.mubr.bf16.mxu0 0
    %2495 = vmatmul.mubr.bf16.gmra.mrb[0].mxu0 %v2231
    %v2496 = vpop.f32.mrb[0].mxu0
    %v2497 = vadd.f32 0.0, %v2496
    %v2498 = vpop.f32.mrb[0].mxu0
    %v2499 = vpop.f32.mrb[0].mxu0
    %v2500 = vadd.f32 0.0, %v2499
    %v2501 = vpop.f32.mrb[0].mxu0
    %2502 = vmatprep.mubr.bf16.mxu0 0
    %2503 = vmatmul.mubr.bf16.gmra.mrb[0].mxu0 %v2234
    %v2504 = vpop.f32.mrb[0].mxu0
    %v2505 = vadd.f32 0.0, %v2504
    %v2506 = vpop.f32.mrb[0].mxu0
    %v2507 = vpop.f32.mrb[0].mxu0
    %v2508 = vadd.f32 0.0, %v2507
    %v2509 = vpop.f32.mrb[0].mxu0
    %2510 = vmatprep.mubr.bf16.mxu0 0
    %2511 = vmatmul.mubr.bf16.gmra.mrb[0].mxu0 %v2237
    %v2512 = vpop.f32.mrb[0].mxu0
    %v2513 = vadd.f32 0.0, %v2512
    %v2514 = vpop.f32.mrb[0].mxu0
    %v2515 = vpop.f32.mrb[0].mxu0
    %v2516 = vadd.f32 0.0, %v2515
    %v2517 = vpop.f32.mrb[0].mxu0
    %2518 = vmatprep.mubr.bf16.mxu0 0
    %2519 = vmatmul.mubr.bf16.gmra.mrb[0].mxu0 %v2240
    %v2520 = vpop.f32.mrb[0].mxu0
    %v2521 = vadd.f32 0.0, %v2520
    %v2522 = vpop.f32.mrb[0].mxu0
    %v2523 = vpop.f32.mrb[0].mxu0
    %v2524 = vadd.f32 0.0, %v2523
    %v2525 = vpop.f32.mrb[0].mxu0
    %2526 = vmatprep.mubr.bf16.mxu0 0
    %2527 = vmatmul.mubr.bf16.gmra.mrb[0].mxu0 %v2243
    %v2528 = vpop.f32.mrb[0].mxu0
    %v2529 = vadd.f32 0.0, %v2528
    %v2530 = vpop.f32.mrb[0].mxu0
    %v2531 = vpop.f32.mrb[0].mxu0
    %v2532 = vadd.f32 0.0, %v2531
    %v2533 = vpop.f32.mrb[0].mxu0
    %2534 = vmatprep.mubr.bf16.mxu0 0
    %2535 = vmatmul.mubr.bf16.gmra.mrb[0].mxu0 %v2246
    %v2536 = vpop.f32.mrb[0].mxu0
    %v2537 = vadd.f32 0.0, %v2536
    %v2538 = vpop.f32.mrb[0].mxu0
    %v2539 = vpop.f32.mrb[0].mxu0
    %v2540 = vadd.f32 0.0, %v2539
    %v2541 = vpop.f32.mrb[0].mxu0
    %2542 = vmatprep.mubr.bf16.mxu0 0
    %2543 = vmatmul.mubr.bf16.gmra.mrb[0].mxu0 %v2249
    %v2544 = vpop.f32.mrb[0].mxu0
    %v2545 = vadd.f32 0.0, %v2544
    %v2546 = vpop.f32.mrb[0].mxu0
    %v2547 = vpop.f32.mrb[0].mxu0
    %v2548 = vadd.f32 0.0, %v2547
    %v2549 = vpop.f32.mrb[0].mxu0
    %2550 = vmatprep.mubr.bf16.mxu0 0
    %2551 = vmatmul.mubr.bf16.gmra.mrb[0].mxu0 %v2252
    %v2552 = vpop.f32.mrb[0].mxu0
    %v2553 = vadd.f32 0.0, %v2552
    %v2554 = vpop.f32.mrb[0].mxu0
    %v2555 = vpop.f32.mrb[0].mxu0
    %v2556 = vadd.f32 0.0, %v2555
    %v2557 = vpop.f32.mrb[0].mxu0
    %2558 = vmatprep.mubr.bf16.mxu0 0
    %2559 = vmatmul.mubr.bf16.gmra.mrb[0].mxu0 %v2255
    %v2560 = vpop.f32.mrb[0].mxu0
    %v2561 = vadd.f32 0.0, %v2560
    %v2562 = vpop.f32.mrb[0].mxu0
    %v2563 = vpop.f32.mrb[0].mxu0
    %v2564 = vadd.f32 0.0, %v2563
    %v2565 = vpop.f32.mrb[0].mxu0
    %2566 = vmatprep.mubr.bf16.mxu0 0
    %2567 = vmatmul.mubr.bf16.gmra.mrb[0].mxu0 %v2258
    %v2568 = vpop.f32.mrb[0].mxu0
    %v2569 = vadd.f32 0.0, %v2568
    %v2570 = vpop.f32.mrb[0].mxu0
    %v2571 = vpop.f32.mrb[0].mxu0
    %v2572 = vadd.f32 0.0, %v2571
    %v2573 = vpop.f32.mrb[0].mxu0
    %2574 = vmatprep.mubr.bf16.mxu0 0
    %2575 = vmatmul.mubr.bf16.gmra.mrb[0].mxu0 %v2261
    %v2576 = vpop.f32.mrb[0].mxu0
    %v2577 = vadd.f32 0.0, %v2576
    %v2578 = vpop.f32.mrb[0].mxu0
    %v2579 = vpop.f32.mrb[0].mxu0
    %v2580 = vadd.f32 0.0, %v2579
    %v2581 = vpop.f32.mrb[0].mxu0
    %2582 = vmatprep.mubr.bf16.mxu0 0
    %2583 = vmatmul.mubr.bf16.gmra.mrb[0].mxu0 %v2264
    %v2584 = vpop.f32.mrb[0].mxu0
    %v2585 = vadd.f32 0.0, %v2584
    %v2586 = vpop.f32.mrb[0].mxu0
    %v2587 = vpop.f32.mrb[0].mxu0
    %v2588 = vadd.f32 0.0, %v2587
    %v2589 = vpop.f32.mrb[0].mxu0
    %2590 = vmatprep.mubr.bf16.mxu0 0
    %2591 = vmatmul.mubr.bf16.gmra.mrb[0].mxu0 %v2267
    %v2592 = vpop.f32.mrb[0].mxu0
    %v2593 = vadd.f32 0.0, %v2592
    %v2594 = vpop.f32.mrb[0].mxu0
    %v2595 = vpop.f32.mrb[0].mxu0
    %v2596 = vadd.f32 0.0, %v2595
    %v2597 = vpop.f32.mrb[0].mxu0
    %2598 = vmatprep.mubr.bf16.mxu0 0
    %2599 = vmatmul.mubr.bf16.gmra.mrb[0].mxu0 %v2270
    %v2600 = vpop.f32.mrb[0].mxu0
    %v2601 = vadd.f32 0.0, %v2600
    %v2602 = vpop.f32.mrb[0].mxu0
    %v2603 = vpop.f32.mrb[0].mxu0
    %v2604 = vadd.f32 0.0, %v2603
    %v2605 = vpop.f32.mrb[0].mxu0
    %2606 = vmatprep.mubr.bf16.mxu0 0
    %2607 = vmatmul.mubr.bf16.gmra.mrb[0].mxu0 %v2273
    %v2608 = vpop.f32.mrb[0].mxu0
    %v2609 = vadd.f32 0.0, %v2608
    %v2610 = vpop.f32.mrb[0].mxu0
    %v2611 = vpop.f32.mrb[0].mxu0
    %v2612 = vadd.f32 0.0, %v2611
    %v2613 = vpop.f32.mrb[0].mxu0
    %2614 = vmatprep.mubr.bf16.mxu0 0
    %2615 = vmatmul.mubr.bf16.gmra.mrb[0].mxu0 %v2276
    %v2616 = vpop.f32.mrb[0].mxu0
    %v2617 = vadd.f32 0.0, %v2616
    %v2618 = vpop.f32.mrb[0].mxu0
    %v2619 = vpop.f32.mrb[0].mxu0
    %v2620 = vadd.f32 0.0, %v2619
    %v2621 = vpop.f32.mrb[0].mxu0
    %2622 = vmatprep.mubr.bf16.mxu0 0
    %2623 = vmatmul.mubr.bf16.gmra.mrb[0].mxu0 %v2279
    %v2624 = vpop.f32.mrb[0].mxu0
    %v2625 = vadd.f32 0.0, %v2624
    %v2626 = vpop.f32.mrb[0].mxu0
    %v2627 = vpop.f32.mrb[0].mxu0
    %v2628 = vadd.f32 0.0, %v2627
    %v2629 = vpop.f32.mrb[0].mxu0
    %2630 = vmatprep.mubr.bf16.mxu0 0
    %2631 = vmatmul.mubr.bf16.gmra.mrb[0].mxu0 %v2282
    %v2632 = vpop.f32.mrb[0].mxu0
    %v2633 = vadd.f32 0.0, %v2632
    %v2634 = vpop.f32.mrb[0].mxu0
    %v2635 = vpop.f32.mrb[0].mxu0
    %v2636 = vadd.f32 0.0, %v2635
    %v2637 = vpop.f32.mrb[0].mxu0
    %2638 = vmatprep.mubr.bf16.mxu0 0
    %2639 = vmatmul.mubr.bf16.gmra.mrb[0].mxu0 %v2285
    %v2640 = vpop.f32.mrb[0].mxu0
    %v2641 = vadd.f32 0.0, %v2640
    %v2642 = vpop.f32.mrb[0].mxu0
    %v2643 = vpop.f32.mrb[0].mxu0
    %v2644 = vadd.f32 0.0, %v2643
    %v2645 = vpop.f32.mrb[0].mxu0
    %2646 = vmatprep.mubr.bf16.mxu0 0
    %2647 = vmatmul.mubr.bf16.gmra.mrb[0].mxu0 %v2288
    %v2648 = vpop.f32.mrb[0].mxu0
    %v2649 = vadd.f32 0.0, %v2648
    %v2650 = vpop.f32.mrb[0].mxu0
    %v2651 = vpop.f32.mrb[0].mxu0
    %v2652 = vadd.f32 0.0, %v2651
    %v2653 = vpop.f32.mrb[0].mxu0
    %2654 = vmatprep.mubr.bf16.mxu0 0
    %2655 = vmatmul.mubr.bf16.gmra.mrb[0].mxu0 %v2291
    %v2656 = vpop.f32.mrb[0].mxu0
    %v2657 = vadd.f32 0.0, %v2656
    %v2658 = vpop.f32.mrb[0].mxu0
    %v2659 = vpop.f32.mrb[0].mxu0
    %v2660 = vadd.f32 0.0, %v2659
    %v2661 = vpop.f32.mrb[0].mxu0
    %2662 = vmatprep.mubr.bf16.mxu0 0
    %2663 = vmatmul.mubr.bf16.gmra.mrb[0].mxu0 %v2294
    %v2664 = vpop.f32.mrb[0].mxu0
    %v2665 = vadd.f32 0.0, %v2664
    %v2666 = vpop.f32.mrb[0].mxu0
    %v2667 = vpop.f32.mrb[0].mxu0
    %v2668 = vadd.f32 0.0, %v2667
    %v2669 = vpop.f32.mrb[0].mxu0
    %2670 = vmatprep.mubr.bf16.mxu0 0
    %2671 = vmatmul.mubr.bf16.gmra.mrb[0].mxu0 %v2297
    %v2672 = vpop.f32.mrb[0].mxu0
    %v2673 = vadd.f32 0.0, %v2672
    %v2674 = vpop.f32.mrb[0].mxu0
    %v2675 = vpop.f32.mrb[0].mxu0
    %v2676 = vadd.f32 0.0, %v2675
    %v2677 = vpop.f32.mrb[0].mxu0
    %2678 = vmatprep.mubr.bf16.mxu0 0
    %2679 = vmatmul.mubr.bf16.gmra.mrb[0].mxu0 %v2300
    %v2680 = vpop.f32.mrb[0].mxu0
    %v2681 = vadd.f32 0.0, %v2680
    %v2682 = vpop.f32.mrb[0].mxu0
    %v2683 = vpop.f32.mrb[0].mxu0
    %v2684 = vadd.f32 0.0, %v2683
    %v2685 = vpop.f32.mrb[0].mxu0
    %2686 = vmatprep.mubr.bf16.mxu0 0
    %2687 = vmatmul.mubr.bf16.gmra.mrb[0].mxu0 %v2303
    %v2688 = vpop.f32.mrb[0].mxu0
    %v2689 = vadd.f32 0.0, %v2688
    %v2690 = vpop.f32.mrb[0].mxu0
    %v2691 = vpop.f32.mrb[0].mxu0
    %v2692 = vadd.f32 0.0, %v2691
    %v2693 = vpop.f32.mrb[0].mxu0
    %2694 = vmatprep.mubr.bf16.mxu0 0
    %2695 = vmatmul.mubr.bf16.gmra.mrb[0].mxu0 %v2306
    %v2696 = vpop.f32.mrb[0].mxu0
    %v2697 = vadd.f32 0.0, %v2696
    %v2698 = vpop.f32.mrb[0].mxu0
    %v2699 = vpop.f32.mrb[0].mxu0
    %v2700 = vadd.f32 0.0, %v2699
    %v2701 = vpop.f32.mrb[0].mxu0
    %2702 = vmatprep.mubr.bf16.mxu0 0
    %2703 = vmatmul.mubr.bf16.gmra.mrb[0].mxu0 %v2309
    %v2704 = vpop.f32.mrb[0].mxu0
    %v2705 = vadd.f32 0.0, %v2704
    %v2706 = vpop.f32.mrb[0].mxu0
    %v2707 = vpop.f32.mrb[0].mxu0
    %v2708 = vadd.f32 0.0, %v2707
    %v2709 = vpop.f32.mrb[0].mxu0
    %2710 = vmatprep.mubr.bf16.mxu0 0
    %2711 = vmatmul.mubr.bf16.gmra.mrb[0].mxu0 %v2312
    %v2712 = vpop.f32.mrb[0].mxu0
    %v2713 = vadd.f32 0.0, %v2712
    %v2714 = vpop.f32.mrb[0].mxu0
    %v2715 = vpop.f32.mrb[0].mxu0
    %v2716 = vadd.f32 0.0, %v2715
    %v2717 = vpop.f32.mrb[0].mxu0
    %2718 = vmatprep.mubr.bf16.mxu0 0
    %2719 = vmatmul.mubr.bf16.gmra.mrb[0].mxu0 %v2315
    %v2720 = vpop.f32.mrb[0].mxu0
    %v2721 = vadd.f32 0.0, %v2720
    %v2722 = vpop.f32.mrb[0].mxu0
    %v2723 = vpop.f32.mrb[0].mxu0
    %v2724 = vadd.f32 0.0, %v2723
    %v2725 = vpop.f32.mrb[0].mxu0
    %2726 = vmatprep.mubr.bf16.mxu0 0
    %2727 = vmatmul.mubr.bf16.gmra.mrb[0].mxu0 %v2318
    %v2728 = vpop.f32.mrb[0].mxu0
    %v2729 = vadd.f32 0.0, %v2728
    %v2730 = vpop.f32.mrb[0].mxu0
    %v2731 = vpop.f32.mrb[0].mxu0
    %v2732 = vadd.f32 0.0, %v2731
    %v2733 = vpop.f32.mrb[0].mxu0
    %2734 = vmatprep.mubr.bf16.mxu0 0
    %2735 = vmatmul.mubr.bf16.gmra.mrb[0].mxu0 %v2321
    %v2736 = vpop.f32.mrb[0].mxu0
    %v2737 = vadd.f32 0.0, %v2736
    %v2738 = vpop.f32.mrb[0].mxu0
    %v2739 = vpop.f32.mrb[0].mxu0
    %v2740 = vadd.f32 0.0, %v2739
    %v2741 = vpop.f32.mrb[0].mxu0
    %2742 = vmatprep.mubr.bf16.mxu0 0
    %2743 = vmatmul.mubr.bf16.gmra.mrb[0].mxu0 %v2324
    %v2744 = vpop.f32.mrb[0].mxu0
    %v2745 = vadd.f32 0.0, %v2744
    %v2746 = vpop.f32.mrb[0].mxu0
    %v2747 = vpop.f32.mrb[0].mxu0
    %v2748 = vadd.f32 0.0, %v2747
    %v2749 = vpop.f32.mrb[0].mxu0
    %2750 = vmatprep.mubr.bf16.mxu0 0
    %2751 = vmatmul.mubr.bf16.gmra.mrb[0].mxu0 %v2327
    %v2752 = vpop.f32.mrb[0].mxu0
    %v2753 = vadd.f32 0.0, %v2752
    %v2754 = vpop.f32.mrb[0].mxu0
    %v2755 = vpop.f32.mrb[0].mxu0
    %v2756 = vadd.f32 0.0, %v2755
    %v2757 = vpop.f32.mrb[0].mxu0
    %2758 = vmatprep.mubr.bf16.mxu0 0
    %2759 = vmatmul.mubr.bf16.gmra.mrb[0].mxu0 %v2330
    %v2760 = vpop.f32.mrb[0].mxu0
    %v2761 = vadd.f32 0.0, %v2760
    %v2762 = vpop.f32.mrb[0].mxu0
    %v2763 = vpop.f32.mrb[0].mxu0
    %v2764 = vadd.f32 0.0, %v2763
    %v2765 = vpop.f32.mrb[0].mxu0
    %2766 = vmatprep.mubr.bf16.mxu0 0
    %2767 = vmatmul.mubr.bf16.gmra.mrb[0].mxu0 %v2333
    %v2768 = vpop.f32.mrb[0].mxu0
    %v2769 = vadd.f32 0.0, %v2768
    %v2770 = vpop.f32.mrb[0].mxu0
    %v2771 = vpop.f32.mrb[0].mxu0
    %v2772 = vadd.f32 0.0, %v2771
    %v2773 = vpop.f32.mrb[0].mxu0
    %2774 = vmatprep.mubr.bf16.mxu0 0
    %2775 = vmatmul.mubr.bf16.gmra.mrb[0].mxu0 %v2336
    %v2776 = vpop.f32.mrb[0].mxu0
    %v2777 = vadd.f32 0.0, %v2776
    %v2778 = vpop.f32.mrb[0].mxu0
    %v2779 = vpop.f32.mrb[0].mxu0
    %v2780 = vadd.f32 0.0, %v2779
    %v2781 = vpop.f32.mrb[0].mxu0
    %2782 = vmatprep.mubr.bf16.mxu0 0
    %2783 = vmatmul.mubr.bf16.gmra.mrb[0].mxu0 %v2339
    %v2784 = vpop.f32.mrb[0].mxu0
    %v2785 = vadd.f32 0.0, %v2784
    %v2786 = vpop.f32.mrb[0].mxu0
    %v2787 = vpop.f32.mrb[0].mxu0
    %v2788 = vadd.f32 0.0, %v2787
    %v2789 = vpop.f32.mrb[0].mxu0
    %2790 = vmatprep.mubr.bf16.mxu0 0
    %2791 = vmatmul.mubr.bf16.gmra.mrb[0].mxu0 %v2342
    %v2792 = vpop.f32.mrb[0].mxu0
    %v2793 = vadd.f32 0.0, %v2792
    %v2794 = vpop.f32.mrb[0].mxu0
    %v2795 = vpop.f32.mrb[0].mxu0
    %v2796 = vadd.f32 0.0, %v2795
    %v2797 = vpop.f32.mrb[0].mxu0
    %2798 = vmatprep.mubr.bf16.mxu0 0
    %2799 = vmatmul.mubr.bf16.gmra.mrb[0].mxu0 %v2345
    %v2800 = vpop.f32.mrb[0].mxu0
    %v2801 = vadd.f32 0.0, %v2800
    %v2802 = vpop.f32.mrb[0].mxu0
    %v2803 = vpop.f32.mrb[0].mxu0
    %v2804 = vadd.f32 0.0, %v2803
    %v2805 = vpop.f32.mrb[0].mxu0
    %2806 = vmatprep.mubr.bf16.mxu0 0
    %2807 = vmatmul.mubr.bf16.gmra.mrb[0].mxu0 %v2348
    %v2808 = vpop.f32.mrb[0].mxu0
    %v2809 = vadd.f32 0.0, %v2808
    %v2810 = vpop.f32.mrb[0].mxu0
    %v2811 = vpop.f32.mrb[0].mxu0
    %v2812 = vadd.f32 0.0, %v2811
    %v2813 = vpop.f32.mrb[0].mxu0
    %2814 = vmatprep.mubr.bf16.mxu0 0
    %2815 = vmatmul.mubr.bf16.gmra.mrb[0].mxu0 %v2351
    %v2816 = vpop.f32.mrb[0].mxu0
    %v2817 = vadd.f32 0.0, %v2816
    %v2818 = vpop.f32.mrb[0].mxu0
    %v2819 = vpop.f32.mrb[0].mxu0
    %v2820 = vadd.f32 0.0, %v2819
    %v2821 = vpop.f32.mrb[0].mxu0
    %2822 = vmatprep.mubr.bf16.mxu0 0
    %2823 = vmatmul.mubr.bf16.gmra.mrb[0].mxu0 %v2354
    %v2824 = vpop.f32.mrb[0].mxu0
    %v2825 = vadd.f32 0.0, %v2824
    %v2826 = vpop.f32.mrb[0].mxu0
    %v2827 = vpop.f32.mrb[0].mxu0
    %v2828 = vadd.f32 0.0, %v2827
    %v2829 = vpop.f32.mrb[0].mxu0
    %2830 = vmatprep.mubr.bf16.mxu0 0
    %2831 = vmatmul.mubr.bf16.gmra.mrb[0].mxu0 %v2357
    %v2832 = vpop.f32.mrb[0].mxu0
    %v2833 = vadd.f32 0.0, %v2832
    %v2834 = vpop.f32.mrb[0].mxu0
    %v2835 = vpop.f32.mrb[0].mxu0
    %v2836 = vadd.f32 0.0, %v2835
    %v2837 = vpop.f32.mrb[0].mxu0
    %2838 = vmatprep.mubr.bf16.mxu0 0
    %2839 = vmatmul.mubr.bf16.gmra.mrb[0].mxu0 %v2360
    %v2840 = vpop.f32.mrb[0].mxu0
    %v2841 = vadd.f32 0.0, %v2840
    %v2842 = vpop.f32.mrb[0].mxu0
    %v2843 = vpop.f32.mrb[0].mxu0
    %v2844 = vadd.f32 0.0, %v2843
    %v2845 = vpop.f32.mrb[0].mxu0
    %2846 = vmatprep.mubr.bf16.mxu0 0
    %2847 = vmatmul.mubr.bf16.gmra.mrb[0].mxu0 %v2363
    %v2848 = vpop.f32.mrb[0].mxu0
    %v2849 = vadd.f32 0.0, %v2848
    %v2850 = vpop.f32.mrb[0].mxu0
    %v2851 = vpop.f32.mrb[0].mxu0
    %v2852 = vadd.f32 0.0, %v2851
    %v2853 = vpop.f32.mrb[0].mxu0
    %2854 = vmatprep.mubr.bf16.mxu0 0
    %2855 = vmatmul.mubr.bf16.gmra.mrb[0].mxu0 %v2366
    %v2856 = vpop.f32.mrb[0].mxu0
    %v2857 = vadd.f32 0.0, %v2856
    %v2858 = vpop.f32.mrb[0].mxu0
    %v2859 = vpop.f32.mrb[0].mxu0
    %v2860 = vadd.f32 0.0, %v2859
    %v2861 = vpop.f32.mrb[0].mxu0
    %2862 = vmatprep.mubr.bf16.mxu0 0
    %2863 = vmatmul.mubr.bf16.gmra.mrb[0].mxu0 %v2369
    %v2864 = vpop.f32.mrb[0].mxu0
    %v2865 = vadd.f32 0.0, %v2864
    %v2866 = vpop.f32.mrb[0].mxu0
    %v2867 = vpop.f32.mrb[0].mxu0
    %v2868 = vadd.f32 0.0, %v2867
    %v2869 = vpop.f32.mrb[0].mxu0
    %2870 = vmatprep.mubr.bf16.mxu0 0
    %2871 = vmatmul.mubr.bf16.gmra.mrb[0].mxu0 %v2372
    %v2872 = vpop.f32.mrb[0].mxu0
    %v2873 = vadd.f32 0.0, %v2872
    %v2874 = vpop.f32.mrb[0].mxu0
    %v2875 = vpop.f32.mrb[0].mxu0
    %v2876 = vadd.f32 0.0, %v2875
    %v2877 = vpop.f32.mrb[0].mxu0
    %2878 = vmatprep.mubr.bf16.mxu0 0
    %2879 = vmatmul.mubr.bf16.gmra.mrb[0].mxu0 %v2375
    %v2880 = vpop.f32.mrb[0].mxu0
    %v2881 = vadd.f32 0.0, %v2880
    %v2882 = vpop.f32.mrb[0].mxu0
    %v2883 = vpop.f32.mrb[0].mxu0
    %v2884 = vadd.f32 0.0, %v2883
    %v2885 = vpop.f32.mrb[0].mxu0
    %2886 = vmatprep.mubr.bf16.mxu0 0
    %2887 = vmatmul.mubr.bf16.gmra.mrb[0].mxu0 %v2378
    %v2888 = vpop.f32.mrb[0].mxu0
    %v2889 = vadd.f32 0.0, %v2888
    %v2890 = vpop.f32.mrb[0].mxu0
    %v2891 = vpop.f32.mrb[0].mxu0
    %v2892 = vadd.f32 0.0, %v2891
    %v2893 = vpop.f32.mrb[0].mxu0
    %2894 = vmatprep.mubr.bf16.mxu0 0
    %2895 = vmatmul.mubr.bf16.gmra.mrb[0].mxu0 %v2381
    %v2896 = vpop.f32.mrb[0].mxu0
    %v2897 = vadd.f32 0.0, %v2896
    %v2898 = vpop.f32.mrb[0].mxu0
    %v2899 = vpop.f32.mrb[0].mxu0
    %v2900 = vadd.f32 0.0, %v2899
    %v2901 = vpop.f32.mrb[0].mxu0
    %2902 = vmatprep.mubr.bf16.mxu0 0
    %2903 = vmatmul.mubr.bf16.gmra.mrb[0].mxu0 %v2384
    %v2904 = vpop.f32.mrb[0].mxu0
    %v2905 = vadd.f32 0.0, %v2904
    %v2906 = vpop.f32.mrb[0].mxu0
    %v2907 = vpop.f32.mrb[0].mxu0
    %v2908 = vadd.f32 0.0, %v2907
    %v2909 = vpop.f32.mrb[0].mxu0
    %2910 = vmatprep.mubr.bf16.mxu0 0
    %2911 = vmatmul.mubr.bf16.gmra.mrb[0].mxu0 %v2387
    %v2912 = vpop.f32.mrb[0].mxu0
    %v2913 = vadd.f32 0.0, %v2912
    %v2914 = vpop.f32.mrb[0].mxu0
    %v2915 = vpop.f32.mrb[0].mxu0
    %v2916 = vadd.f32 0.0, %v2915
    %v2917 = vpop.f32.mrb[0].mxu0
    %2918 = vmatprep.mubr.bf16.mxu0 0
    %2919 = vmatmul.mubr.bf16.gmra.mrb[0].mxu0 %v2390
    %v2920 = vpop.f32.mrb[0].mxu0
    %v2921 = vadd.f32 0.0, %v2920
    %v2922 = vpop.f32.mrb[0].mxu0
    %v2923 = vpop.f32.mrb[0].mxu0
    %v2924 = vadd.f32 0.0, %v2923
    %v2925 = vpop.f32.mrb[0].mxu0
    %2926 = vmatprep.mubr.bf16.mxu0 0
    %2927 = vmatmul.mubr.bf16.gmra.mrb[0].mxu0 %v2393
    %v2928 = vpop.f32.mrb[0].mxu0
    %v2929 = vadd.f32 0.0, %v2928
    %v2930 = vpop.f32.mrb[0].mxu0
    %v2931 = vpop.f32.mrb[0].mxu0
    %v2932 = vadd.f32 0.0, %v2931
    %v2933 = vpop.f32.mrb[0].mxu0
    %2934 = vmatprep.mubr.bf16.mxu0 0
    %2935 = vmatmul.mubr.bf16.gmra.mrb[0].mxu0 %v2396
    %v2936 = vpop.f32.mrb[0].mxu0
    %v2937 = vadd.f32 0.0, %v2936
    %v2938 = vpop.f32.mrb[0].mxu0
    %v2939 = vpop.f32.mrb[0].mxu0
    %v2940 = vadd.f32 0.0, %v2939
    %v2941 = vpop.f32.mrb[0].mxu0
    %2942 = vdwg.mxu0
    %v2943 = vld [vmem:[#allocation10] sm:$0xf]
    %v2944 = vld [vmem:[#allocation10 + $0x4] sm:$0xf]
    %v2945 = vld [vmem:[#allocation10 + $0x8] sm:$0xf]
    %v2946 = vld [vmem:[#allocation10 + $0xc] sm:$0xf]
    %v2947 = vld [vmem:[#allocation10 + $0x10] sm:$0xf]
    %v2948 = vld [vmem:[#allocation10 + $0x14] sm:$0xf]
    %v2949 = vld [vmem:[#allocation10 + $0x18] sm:$0xf]
    %v2950 = vld [vmem:[#allocation10 + $0x1c] sm:$0xf]
    %v3079 = vunpack.c.l.b16 %v200
    %v3080 = vunpack.c.l.b16 %v201
    %v3081 = vunpack.c.l.b16 %v202
    %v3082 = vunpack.c.l.b16 %v203
    %v3083 = vunpack.c.l.b16 %v204
    %v3084 = vunpack.c.l.b16 %v205
    %v3085 = vunpack.c.l.b16 %v206
    %v3086 = vunpack.c.l.b16 %v207
    %v3087 = vunpack.c.l.b16 %v208
    %v3088 = vunpack.c.l.b16 %v209
    %v3089 = vunpack.c.l.b16 %v210
    %v3090 = vunpack.c.l.b16 %v211
    %v3091 = vunpack.c.l.b16 %v212
    %v3092 = vunpack.c.l.b16 %v213
    %v3093 = vunpack.c.l.b16 %v214
    %v3094 = vunpack.c.l.b16 %v215
    %v3095 = vunpack.c.l.b16 %v216
    %v3096 = vunpack.c.l.b16 %v217
    %v3097 = vunpack.c.l.b16 %v218
    %v3098 = vunpack.c.l.b16 %v219
    %v3099 = vunpack.c.l.b16 %v220
    %v3100 = vunpack.c.l.b16 %v221
    %v3101 = vunpack.c.l.b16 %v222
    %v3102 = vunpack.c.l.b16 %v223
    %v3103 = vunpack.c.l.b16 %v224
    %v3104 = vunpack.c.l.b16 %v225
    %v3105 = vunpack.c.l.b16 %v226
    %v3106 = vunpack.c.l.b16 %v227
    %v3107 = vunpack.c.l.b16 %v228
    %v3108 = vunpack.c.l.b16 %v229
    %v3109 = vunpack.c.l.b16 %v230
    %v3110 = vunpack.c.l.b16 %v231
    %v3111 = vunpack.c.l.b16 %v232
    %v3112 = vunpack.c.l.b16 %v233
    %v3113 = vunpack.c.l.b16 %v234
    %v3114 = vunpack.c.l.b16 %v235
    %v3115 = vunpack.c.l.b16 %v236
    %v3116 = vunpack.c.l.b16 %v237
    %v3117 = vunpack.c.l.b16 %v238
    %v3118 = vunpack.c.l.b16 %v239
    %v3119 = vunpack.c.l.b16 %v240
    %v3120 = vunpack.c.l.b16 %v241
    %v3121 = vunpack.c.l.b16 %v242
    %v3122 = vunpack.c.l.b16 %v243
    %v3123 = vunpack.c.l.b16 %v244
    %v3124 = vunpack.c.l.b16 %v245
    %v3125 = vunpack.c.l.b16 %v246
    %v3126 = vunpack.c.l.b16 %v247
    %v3127 = vunpack.c.l.b16 %v248
    %v3128 = vunpack.c.l.b16 %v249
    %v3129 = vunpack.c.l.b16 %v250
    %v3130 = vunpack.c.l.b16 %v251
    %v3131 = vunpack.c.l.b16 %v252
    %v3132 = vunpack.c.l.b16 %v253
    %v3133 = vunpack.c.l.b16 %v254
    %v3134 = vunpack.c.l.b16 %v255
    %v3135 = vunpack.c.l.b16 %v256
    %v3136 = vunpack.c.l.b16 %v257
    %v3137 = vunpack.c.l.b16 %v258
    %v3138 = vunpack.c.l.b16 %v259
    %v3139 = vunpack.c.l.b16 %v260
    %v3140 = vunpack.c.l.b16 %v261
    %v3141 = vunpack.c.l.b16 %v262
    %v3142 = vunpack.c.l.b16 %v263
    %v3143 = vunpack.c.l.b16 %v264
    %v3144 = vunpack.c.l.b16 %v265
    %v3145 = vunpack.c.l.b16 %v266
    %v3146 = vunpack.c.l.b16 %v267
    %v3147 = vunpack.c.l.b16 %v268
    %v3148 = vunpack.c.l.b16 %v269
    %v3149 = vunpack.c.l.b16 %v270
    %v3150 = vunpack.c.l.b16 %v271
    %v3151 = vunpack.c.l.b16 %v272
    %v3152 = vunpack.c.l.b16 %v273
    %v3153 = vunpack.c.l.b16 %v274
    %v3154 = vunpack.c.l.b16 %v275
    %v3155 = vunpack.c.l.b16 %v276
    %v3156 = vunpack.c.l.b16 %v277
    %v3157 = vunpack.c.l.b16 %v278
    %v3158 = vunpack.c.l.b16 %v279
    %v3159 = vunpack.c.l.b16 %v280
    %v3160 = vunpack.c.l.b16 %v281
    %v3161 = vunpack.c.l.b16 %v282
    %v3162 = vunpack.c.l.b16 %v283
    %v3163 = vunpack.c.l.b16 %v284
    %v3164 = vunpack.c.l.b16 %v285
    %v3165 = vunpack.c.l.b16 %v286
    %v3166 = vunpack.c.l.b16 %v287
    %v3167 = vunpack.c.l.b16 %v288
    %v3168 = vunpack.c.l.b16 %v289
    %v3169 = vunpack.c.l.b16 %v290
    %v3170 = vunpack.c.l.b16 %v291
    %v3171 = vunpack.c.l.b16 %v292
    %v3172 = vunpack.c.l.b16 %v293
    %v3173 = vunpack.c.l.b16 %v294
    %v3174 = vunpack.c.l.b16 %v295
    %v3175 = vunpack.c.l.b16 %v296
    %v3176 = vunpack.c.l.b16 %v297
    %v3177 = vunpack.c.l.b16 %v298
    %v3178 = vunpack.c.l.b16 %v299
    %v3179 = vunpack.c.l.b16 %v300
    %v3180 = vunpack.c.l.b16 %v301
    %v3181 = vunpack.c.l.b16 %v302
    %v3182 = vunpack.c.l.b16 %v303
    %v3183 = vunpack.c.l.b16 %v304
    %v3184 = vunpack.c.l.b16 %v305
    %v3185 = vunpack.c.l.b16 %v306
    %v3186 = vunpack.c.l.b16 %v307
    %v3187 = vunpack.c.l.b16 %v308
    %v3188 = vunpack.c.l.b16 %v309
    %v3189 = vunpack.c.l.b16 %v310
    %v3190 = vunpack.c.l.b16 %v311
    %v3191 = vunpack.c.l.b16 %v312
    %v3192 = vunpack.c.l.b16 %v313
    %v3193 = vunpack.c.l.b16 %v314
    %v3194 = vunpack.c.l.b16 %v315
    %v3195 = vunpack.c.l.b16 %v316
    %v3196 = vunpack.c.l.b16 %v317
    %v3197 = vunpack.c.l.b16 %v318
    %v3198 = vunpack.c.l.b16 %v319
    %v3199 = vunpack.c.l.b16 %v320
    %v3200 = vunpack.c.l.b16 %v321
    %v3201 = vunpack.c.l.b16 %v322
    %v3202 = vunpack.c.l.b16 %v323
    %v3203 = vunpack.c.l.b16 %v324
    %v3204 = vunpack.c.l.b16 %v325
    %v3205 = vunpack.c.l.b16 %v326
    %v3206 = vunpack.c.l.b16 %v327
    %v3207 = vpack.c.b16 %v3080, %v3079
    %v3208 = vpack.c.b16 %v3082, %v3081
    %v3209 = vpack.c.b16 %v3084, %v3083
    %v3210 = vpack.c.b16 %v3086, %v3085
    %v3211 = vpack.c.b16 %v3088, %v3087
    %v3212 = vpack.c.b16 %v3090, %v3089
    %v3213 = vpack.c.b16 %v3092, %v3091
    %v3214 = vpack.c.b16 %v3094, %v3093
    %v3215 = vpack.c.b16 %v3096, %v3095
    %v3216 = vpack.c.b16 %v3098, %v3097
    %v3217 = vpack.c.b16 %v3100, %v3099
    %v3218 = vpack.c.b16 %v3102, %v3101
    %v3219 = vpack.c.b16 %v3104, %v3103
    %v3220 = vpack.c.b16 %v3106, %v3105
    %v3221 = vpack.c.b16 %v3108, %v3107
    %v3222 = vpack.c.b16 %v3110, %v3109
    %v3223 = vpack.c.b16 %v3112, %v3111
    %v3224 = vpack.c.b16 %v3114, %v3113
    %v3225 = vpack.c.b16 %v3116, %v3115
    %v3226 = vpack.c.b16 %v3118, %v3117
    %v3227 = vpack.c.b16 %v3120, %v3119
    %v3228 = vpack.c.b16 %v3122, %v3121
    %v3229 = vpack.c.b16 %v3124, %v3123
    %v3230 = vpack.c.b16 %v3126, %v3125
    %v3231 = vpack.c.b16 %v3128, %v3127
    %v3232 = vpack.c.b16 %v3130, %v3129
    %v3233 = vpack.c.b16 %v3132, %v3131
    %v3234 = vpack.c.b16 %v3134, %v3133
    %v3235 = vpack.c.b16 %v3136, %v3135
    %v3236 = vpack.c.b16 %v3138, %v3137
    %v3237 = vpack.c.b16 %v3140, %v3139
    %v3238 = vpack.c.b16 %v3142, %v3141
    %v3239 = vpack.c.b16 %v3144, %v3143
    %v3240 = vpack.c.b16 %v3146, %v3145
    %v3241 = vpack.c.b16 %v3148, %v3147
    %v3242 = vpack.c.b16 %v3150, %v3149
    %v3243 = vpack.c.b16 %v3152, %v3151
    %v3244 = vpack.c.b16 %v3154, %v3153
    %v3245 = vpack.c.b16 %v3156, %v3155
    %v3246 = vpack.c.b16 %v3158, %v3157
    %v3247 = vpack.c.b16 %v3160, %v3159
    %v3248 = vpack.c.b16 %v3162, %v3161
    %v3249 = vpack.c.b16 %v3164, %v3163
    %v3250 = vpack.c.b16 %v3166, %v3165
    %v3251 = vpack.c.b16 %v3168, %v3167
    %v3252 = vpack.c.b16 %v3170, %v3169
    %v3253 = vpack.c.b16 %v3172, %v3171
    %v3254 = vpack.c.b16 %v3174, %v3173
    %v3255 = vpack.c.b16 %v3176, %v3175
    %v3256 = vpack.c.b16 %v3178, %v3177
    %v3257 = vpack.c.b16 %v3180, %v3179
    %v3258 = vpack.c.b16 %v3182, %v3181
    %v3259 = vpack.c.b16 %v3184, %v3183
    %v3260 = vpack.c.b16 %v3186, %v3185
    %v3261 = vpack.c.b16 %v3188, %v3187
    %v3262 = vpack.c.b16 %v3190, %v3189
    %v3263 = vpack.c.b16 %v3192, %v3191
    %v3264 = vpack.c.b16 %v3194, %v3193
    %v3265 = vpack.c.b16 %v3196, %v3195
    %v3266 = vpack.c.b16 %v3198, %v3197
    %v3267 = vpack.c.b16 %v3200, %v3199
    %v3268 = vpack.c.b16 %v3202, %v3201
    %v3269 = vpack.c.b16 %v3204, %v3203
    %v3270 = vpack.c.b16 %v3206, %v3205
    %v3279 = vunpack.c.l.b16 %v2943
    %v3280 = vunpack.c.l.b16 %v2944
    %v3281 = vunpack.c.l.b16 %v2945
    %v3282 = vunpack.c.l.b16 %v2946
    %v3283 = vunpack.c.l.b16 %v2947
    %v3284 = vunpack.c.l.b16 %v2948
    %v3285 = vunpack.c.l.b16 %v2949
    %v3286 = vunpack.c.l.b16 %v2950
    %v3287 = vpack.c.b16 %v3280, %v3279
    %v3288 = vpack.c.b16 %v3282, %v3281
    %v3289 = vpack.c.b16 %v3284, %v3283
    %v3290 = vpack.c.b16 %v3286, %v3285
    %vm3295 = vcmask 523264
    %v3297 = vsel %vm3295, %v3207, 0
    %v3300 = vsel %vm3295, %v3208, 0
    %v3303 = vsel %vm3295, %v3209, 0
    %v3306 = vsel %vm3295, %v3210, 0
    %v3309 = vsel %vm3295, %v3211, 0
    %v3312 = vsel %vm3295, %v3212, 0
    %v3315 = vsel %vm3295, %v3213, 0
    %v3318 = vsel %vm3295, %v3214, 0
    %v3321 = vsel %vm3295, %v3215, 0
    %v3324 = vsel %vm3295, %v3216, 0
    %v3327 = vsel %vm3295, %v3217, 0
    %v3330 = vsel %vm3295, %v3218, 0
    %v3333 = vsel %vm3295, %v3219, 0
    %v3336 = vsel %vm3295, %v3220, 0
    %v3339 = vsel %vm3295, %v3221, 0
    %v3342 = vsel %vm3295, %v3222, 0
    %v3345 = vsel %vm3295, %v3223, 0
    %v3348 = vsel %vm3295, %v3224, 0
    %v3351 = vsel %vm3295, %v3225, 0
    %v3354 = vsel %vm3295, %v3226, 0
    %v3357 = vsel %vm3295, %v3227, 0
    %v3360 = vsel %vm3295, %v3228, 0
    %v3363 = vsel %vm3295, %v3229, 0
    %v3366 = vsel %vm3295, %v3230, 0
    %v3369 = vsel %vm3295, %v3231, 0
    %v3372 = vsel %vm3295, %v3232, 0
    %v3375 = vsel %vm3295, %v3233, 0
    %v3378 = vsel %vm3295, %v3234, 0
    %v3381 = vsel %vm3295, %v3235, 0
    %v3384 = vsel %vm3295, %v3236, 0
    %v3387 = vsel %vm3295, %v3237, 0
    %v3390 = vsel %vm3295, %v3238, 0
    %v3393 = vsel %vm3295, %v3239, 0
    %v3396 = vsel %vm3295, %v3240, 0
    %v3399 = vsel %vm3295, %v3241, 0
    %v3402 = vsel %vm3295, %v3242, 0
    %v3405 = vsel %vm3295, %v3243, 0
    %v3408 = vsel %vm3295, %v3244, 0
    %v3411 = vsel %vm3295, %v3245, 0
    %v3414 = vsel %vm3295, %v3246, 0
    %v3417 = vsel %vm3295, %v3247, 0
    %v3420 = vsel %vm3295, %v3248, 0
    %v3423 = vsel %vm3295, %v3249, 0
    %v3426 = vsel %vm3295, %v3250, 0
    %v3429 = vsel %vm3295, %v3251, 0
    %v3432 = vsel %vm3295, %v3252, 0
    %v3435 = vsel %vm3295, %v3253, 0
    %v3438 = vsel %vm3295, %v3254, 0
    %v3441 = vsel %vm3295, %v3255, 0
    %v3444 = vsel %vm3295, %v3256, 0
    %v3447 = vsel %vm3295, %v3257, 0
    %v3450 = vsel %vm3295, %v3258, 0
    %v3453 = vsel %vm3295, %v3259, 0
    %v3456 = vsel %vm3295, %v3260, 0
    %v3459 = vsel %vm3295, %v3261, 0
    %v3462 = vsel %vm3295, %v3262, 0
    %v3465 = vsel %vm3295, %v3263, 0
    %v3468 = vsel %vm3295, %v3264, 0
    %v3471 = vsel %vm3295, %v3265, 0
    %v3474 = vsel %vm3295, %v3266, 0
    %v3477 = vsel %vm3295, %v3267, 0
    %v3480 = vsel %vm3295, %v3268, 0
    %v3483 = vsel %vm3295, %v3269, 0
    %v3486 = vsel %vm3295, %v3270, 0
    %3488 = vmatprep.subr.bf16.mxu0 0
    %3489 = vmatpush1.bf16.msra.mxu0 %v3287
    %3490 = vmatprep.subr.bf16.mxu0 0
    %3491 = vmatpush1.bf16.msra.mxu0 %v3288
    %3492 = vmatprep.subr.bf16.mxu0 0
    %3493 = vmatpush1.bf16.msra.mxu0 %v3289
    %3494 = vmatprep.subr.bf16.mxu0 0
    %3495 = vmatpush1.bf16.msra.mxu0 %v3290
    %3496 = vmatprep.subr.bf16.mxu0 0
    %3497 = vmatpush1.bf16.msra.mxu0 0
    %3498 = vmatprep.subr.bf16.mxu0 0
    %3499 = vmatpush1.bf16.msra.mxu0 0
    %3500 = vmatprep.subr.bf16.mxu0 0
    %3501 = vmatpush1.bf16.msra.mxu0 0
    %3502 = vmatprep.subr.bf16.mxu0 0
    %3503 = vmatpush1.bf16.msra.mxu0 0
    %3504 = vmatprep.subr.bf16.mxu0 0
    %3505 = vmatpush1.bf16.msra.mxu0 0
    %3506 = vmatprep.subr.bf16.mxu0 0
    %3507 = vmatpush1.bf16.msra.mxu0 0
    %3508 = vmatprep.subr.bf16.mxu0 0
    %3509 = vmatpush1.bf16.msra.mxu0 0
    %3510 = vmatprep.subr.bf16.mxu0 0
    %3511 = vmatpush1.bf16.msra.mxu0 0
    %3512 = vmatprep.subr.bf16.mxu0 0
    %3513 = vmatpush1.bf16.msra.mxu0 0
    %3514 = vmatprep.subr.bf16.mxu0 0
    %3515 = vmatpush1.bf16.msra.mxu0 0
    %3516 = vmatprep.subr.bf16.mxu0 0
    %3517 = vmatpush1.bf16.msra.mxu0 0
    %3518 = vmatprep.subr.bf16.mxu0 0
    %3519 = vmatpush1.bf16.msra.mxu0 0
    %3520 = vmatprep.mubr.bf16.mxu0 0
    %3521 = vmatmul.mubr.bf16.gmra.mrb[0].mxu0 %v3297
    %v3522 = vpop.f32.mrb[0].mxu0
    %v3523 = vadd.f32 0.0, %v3522
    %v3524 = vpop.f32.mrb[0].mxu0
    %v3525 = vpop.f32.mrb[0].mxu0
    %v3526 = vadd.f32 0.0, %v3525
    %v3527 = vpop.f32.mrb[0].mxu0
    %3528 = vmatprep.mubr.bf16.mxu0 0
    %3529 = vmatmul.mubr.bf16.gmra.mrb[0].mxu0 %v3300
    %v3530 = vpop.f32.mrb[0].mxu0
    %v3531 = vadd.f32 0.0, %v3530
    %v3532 = vpop.f32.mrb[0].mxu0
    %v3533 = vpop.f32.mrb[0].mxu0
    %v3534 = vadd.f32 0.0, %v3533
    %v3535 = vpop.f32.mrb[0].mxu0
    %3536 = vmatprep.mubr.bf16.mxu0 0
    %3537 = vmatmul.mubr.bf16.gmra.mrb[0].mxu0 %v3303
    %v3538 = vpop.f32.mrb[0].mxu0
    %v3539 = vadd.f32 0.0, %v3538
    %v3540 = vpop.f32.mrb[0].mxu0
    %v3541 = vpop.f32.mrb[0].mxu0
    %v3542 = vadd.f32 0.0, %v3541
    %v3543 = vpop.f32.mrb[0].mxu0
    %3544 = vmatprep.mubr.bf16.mxu0 0
    %3545 = vmatmul.mubr.bf16.gmra.mrb[0].mxu0 %v3306
    %v3546 = vpop.f32.mrb[0].mxu0
    %v3547 = vadd.f32 0.0, %v3546
    %v3548 = vpop.f32.mrb[0].mxu0
    %v3549 = vpop.f32.mrb[0].mxu0
    %v3550 = vadd.f32 0.0, %v3549
    %v3551 = vpop.f32.mrb[0].mxu0
    %3552 = vmatprep.mubr.bf16.mxu0 0
    %3553 = vmatmul.mubr.bf16.gmra.mrb[0].mxu0 %v3309
    %v3554 = vpop.f32.mrb[0].mxu0
    %v3555 = vadd.f32 0.0, %v3554
    %v3556 = vpop.f32.mrb[0].mxu0
    %v3557 = vpop.f32.mrb[0].mxu0
    %v3558 = vadd.f32 0.0, %v3557
    %v3559 = vpop.f32.mrb[0].mxu0
    %3560 = vmatprep.mubr.bf16.mxu0 0
    %3561 = vmatmul.mubr.bf16.gmra.mrb[0].mxu0 %v3312
    %v3562 = vpop.f32.mrb[0].mxu0
    %v3563 = vadd.f32 0.0, %v3562
    %v3564 = vpop.f32.mrb[0].mxu0
    %v3565 = vpop.f32.mrb[0].mxu0
    %v3566 = vadd.f32 0.0, %v3565
    %v3567 = vpop.f32.mrb[0].mxu0
    %3568 = vmatprep.mubr.bf16.mxu0 0
    %3569 = vmatmul.mubr.bf16.gmra.mrb[0].mxu0 %v3315
    %v3570 = vpop.f32.mrb[0].mxu0
    %v3571 = vadd.f32 0.0, %v3570
    %v3572 = vpop.f32.mrb[0].mxu0
    %v3573 = vpop.f32.mrb[0].mxu0
    %v3574 = vadd.f32 0.0, %v3573
    %v3575 = vpop.f32.mrb[0].mxu0
    %3576 = vmatprep.mubr.bf16.mxu0 0
    %3577 = vmatmul.mubr.bf16.gmra.mrb[0].mxu0 %v3318
    %v3578 = vpop.f32.mrb[0].mxu0
    %v3579 = vadd.f32 0.0, %v3578
    %v3580 = vpop.f32.mrb[0].mxu0
    %v3581 = vpop.f32.mrb[0].mxu0
    %v3582 = vadd.f32 0.0, %v3581
    %v3583 = vpop.f32.mrb[0].mxu0
    %3584 = vmatprep.mubr.bf16.mxu0 0
    %3585 = vmatmul.mubr.bf16.gmra.mrb[0].mxu0 %v3321
    %v3586 = vpop.f32.mrb[0].mxu0
    %v3587 = vadd.f32 0.0, %v3586
    %v3588 = vpop.f32.mrb[0].mxu0
    %v3589 = vpop.f32.mrb[0].mxu0
    %v3590 = vadd.f32 0.0, %v3589
    %v3591 = vpop.f32.mrb[0].mxu0
    %3592 = vmatprep.mubr.bf16.mxu0 0
    %3593 = vmatmul.mubr.bf16.gmra.mrb[0].mxu0 %v3324
    %v3594 = vpop.f32.mrb[0].mxu0
    %v3595 = vadd.f32 0.0, %v3594
    %v3596 = vpop.f32.mrb[0].mxu0
    %v3597 = vpop.f32.mrb[0].mxu0
    %v3598 = vadd.f32 0.0, %v3597
    %v3599 = vpop.f32.mrb[0].mxu0
    %3600 = vmatprep.mubr.bf16.mxu0 0
    %3601 = vmatmul.mubr.bf16.gmra.mrb[0].mxu0 %v3327
    %v3602 = vpop.f32.mrb[0].mxu0
    %v3603 = vadd.f32 0.0, %v3602
    %v3604 = vpop.f32.mrb[0].mxu0
    %v3605 = vpop.f32.mrb[0].mxu0
    %v3606 = vadd.f32 0.0, %v3605
    %v3607 = vpop.f32.mrb[0].mxu0
    %3608 = vmatprep.mubr.bf16.mxu0 0
    %3609 = vmatmul.mubr.bf16.gmra.mrb[0].mxu0 %v3330
    %v3610 = vpop.f32.mrb[0].mxu0
    %v3611 = vadd.f32 0.0, %v3610
    %v3612 = vpop.f32.mrb[0].mxu0
    %v3613 = vpop.f32.mrb[0].mxu0
    %v3614 = vadd.f32 0.0, %v3613
    %v3615 = vpop.f32.mrb[0].mxu0
    %3616 = vmatprep.mubr.bf16.mxu0 0
    %3617 = vmatmul.mubr.bf16.gmra.mrb[0].mxu0 %v3333
    %v3618 = vpop.f32.mrb[0].mxu0
    %v3619 = vadd.f32 0.0, %v3618
    %v3620 = vpop.f32.mrb[0].mxu0
    %v3621 = vpop.f32.mrb[0].mxu0
    %v3622 = vadd.f32 0.0, %v3621
    %v3623 = vpop.f32.mrb[0].mxu0
    %3624 = vmatprep.mubr.bf16.mxu0 0
    %3625 = vmatmul.mubr.bf16.gmra.mrb[0].mxu0 %v3336
    %v3626 = vpop.f32.mrb[0].mxu0
    %v3627 = vadd.f32 0.0, %v3626
    %v3628 = vpop.f32.mrb[0].mxu0
    %v3629 = vpop.f32.mrb[0].mxu0
    %v3630 = vadd.f32 0.0, %v3629
    %v3631 = vpop.f32.mrb[0].mxu0
    %3632 = vmatprep.mubr.bf16.mxu0 0
    %3633 = vmatmul.mubr.bf16.gmra.mrb[0].mxu0 %v3339
    %v3634 = vpop.f32.mrb[0].mxu0
    %v3635 = vadd.f32 0.0, %v3634
    %v3636 = vpop.f32.mrb[0].mxu0
    %v3637 = vpop.f32.mrb[0].mxu0
    %v3638 = vadd.f32 0.0, %v3637
    %v3639 = vpop.f32.mrb[0].mxu0
    %3640 = vmatprep.mubr.bf16.mxu0 0
    %3641 = vmatmul.mubr.bf16.gmra.mrb[0].mxu0 %v3342
    %v3642 = vpop.f32.mrb[0].mxu0
    %v3643 = vadd.f32 0.0, %v3642
    %v3644 = vpop.f32.mrb[0].mxu0
    %v3645 = vpop.f32.mrb[0].mxu0
    %v3646 = vadd.f32 0.0, %v3645
    %v3647 = vpop.f32.mrb[0].mxu0
    %3648 = vmatprep.mubr.bf16.mxu0 0
    %3649 = vmatmul.mubr.bf16.gmra.mrb[0].mxu0 %v3345
    %v3650 = vpop.f32.mrb[0].mxu0
    %v3651 = vadd.f32 0.0, %v3650
    %v3652 = vpop.f32.mrb[0].mxu0
    %v3653 = vpop.f32.mrb[0].mxu0
    %v3654 = vadd.f32 0.0, %v3653
    %v3655 = vpop.f32.mrb[0].mxu0
    %3656 = vmatprep.mubr.bf16.mxu0 0
    %3657 = vmatmul.mubr.bf16.gmra.mrb[0].mxu0 %v3348
    %v3658 = vpop.f32.mrb[0].mxu0
    %v3659 = vadd.f32 0.0, %v3658
    %v3660 = vpop.f32.mrb[0].mxu0
    %v3661 = vpop.f32.mrb[0].mxu0
    %v3662 = vadd.f32 0.0, %v3661
    %v3663 = vpop.f32.mrb[0].mxu0
    %3664 = vmatprep.mubr.bf16.mxu0 0
    %3665 = vmatmul.mubr.bf16.gmra.mrb[0].mxu0 %v3351
    %v3666 = vpop.f32.mrb[0].mxu0
    %v3667 = vadd.f32 0.0, %v3666
    %v3668 = vpop.f32.mrb[0].mxu0
    %v3669 = vpop.f32.mrb[0].mxu0
    %v3670 = vadd.f32 0.0, %v3669
    %v3671 = vpop.f32.mrb[0].mxu0
    %3672 = vmatprep.mubr.bf16.mxu0 0
    %3673 = vmatmul.mubr.bf16.gmra.mrb[0].mxu0 %v3354
    %v3674 = vpop.f32.mrb[0].mxu0
    %v3675 = vadd.f32 0.0, %v3674
    %v3676 = vpop.f32.mrb[0].mxu0
    %v3677 = vpop.f32.mrb[0].mxu0
    %v3678 = vadd.f32 0.0, %v3677
    %v3679 = vpop.f32.mrb[0].mxu0
    %3680 = vmatprep.mubr.bf16.mxu0 0
    %3681 = vmatmul.mubr.bf16.gmra.mrb[0].mxu0 %v3357
    %v3682 = vpop.f32.mrb[0].mxu0
    %v3683 = vadd.f32 0.0, %v3682
    %v3684 = vpop.f32.mrb[0].mxu0
    %v3685 = vpop.f32.mrb[0].mxu0
    %v3686 = vadd.f32 0.0, %v3685
    %v3687 = vpop.f32.mrb[0].mxu0
    %3688 = vmatprep.mubr.bf16.mxu0 0
    %3689 = vmatmul.mubr.bf16.gmra.mrb[0].mxu0 %v3360
    %v3690 = vpop.f32.mrb[0].mxu0
    %v3691 = vadd.f32 0.0, %v3690
    %v3692 = vpop.f32.mrb[0].mxu0
    %v3693 = vpop.f32.mrb[0].mxu0
    %v3694 = vadd.f32 0.0, %v3693
    %v3695 = vpop.f32.mrb[0].mxu0
    %3696 = vmatprep.mubr.bf16.mxu0 0
    %3697 = vmatmul.mubr.bf16.gmra.mrb[0].mxu0 %v3363
    %v3698 = vpop.f32.mrb[0].mxu0
    %v3699 = vadd.f32 0.0, %v3698
    %v3700 = vpop.f32.mrb[0].mxu0
    %v3701 = vpop.f32.mrb[0].mxu0
    %v3702 = vadd.f32 0.0, %v3701
    %v3703 = vpop.f32.mrb[0].mxu0
    %3704 = vmatprep.mubr.bf16.mxu0 0
    %3705 = vmatmul.mubr.bf16.gmra.mrb[0].mxu0 %v3366
    %v3706 = vpop.f32.mrb[0].mxu0
    %v3707 = vadd.f32 0.0, %v3706
    %v3708 = vpop.f32.mrb[0].mxu0
    %v3709 = vpop.f32.mrb[0].mxu0
    %v3710 = vadd.f32 0.0, %v3709
    %v3711 = vpop.f32.mrb[0].mxu0
    %3712 = vmatprep.mubr.bf16.mxu0 0
    %3713 = vmatmul.mubr.bf16.gmra.mrb[0].mxu0 %v3369
    %v3714 = vpop.f32.mrb[0].mxu0
    %v3715 = vadd.f32 0.0, %v3714
    %v3716 = vpop.f32.mrb[0].mxu0
    %v3717 = vpop.f32.mrb[0].mxu0
    %v3718 = vadd.f32 0.0, %v3717
    %v3719 = vpop.f32.mrb[0].mxu0
    %3720 = vmatprep.mubr.bf16.mxu0 0
    %3721 = vmatmul.mubr.bf16.gmra.mrb[0].mxu0 %v3372
    %v3722 = vpop.f32.mrb[0].mxu0
    %v3723 = vadd.f32 0.0, %v3722
    %v3724 = vpop.f32.mrb[0].mxu0
    %v3725 = vpop.f32.mrb[0].mxu0
    %v3726 = vadd.f32 0.0, %v3725
    %v3727 = vpop.f32.mrb[0].mxu0
    %3728 = vmatprep.mubr.bf16.mxu0 0
    %3729 = vmatmul.mubr.bf16.gmra.mrb[0].mxu0 %v3375
    %v3730 = vpop.f32.mrb[0].mxu0
    %v3731 = vadd.f32 0.0, %v3730
    %v3732 = vpop.f32.mrb[0].mxu0
    %v3733 = vpop.f32.mrb[0].mxu0
    %v3734 = vadd.f32 0.0, %v3733
    %v3735 = vpop.f32.mrb[0].mxu0
    %3736 = vmatprep.mubr.bf16.mxu0 0
    %3737 = vmatmul.mubr.bf16.gmra.mrb[0].mxu0 %v3378
    %v3738 = vpop.f32.mrb[0].mxu0
    %v3739 = vadd.f32 0.0, %v3738
    %v3740 = vpop.f32.mrb[0].mxu0
    %v3741 = vpop.f32.mrb[0].mxu0
    %v3742 = vadd.f32 0.0, %v3741
    %v3743 = vpop.f32.mrb[0].mxu0
    %3744 = vmatprep.mubr.bf16.mxu0 0
    %3745 = vmatmul.mubr.bf16.gmra.mrb[0].mxu0 %v3381
    %v3746 = vpop.f32.mrb[0].mxu0
    %v3747 = vadd.f32 0.0, %v3746
    %v3748 = vpop.f32.mrb[0].mxu0
    %v3749 = vpop.f32.mrb[0].mxu0
    %v3750 = vadd.f32 0.0, %v3749
    %v3751 = vpop.f32.mrb[0].mxu0
    %3752 = vmatprep.mubr.bf16.mxu0 0
    %3753 = vmatmul.mubr.bf16.gmra.mrb[0].mxu0 %v3384
    %v3754 = vpop.f32.mrb[0].mxu0
    %v3755 = vadd.f32 0.0, %v3754
    %v3756 = vpop.f32.mrb[0].mxu0
    %v3757 = vpop.f32.mrb[0].mxu0
    %v3758 = vadd.f32 0.0, %v3757
    %v3759 = vpop.f32.mrb[0].mxu0
    %3760 = vmatprep.mubr.bf16.mxu0 0
    %3761 = vmatmul.mubr.bf16.gmra.mrb[0].mxu0 %v3387
    %v3762 = vpop.f32.mrb[0].mxu0
    %v3763 = vadd.f32 0.0, %v3762
    %v3764 = vpop.f32.mrb[0].mxu0
    %v3765 = vpop.f32.mrb[0].mxu0
    %v3766 = vadd.f32 0.0, %v3765
    %v3767 = vpop.f32.mrb[0].mxu0
    %3768 = vmatprep.mubr.bf16.mxu0 0
    %3769 = vmatmul.mubr.bf16.gmra.mrb[0].mxu0 %v3390
    %v3770 = vpop.f32.mrb[0].mxu0
    %v3771 = vadd.f32 0.0, %v3770
    %v3772 = vpop.f32.mrb[0].mxu0
    %v3773 = vpop.f32.mrb[0].mxu0
    %v3774 = vadd.f32 0.0, %v3773
    %v3775 = vpop.f32.mrb[0].mxu0
    %3776 = vmatprep.mubr.bf16.mxu0 0
    %3777 = vmatmul.mubr.bf16.gmra.mrb[0].mxu0 %v3393
    %v3778 = vpop.f32.mrb[0].mxu0
    %v3779 = vadd.f32 0.0, %v3778
    %v3780 = vpop.f32.mrb[0].mxu0
    %v3781 = vpop.f32.mrb[0].mxu0
    %v3782 = vadd.f32 0.0, %v3781
    %v3783 = vpop.f32.mrb[0].mxu0
    %3784 = vmatprep.mubr.bf16.mxu0 0
    %3785 = vmatmul.mubr.bf16.gmra.mrb[0].mxu0 %v3396
    %v3786 = vpop.f32.mrb[0].mxu0
    %v3787 = vadd.f32 0.0, %v3786
    %v3788 = vpop.f32.mrb[0].mxu0
    %v3789 = vpop.f32.mrb[0].mxu0
    %v3790 = vadd.f32 0.0, %v3789
    %v3791 = vpop.f32.mrb[0].mxu0
    %3792 = vmatprep.mubr.bf16.mxu0 0
    %3793 = vmatmul.mubr.bf16.gmra.mrb[0].mxu0 %v3399
    %v3794 = vpop.f32.mrb[0].mxu0
    %v3795 = vadd.f32 0.0, %v3794
    %v3796 = vpop.f32.mrb[0].mxu0
    %v3797 = vpop.f32.mrb[0].mxu0
    %v3798 = vadd.f32 0.0, %v3797
    %v3799 = vpop.f32.mrb[0].mxu0
    %3800 = vmatprep.mubr.bf16.mxu0 0
    %3801 = vmatmul.mubr.bf16.gmra.mrb[0].mxu0 %v3402
    %v3802 = vpop.f32.mrb[0].mxu0
    %v3803 = vadd.f32 0.0, %v3802
    %v3804 = vpop.f32.mrb[0].mxu0
    %v3805 = vpop.f32.mrb[0].mxu0
    %v3806 = vadd.f32 0.0, %v3805
    %v3807 = vpop.f32.mrb[0].mxu0
    %3808 = vmatprep.mubr.bf16.mxu0 0
    %3809 = vmatmul.mubr.bf16.gmra.mrb[0].mxu0 %v3405
    %v3810 = vpop.f32.mrb[0].mxu0
    %v3811 = vadd.f32 0.0, %v3810
    %v3812 = vpop.f32.mrb[0].mxu0
    %v3813 = vpop.f32.mrb[0].mxu0
    %v3814 = vadd.f32 0.0, %v3813
    %v3815 = vpop.f32.mrb[0].mxu0
    %3816 = vmatprep.mubr.bf16.mxu0 0
    %3817 = vmatmul.mubr.bf16.gmra.mrb[0].mxu0 %v3408
    %v3818 = vpop.f32.mrb[0].mxu0
    %v3819 = vadd.f32 0.0, %v3818
    %v3820 = vpop.f32.mrb[0].mxu0
    %v3821 = vpop.f32.mrb[0].mxu0
    %v3822 = vadd.f32 0.0, %v3821
    %v3823 = vpop.f32.mrb[0].mxu0
    %3824 = vmatprep.mubr.bf16.mxu0 0
    %3825 = vmatmul.mubr.bf16.gmra.mrb[0].mxu0 %v3411
    %v3826 = vpop.f32.mrb[0].mxu0
    %v3827 = vadd.f32 0.0, %v3826
    %v3828 = vpop.f32.mrb[0].mxu0
    %v3829 = vpop.f32.mrb[0].mxu0
    %v3830 = vadd.f32 0.0, %v3829
    %v3831 = vpop.f32.mrb[0].mxu0
    %3832 = vmatprep.mubr.bf16.mxu0 0
    %3833 = vmatmul.mubr.bf16.gmra.mrb[0].mxu0 %v3414
    %v3834 = vpop.f32.mrb[0].mxu0
    %v3835 = vadd.f32 0.0, %v3834
    %v3836 = vpop.f32.mrb[0].mxu0
    %v3837 = vpop.f32.mrb[0].mxu0
    %v3838 = vadd.f32 0.0, %v3837
    %v3839 = vpop.f32.mrb[0].mxu0
    %3840 = vmatprep.mubr.bf16.mxu0 0
    %3841 = vmatmul.mubr.bf16.gmra.mrb[0].mxu0 %v3417
    %v3842 = vpop.f32.mrb[0].mxu0
    %v3843 = vadd.f32 0.0, %v3842
    %v3844 = vpop.f32.mrb[0].mxu0
    %v3845 = vpop.f32.mrb[0].mxu0
    %v3846 = vadd.f32 0.0, %v3845
    %v3847 = vpop.f32.mrb[0].mxu0
    %3848 = vmatprep.mubr.bf16.mxu0 0
    %3849 = vmatmul.mubr.bf16.gmra.mrb[0].mxu0 %v3420
    %v3850 = vpop.f32.mrb[0].mxu0
    %v3851 = vadd.f32 0.0, %v3850
    %v3852 = vpop.f32.mrb[0].mxu0
    %v3853 = vpop.f32.mrb[0].mxu0
    %v3854 = vadd.f32 0.0, %v3853
    %v3855 = vpop.f32.mrb[0].mxu0
    %3856 = vmatprep.mubr.bf16.mxu0 0
    %3857 = vmatmul.mubr.bf16.gmra.mrb[0].mxu0 %v3423
    %v3858 = vpop.f32.mrb[0].mxu0
    %v3859 = vadd.f32 0.0, %v3858
    %v3860 = vpop.f32.mrb[0].mxu0
    %v3861 = vpop.f32.mrb[0].mxu0
    %v3862 = vadd.f32 0.0, %v3861
    %v3863 = vpop.f32.mrb[0].mxu0
    %3864 = vmatprep.mubr.bf16.mxu0 0
    %3865 = vmatmul.mubr.bf16.gmra.mrb[0].mxu0 %v3426
    %v3866 = vpop.f32.mrb[0].mxu0
    %v3867 = vadd.f32 0.0, %v3866
    %v3868 = vpop.f32.mrb[0].mxu0
    %v3869 = vpop.f32.mrb[0].mxu0
    %v3870 = vadd.f32 0.0, %v3869
    %v3871 = vpop.f32.mrb[0].mxu0
    %3872 = vmatprep.mubr.bf16.mxu0 0
    %3873 = vmatmul.mubr.bf16.gmra.mrb[0].mxu0 %v3429
    %v3874 = vpop.f32.mrb[0].mxu0
    %v3875 = vadd.f32 0.0, %v3874
    %v3876 = vpop.f32.mrb[0].mxu0
    %v3877 = vpop.f32.mrb[0].mxu0
    %v3878 = vadd.f32 0.0, %v3877
    %v3879 = vpop.f32.mrb[0].mxu0
    %3880 = vmatprep.mubr.bf16.mxu0 0
    %3881 = vmatmul.mubr.bf16.gmra.mrb[0].mxu0 %v3432
    %v3882 = vpop.f32.mrb[0].mxu0
    %v3883 = vadd.f32 0.0, %v3882
    %v3884 = vpop.f32.mrb[0].mxu0
    %v3885 = vpop.f32.mrb[0].mxu0
    %v3886 = vadd.f32 0.0, %v3885
    %v3887 = vpop.f32.mrb[0].mxu0
    %3888 = vmatprep.mubr.bf16.mxu0 0
    %3889 = vmatmul.mubr.bf16.gmra.mrb[0].mxu0 %v3435
    %v3890 = vpop.f32.mrb[0].mxu0
    %v3891 = vadd.f32 0.0, %v3890
    %v3892 = vpop.f32.mrb[0].mxu0
    %v3893 = vpop.f32.mrb[0].mxu0
    %v3894 = vadd.f32 0.0, %v3893
    %v3895 = vpop.f32.mrb[0].mxu0
    %3896 = vmatprep.mubr.bf16.mxu0 0
    %3897 = vmatmul.mubr.bf16.gmra.mrb[0].mxu0 %v3438
    %v3898 = vpop.f32.mrb[0].mxu0
    %v3899 = vadd.f32 0.0, %v3898
    %v3900 = vpop.f32.mrb[0].mxu0
    %v3901 = vpop.f32.mrb[0].mxu0
    %v3902 = vadd.f32 0.0, %v3901
    %v3903 = vpop.f32.mrb[0].mxu0
    %3904 = vmatprep.mubr.bf16.mxu0 0
    %3905 = vmatmul.mubr.bf16.gmra.mrb[0].mxu0 %v3441
    %v3906 = vpop.f32.mrb[0].mxu0
    %v3907 = vadd.f32 0.0, %v3906
    %v3908 = vpop.f32.mrb[0].mxu0
    %v3909 = vpop.f32.mrb[0].mxu0
    %v3910 = vadd.f32 0.0, %v3909
    %v3911 = vpop.f32.mrb[0].mxu0
    %3912 = vmatprep.mubr.bf16.mxu0 0
    %3913 = vmatmul.mubr.bf16.gmra.mrb[0].mxu0 %v3444
    %v3914 = vpop.f32.mrb[0].mxu0
    %v3915 = vadd.f32 0.0, %v3914
    %v3916 = vpop.f32.mrb[0].mxu0
    %v3917 = vpop.f32.mrb[0].mxu0
    %v3918 = vadd.f32 0.0, %v3917
    %v3919 = vpop.f32.mrb[0].mxu0
    %3920 = vmatprep.mubr.bf16.mxu0 0
    %3921 = vmatmul.mubr.bf16.gmra.mrb[0].mxu0 %v3447
    %v3922 = vpop.f32.mrb[0].mxu0
    %v3923 = vadd.f32 0.0, %v3922
    %v3924 = vpop.f32.mrb[0].mxu0
    %v3925 = vpop.f32.mrb[0].mxu0
    %v3926 = vadd.f32 0.0, %v3925
    %v3927 = vpop.f32.mrb[0].mxu0
    %3928 = vmatprep.mubr.bf16.mxu0 0
    %3929 = vmatmul.mubr.bf16.gmra.mrb[0].mxu0 %v3450
    %v3930 = vpop.f32.mrb[0].mxu0
    %v3931 = vadd.f32 0.0, %v3930
    %v3932 = vpop.f32.mrb[0].mxu0
    %v3933 = vpop.f32.mrb[0].mxu0
    %v3934 = vadd.f32 0.0, %v3933
    %v3935 = vpop.f32.mrb[0].mxu0
    %3936 = vmatprep.mubr.bf16.mxu0 0
    %3937 = vmatmul.mubr.bf16.gmra.mrb[0].mxu0 %v3453
    %v3938 = vpop.f32.mrb[0].mxu0
    %v3939 = vadd.f32 0.0, %v3938
    %v3940 = vpop.f32.mrb[0].mxu0
    %v3941 = vpop.f32.mrb[0].mxu0
    %v3942 = vadd.f32 0.0, %v3941
    %v3943 = vpop.f32.mrb[0].mxu0
    %3944 = vmatprep.mubr.bf16.mxu0 0
    %3945 = vmatmul.mubr.bf16.gmra.mrb[0].mxu0 %v3456
    %v3946 = vpop.f32.mrb[0].mxu0
    %v3947 = vadd.f32 0.0, %v3946
    %v3948 = vpop.f32.mrb[0].mxu0
    %v3949 = vpop.f32.mrb[0].mxu0
    %v3950 = vadd.f32 0.0, %v3949
    %v3951 = vpop.f32.mrb[0].mxu0
    %3952 = vmatprep.mubr.bf16.mxu0 0
    %3953 = vmatmul.mubr.bf16.gmra.mrb[0].mxu0 %v3459
    %v3954 = vpop.f32.mrb[0].mxu0
    %v3955 = vadd.f32 0.0, %v3954
    %v3956 = vpop.f32.mrb[0].mxu0
    %v3957 = vpop.f32.mrb[0].mxu0
    %v3958 = vadd.f32 0.0, %v3957
    %v3959 = vpop.f32.mrb[0].mxu0
    %3960 = vmatprep.mubr.bf16.mxu0 0
    %3961 = vmatmul.mubr.bf16.gmra.mrb[0].mxu0 %v3462
    %v3962 = vpop.f32.mrb[0].mxu0
    %v3963 = vadd.f32 0.0, %v3962
    %v3964 = vpop.f32.mrb[0].mxu0
    %v3965 = vpop.f32.mrb[0].mxu0
    %v3966 = vadd.f32 0.0, %v3965
    %v3967 = vpop.f32.mrb[0].mxu0
    %3968 = vmatprep.mubr.bf16.mxu0 0
    %3969 = vmatmul.mubr.bf16.gmra.mrb[0].mxu0 %v3465
    %v3970 = vpop.f32.mrb[0].mxu0
    %v3971 = vadd.f32 0.0, %v3970
    %v3972 = vpop.f32.mrb[0].mxu0
    %v3973 = vpop.f32.mrb[0].mxu0
    %v3974 = vadd.f32 0.0, %v3973
    %v3975 = vpop.f32.mrb[0].mxu0
    %3976 = vmatprep.mubr.bf16.mxu0 0
    %3977 = vmatmul.mubr.bf16.gmra.mrb[0].mxu0 %v3468
    %v3978 = vpop.f32.mrb[0].mxu0
    %v3979 = vadd.f32 0.0, %v3978
    %v3980 = vpop.f32.mrb[0].mxu0
    %v3981 = vpop.f32.mrb[0].mxu0
    %v3982 = vadd.f32 0.0, %v3981
    %v3983 = vpop.f32.mrb[0].mxu0
    %3984 = vmatprep.mubr.bf16.mxu0 0
    %3985 = vmatmul.mubr.bf16.gmra.mrb[0].mxu0 %v3471
    %v3986 = vpop.f32.mrb[0].mxu0
    %v3987 = vadd.f32 0.0, %v3986
    %v3988 = vpop.f32.mrb[0].mxu0
    %v3989 = vpop.f32.mrb[0].mxu0
    %v3990 = vadd.f32 0.0, %v3989
    %v3991 = vpop.f32.mrb[0].mxu0
    %3992 = vmatprep.mubr.bf16.mxu0 0
    %3993 = vmatmul.mubr.bf16.gmra.mrb[0].mxu0 %v3474
    %v3994 = vpop.f32.mrb[0].mxu0
    %v3995 = vadd.f32 0.0, %v3994
    %v3996 = vpop.f32.mrb[0].mxu0
    %v3997 = vpop.f32.mrb[0].mxu0
    %v3998 = vadd.f32 0.0, %v3997
    %v3999 = vpop.f32.mrb[0].mxu0
    %4000 = vmatprep.mubr.bf16.mxu0 0
    %4001 = vmatmul.mubr.bf16.gmra.mrb[0].mxu0 %v3477
    %v4002 = vpop.f32.mrb[0].mxu0
    %v4003 = vadd.f32 0.0, %v4002
    %v4004 = vpop.f32.mrb[0].mxu0
    %v4005 = vpop.f32.mrb[0].mxu0
    %v4006 = vadd.f32 0.0, %v4005
    %v4007 = vpop.f32.mrb[0].mxu0
    %4008 = vmatprep.mubr.bf16.mxu0 0
    %4009 = vmatmul.mubr.bf16.gmra.mrb[0].mxu0 %v3480
    %v4010 = vpop.f32.mrb[0].mxu0
    %v4011 = vadd.f32 0.0, %v4010
    %v4012 = vpop.f32.mrb[0].mxu0
    %v4013 = vpop.f32.mrb[0].mxu0
    %v4014 = vadd.f32 0.0, %v4013
    %v4015 = vpop.f32.mrb[0].mxu0
    %4016 = vmatprep.mubr.bf16.mxu0 0
    %4017 = vmatmul.mubr.bf16.gmra.mrb[0].mxu0 %v3483
    %v4018 = vpop.f32.mrb[0].mxu0
    %v4019 = vadd.f32 0.0, %v4018
    %v4020 = vpop.f32.mrb[0].mxu0
    %v4021 = vpop.f32.mrb[0].mxu0
    %v4022 = vadd.f32 0.0, %v4021
    %v4023 = vpop.f32.mrb[0].mxu0
    %4024 = vmatprep.mubr.bf16.mxu0 0
    %4025 = vmatmul.mubr.bf16.gmra.mrb[0].mxu0 %v3486
    %v4026 = vpop.f32.mrb[0].mxu0
    %v4027 = vadd.f32 0.0, %v4026
    %v4028 = vpop.f32.mrb[0].mxu0
    %v4029 = vpop.f32.mrb[0].mxu0
    %v4030 = vadd.f32 0.0, %v4029
    %v4031 = vpop.f32.mrb[0].mxu0
    %4032 = vdwg.mxu0
    %v4033 = vadd.f32 %v1111, %v3523
    %v4034 = vadd.f32 %v1115, %v3526
    %v4035 = vadd.f32 %v1121, %v3531
    %v4036 = vadd.f32 %v1125, %v3534
    %v4037 = vadd.f32 %v1131, %v3539
    %v4038 = vadd.f32 %v1135, %v3542
    %v4039 = vadd.f32 %v1141, %v3547
    %v4040 = vadd.f32 %v1145, %v3550
    %v4041 = vadd.f32 %v1151, %v3555
    %v4042 = vadd.f32 %v1155, %v3558
    %v4043 = vadd.f32 %v1161, %v3563
    %v4044 = vadd.f32 %v1165, %v3566
    %v4045 = vadd.f32 %v1171, %v3571
    %v4046 = vadd.f32 %v1175, %v3574
    %v4047 = vadd.f32 %v1181, %v3579
    %v4048 = vadd.f32 %v1185, %v3582
    %v4049 = vadd.f32 %v1191, %v3587
    %v4050 = vadd.f32 %v1195, %v3590
    %v4051 = vadd.f32 %v1201, %v3595
    %v4052 = vadd.f32 %v1205, %v3598
    %v4053 = vadd.f32 %v1211, %v3603
    %v4054 = vadd.f32 %v1215, %v3606
    %v4055 = vadd.f32 %v1221, %v3611
    %v4056 = vadd.f32 %v1225, %v3614
    %v4057 = vadd.f32 %v1231, %v3619
    %v4058 = vadd.f32 %v1235, %v3622
    %v4059 = vadd.f32 %v1241, %v3627
    %v4060 = vadd.f32 %v1245, %v3630
    %v4061 = vadd.f32 %v1251, %v3635
    %v4062 = vadd.f32 %v1255, %v3638
    %v4063 = vadd.f32 %v1261, %v3643
    %v4064 = vadd.f32 %v1265, %v3646
    %v4065 = vadd.f32 %v1271, %v3651
    %v4066 = vadd.f32 %v1275, %v3654
    %v4067 = vadd.f32 %v1281, %v3659
    %v4068 = vadd.f32 %v1285, %v3662
    %v4069 = vadd.f32 %v1291, %v3667
    %v4070 = vadd.f32 %v1295, %v3670
    %v4071 = vadd.f32 %v1301, %v3675
    %v4072 = vadd.f32 %v1305, %v3678
    %v4073 = vadd.f32 %v1311, %v3683
    %v4074 = vadd.f32 %v1315, %v3686
    %v4075 = vadd.f32 %v1321, %v3691
    %v4076 = vadd.f32 %v1325, %v3694
    %v4077 = vadd.f32 %v1331, %v3699
    %v4078 = vadd.f32 %v1335, %v3702
    %v4079 = vadd.f32 %v1341, %v3707
    %v4080 = vadd.f32 %v1345, %v3710
    %v4081 = vadd.f32 %v1351, %v3715
    %v4082 = vadd.f32 %v1355, %v3718
    %v4083 = vadd.f32 %v1361, %v3723
    %v4084 = vadd.f32 %v1365, %v3726
    %v4085 = vadd.f32 %v1371, %v3731
    %v4086 = vadd.f32 %v1375, %v3734
    %v4087 = vadd.f32 %v1381, %v3739
    %v4088 = vadd.f32 %v1385, %v3742
    %v4089 = vadd.f32 %v1391, %v3747
    %v4090 = vadd.f32 %v1395, %v3750
    %v4091 = vadd.f32 %v1401, %v3755
    %v4092 = vadd.f32 %v1405, %v3758
    %v4093 = vadd.f32 %v1411, %v3763
    %v4094 = vadd.f32 %v1415, %v3766
    %v4095 = vadd.f32 %v1421, %v3771
    %v4096 = vadd.f32 %v1425, %v3774
    %v4097 = vadd.f32 %v1431, %v3779
    %v4098 = vadd.f32 %v1435, %v3782
    %v4099 = vadd.f32 %v1441, %v3787
    %v4100 = vadd.f32 %v1445, %v3790
    %v4101 = vadd.f32 %v1451, %v3795
    %v4102 = vadd.f32 %v1455, %v3798
    %v4103 = vadd.f32 %v1461, %v3803
    %v4104 = vadd.f32 %v1465, %v3806
    %v4105 = vadd.f32 %v1471, %v3811
    %v4106 = vadd.f32 %v1475, %v3814
    %v4107 = vadd.f32 %v1481, %v3819
    %v4108 = vadd.f32 %v1485, %v3822
    %v4109 = vadd.f32 %v1491, %v3827
    %v4110 = vadd.f32 %v1495, %v3830
    %v4111 = vadd.f32 %v1501, %v3835
    %v4112 = vadd.f32 %v1505, %v3838
    %v4113 = vadd.f32 %v1511, %v3843
    %v4114 = vadd.f32 %v1515, %v3846
    %v4115 = vadd.f32 %v1521, %v3851
    %v4116 = vadd.f32 %v1525, %v3854
    %v4117 = vadd.f32 %v1531, %v3859
    %v4118 = vadd.f32 %v1535, %v3862
    %v4119 = vadd.f32 %v1541, %v3867
    %v4120 = vadd.f32 %v1545, %v3870
    %v4121 = vadd.f32 %v1551, %v3875
    %v4122 = vadd.f32 %v1555, %v3878
    %v4123 = vadd.f32 %v1561, %v3883
    %v4124 = vadd.f32 %v1565, %v3886
    %v4125 = vadd.f32 %v1571, %v3891
    %v4126 = vadd.f32 %v1575, %v3894
    %v4127 = vadd.f32 %v1581, %v3899
    %v4128 = vadd.f32 %v1585, %v3902
    %v4129 = vadd.f32 %v1591, %v3907
    %v4130 = vadd.f32 %v1595, %v3910
    %v4131 = vadd.f32 %v1601, %v3915
    %v4132 = vadd.f32 %v1605, %v3918
    %v4133 = vadd.f32 %v1611, %v3923
    %v4134 = vadd.f32 %v1615, %v3926
    %v4135 = vadd.f32 %v1621, %v3931
    %v4136 = vadd.f32 %v1625, %v3934
    %v4137 = vadd.f32 %v1631, %v3939
    %v4138 = vadd.f32 %v1635, %v3942
    %v4139 = vadd.f32 %v1641, %v3947
    %v4140 = vadd.f32 %v1645, %v3950
    %v4141 = vadd.f32 %v1651, %v3955
    %v4142 = vadd.f32 %v1655, %v3958
    %v4143 = vadd.f32 %v1661, %v3963
    %v4144 = vadd.f32 %v1665, %v3966
    %v4145 = vadd.f32 %v1671, %v3971
    %v4146 = vadd.f32 %v1675, %v3974
    %v4147 = vadd.f32 %v1681, %v3979
    %v4148 = vadd.f32 %v1685, %v3982
    %v4149 = vadd.f32 %v1691, %v3987
    %v4150 = vadd.f32 %v1695, %v3990
    %v4151 = vadd.f32 %v1701, %v3995
    %v4152 = vadd.f32 %v1705, %v3998
    %v4153 = vadd.f32 %v1711, %v4003
    %v4154 = vadd.f32 %v1715, %v4006
    %v4155 = vadd.f32 %v1721, %v4011
    %v4156 = vadd.f32 %v1725, %v4014
    %v4157 = vadd.f32 %v1731, %v4019
    %v4158 = vadd.f32 %v1735, %v4022
    %v4159 = vadd.f32 %v1741, %v4027
    %v4160 = vadd.f32 %v1745, %v4030
    %v4161 = vxor.u32 %v4033, 2147483648
    %v4162 = vxor.u32 %v4034, 2147483648
    %v4163 = vxor.u32 %v4035, 2147483648
    %v4164 = vxor.u32 %v4036, 2147483648
    %v4165 = vxor.u32 %v4037, 2147483648
    %v4166 = vxor.u32 %v4038, 2147483648
    %v4167 = vxor.u32 %v4039, 2147483648
    %v4168 = vxor.u32 %v4040, 2147483648
    %v4169 = vxor.u32 %v4041, 2147483648
    %v4170 = vxor.u32 %v4042, 2147483648
    %v4171 = vxor.u32 %v4043, 2147483648
    %v4172 = vxor.u32 %v4044, 2147483648
    %v4173 = vxor.u32 %v4045, 2147483648
    %v4174 = vxor.u32 %v4046, 2147483648
    %v4175 = vxor.u32 %v4047, 2147483648
    %v4176 = vxor.u32 %v4048, 2147483648
    %v4177 = vxor.u32 %v4049, 2147483648
    %v4178 = vxor.u32 %v4050, 2147483648
    %v4179 = vxor.u32 %v4051, 2147483648
    %v4180 = vxor.u32 %v4052, 2147483648
    %v4181 = vxor.u32 %v4053, 2147483648
    %v4182 = vxor.u32 %v4054, 2147483648
    %v4183 = vxor.u32 %v4055, 2147483648
    %v4184 = vxor.u32 %v4056, 2147483648
    %v4185 = vxor.u32 %v4057, 2147483648
    %v4186 = vxor.u32 %v4058, 2147483648
    %v4187 = vxor.u32 %v4059, 2147483648
    %v4188 = vxor.u32 %v4060, 2147483648
    %v4189 = vxor.u32 %v4061, 2147483648
    %v4190 = vxor.u32 %v4062, 2147483648
    %v4191 = vxor.u32 %v4063, 2147483648
    %v4192 = vxor.u32 %v4064, 2147483648
    %v4193 = vxor.u32 %v4065, 2147483648
    %v4194 = vxor.u32 %v4066, 2147483648
    %v4195 = vxor.u32 %v4067, 2147483648
    %v4196 = vxor.u32 %v4068, 2147483648
    %v4197 = vxor.u32 %v4069, 2147483648
    %v4198 = vxor.u32 %v4070, 2147483648
    %v4199 = vxor.u32 %v4071, 2147483648
    %v4200 = vxor.u32 %v4072, 2147483648
    %v4201 = vxor.u32 %v4073, 2147483648
    %v4202 = vxor.u32 %v4074, 2147483648
    %v4203 = vxor.u32 %v4075, 2147483648
    %v4204 = vxor.u32 %v4076, 2147483648
    %v4205 = vxor.u32 %v4077, 2147483648
    %v4206 = vxor.u32 %v4078, 2147483648
    %v4207 = vxor.u32 %v4079, 2147483648
    %v4208 = vxor.u32 %v4080, 2147483648
    %v4209 = vxor.u32 %v4081, 2147483648
    %v4210 = vxor.u32 %v4082, 2147483648
    %v4211 = vxor.u32 %v4083, 2147483648
    %v4212 = vxor.u32 %v4084, 2147483648
    %v4213 = vxor.u32 %v4085, 2147483648
    %v4214 = vxor.u32 %v4086, 2147483648
    %v4215 = vxor.u32 %v4087, 2147483648
    %v4216 = vxor.u32 %v4088, 2147483648
    %v4217 = vxor.u32 %v4089, 2147483648
    %v4218 = vxor.u32 %v4090, 2147483648
    %v4219 = vxor.u32 %v4091, 2147483648
    %v4220 = vxor.u32 %v4092, 2147483648
    %v4221 = vxor.u32 %v4093, 2147483648
    %v4222 = vxor.u32 %v4094, 2147483648
    %v4223 = vxor.u32 %v4095, 2147483648
    %v4224 = vxor.u32 %v4096, 2147483648
    %v4225 = vxor.u32 %v4097, 2147483648
    %v4226 = vxor.u32 %v4098, 2147483648
    %v4227 = vxor.u32 %v4099, 2147483648
    %v4228 = vxor.u32 %v4100, 2147483648
    %v4229 = vxor.u32 %v4101, 2147483648
    %v4230 = vxor.u32 %v4102, 2147483648
    %v4231 = vxor.u32 %v4103, 2147483648
    %v4232 = vxor.u32 %v4104, 2147483648
    %v4233 = vxor.u32 %v4105, 2147483648
    %v4234 = vxor.u32 %v4106, 2147483648
    %v4235 = vxor.u32 %v4107, 2147483648
    %v4236 = vxor.u32 %v4108, 2147483648
    %v4237 = vxor.u32 %v4109, 2147483648
    %v4238 = vxor.u32 %v4110, 2147483648
    %v4239 = vxor.u32 %v4111, 2147483648
    %v4240 = vxor.u32 %v4112, 2147483648
    %v4241 = vxor.u32 %v4113, 2147483648
    %v4242 = vxor.u32 %v4114, 2147483648
    %v4243 = vxor.u32 %v4115, 2147483648
    %v4244 = vxor.u32 %v4116, 2147483648
    %v4245 = vxor.u32 %v4117, 2147483648
    %v4246 = vxor.u32 %v4118, 2147483648
    %v4247 = vxor.u32 %v4119, 2147483648
    %v4248 = vxor.u32 %v4120, 2147483648
    %v4249 = vxor.u32 %v4121, 2147483648
    %v4250 = vxor.u32 %v4122, 2147483648
    %v4251 = vxor.u32 %v4123, 2147483648
    %v4252 = vxor.u32 %v4124, 2147483648
    %v4253 = vxor.u32 %v4125, 2147483648
    %v4254 = vxor.u32 %v4126, 2147483648
    %v4255 = vxor.u32 %v4127, 2147483648
    %v4256 = vxor.u32 %v4128, 2147483648
    %v4257 = vxor.u32 %v4129, 2147483648
    %v4258 = vxor.u32 %v4130, 2147483648
    %v4259 = vxor.u32 %v4131, 2147483648
    %v4260 = vxor.u32 %v4132, 2147483648
    %v4261 = vxor.u32 %v4133, 2147483648
    %v4262 = vxor.u32 %v4134, 2147483648
    %v4263 = vxor.u32 %v4135, 2147483648
    %v4264 = vxor.u32 %v4136, 2147483648
    %v4265 = vxor.u32 %v4137, 2147483648
    %v4266 = vxor.u32 %v4138, 2147483648
    %v4267 = vxor.u32 %v4139, 2147483648
    %v4268 = vxor.u32 %v4140, 2147483648
    %v4269 = vxor.u32 %v4141, 2147483648
    %v4270 = vxor.u32 %v4142, 2147483648
    %v4271 = vxor.u32 %v4143, 2147483648
    %v4272 = vxor.u32 %v4144, 2147483648
    %v4273 = vxor.u32 %v4145, 2147483648
    %v4274 = vxor.u32 %v4146, 2147483648
    %v4275 = vxor.u32 %v4147, 2147483648
    %v4276 = vxor.u32 %v4148, 2147483648
    %v4277 = vxor.u32 %v4149, 2147483648
    %v4278 = vxor.u32 %v4150, 2147483648
    %v4279 = vxor.u32 %v4151, 2147483648
    %v4280 = vxor.u32 %v4152, 2147483648
    %v4281 = vxor.u32 %v4153, 2147483648
    %v4282 = vxor.u32 %v4154, 2147483648
    %v4283 = vxor.u32 %v4155, 2147483648
    %v4284 = vxor.u32 %v4156, 2147483648
    %v4285 = vxor.u32 %v4157, 2147483648
    %v4286 = vxor.u32 %v4158, 2147483648
    %v4287 = vxor.u32 %v4159, 2147483648
    %v4288 = vxor.u32 %v4160, 2147483648
    %v4289 = vmul.f32 %v4161, 1.442695
    %v4290 = vpow.pop %v4289
    %v4291 = vmul.f32 %v4162, 1.442695
    %v4292 = vpow.pop %v4291
    %v4293 = vmul.f32 %v4163, 1.442695
    %v4294 = vpow.pop %v4293
    %v4295 = vmul.f32 %v4164, 1.442695
    %v4296 = vpow.pop %v4295
    %v4297 = vmul.f32 %v4165, 1.442695
    %v4298 = vpow.pop %v4297
    %v4299 = vmul.f32 %v4166, 1.442695
    %v4300 = vpow.pop %v4299
    %v4301 = vmul.f32 %v4167, 1.442695
    %v4302 = vpow.pop %v4301
    %v4303 = vmul.f32 %v4168, 1.442695
    %v4304 = vpow.pop %v4303
    %v4305 = vmul.f32 %v4169, 1.442695
    %v4306 = vpow.pop %v4305
    %v4307 = vmul.f32 %v4170, 1.442695
    %v4308 = vpow.pop %v4307
    %v4309 = vmul.f32 %v4171, 1.442695
    %v4310 = vpow.pop %v4309
    %v4311 = vmul.f32 %v4172, 1.442695
    %v4312 = vpow.pop %v4311
    %v4313 = vmul.f32 %v4173, 1.442695
    %v4314 = vpow.pop %v4313
    %v4315 = vmul.f32 %v4174, 1.442695
    %v4316 = vpow.pop %v4315
    %v4317 = vmul.f32 %v4175, 1.442695
    %v4318 = vpow.pop %v4317
    %v4319 = vmul.f32 %v4176, 1.442695
    %v4320 = vpow.pop %v4319
    %v4321 = vmul.f32 %v4177, 1.442695
    %v4322 = vpow.pop %v4321
    %v4323 = vmul.f32 %v4178, 1.442695
    %v4324 = vpow.pop %v4323
    %v4325 = vmul.f32 %v4179, 1.442695
    %v4326 = vpow.pop %v4325
    %v4327 = vmul.f32 %v4180, 1.442695
    %v4328 = vpow.pop %v4327
    %v4329 = vmul.f32 %v4181, 1.442695
    %v4330 = vpow.pop %v4329
    %v4331 = vmul.f32 %v4182, 1.442695
    %v4332 = vpow.pop %v4331
    %v4333 = vmul.f32 %v4183, 1.442695
    %v4334 = vpow.pop %v4333
    %v4335 = vmul.f32 %v4184, 1.442695
    %v4336 = vpow.pop %v4335
    %v4337 = vmul.f32 %v4185, 1.442695
    %v4338 = vpow.pop %v4337
    %v4339 = vmul.f32 %v4186, 1.442695
    %v4340 = vpow.pop %v4339
    %v4341 = vmul.f32 %v4187, 1.442695
    %v4342 = vpow.pop %v4341
    %v4343 = vmul.f32 %v4188, 1.442695
    %v4344 = vpow.pop %v4343
    %v4345 = vmul.f32 %v4189, 1.442695
    %v4346 = vpow.pop %v4345
    %v4347 = vmul.f32 %v4190, 1.442695
    %v4348 = vpow.pop %v4347
    %v4349 = vmul.f32 %v4191, 1.442695
    %v4350 = vpow.pop %v4349
    %v4351 = vmul.f32 %v4192, 1.442695
    %v4352 = vpow.pop %v4351
    %v4353 = vmul.f32 %v4193, 1.442695
    %v4354 = vpow.pop %v4353
    %v4355 = vmul.f32 %v4194, 1.442695
    %v4356 = vpow.pop %v4355
    %v4357 = vmul.f32 %v4195, 1.442695
    %v4358 = vpow.pop %v4357
    %v4359 = vmul.f32 %v4196, 1.442695
    %v4360 = vpow.pop %v4359
    %v4361 = vmul.f32 %v4197, 1.442695
    %v4362 = vpow.pop %v4361
    %v4363 = vmul.f32 %v4198, 1.442695
    %v4364 = vpow.pop %v4363
    %v4365 = vmul.f32 %v4199, 1.442695
    %v4366 = vpow.pop %v4365
    %v4367 = vmul.f32 %v4200, 1.442695
    %v4368 = vpow.pop %v4367
    %v4369 = vmul.f32 %v4201, 1.442695
    %v4370 = vpow.pop %v4369
    %v4371 = vmul.f32 %v4202, 1.442695
    %v4372 = vpow.pop %v4371
    %v4373 = vmul.f32 %v4203, 1.442695
    %v4374 = vpow.pop %v4373
    %v4375 = vmul.f32 %v4204, 1.442695
    %v4376 = vpow.pop %v4375
    %v4377 = vmul.f32 %v4205, 1.442695
    %v4378 = vpow.pop %v4377
    %v4379 = vmul.f32 %v4206, 1.442695
    %v4380 = vpow.pop %v4379
    %v4381 = vmul.f32 %v4207, 1.442695
    %v4382 = vpow.pop %v4381
    %v4383 = vmul.f32 %v4208, 1.442695
    %v4384 = vpow.pop %v4383
    %v4385 = vmul.f32 %v4209, 1.442695
    %v4386 = vpow.pop %v4385
    %v4387 = vmul.f32 %v4210, 1.442695
    %v4388 = vpow.pop %v4387
    %v4389 = vmul.f32 %v4211, 1.442695
    %v4390 = vpow.pop %v4389
    %v4391 = vmul.f32 %v4212, 1.442695
    %v4392 = vpow.pop %v4391
    %v4393 = vmul.f32 %v4213, 1.442695
    %v4394 = vpow.pop %v4393
    %v4395 = vmul.f32 %v4214, 1.442695
    %v4396 = vpow.pop %v4395
    %v4397 = vmul.f32 %v4215, 1.442695
    %v4398 = vpow.pop %v4397
    %v4399 = vmul.f32 %v4216, 1.442695
    %v4400 = vpow.pop %v4399
    %v4401 = vmul.f32 %v4217, 1.442695
    %v4402 = vpow.pop %v4401
    %v4403 = vmul.f32 %v4218, 1.442695
    %v4404 = vpow.pop %v4403
    %v4405 = vmul.f32 %v4219, 1.442695
    %v4406 = vpow.pop %v4405
    %v4407 = vmul.f32 %v4220, 1.442695
    %v4408 = vpow.pop %v4407
    %v4409 = vmul.f32 %v4221, 1.442695
    %v4410 = vpow.pop %v4409
    %v4411 = vmul.f32 %v4222, 1.442695
    %v4412 = vpow.pop %v4411
    %v4413 = vmul.f32 %v4223, 1.442695
    %v4414 = vpow.pop %v4413
    %v4415 = vmul.f32 %v4224, 1.442695
    %v4416 = vpow.pop %v4415
    %v4417 = vmul.f32 %v4225, 1.442695
    %v4418 = vpow.pop %v4417
    %v4419 = vmul.f32 %v4226, 1.442695
    %v4420 = vpow.pop %v4419
    %v4421 = vmul.f32 %v4227, 1.442695
    %v4422 = vpow.pop %v4421
    %v4423 = vmul.f32 %v4228, 1.442695
    %v4424 = vpow.pop %v4423
    %v4425 = vmul.f32 %v4229, 1.442695
    %v4426 = vpow.pop %v4425
    %v4427 = vmul.f32 %v4230, 1.442695
    %v4428 = vpow.pop %v4427
    %v4429 = vmul.f32 %v4231, 1.442695
    %v4430 = vpow.pop %v4429
    %v4431 = vmul.f32 %v4232, 1.442695
    %v4432 = vpow.pop %v4431
    %v4433 = vmul.f32 %v4233, 1.442695
    %v4434 = vpow.pop %v4433
    %v4435 = vmul.f32 %v4234, 1.442695
    %v4436 = vpow.pop %v4435
    %v4437 = vmul.f32 %v4235, 1.442695
    %v4438 = vpow.pop %v4437
    %v4439 = vmul.f32 %v4236, 1.442695
    %v4440 = vpow.pop %v4439
    %v4441 = vmul.f32 %v4237, 1.442695
    %v4442 = vpow.pop %v4441
    %v4443 = vmul.f32 %v4238, 1.442695
    %v4444 = vpow.pop %v4443
    %v4445 = vmul.f32 %v4239, 1.442695
    %v4446 = vpow.pop %v4445
    %v4447 = vmul.f32 %v4240, 1.442695
    %v4448 = vpow.pop %v4447
    %v4449 = vmul.f32 %v4241, 1.442695
    %v4450 = vpow.pop %v4449
    %v4451 = vmul.f32 %v4242, 1.442695
    %v4452 = vpow.pop %v4451
    %v4453 = vmul.f32 %v4243, 1.442695
    %v4454 = vpow.pop %v4453
    %v4455 = vmul.f32 %v4244, 1.442695
    %v4456 = vpow.pop %v4455
    %v4457 = vmul.f32 %v4245, 1.442695
    %v4458 = vpow.pop %v4457
    %v4459 = vmul.f32 %v4246, 1.442695
    %v4460 = vpow.pop %v4459
    %v4461 = vmul.f32 %v4247, 1.442695
    %v4462 = vpow.pop %v4461
    %v4463 = vmul.f32 %v4248, 1.442695
    %v4464 = vpow.pop %v4463
    %v4465 = vmul.f32 %v4249, 1.442695
    %v4466 = vpow.pop %v4465
    %v4467 = vmul.f32 %v4250, 1.442695
    %v4468 = vpow.pop %v4467
    %v4469 = vmul.f32 %v4251, 1.442695
    %v4470 = vpow.pop %v4469
    %v4471 = vmul.f32 %v4252, 1.442695
    %v4472 = vpow.pop %v4471
    %v4473 = vmul.f32 %v4253, 1.442695
    %v4474 = vpow.pop %v4473
    %v4475 = vmul.f32 %v4254, 1.442695
    %v4476 = vpow.pop %v4475
    %v4477 = vmul.f32 %v4255, 1.442695
    %v4478 = vpow.pop %v4477
    %v4479 = vmul.f32 %v4256, 1.442695
    %v4480 = vpow.pop %v4479
    %v4481 = vmul.f32 %v4257, 1.442695
    %v4482 = vpow.pop %v4481
    %v4483 = vmul.f32 %v4258, 1.442695
    %v4484 = vpow.pop %v4483
    %v4485 = vmul.f32 %v4259, 1.442695
    %v4486 = vpow.pop %v4485
    %v4487 = vmul.f32 %v4260, 1.442695
    %v4488 = vpow.pop %v4487
    %v4489 = vmul.f32 %v4261, 1.442695
    %v4490 = vpow.pop %v4489
    %v4491 = vmul.f32 %v4262, 1.442695
    %v4492 = vpow.pop %v4491
    %v4493 = vmul.f32 %v4263, 1.442695
    %v4494 = vpow.pop %v4493
    %v4495 = vmul.f32 %v4264, 1.442695
    %v4496 = vpow.pop %v4495
    %v4497 = vmul.f32 %v4265, 1.442695
    %v4498 = vpow.pop %v4497
    %v4499 = vmul.f32 %v4266, 1.442695
    %v4500 = vpow.pop %v4499
    %v4501 = vmul.f32 %v4267, 1.442695
    %v4502 = vpow.pop %v4501
    %v4503 = vmul.f32 %v4268, 1.442695
    %v4504 = vpow.pop %v4503
    %v4505 = vmul.f32 %v4269, 1.442695
    %v4506 = vpow.pop %v4505
    %v4507 = vmul.f32 %v4270, 1.442695
    %v4508 = vpow.pop %v4507
    %v4509 = vmul.f32 %v4271, 1.442695
    %v4510 = vpow.pop %v4509
    %v4511 = vmul.f32 %v4272, 1.442695
    %v4512 = vpow.pop %v4511
    %v4513 = vmul.f32 %v4273, 1.442695
    %v4514 = vpow.pop %v4513
    %v4515 = vmul.f32 %v4274, 1.442695
    %v4516 = vpow.pop %v4515
    %v4517 = vmul.f32 %v4275, 1.442695
    %v4518 = vpow.pop %v4517
    %v4519 = vmul.f32 %v4276, 1.442695
    %v4520 = vpow.pop %v4519
    %v4521 = vmul.f32 %v4277, 1.442695
    %v4522 = vpow.pop %v4521
    %v4523 = vmul.f32 %v4278, 1.442695
    %v4524 = vpow.pop %v4523
    %v4525 = vmul.f32 %v4279, 1.442695
    %v4526 = vpow.pop %v4525
    %v4527 = vmul.f32 %v4280, 1.442695
    %v4528 = vpow.pop %v4527
    %v4529 = vmul.f32 %v4281, 1.442695
    %v4530 = vpow.pop %v4529
    %v4531 = vmul.f32 %v4282, 1.442695
    %v4532 = vpow.pop %v4531
    %v4533 = vmul.f32 %v4283, 1.442695
    %v4534 = vpow.pop %v4533
    %v4535 = vmul.f32 %v4284, 1.442695
    %v4536 = vpow.pop %v4535
    %v4537 = vmul.f32 %v4285, 1.442695
    %v4538 = vpow.pop %v4537
    %v4539 = vmul.f32 %v4286, 1.442695
    %v4540 = vpow.pop %v4539
    %v4541 = vmul.f32 %v4287, 1.442695
    %v4542 = vpow.pop %v4541
    %v4543 = vmul.f32 %v4288, 1.442695
    %v4544 = vpow.pop %v4543
    %v4545 = vadd.f32 %v4290, 1.0
    %v4546 = vadd.f32 %v4292, 1.0
    %v4547 = vadd.f32 %v4294, 1.0
    %v4548 = vadd.f32 %v4296, 1.0
    %v4549 = vadd.f32 %v4298, 1.0
    %v4550 = vadd.f32 %v4300, 1.0
    %v4551 = vadd.f32 %v4302, 1.0
    %v4552 = vadd.f32 %v4304, 1.0
    %v4553 = vadd.f32 %v4306, 1.0
    %v4554 = vadd.f32 %v4308, 1.0
    %v4555 = vadd.f32 %v4310, 1.0
    %v4556 = vadd.f32 %v4312, 1.0
    %v4557 = vadd.f32 %v4314, 1.0
    %v4558 = vadd.f32 %v4316, 1.0
    %v4559 = vadd.f32 %v4318, 1.0
    %v4560 = vadd.f32 %v4320, 1.0
    %v4561 = vadd.f32 %v4322, 1.0
    %v4562 = vadd.f32 %v4324, 1.0
    %v4563 = vadd.f32 %v4326, 1.0
    %v4564 = vadd.f32 %v4328, 1.0
    %v4565 = vadd.f32 %v4330, 1.0
    %v4566 = vadd.f32 %v4332, 1.0
    %v4567 = vadd.f32 %v4334, 1.0
    %v4568 = vadd.f32 %v4336, 1.0
    %v4569 = vadd.f32 %v4338, 1.0
    %v4570 = vadd.f32 %v4340, 1.0
    %v4571 = vadd.f32 %v4342, 1.0
    %v4572 = vadd.f32 %v4344, 1.0
    %v4573 = vadd.f32 %v4346, 1.0
    %v4574 = vadd.f32 %v4348, 1.0
    %v4575 = vadd.f32 %v4350, 1.0
    %v4576 = vadd.f32 %v4352, 1.0
    %v4577 = vadd.f32 %v4354, 1.0
    %v4578 = vadd.f32 %v4356, 1.0
    %v4579 = vadd.f32 %v4358, 1.0
    %v4580 = vadd.f32 %v4360, 1.0
    %v4581 = vadd.f32 %v4362, 1.0
    %v4582 = vadd.f32 %v4364, 1.0
    %v4583 = vadd.f32 %v4366, 1.0
    %v4584 = vadd.f32 %v4368, 1.0
    %v4585 = vadd.f32 %v4370, 1.0
    %v4586 = vadd.f32 %v4372, 1.0
    %v4587 = vadd.f32 %v4374, 1.0
    %v4588 = vadd.f32 %v4376, 1.0
    %v4589 = vadd.f32 %v4378, 1.0
    %v4590 = vadd.f32 %v4380, 1.0
    %v4591 = vadd.f32 %v4382, 1.0
    %v4592 = vadd.f32 %v4384, 1.0
    %v4593 = vadd.f32 %v4386, 1.0
    %v4594 = vadd.f32 %v4388, 1.0
    %v4595 = vadd.f32 %v4390, 1.0
    %v4596 = vadd.f32 %v4392, 1.0
    %v4597 = vadd.f32 %v4394, 1.0
    %v4598 = vadd.f32 %v4396, 1.0
    %v4599 = vadd.f32 %v4398, 1.0
    %v4600 = vadd.f32 %v4400, 1.0
    %v4601 = vadd.f32 %v4402, 1.0
    %v4602 = vadd.f32 %v4404, 1.0
    %v4603 = vadd.f32 %v4406, 1.0
    %v4604 = vadd.f32 %v4408, 1.0
    %v4605 = vadd.f32 %v4410, 1.0
    %v4606 = vadd.f32 %v4412, 1.0
    %v4607 = vadd.f32 %v4414, 1.0
    %v4608 = vadd.f32 %v4416, 1.0
    %v4609 = vadd.f32 %v4418, 1.0
    %v4610 = vadd.f32 %v4420, 1.0
    %v4611 = vadd.f32 %v4422, 1.0
    %v4612 = vadd.f32 %v4424, 1.0
    %v4613 = vadd.f32 %v4426, 1.0
    %v4614 = vadd.f32 %v4428, 1.0
    %v4615 = vadd.f32 %v4430, 1.0
    %v4616 = vadd.f32 %v4432, 1.0
    %v4617 = vadd.f32 %v4434, 1.0
    %v4618 = vadd.f32 %v4436, 1.0
    %v4619 = vadd.f32 %v4438, 1.0
    %v4620 = vadd.f32 %v4440, 1.0
    %v4621 = vadd.f32 %v4442, 1.0
    %v4622 = vadd.f32 %v4444, 1.0
    %v4623 = vadd.f32 %v4446, 1.0
    %v4624 = vadd.f32 %v4448, 1.0
    %v4625 = vadd.f32 %v4450, 1.0
    %v4626 = vadd.f32 %v4452, 1.0
    %v4627 = vadd.f32 %v4454, 1.0
    %v4628 = vadd.f32 %v4456, 1.0
    %v4629 = vadd.f32 %v4458, 1.0
    %v4630 = vadd.f32 %v4460, 1.0
    %v4631 = vadd.f32 %v4462, 1.0
    %v4632 = vadd.f32 %v4464, 1.0
    %v4633 = vadd.f32 %v4466, 1.0
    %v4634 = vadd.f32 %v4468, 1.0
    %v4635 = vadd.f32 %v4470, 1.0
    %v4636 = vadd.f32 %v4472, 1.0
    %v4637 = vadd.f32 %v4474, 1.0
    %v4638 = vadd.f32 %v4476, 1.0
    %v4639 = vadd.f32 %v4478, 1.0
    %v4640 = vadd.f32 %v4480, 1.0
    %v4641 = vadd.f32 %v4482, 1.0
    %v4642 = vadd.f32 %v4484, 1.0
    %v4643 = vadd.f32 %v4486, 1.0
    %v4644 = vadd.f32 %v4488, 1.0
    %v4645 = vadd.f32 %v4490, 1.0
    %v4646 = vadd.f32 %v4492, 1.0
    %v4647 = vadd.f32 %v4494, 1.0
    %v4648 = vadd.f32 %v4496, 1.0
    %v4649 = vadd.f32 %v4498, 1.0
    %v4650 = vadd.f32 %v4500, 1.0
    %v4651 = vadd.f32 %v4502, 1.0
    %v4652 = vadd.f32 %v4504, 1.0
    %v4653 = vadd.f32 %v4506, 1.0
    %v4654 = vadd.f32 %v4508, 1.0
    %v4655 = vadd.f32 %v4510, 1.0
    %v4656 = vadd.f32 %v4512, 1.0
    %v4657 = vadd.f32 %v4514, 1.0
    %v4658 = vadd.f32 %v4516, 1.0
    %v4659 = vadd.f32 %v4518, 1.0
    %v4660 = vadd.f32 %v4520, 1.0
    %v4661 = vadd.f32 %v4522, 1.0
    %v4662 = vadd.f32 %v4524, 1.0
    %v4663 = vadd.f32 %v4526, 1.0
    %v4664 = vadd.f32 %v4528, 1.0
    %v4665 = vadd.f32 %v4530, 1.0
    %v4666 = vadd.f32 %v4532, 1.0
    %v4667 = vadd.f32 %v4534, 1.0
    %v4668 = vadd.f32 %v4536, 1.0
    %v4669 = vadd.f32 %v4538, 1.0
    %v4670 = vadd.f32 %v4540, 1.0
    %v4671 = vadd.f32 %v4542, 1.0
    %v4672 = vadd.f32 %v4544, 1.0
    %v4673 = vrcp.pop %v4545
    %v4674 = vmul.f32 1.0, %v4673
    %v4675 = vrcp.pop %v4546
    %v4676 = vmul.f32 1.0, %v4675
    %v4677 = vrcp.pop %v4547
    %v4678 = vmul.f32 1.0, %v4677
    %v4679 = vrcp.pop %v4548
    %v4680 = vmul.f32 1.0, %v4679
    %v4681 = vrcp.pop %v4549
    %v4682 = vmul.f32 1.0, %v4681
    %v4683 = vrcp.pop %v4550
    %v4684 = vmul.f32 1.0, %v4683
    %v4685 = vrcp.pop %v4551
    %v4686 = vmul.f32 1.0, %v4685
    %v4687 = vrcp.pop %v4552
    %v4688 = vmul.f32 1.0, %v4687
    %v4689 = vrcp.pop %v4553
    %v4690 = vmul.f32 1.0, %v4689
    %v4691 = vrcp.pop %v4554
    %v4692 = vmul.f32 1.0, %v4691
    %v4693 = vrcp.pop %v4555
    %v4694 = vmul.f32 1.0, %v4693
    %v4695 = vrcp.pop %v4556
    %v4696 = vmul.f32 1.0, %v4695
    %v4697 = vrcp.pop %v4557
    %v4698 = vmul.f32 1.0, %v4697
    %v4699 = vrcp.pop %v4558
    %v4700 = vmul.f32 1.0, %v4699
    %v4701 = vrcp.pop %v4559
    %v4702 = vmul.f32 1.0, %v4701
    %v4703 = vrcp.pop %v4560
    %v4704 = vmul.f32 1.0, %v4703
    %v4705 = vrcp.pop %v4561
    %v4706 = vmul.f32 1.0, %v4705
    %v4707 = vrcp.pop %v4562
    %v4708 = vmul.f32 1.0, %v4707
    %v4709 = vrcp.pop %v4563
    %v4710 = vmul.f32 1.0, %v4709
    %v4711 = vrcp.pop %v4564
    %v4712 = vmul.f32 1.0, %v4711
    %v4713 = vrcp.pop %v4565
    %v4714 = vmul.f32 1.0, %v4713
    %v4715 = vrcp.pop %v4566
    %v4716 = vmul.f32 1.0, %v4715
    %v4717 = vrcp.pop %v4567
    %v4718 = vmul.f32 1.0, %v4717
    %v4719 = vrcp.pop %v4568
    %v4720 = vmul.f32 1.0, %v4719
    %v4721 = vrcp.pop %v4569
    %v4722 = vmul.f32 1.0, %v4721
    %v4723 = vrcp.pop %v4570
    %v4724 = vmul.f32 1.0, %v4723
    %v4725 = vrcp.pop %v4571
    %v4726 = vmul.f32 1.0, %v4725
    %v4727 = vrcp.pop %v4572
    %v4728 = vmul.f32 1.0, %v4727
    %v4729 = vrcp.pop %v4573
    %v4730 = vmul.f32 1.0, %v4729
    %v4731 = vrcp.pop %v4574
    %v4732 = vmul.f32 1.0, %v4731
    %v4733 = vrcp.pop %v4575
    %v4734 = vmul.f32 1.0, %v4733
    %v4735 = vrcp.pop %v4576
    %v4736 = vmul.f32 1.0, %v4735
    %v4737 = vrcp.pop %v4577
    %v4738 = vmul.f32 1.0, %v4737
    %v4739 = vrcp.pop %v4578
    %v4740 = vmul.f32 1.0, %v4739
    %v4741 = vrcp.pop %v4579
    %v4742 = vmul.f32 1.0, %v4741
    %v4743 = vrcp.pop %v4580
    %v4744 = vmul.f32 1.0, %v4743
    %v4745 = vrcp.pop %v4581
    %v4746 = vmul.f32 1.0, %v4745
    %v4747 = vrcp.pop %v4582
    %v4748 = vmul.f32 1.0, %v4747
    %v4749 = vrcp.pop %v4583
    %v4750 = vmul.f32 1.0, %v4749
    %v4751 = vrcp.pop %v4584
    %v4752 = vmul.f32 1.0, %v4751
    %v4753 = vrcp.pop %v4585
    %v4754 = vmul.f32 1.0, %v4753
    %v4755 = vrcp.pop %v4586
    %v4756 = vmul.f32 1.0, %v4755
    %v4757 = vrcp.pop %v4587
    %v4758 = vmul.f32 1.0, %v4757
    %v4759 = vrcp.pop %v4588
    %v4760 = vmul.f32 1.0, %v4759
    %v4761 = vrcp.pop %v4589
    %v4762 = vmul.f32 1.0, %v4761
    %v4763 = vrcp.pop %v4590
    %v4764 = vmul.f32 1.0, %v4763
    %v4765 = vrcp.pop %v4591
    %v4766 = vmul.f32 1.0, %v4765
    %v4767 = vrcp.pop %v4592
    %v4768 = vmul.f32 1.0, %v4767
    %v4769 = vrcp.pop %v4593
    %v4770 = vmul.f32 1.0, %v4769
    %v4771 = vrcp.pop %v4594
    %v4772 = vmul.f32 1.0, %v4771
    %v4773 = vrcp.pop %v4595
    %v4774 = vmul.f32 1.0, %v4773
    %v4775 = vrcp.pop %v4596
    %v4776 = vmul.f32 1.0, %v4775
    %v4777 = vrcp.pop %v4597
    %v4778 = vmul.f32 1.0, %v4777
    %v4779 = vrcp.pop %v4598
    %v4780 = vmul.f32 1.0, %v4779
    %v4781 = vrcp.pop %v4599
    %v4782 = vmul.f32 1.0, %v4781
    %v4783 = vrcp.pop %v4600
    %v4784 = vmul.f32 1.0, %v4783
    %v4785 = vrcp.pop %v4601
    %v4786 = vmul.f32 1.0, %v4785
    %v4787 = vrcp.pop %v4602
    %v4788 = vmul.f32 1.0, %v4787
    %v4789 = vrcp.pop %v4603
    %v4790 = vmul.f32 1.0, %v4789
    %v4791 = vrcp.pop %v4604
    %v4792 = vmul.f32 1.0, %v4791
    %v4793 = vrcp.pop %v4605
    %v4794 = vmul.f32 1.0, %v4793
    %v4795 = vrcp.pop %v4606
    %v4796 = vmul.f32 1.0, %v4795
    %v4797 = vrcp.pop %v4607
    %v4798 = vmul.f32 1.0, %v4797
    %v4799 = vrcp.pop %v4608
    %v4800 = vmul.f32 1.0, %v4799
    %v4801 = vrcp.pop %v4609
    %v4802 = vmul.f32 1.0, %v4801
    %v4803 = vrcp.pop %v4610
    %v4804 = vmul.f32 1.0, %v4803
    %v4805 = vrcp.pop %v4611
    %v4806 = vmul.f32 1.0, %v4805
    %v4807 = vrcp.pop %v4612
    %v4808 = vmul.f32 1.0, %v4807
    %v4809 = vrcp.pop %v4613
    %v4810 = vmul.f32 1.0, %v4809
    %v4811 = vrcp.pop %v4614
    %v4812 = vmul.f32 1.0, %v4811
    %v4813 = vrcp.pop %v4615
    %v4814 = vmul.f32 1.0, %v4813
    %v4815 = vrcp.pop %v4616
    %v4816 = vmul.f32 1.0, %v4815
    %v4817 = vrcp.pop %v4617
    %v4818 = vmul.f32 1.0, %v4817
    %v4819 = vrcp.pop %v4618
    %v4820 = vmul.f32 1.0, %v4819
    %v4821 = vrcp.pop %v4619
    %v4822 = vmul.f32 1.0, %v4821
    %v4823 = vrcp.pop %v4620
    %v4824 = vmul.f32 1.0, %v4823
    %v4825 = vrcp.pop %v4621
    %v4826 = vmul.f32 1.0, %v4825
    %v4827 = vrcp.pop %v4622
    %v4828 = vmul.f32 1.0, %v4827
    %v4829 = vrcp.pop %v4623
    %v4830 = vmul.f32 1.0, %v4829
    %v4831 = vrcp.pop %v4624
    %v4832 = vmul.f32 1.0, %v4831
    %v4833 = vrcp.pop %v4625
    %v4834 = vmul.f32 1.0, %v4833
    %v4835 = vrcp.pop %v4626
    %v4836 = vmul.f32 1.0, %v4835
    %v4837 = vrcp.pop %v4627
    %v4838 = vmul.f32 1.0, %v4837
    %v4839 = vrcp.pop %v4628
    %v4840 = vmul.f32 1.0, %v4839
    %v4841 = vrcp.pop %v4629
    %v4842 = vmul.f32 1.0, %v4841
    %v4843 = vrcp.pop %v4630
    %v4844 = vmul.f32 1.0, %v4843
    %v4845 = vrcp.pop %v4631
    %v4846 = vmul.f32 1.0, %v4845
    %v4847 = vrcp.pop %v4632
    %v4848 = vmul.f32 1.0, %v4847
    %v4849 = vrcp.pop %v4633
    %v4850 = vmul.f32 1.0, %v4849
    %v4851 = vrcp.pop %v4634
    %v4852 = vmul.f32 1.0, %v4851
    %v4853 = vrcp.pop %v4635
    %v4854 = vmul.f32 1.0, %v4853
    %v4855 = vrcp.pop %v4636
    %v4856 = vmul.f32 1.0, %v4855
    %v4857 = vrcp.pop %v4637
    %v4858 = vmul.f32 1.0, %v4857
    %v4859 = vrcp.pop %v4638
    %v4860 = vmul.f32 1.0, %v4859
    %v4861 = vrcp.pop %v4639
    %v4862 = vmul.f32 1.0, %v4861
    %v4863 = vrcp.pop %v4640
    %v4864 = vmul.f32 1.0, %v4863
    %v4865 = vrcp.pop %v4641
    %v4866 = vmul.f32 1.0, %v4865
    %v4867 = vrcp.pop %v4642
    %v4868 = vmul.f32 1.0, %v4867
    %v4869 = vrcp.pop %v4643
    %v4870 = vmul.f32 1.0, %v4869
    %v4871 = vrcp.pop %v4644
    %v4872 = vmul.f32 1.0, %v4871
    %v4873 = vrcp.pop %v4645
    %v4874 = vmul.f32 1.0, %v4873
    %v4875 = vrcp.pop %v4646
    %v4876 = vmul.f32 1.0, %v4875
    %v4877 = vrcp.pop %v4647
    %v4878 = vmul.f32 1.0, %v4877
    %v4879 = vrcp.pop %v4648
    %v4880 = vmul.f32 1.0, %v4879
    %v4881 = vrcp.pop %v4649
    %v4882 = vmul.f32 1.0, %v4881
    %v4883 = vrcp.pop %v4650
    %v4884 = vmul.f32 1.0, %v4883
    %v4885 = vrcp.pop %v4651
    %v4886 = vmul.f32 1.0, %v4885
    %v4887 = vrcp.pop %v4652
    %v4888 = vmul.f32 1.0, %v4887
    %v4889 = vrcp.pop %v4653
    %v4890 = vmul.f32 1.0, %v4889
    %v4891 = vrcp.pop %v4654
    %v4892 = vmul.f32 1.0, %v4891
    %v4893 = vrcp.pop %v4655
    %v4894 = vmul.f32 1.0, %v4893
    %v4895 = vrcp.pop %v4656
    %v4896 = vmul.f32 1.0, %v4895
    %v4897 = vrcp.pop %v4657
    %v4898 = vmul.f32 1.0, %v4897
    %v4899 = vrcp.pop %v4658
    %v4900 = vmul.f32 1.0, %v4899
    %v4901 = vrcp.pop %v4659
    %v4902 = vmul.f32 1.0, %v4901
    %v4903 = vrcp.pop %v4660
    %v4904 = vmul.f32 1.0, %v4903
    %v4905 = vrcp.pop %v4661
    %v4906 = vmul.f32 1.0, %v4905
    %v4907 = vrcp.pop %v4662
    %v4908 = vmul.f32 1.0, %v4907
    %v4909 = vrcp.pop %v4663
    %v4910 = vmul.f32 1.0, %v4909
    %v4911 = vrcp.pop %v4664
    %v4912 = vmul.f32 1.0, %v4911
    %v4913 = vrcp.pop %v4665
    %v4914 = vmul.f32 1.0, %v4913
    %v4915 = vrcp.pop %v4666
    %v4916 = vmul.f32 1.0, %v4915
    %v4917 = vrcp.pop %v4667
    %v4918 = vmul.f32 1.0, %v4917
    %v4919 = vrcp.pop %v4668
    %v4920 = vmul.f32 1.0, %v4919
    %v4921 = vrcp.pop %v4669
    %v4922 = vmul.f32 1.0, %v4921
    %v4923 = vrcp.pop %v4670
    %v4924 = vmul.f32 1.0, %v4923
    %v4925 = vrcp.pop %v4671
    %v4926 = vmul.f32 1.0, %v4925
    %v4927 = vrcp.pop %v4672
    %v4928 = vmul.f32 1.0, %v4927
    %v4929 = vmul.f32 %v4033, %v4674
    %v4930 = vmul.f32 %v4034, %v4676
    %v4931 = vmul.f32 %v4035, %v4678
    %v4932 = vmul.f32 %v4036, %v4680
    %v4933 = vmul.f32 %v4037, %v4682
    %v4934 = vmul.f32 %v4038, %v4684
    %v4935 = vmul.f32 %v4039, %v4686
    %v4936 = vmul.f32 %v4040, %v4688
    %v4937 = vmul.f32 %v4041, %v4690
    %v4938 = vmul.f32 %v4042, %v4692
    %v4939 = vmul.f32 %v4043, %v4694
    %v4940 = vmul.f32 %v4044, %v4696
    %v4941 = vmul.f32 %v4045, %v4698
    %v4942 = vmul.f32 %v4046, %v4700
    %v4943 = vmul.f32 %v4047, %v4702
    %v4944 = vmul.f32 %v4048, %v4704
    %v4945 = vmul.f32 %v4049, %v4706
    %v4946 = vmul.f32 %v4050, %v4708
    %v4947 = vmul.f32 %v4051, %v4710
    %v4948 = vmul.f32 %v4052, %v4712
    %v4949 = vmul.f32 %v4053, %v4714
    %v4950 = vmul.f32 %v4054, %v4716
    %v4951 = vmul.f32 %v4055, %v4718
    %v4952 = vmul.f32 %v4056, %v4720
    %v4953 = vmul.f32 %v4057, %v4722
    %v4954 = vmul.f32 %v4058, %v4724
    %v4955 = vmul.f32 %v4059, %v4726
    %v4956 = vmul.f32 %v4060, %v4728
    %v4957 = vmul.f32 %v4061, %v4730
    %v4958 = vmul.f32 %v4062, %v4732
    %v4959 = vmul.f32 %v4063, %v4734
    %v4960 = vmul.f32 %v4064, %v4736
    %v4961 = vmul.f32 %v4065, %v4738
    %v4962 = vmul.f32 %v4066, %v4740
    %v4963 = vmul.f32 %v4067, %v4742
    %v4964 = vmul.f32 %v4068, %v4744
    %v4965 = vmul.f32 %v4069, %v4746
    %v4966 = vmul.f32 %v4070, %v4748
    %v4967 = vmul.f32 %v4071, %v4750
    %v4968 = vmul.f32 %v4072, %v4752
    %v4969 = vmul.f32 %v4073, %v4754
    %v4970 = vmul.f32 %v4074, %v4756
    %v4971 = vmul.f32 %v4075, %v4758
    %v4972 = vmul.f32 %v4076, %v4760
    %v4973 = vmul.f32 %v4077, %v4762
    %v4974 = vmul.f32 %v4078, %v4764
    %v4975 = vmul.f32 %v4079, %v4766
    %v4976 = vmul.f32 %v4080, %v4768
    %v4977 = vmul.f32 %v4081, %v4770
    %v4978 = vmul.f32 %v4082, %v4772
    %v4979 = vmul.f32 %v4083, %v4774
    %v4980 = vmul.f32 %v4084, %v4776
    %v4981 = vmul.f32 %v4085, %v4778
    %v4982 = vmul.f32 %v4086, %v4780
    %v4983 = vmul.f32 %v4087, %v4782
    %v4984 = vmul.f32 %v4088, %v4784
    %v4985 = vmul.f32 %v4089, %v4786
    %v4986 = vmul.f32 %v4090, %v4788
    %v4987 = vmul.f32 %v4091, %v4790
    %v4988 = vmul.f32 %v4092, %v4792
    %v4989 = vmul.f32 %v4093, %v4794
    %v4990 = vmul.f32 %v4094, %v4796
    %v4991 = vmul.f32 %v4095, %v4798
    %v4992 = vmul.f32 %v4096, %v4800
    %v4993 = vmul.f32 %v4097, %v4802
    %v4994 = vmul.f32 %v4098, %v4804
    %v4995 = vmul.f32 %v4099, %v4806
    %v4996 = vmul.f32 %v4100, %v4808
    %v4997 = vmul.f32 %v4101, %v4810
    %v4998 = vmul.f32 %v4102, %v4812
    %v4999 = vmul.f32 %v4103, %v4814
    %v5000 = vmul.f32 %v4104, %v4816
    %v5001 = vmul.f32 %v4105, %v4818
    %v5002 = vmul.f32 %v4106, %v4820
    %v5003 = vmul.f32 %v4107, %v4822
    %v5004 = vmul.f32 %v4108, %v4824
    %v5005 = vmul.f32 %v4109, %v4826
    %v5006 = vmul.f32 %v4110, %v4828
    %v5007 = vmul.f32 %v4111, %v4830
    %v5008 = vmul.f32 %v4112, %v4832
    %v5009 = vmul.f32 %v4113, %v4834
    %v5010 = vmul.f32 %v4114, %v4836
    %v5011 = vmul.f32 %v4115, %v4838
    %v5012 = vmul.f32 %v4116, %v4840
    %v5013 = vmul.f32 %v4117, %v4842
    %v5014 = vmul.f32 %v4118, %v4844
    %v5015 = vmul.f32 %v4119, %v4846
    %v5016 = vmul.f32 %v4120, %v4848
    %v5017 = vmul.f32 %v4121, %v4850
    %v5018 = vmul.f32 %v4122, %v4852
    %v5019 = vmul.f32 %v4123, %v4854
    %v5020 = vmul.f32 %v4124, %v4856
    %v5021 = vmul.f32 %v4125, %v4858
    %v5022 = vmul.f32 %v4126, %v4860
    %v5023 = vmul.f32 %v4127, %v4862
    %v5024 = vmul.f32 %v4128, %v4864
    %v5025 = vmul.f32 %v4129, %v4866
    %v5026 = vmul.f32 %v4130, %v4868
    %v5027 = vmul.f32 %v4131, %v4870
    %v5028 = vmul.f32 %v4132, %v4872
    %v5029 = vmul.f32 %v4133, %v4874
    %v5030 = vmul.f32 %v4134, %v4876
    %v5031 = vmul.f32 %v4135, %v4878
    %v5032 = vmul.f32 %v4136, %v4880
    %v5033 = vmul.f32 %v4137, %v4882
    %v5034 = vmul.f32 %v4138, %v4884
    %v5035 = vmul.f32 %v4139, %v4886
    %v5036 = vmul.f32 %v4140, %v4888
    %v5037 = vmul.f32 %v4141, %v4890
    %v5038 = vmul.f32 %v4142, %v4892
    %v5039 = vmul.f32 %v4143, %v4894
    %v5040 = vmul.f32 %v4144, %v4896
    %v5041 = vmul.f32 %v4145, %v4898
    %v5042 = vmul.f32 %v4146, %v4900
    %v5043 = vmul.f32 %v4147, %v4902
    %v5044 = vmul.f32 %v4148, %v4904
    %v5045 = vmul.f32 %v4149, %v4906
    %v5046 = vmul.f32 %v4150, %v4908
    %v5047 = vmul.f32 %v4151, %v4910
    %v5048 = vmul.f32 %v4152, %v4912
    %v5049 = vmul.f32 %v4153, %v4914
    %v5050 = vmul.f32 %v4154, %v4916
    %v5051 = vmul.f32 %v4155, %v4918
    %v5052 = vmul.f32 %v4156, %v4920
    %v5053 = vmul.f32 %v4157, %v4922
    %v5054 = vmul.f32 %v4158, %v4924
    %v5055 = vmul.f32 %v4159, %v4926
    %v5056 = vmul.f32 %v4160, %v4928
    %v5057 = vpack.c.bf16 %v4930, %v4929
    %v5058 = vpack.c.bf16 %v4932, %v4931
    %v5059 = vpack.c.bf16 %v4934, %v4933
    %v5060 = vpack.c.bf16 %v4936, %v4935
    %v5061 = vpack.c.bf16 %v4938, %v4937
    %v5062 = vpack.c.bf16 %v4940, %v4939
    %v5063 = vpack.c.bf16 %v4942, %v4941
    %v5064 = vpack.c.bf16 %v4944, %v4943
    %v5065 = vpack.c.bf16 %v4946, %v4945
    %v5066 = vpack.c.bf16 %v4948, %v4947
    %v5067 = vpack.c.bf16 %v4950, %v4949
    %v5068 = vpack.c.bf16 %v4952, %v4951
    %v5069 = vpack.c.bf16 %v4954, %v4953
    %v5070 = vpack.c.bf16 %v4956, %v4955
    %v5071 = vpack.c.bf16 %v4958, %v4957
    %v5072 = vpack.c.bf16 %v4960, %v4959
    %v5073 = vpack.c.bf16 %v4962, %v4961
    %v5074 = vpack.c.bf16 %v4964, %v4963
    %v5075 = vpack.c.bf16 %v4966, %v4965
    %v5076 = vpack.c.bf16 %v4968, %v4967
    %v5077 = vpack.c.bf16 %v4970, %v4969
    %v5078 = vpack.c.bf16 %v4972, %v4971
    %v5079 = vpack.c.bf16 %v4974, %v4973
    %v5080 = vpack.c.bf16 %v4976, %v4975
    %v5081 = vpack.c.bf16 %v4978, %v4977
    %v5082 = vpack.c.bf16 %v4980, %v4979
    %v5083 = vpack.c.bf16 %v4982, %v4981
    %v5084 = vpack.c.bf16 %v4984, %v4983
    %v5085 = vpack.c.bf16 %v4986, %v4985
    %v5086 = vpack.c.bf16 %v4988, %v4987
    %v5087 = vpack.c.bf16 %v4990, %v4989
    %v5088 = vpack.c.bf16 %v4992, %v4991
    %v5089 = vpack.c.bf16 %v4994, %v4993
    %v5090 = vpack.c.bf16 %v4996, %v4995
    %v5091 = vpack.c.bf16 %v4998, %v4997
    %v5092 = vpack.c.bf16 %v5000, %v4999
    %v5093 = vpack.c.bf16 %v5002, %v5001
    %v5094 = vpack.c.bf16 %v5004, %v5003
    %v5095 = vpack.c.bf16 %v5006, %v5005
    %v5096 = vpack.c.bf16 %v5008, %v5007
    %v5097 = vpack.c.bf16 %v5010, %v5009
    %v5098 = vpack.c.bf16 %v5012, %v5011
    %v5099 = vpack.c.bf16 %v5014, %v5013
    %v5100 = vpack.c.bf16 %v5016, %v5015
    %v5101 = vpack.c.bf16 %v5018, %v5017
    %v5102 = vpack.c.bf16 %v5020, %v5019
    %v5103 = vpack.c.bf16 %v5022, %v5021
    %v5104 = vpack.c.bf16 %v5024, %v5023
    %v5105 = vpack.c.bf16 %v5026, %v5025
    %v5106 = vpack.c.bf16 %v5028, %v5027
    %v5107 = vpack.c.bf16 %v5030, %v5029
    %v5108 = vpack.c.bf16 %v5032, %v5031
    %v5109 = vpack.c.bf16 %v5034, %v5033
    %v5110 = vpack.c.bf16 %v5036, %v5035
    %v5111 = vpack.c.bf16 %v5038, %v5037
    %v5112 = vpack.c.bf16 %v5040, %v5039
    %v5113 = vpack.c.bf16 %v5042, %v5041
    %v5114 = vpack.c.bf16 %v5044, %v5043
    %v5115 = vpack.c.bf16 %v5046, %v5045
    %v5116 = vpack.c.bf16 %v5048, %v5047
    %v5117 = vpack.c.bf16 %v5050, %v5049
    %v5118 = vpack.c.bf16 %v5052, %v5051
    %v5119 = vpack.c.bf16 %v5054, %v5053
    %v5120 = vpack.c.bf16 %v5056, %v5055
    %v5121 = vld [vmem:[#allocation14] sm:$0xf]
    %v5122 = vld [vmem:[#allocation14 + $0x4] sm:$0xf]
    %v5123 = vld [vmem:[#allocation14 + $0x8] sm:$0xf]
    %v5124 = vld [vmem:[#allocation14 + $0xc] sm:$0xf]
    %v5125 = vld [vmem:[#allocation14 + $0x10] sm:$0xf]
    %v5126 = vld [vmem:[#allocation14 + $0x14] sm:$0xf]
    %v5127 = vld [vmem:[#allocation14 + $0x18] sm:$0xf]
    %v5128 = vld [vmem:[#allocation14 + $0x1c] sm:$0xf]
    %v5129 = vld [vmem:[#allocation14 + $0x20] sm:$0xf]
    %v5130 = vld [vmem:[#allocation14 + $0x24] sm:$0xf]
    %v5131 = vld [vmem:[#allocation14 + $0x28] sm:$0xf]
    %v5132 = vld [vmem:[#allocation14 + $0x2c] sm:$0xf]
    %v5133 = vld [vmem:[#allocation14 + $0x30] sm:$0xf]
    %v5134 = vld [vmem:[#allocation14 + $0x34] sm:$0xf]
    %v5135 = vld [vmem:[#allocation14 + $0x38] sm:$0xf]
    %v5136 = vld [vmem:[#allocation14 + $0x3c] sm:$0xf]
    %v5137 = vld [vmem:[#allocation16] sm:$0x1]
    %v5139 = vlaneseq
    %v5140 = vshrl.u32 %v5139, 7
    %v5141 = vsub.s32 0, %v5140
    %v5142 = vrot.slane %v5137, %v5141
    %v5160 = vunpack.c.l.b16 %v5121
    %v5161 = vunpack.c.l.b16 %v5122
    %v5162 = vunpack.c.l.b16 %v5123
    %v5163 = vunpack.c.l.b16 %v5124
    %v5164 = vunpack.c.l.b16 %v5125
    %v5165 = vunpack.c.l.b16 %v5126
    %v5166 = vunpack.c.l.b16 %v5127
    %v5167 = vunpack.c.l.b16 %v5128
    %v5168 = vunpack.c.l.b16 %v5129
    %v5169 = vunpack.c.l.b16 %v5130
    %v5170 = vunpack.c.l.b16 %v5131
    %v5171 = vunpack.c.l.b16 %v5132
    %v5172 = vunpack.c.l.b16 %v5133
    %v5173 = vunpack.c.l.b16 %v5134
    %v5174 = vunpack.c.l.b16 %v5135
    %v5175 = vunpack.c.l.b16 %v5136
    %v5176 = vpack.c.b16 %v5161, %v5160
    %v5177 = vpack.c.b16 %v5163, %v5162
    %v5178 = vpack.c.b16 %v5165, %v5164
    %v5179 = vpack.c.b16 %v5167, %v5166
    %v5180 = vpack.c.b16 %v5169, %v5168
    %v5181 = vpack.c.b16 %v5171, %v5170
    %v5182 = vpack.c.b16 %v5173, %v5172
    %v5183 = vpack.c.b16 %v5175, %v5174
    %5192 = vmatprep.subr.bf16.mxu0 0
    %5193 = vmatpush1.bf16.msra.mxu0 %v5176
    %5194 = vmatprep.subr.bf16.mxu0 0
    %5195 = vmatpush1.bf16.msra.mxu0 %v5177
    %5196 = vmatprep.subr.bf16.mxu0 0
    %5197 = vmatpush1.bf16.msra.mxu0 %v5178
    %5198 = vmatprep.subr.bf16.mxu0 0
    %5199 = vmatpush1.bf16.msra.mxu0 %v5179
    %5200 = vmatprep.subr.bf16.mxu0 0
    %5201 = vmatpush1.bf16.msra.mxu0 %v5180
    %5202 = vmatprep.subr.bf16.mxu0 0
    %5203 = vmatpush1.bf16.msra.mxu0 %v5181
    %5204 = vmatprep.subr.bf16.mxu0 0
    %5205 = vmatpush1.bf16.msra.mxu0 %v5182
    %5206 = vmatprep.subr.bf16.mxu0 0
    %5207 = vmatpush1.bf16.msra.mxu0 %v5183
    %5208 = vmatprep.subr.bf16.mxu0 0
    %5209 = vmatpush1.bf16.msra.mxu0 0
    %5210 = vmatprep.subr.bf16.mxu0 0
    %5211 = vmatpush1.bf16.msra.mxu0 0
    %5212 = vmatprep.subr.bf16.mxu0 0
    %5213 = vmatpush1.bf16.msra.mxu0 0
    %5214 = vmatprep.subr.bf16.mxu0 0
    %5215 = vmatpush1.bf16.msra.mxu0 0
    %5216 = vmatprep.subr.bf16.mxu0 0
    %5217 = vmatpush1.bf16.msra.mxu0 0
    %5218 = vmatprep.subr.bf16.mxu0 0
    %5219 = vmatpush1.bf16.msra.mxu0 0
    %5220 = vmatprep.subr.bf16.mxu0 0
    %5221 = vmatpush1.bf16.msra.mxu0 0
    %5222 = vmatprep.subr.bf16.mxu0 0
    %5223 = vmatpush1.bf16.msra.mxu0 0
    %5224 = vmatprep.mubr.bf16.mxu0 0
    %5225 = vmatmul.mubr.bf16.gmra.mrb[0].mxu0 %v5057
    %v5226 = vpop.f32.mrb[0].mxu0
    %v5227 = vadd.f32 %v5142, %v5226
    %v5228 = vpop.f32.mrb[0].mxu0
    %v5229 = vpop.f32.mrb[0].mxu0
    %v5230 = vadd.f32 %v5142, %v5229
    %v5231 = vpop.f32.mrb[0].mxu0
    %5232 = vmatprep.mubr.bf16.mxu0 0
    %5233 = vmatmul.mubr.bf16.gmra.mrb[0].mxu0 %v5058
    %v5234 = vpop.f32.mrb[0].mxu0
    %v5235 = vadd.f32 %v5142, %v5234
    %v5236 = vpop.f32.mrb[0].mxu0
    %v5237 = vpop.f32.mrb[0].mxu0
    %v5238 = vadd.f32 %v5142, %v5237
    %v5239 = vpop.f32.mrb[0].mxu0
    %5240 = vmatprep.mubr.bf16.mxu0 0
    %5241 = vmatmul.mubr.bf16.gmra.mrb[0].mxu0 %v5059
    %v5242 = vpop.f32.mrb[0].mxu0
    %v5243 = vadd.f32 %v5142, %v5242
    %v5244 = vpop.f32.mrb[0].mxu0
    %v5245 = vpop.f32.mrb[0].mxu0
    %v5246 = vadd.f32 %v5142, %v5245
    %v5247 = vpop.f32.mrb[0].mxu0
    %5248 = vmatprep.mubr.bf16.mxu0 0
    %5249 = vmatmul.mubr.bf16.gmra.mrb[0].mxu0 %v5060
    %v5250 = vpop.f32.mrb[0].mxu0
    %v5251 = vadd.f32 %v5142, %v5250
    %v5252 = vpop.f32.mrb[0].mxu0
    %v5253 = vpop.f32.mrb[0].mxu0
    %v5254 = vadd.f32 %v5142, %v5253
    %v5255 = vpop.f32.mrb[0].mxu0
    %5256 = vmatprep.mubr.bf16.mxu0 0
    %5257 = vmatmul.mubr.bf16.gmra.mrb[0].mxu0 %v5061
    %v5258 = vpop.f32.mrb[0].mxu0
    %v5259 = vadd.f32 %v5142, %v5258
    %v5260 = vpop.f32.mrb[0].mxu0
    %v5261 = vpop.f32.mrb[0].mxu0
    %v5262 = vadd.f32 %v5142, %v5261
    %v5263 = vpop.f32.mrb[0].mxu0
    %5264 = vmatprep.mubr.bf16.mxu0 0
    %5265 = vmatmul.mubr.bf16.gmra.mrb[0].mxu0 %v5062
    %v5266 = vpop.f32.mrb[0].mxu0
    %v5267 = vadd.f32 %v5142, %v5266
    %v5268 = vpop.f32.mrb[0].mxu0
    %v5269 = vpop.f32.mrb[0].mxu0
    %v5270 = vadd.f32 %v5142, %v5269
    %v5271 = vpop.f32.mrb[0].mxu0
    %5272 = vmatprep.mubr.bf16.mxu0 0
    %5273 = vmatmul.mubr.bf16.gmra.mrb[0].mxu0 %v5063
    %v5274 = vpop.f32.mrb[0].mxu0
    %v5275 = vadd.f32 %v5142, %v5274
    %v5276 = vpop.f32.mrb[0].mxu0
    %v5277 = vpop.f32.mrb[0].mxu0
    %v5278 = vadd.f32 %v5142, %v5277
    %v5279 = vpop.f32.mrb[0].mxu0
    %5280 = vmatprep.mubr.bf16.mxu0 0
    %5281 = vmatmul.mubr.bf16.gmra.mrb[0].mxu0 %v5064
    %v5282 = vpop.f32.mrb[0].mxu0
    %v5283 = vadd.f32 %v5142, %v5282
    %v5284 = vpop.f32.mrb[0].mxu0
    %v5285 = vpop.f32.mrb[0].mxu0
    %v5286 = vadd.f32 %v5142, %v5285
    %v5287 = vpop.f32.mrb[0].mxu0
    %5288 = vmatprep.mubr.bf16.mxu0 0
    %5289 = vmatmul.mubr.bf16.gmra.mrb[0].mxu0 %v5065
    %v5290 = vpop.f32.mrb[0].mxu0
    %v5291 = vadd.f32 %v5142, %v5290
    %v5292 = vpop.f32.mrb[0].mxu0
    %v5293 = vpop.f32.mrb[0].mxu0
    %v5294 = vadd.f32 %v5142, %v5293
    %v5295 = vpop.f32.mrb[0].mxu0
    %5296 = vmatprep.mubr.bf16.mxu0 0
    %5297 = vmatmul.mubr.bf16.gmra.mrb[0].mxu0 %v5066
    %v5298 = vpop.f32.mrb[0].mxu0
    %v5299 = vadd.f32 %v5142, %v5298
    %v5300 = vpop.f32.mrb[0].mxu0
    %v5301 = vpop.f32.mrb[0].mxu0
    %v5302 = vadd.f32 %v5142, %v5301
    %v5303 = vpop.f32.mrb[0].mxu0
    %5304 = vmatprep.mubr.bf16.mxu0 0
    %5305 = vmatmul.mubr.bf16.gmra.mrb[0].mxu0 %v5067
    %v5306 = vpop.f32.mrb[0].mxu0
    %v5307 = vadd.f32 %v5142, %v5306
    %v5308 = vpop.f32.mrb[0].mxu0
    %v5309 = vpop.f32.mrb[0].mxu0
    %v5310 = vadd.f32 %v5142, %v5309
    %v5311 = vpop.f32.mrb[0].mxu0
    %5312 = vmatprep.mubr.bf16.mxu0 0
    %5313 = vmatmul.mubr.bf16.gmra.mrb[0].mxu0 %v5068
    %v5314 = vpop.f32.mrb[0].mxu0
    %v5315 = vadd.f32 %v5142, %v5314
    %v5316 = vpop.f32.mrb[0].mxu0
    %v5317 = vpop.f32.mrb[0].mxu0
    %v5318 = vadd.f32 %v5142, %v5317
    %v5319 = vpop.f32.mrb[0].mxu0
    %5320 = vmatprep.mubr.bf16.mxu0 0
    %5321 = vmatmul.mubr.bf16.gmra.mrb[0].mxu0 %v5069
    %v5322 = vpop.f32.mrb[0].mxu0
    %v5323 = vadd.f32 %v5142, %v5322
    %v5324 = vpop.f32.mrb[0].mxu0
    %v5325 = vpop.f32.mrb[0].mxu0
    %v5326 = vadd.f32 %v5142, %v5325
    %v5327 = vpop.f32.mrb[0].mxu0
    %5328 = vmatprep.mubr.bf16.mxu0 0
    %5329 = vmatmul.mubr.bf16.gmra.mrb[0].mxu0 %v5070
    %v5330 = vpop.f32.mrb[0].mxu0
    %v5331 = vadd.f32 %v5142, %v5330
    %v5332 = vpop.f32.mrb[0].mxu0
    %v5333 = vpop.f32.mrb[0].mxu0
    %v5334 = vadd.f32 %v5142, %v5333
    %v5335 = vpop.f32.mrb[0].mxu0
    %5336 = vmatprep.mubr.bf16.mxu0 0
    %5337 = vmatmul.mubr.bf16.gmra.mrb[0].mxu0 %v5071
    %v5338 = vpop.f32.mrb[0].mxu0
    %v5339 = vadd.f32 %v5142, %v5338
    %v5340 = vpop.f32.mrb[0].mxu0
    %v5341 = vpop.f32.mrb[0].mxu0
    %v5342 = vadd.f32 %v5142, %v5341
    %v5343 = vpop.f32.mrb[0].mxu0
    %5344 = vmatprep.mubr.bf16.mxu0 0
    %5345 = vmatmul.mubr.bf16.gmra.mrb[0].mxu0 %v5072
    %v5346 = vpop.f32.mrb[0].mxu0
    %v5347 = vadd.f32 %v5142, %v5346
    %v5348 = vpop.f32.mrb[0].mxu0
    %v5349 = vpop.f32.mrb[0].mxu0
    %v5350 = vadd.f32 %v5142, %v5349
    %v5351 = vpop.f32.mrb[0].mxu0
    %5352 = vmatprep.mubr.bf16.mxu0 0
    %5353 = vmatmul.mubr.bf16.gmra.mrb[0].mxu0 %v5073
    %v5354 = vpop.f32.mrb[0].mxu0
    %v5355 = vadd.f32 %v5142, %v5354
    %v5356 = vpop.f32.mrb[0].mxu0
    %v5357 = vpop.f32.mrb[0].mxu0
    %v5358 = vadd.f32 %v5142, %v5357
    %v5359 = vpop.f32.mrb[0].mxu0
    %5360 = vmatprep.mubr.bf16.mxu0 0
    %5361 = vmatmul.mubr.bf16.gmra.mrb[0].mxu0 %v5074
    %v5362 = vpop.f32.mrb[0].mxu0
    %v5363 = vadd.f32 %v5142, %v5362
    %v5364 = vpop.f32.mrb[0].mxu0
    %v5365 = vpop.f32.mrb[0].mxu0
    %v5366 = vadd.f32 %v5142, %v5365
    %v5367 = vpop.f32.mrb[0].mxu0
    %5368 = vmatprep.mubr.bf16.mxu0 0
    %5369 = vmatmul.mubr.bf16.gmra.mrb[0].mxu0 %v5075
    %v5370 = vpop.f32.mrb[0].mxu0
    %v5371 = vadd.f32 %v5142, %v5370
    %v5372 = vpop.f32.mrb[0].mxu0
    %v5373 = vpop.f32.mrb[0].mxu0
    %v5374 = vadd.f32 %v5142, %v5373
    %v5375 = vpop.f32.mrb[0].mxu0
    %5376 = vmatprep.mubr.bf16.mxu0 0
    %5377 = vmatmul.mubr.bf16.gmra.mrb[0].mxu0 %v5076
    %v5378 = vpop.f32.mrb[0].mxu0
    %v5379 = vadd.f32 %v5142, %v5378
    %v5380 = vpop.f32.mrb[0].mxu0
    %v5381 = vpop.f32.mrb[0].mxu0
    %v5382 = vadd.f32 %v5142, %v5381
    %v5383 = vpop.f32.mrb[0].mxu0
    %5384 = vmatprep.mubr.bf16.mxu0 0
    %5385 = vmatmul.mubr.bf16.gmra.mrb[0].mxu0 %v5077
    %v5386 = vpop.f32.mrb[0].mxu0
    %v5387 = vadd.f32 %v5142, %v5386
    %v5388 = vpop.f32.mrb[0].mxu0
    %v5389 = vpop.f32.mrb[0].mxu0
    %v5390 = vadd.f32 %v5142, %v5389
    %v5391 = vpop.f32.mrb[0].mxu0
    %5392 = vmatprep.mubr.bf16.mxu0 0
    %5393 = vmatmul.mubr.bf16.gmra.mrb[0].mxu0 %v5078
    %v5394 = vpop.f32.mrb[0].mxu0
    %v5395 = vadd.f32 %v5142, %v5394
    %v5396 = vpop.f32.mrb[0].mxu0
    %v5397 = vpop.f32.mrb[0].mxu0
    %v5398 = vadd.f32 %v5142, %v5397
    %v5399 = vpop.f32.mrb[0].mxu0
    %5400 = vmatprep.mubr.bf16.mxu0 0
    %5401 = vmatmul.mubr.bf16.gmra.mrb[0].mxu0 %v5079
    %v5402 = vpop.f32.mrb[0].mxu0
    %v5403 = vadd.f32 %v5142, %v5402
    %v5404 = vpop.f32.mrb[0].mxu0
    %v5405 = vpop.f32.mrb[0].mxu0
    %v5406 = vadd.f32 %v5142, %v5405
    %v5407 = vpop.f32.mrb[0].mxu0
    %5408 = vmatprep.mubr.bf16.mxu0 0
    %5409 = vmatmul.mubr.bf16.gmra.mrb[0].mxu0 %v5080
    %v5410 = vpop.f32.mrb[0].mxu0
    %v5411 = vadd.f32 %v5142, %v5410
    %v5412 = vpop.f32.mrb[0].mxu0
    %v5413 = vpop.f32.mrb[0].mxu0
    %v5414 = vadd.f32 %v5142, %v5413
    %v5415 = vpop.f32.mrb[0].mxu0
    %5416 = vmatprep.mubr.bf16.mxu0 0
    %5417 = vmatmul.mubr.bf16.gmra.mrb[0].mxu0 %v5081
    %v5418 = vpop.f32.mrb[0].mxu0
    %v5419 = vadd.f32 %v5142, %v5418
    %v5420 = vpop.f32.mrb[0].mxu0
    %v5421 = vpop.f32.mrb[0].mxu0
    %v5422 = vadd.f32 %v5142, %v5421
    %v5423 = vpop.f32.mrb[0].mxu0
    %5424 = vmatprep.mubr.bf16.mxu0 0
    %5425 = vmatmul.mubr.bf16.gmra.mrb[0].mxu0 %v5082
    %v5426 = vpop.f32.mrb[0].mxu0
    %v5427 = vadd.f32 %v5142, %v5426
    %v5428 = vpop.f32.mrb[0].mxu0
    %v5429 = vpop.f32.mrb[0].mxu0
    %v5430 = vadd.f32 %v5142, %v5429
    %v5431 = vpop.f32.mrb[0].mxu0
    %5432 = vmatprep.mubr.bf16.mxu0 0
    %5433 = vmatmul.mubr.bf16.gmra.mrb[0].mxu0 %v5083
    %v5434 = vpop.f32.mrb[0].mxu0
    %v5435 = vadd.f32 %v5142, %v5434
    %v5436 = vpop.f32.mrb[0].mxu0
    %v5437 = vpop.f32.mrb[0].mxu0
    %v5438 = vadd.f32 %v5142, %v5437
    %v5439 = vpop.f32.mrb[0].mxu0
    %5440 = vmatprep.mubr.bf16.mxu0 0
    %5441 = vmatmul.mubr.bf16.gmra.mrb[0].mxu0 %v5084
    %v5442 = vpop.f32.mrb[0].mxu0
    %v5443 = vadd.f32 %v5142, %v5442
    %v5444 = vpop.f32.mrb[0].mxu0
    %v5445 = vpop.f32.mrb[0].mxu0
    %v5446 = vadd.f32 %v5142, %v5445
    %v5447 = vpop.f32.mrb[0].mxu0
    %5448 = vmatprep.mubr.bf16.mxu0 0
    %5449 = vmatmul.mubr.bf16.gmra.mrb[0].mxu0 %v5085
    %v5450 = vpop.f32.mrb[0].mxu0
    %v5451 = vadd.f32 %v5142, %v5450
    %v5452 = vpop.f32.mrb[0].mxu0
    %v5453 = vpop.f32.mrb[0].mxu0
    %v5454 = vadd.f32 %v5142, %v5453
    %v5455 = vpop.f32.mrb[0].mxu0
    %5456 = vmatprep.mubr.bf16.mxu0 0
    %5457 = vmatmul.mubr.bf16.gmra.mrb[0].mxu0 %v5086
    %v5458 = vpop.f32.mrb[0].mxu0
    %v5459 = vadd.f32 %v5142, %v5458
    %v5460 = vpop.f32.mrb[0].mxu0
    %v5461 = vpop.f32.mrb[0].mxu0
    %v5462 = vadd.f32 %v5142, %v5461
    %v5463 = vpop.f32.mrb[0].mxu0
    %5464 = vmatprep.mubr.bf16.mxu0 0
    %5465 = vmatmul.mubr.bf16.gmra.mrb[0].mxu0 %v5087
    %v5466 = vpop.f32.mrb[0].mxu0
    %v5467 = vadd.f32 %v5142, %v5466
    %v5468 = vpop.f32.mrb[0].mxu0
    %v5469 = vpop.f32.mrb[0].mxu0
    %v5470 = vadd.f32 %v5142, %v5469
    %v5471 = vpop.f32.mrb[0].mxu0
    %5472 = vmatprep.mubr.bf16.mxu0 0
    %5473 = vmatmul.mubr.bf16.gmra.mrb[0].mxu0 %v5088
    %v5474 = vpop.f32.mrb[0].mxu0
    %v5475 = vadd.f32 %v5142, %v5474
    %v5476 = vpop.f32.mrb[0].mxu0
    %v5477 = vpop.f32.mrb[0].mxu0
    %v5478 = vadd.f32 %v5142, %v5477
    %v5479 = vpop.f32.mrb[0].mxu0
    %5480 = vmatprep.mubr.bf16.mxu0 0
    %5481 = vmatmul.mubr.bf16.gmra.mrb[0].mxu0 %v5089
    %v5482 = vpop.f32.mrb[0].mxu0
    %v5483 = vadd.f32 %v5142, %v5482
    %v5484 = vpop.f32.mrb[0].mxu0
    %v5485 = vpop.f32.mrb[0].mxu0
    %v5486 = vadd.f32 %v5142, %v5485
    %v5487 = vpop.f32.mrb[0].mxu0
    %5488 = vmatprep.mubr.bf16.mxu0 0
    %5489 = vmatmul.mubr.bf16.gmra.mrb[0].mxu0 %v5090
    %v5490 = vpop.f32.mrb[0].mxu0
    %v5491 = vadd.f32 %v5142, %v5490
    %v5492 = vpop.f32.mrb[0].mxu0
    %v5493 = vpop.f32.mrb[0].mxu0
    %v5494 = vadd.f32 %v5142, %v5493
    %v5495 = vpop.f32.mrb[0].mxu0
    %5496 = vmatprep.mubr.bf16.mxu0 0
    %5497 = vmatmul.mubr.bf16.gmra.mrb[0].mxu0 %v5091
    %v5498 = vpop.f32.mrb[0].mxu0
    %v5499 = vadd.f32 %v5142, %v5498
    %v5500 = vpop.f32.mrb[0].mxu0
    %v5501 = vpop.f32.mrb[0].mxu0
    %v5502 = vadd.f32 %v5142, %v5501
    %v5503 = vpop.f32.mrb[0].mxu0
    %5504 = vmatprep.mubr.bf16.mxu0 0
    %5505 = vmatmul.mubr.bf16.gmra.mrb[0].mxu0 %v5092
    %v5506 = vpop.f32.mrb[0].mxu0
    %v5507 = vadd.f32 %v5142, %v5506
    %v5508 = vpop.f32.mrb[0].mxu0
    %v5509 = vpop.f32.mrb[0].mxu0
    %v5510 = vadd.f32 %v5142, %v5509
    %v5511 = vpop.f32.mrb[0].mxu0
    %5512 = vmatprep.mubr.bf16.mxu0 0
    %5513 = vmatmul.mubr.bf16.gmra.mrb[0].mxu0 %v5093
    %v5514 = vpop.f32.mrb[0].mxu0
    %v5515 = vadd.f32 %v5142, %v5514
    %v5516 = vpop.f32.mrb[0].mxu0
    %v5517 = vpop.f32.mrb[0].mxu0
    %v5518 = vadd.f32 %v5142, %v5517
    %v5519 = vpop.f32.mrb[0].mxu0
    %5520 = vmatprep.mubr.bf16.mxu0 0
    %5521 = vmatmul.mubr.bf16.gmra.mrb[0].mxu0 %v5094
    %v5522 = vpop.f32.mrb[0].mxu0
    %v5523 = vadd.f32 %v5142, %v5522
    %v5524 = vpop.f32.mrb[0].mxu0
    %v5525 = vpop.f32.mrb[0].mxu0
    %v5526 = vadd.f32 %v5142, %v5525
    %v5527 = vpop.f32.mrb[0].mxu0
    %5528 = vmatprep.mubr.bf16.mxu0 0
    %5529 = vmatmul.mubr.bf16.gmra.mrb[0].mxu0 %v5095
    %v5530 = vpop.f32.mrb[0].mxu0
    %v5531 = vadd.f32 %v5142, %v5530
    %v5532 = vpop.f32.mrb[0].mxu0
    %v5533 = vpop.f32.mrb[0].mxu0
    %v5534 = vadd.f32 %v5142, %v5533
    %v5535 = vpop.f32.mrb[0].mxu0
    %5536 = vmatprep.mubr.bf16.mxu0 0
    %5537 = vmatmul.mubr.bf16.gmra.mrb[0].mxu0 %v5096
    %v5538 = vpop.f32.mrb[0].mxu0
    %v5539 = vadd.f32 %v5142, %v5538
    %v5540 = vpop.f32.mrb[0].mxu0
    %v5541 = vpop.f32.mrb[0].mxu0
    %v5542 = vadd.f32 %v5142, %v5541
    %v5543 = vpop.f32.mrb[0].mxu0
    %5544 = vmatprep.mubr.bf16.mxu0 0
    %5545 = vmatmul.mubr.bf16.gmra.mrb[0].mxu0 %v5097
    %v5546 = vpop.f32.mrb[0].mxu0
    %v5547 = vadd.f32 %v5142, %v5546
    %v5548 = vpop.f32.mrb[0].mxu0
    %v5549 = vpop.f32.mrb[0].mxu0
    %v5550 = vadd.f32 %v5142, %v5549
    %v5551 = vpop.f32.mrb[0].mxu0
    %5552 = vmatprep.mubr.bf16.mxu0 0
    %5553 = vmatmul.mubr.bf16.gmra.mrb[0].mxu0 %v5098
    %v5554 = vpop.f32.mrb[0].mxu0
    %v5555 = vadd.f32 %v5142, %v5554
    %v5556 = vpop.f32.mrb[0].mxu0
    %v5557 = vpop.f32.mrb[0].mxu0
    %v5558 = vadd.f32 %v5142, %v5557
    %v5559 = vpop.f32.mrb[0].mxu0
    %5560 = vmatprep.mubr.bf16.mxu0 0
    %5561 = vmatmul.mubr.bf16.gmra.mrb[0].mxu0 %v5099
    %v5562 = vpop.f32.mrb[0].mxu0
    %v5563 = vadd.f32 %v5142, %v5562
    %v5564 = vpop.f32.mrb[0].mxu0
    %v5565 = vpop.f32.mrb[0].mxu0
    %v5566 = vadd.f32 %v5142, %v5565
    %v5567 = vpop.f32.mrb[0].mxu0
    %5568 = vmatprep.mubr.bf16.mxu0 0
    %5569 = vmatmul.mubr.bf16.gmra.mrb[0].mxu0 %v5100
    %v5570 = vpop.f32.mrb[0].mxu0
    %v5571 = vadd.f32 %v5142, %v5570
    %v5572 = vpop.f32.mrb[0].mxu0
    %v5573 = vpop.f32.mrb[0].mxu0
    %v5574 = vadd.f32 %v5142, %v5573
    %v5575 = vpop.f32.mrb[0].mxu0
    %5576 = vmatprep.mubr.bf16.mxu0 0
    %5577 = vmatmul.mubr.bf16.gmra.mrb[0].mxu0 %v5101
    %v5578 = vpop.f32.mrb[0].mxu0
    %v5579 = vadd.f32 %v5142, %v5578
    %v5580 = vpop.f32.mrb[0].mxu0
    %v5581 = vpop.f32.mrb[0].mxu0
    %v5582 = vadd.f32 %v5142, %v5581
    %v5583 = vpop.f32.mrb[0].mxu0
    %5584 = vmatprep.mubr.bf16.mxu0 0
    %5585 = vmatmul.mubr.bf16.gmra.mrb[0].mxu0 %v5102
    %v5586 = vpop.f32.mrb[0].mxu0
    %v5587 = vadd.f32 %v5142, %v5586
    %v5588 = vpop.f32.mrb[0].mxu0
    %v5589 = vpop.f32.mrb[0].mxu0
    %v5590 = vadd.f32 %v5142, %v5589
    %v5591 = vpop.f32.mrb[0].mxu0
    %5592 = vmatprep.mubr.bf16.mxu0 0
    %5593 = vmatmul.mubr.bf16.gmra.mrb[0].mxu0 %v5103
    %v5594 = vpop.f32.mrb[0].mxu0
    %v5595 = vadd.f32 %v5142, %v5594
    %v5596 = vpop.f32.mrb[0].mxu0
    %v5597 = vpop.f32.mrb[0].mxu0
    %v5598 = vadd.f32 %v5142, %v5597
    %v5599 = vpop.f32.mrb[0].mxu0
    %5600 = vmatprep.mubr.bf16.mxu0 0
    %5601 = vmatmul.mubr.bf16.gmra.mrb[0].mxu0 %v5104
    %v5602 = vpop.f32.mrb[0].mxu0
    %v5603 = vadd.f32 %v5142, %v5602
    %v5604 = vpop.f32.mrb[0].mxu0
    %v5605 = vpop.f32.mrb[0].mxu0
    %v5606 = vadd.f32 %v5142, %v5605
    %v5607 = vpop.f32.mrb[0].mxu0
    %5608 = vmatprep.mubr.bf16.mxu0 0
    %5609 = vmatmul.mubr.bf16.gmra.mrb[0].mxu0 %v5105
    %v5610 = vpop.f32.mrb[0].mxu0
    %v5611 = vadd.f32 %v5142, %v5610
    %v5612 = vpop.f32.mrb[0].mxu0
    %v5613 = vpop.f32.mrb[0].mxu0
    %v5614 = vadd.f32 %v5142, %v5613
    %v5615 = vpop.f32.mrb[0].mxu0
    %5616 = vmatprep.mubr.bf16.mxu0 0
    %5617 = vmatmul.mubr.bf16.gmra.mrb[0].mxu0 %v5106
    %v5618 = vpop.f32.mrb[0].mxu0
    %v5619 = vadd.f32 %v5142, %v5618
    %v5620 = vpop.f32.mrb[0].mxu0
    %v5621 = vpop.f32.mrb[0].mxu0
    %v5622 = vadd.f32 %v5142, %v5621
    %v5623 = vpop.f32.mrb[0].mxu0
    %5624 = vmatprep.mubr.bf16.mxu0 0
    %5625 = vmatmul.mubr.bf16.gmra.mrb[0].mxu0 %v5107
    %v5626 = vpop.f32.mrb[0].mxu0
    %v5627 = vadd.f32 %v5142, %v5626
    %v5628 = vpop.f32.mrb[0].mxu0
    %v5629 = vpop.f32.mrb[0].mxu0
    %v5630 = vadd.f32 %v5142, %v5629
    %v5631 = vpop.f32.mrb[0].mxu0
    %5632 = vmatprep.mubr.bf16.mxu0 0
    %5633 = vmatmul.mubr.bf16.gmra.mrb[0].mxu0 %v5108
    %v5634 = vpop.f32.mrb[0].mxu0
    %v5635 = vadd.f32 %v5142, %v5634
    %v5636 = vpop.f32.mrb[0].mxu0
    %v5637 = vpop.f32.mrb[0].mxu0
    %v5638 = vadd.f32 %v5142, %v5637
    %v5639 = vpop.f32.mrb[0].mxu0
    %5640 = vmatprep.mubr.bf16.mxu0 0
    %5641 = vmatmul.mubr.bf16.gmra.mrb[0].mxu0 %v5109
    %v5642 = vpop.f32.mrb[0].mxu0
    %v5643 = vadd.f32 %v5142, %v5642
    %v5644 = vpop.f32.mrb[0].mxu0
    %v5645 = vpop.f32.mrb[0].mxu0
    %v5646 = vadd.f32 %v5142, %v5645
    %v5647 = vpop.f32.mrb[0].mxu0
    %5648 = vmatprep.mubr.bf16.mxu0 0
    %5649 = vmatmul.mubr.bf16.gmra.mrb[0].mxu0 %v5110
    %v5650 = vpop.f32.mrb[0].mxu0
    %v5651 = vadd.f32 %v5142, %v5650
    %v5652 = vpop.f32.mrb[0].mxu0
    %v5653 = vpop.f32.mrb[0].mxu0
    %v5654 = vadd.f32 %v5142, %v5653
    %v5655 = vpop.f32.mrb[0].mxu0
    %5656 = vmatprep.mubr.bf16.mxu0 0
    %5657 = vmatmul.mubr.bf16.gmra.mrb[0].mxu0 %v5111
    %v5658 = vpop.f32.mrb[0].mxu0
    %v5659 = vadd.f32 %v5142, %v5658
    %v5660 = vpop.f32.mrb[0].mxu0
    %v5661 = vpop.f32.mrb[0].mxu0
    %v5662 = vadd.f32 %v5142, %v5661
    %v5663 = vpop.f32.mrb[0].mxu0
    %5664 = vmatprep.mubr.bf16.mxu0 0
    %5665 = vmatmul.mubr.bf16.gmra.mrb[0].mxu0 %v5112
    %v5666 = vpop.f32.mrb[0].mxu0
    %v5667 = vadd.f32 %v5142, %v5666
    %v5668 = vpop.f32.mrb[0].mxu0
    %v5669 = vpop.f32.mrb[0].mxu0
    %v5670 = vadd.f32 %v5142, %v5669
    %v5671 = vpop.f32.mrb[0].mxu0
    %5672 = vmatprep.mubr.bf16.mxu0 0
    %5673 = vmatmul.mubr.bf16.gmra.mrb[0].mxu0 %v5113
    %v5674 = vpop.f32.mrb[0].mxu0
    %v5675 = vadd.f32 %v5142, %v5674
    %v5676 = vpop.f32.mrb[0].mxu0
    %v5677 = vpop.f32.mrb[0].mxu0
    %v5678 = vadd.f32 %v5142, %v5677
    %v5679 = vpop.f32.mrb[0].mxu0
    %5680 = vmatprep.mubr.bf16.mxu0 0
    %5681 = vmatmul.mubr.bf16.gmra.mrb[0].mxu0 %v5114
    %v5682 = vpop.f32.mrb[0].mxu0
    %v5683 = vadd.f32 %v5142, %v5682
    %v5684 = vpop.f32.mrb[0].mxu0
    %v5685 = vpop.f32.mrb[0].mxu0
    %v5686 = vadd.f32 %v5142, %v5685
    %v5687 = vpop.f32.mrb[0].mxu0
    %5688 = vmatprep.mubr.bf16.mxu0 0
    %5689 = vmatmul.mubr.bf16.gmra.mrb[0].mxu0 %v5115
    %v5690 = vpop.f32.mrb[0].mxu0
    %v5691 = vadd.f32 %v5142, %v5690
    %v5692 = vpop.f32.mrb[0].mxu0
    %v5693 = vpop.f32.mrb[0].mxu0
    %v5694 = vadd.f32 %v5142, %v5693
    %v5695 = vpop.f32.mrb[0].mxu0
    %5696 = vmatprep.mubr.bf16.mxu0 0
    %5697 = vmatmul.mubr.bf16.gmra.mrb[0].mxu0 %v5116
    %v5698 = vpop.f32.mrb[0].mxu0
    %v5699 = vadd.f32 %v5142, %v5698
    %v5700 = vpop.f32.mrb[0].mxu0
    %v5701 = vpop.f32.mrb[0].mxu0
    %v5702 = vadd.f32 %v5142, %v5701
    %v5703 = vpop.f32.mrb[0].mxu0
    %5704 = vmatprep.mubr.bf16.mxu0 0
    %5705 = vmatmul.mubr.bf16.gmra.mrb[0].mxu0 %v5117
    %v5706 = vpop.f32.mrb[0].mxu0
    %v5707 = vadd.f32 %v5142, %v5706
    %v5708 = vpop.f32.mrb[0].mxu0
    %v5709 = vpop.f32.mrb[0].mxu0
    %v5710 = vadd.f32 %v5142, %v5709
    %v5711 = vpop.f32.mrb[0].mxu0
    %5712 = vmatprep.mubr.bf16.mxu0 0
    %5713 = vmatmul.mubr.bf16.gmra.mrb[0].mxu0 %v5118
    %v5714 = vpop.f32.mrb[0].mxu0
    %v5715 = vadd.f32 %v5142, %v5714
    %v5716 = vpop.f32.mrb[0].mxu0
    %v5717 = vpop.f32.mrb[0].mxu0
    %v5718 = vadd.f32 %v5142, %v5717
    %v5719 = vpop.f32.mrb[0].mxu0
    %5720 = vmatprep.mubr.bf16.mxu0 0
    %5721 = vmatmul.mubr.bf16.gmra.mrb[0].mxu0 %v5119
    %v5722 = vpop.f32.mrb[0].mxu0
    %v5723 = vadd.f32 %v5142, %v5722
    %v5724 = vpop.f32.mrb[0].mxu0
    %v5725 = vpop.f32.mrb[0].mxu0
    %v5726 = vadd.f32 %v5142, %v5725
    %v5727 = vpop.f32.mrb[0].mxu0
    %5728 = vmatprep.mubr.bf16.mxu0 0
    %5729 = vmatmul.mubr.bf16.gmra.mrb[0].mxu0 %v5120
    %v5730 = vpop.f32.mrb[0].mxu0
    %v5731 = vadd.f32 %v5142, %v5730
    %v5732 = vpop.f32.mrb[0].mxu0
    %v5733 = vpop.f32.mrb[0].mxu0
    %v5734 = vadd.f32 %v5142, %v5733
    %v5735 = vpop.f32.mrb[0].mxu0
    %5736 = vdwg.mxu0
    %v5737 = vxor.u32 %v5227, 2147483648
    %v5738 = vxor.u32 %v5230, 2147483648
    %v5739 = vxor.u32 %v5235, 2147483648
    %v5740 = vxor.u32 %v5238, 2147483648
    %v5741 = vxor.u32 %v5243, 2147483648
    %v5742 = vxor.u32 %v5246, 2147483648
    %v5743 = vxor.u32 %v5251, 2147483648
    %v5744 = vxor.u32 %v5254, 2147483648
    %v5745 = vxor.u32 %v5259, 2147483648
    %v5746 = vxor.u32 %v5262, 2147483648
    %v5747 = vxor.u32 %v5267, 2147483648
    %v5748 = vxor.u32 %v5270, 2147483648
    %v5749 = vxor.u32 %v5275, 2147483648
    %v5750 = vxor.u32 %v5278, 2147483648
    %v5751 = vxor.u32 %v5283, 2147483648
    %v5752 = vxor.u32 %v5286, 2147483648
    %v5753 = vxor.u32 %v5291, 2147483648
    %v5754 = vxor.u32 %v5294, 2147483648
    %v5755 = vxor.u32 %v5299, 2147483648
    %v5756 = vxor.u32 %v5302, 2147483648
    %v5757 = vxor.u32 %v5307, 2147483648
    %v5758 = vxor.u32 %v5310, 2147483648
    %v5759 = vxor.u32 %v5315, 2147483648
    %v5760 = vxor.u32 %v5318, 2147483648
    %v5761 = vxor.u32 %v5323, 2147483648
    %v5762 = vxor.u32 %v5326, 2147483648
    %v5763 = vxor.u32 %v5331, 2147483648
    %v5764 = vxor.u32 %v5334, 2147483648
    %v5765 = vxor.u32 %v5339, 2147483648
    %v5766 = vxor.u32 %v5342, 2147483648
    %v5767 = vxor.u32 %v5347, 2147483648
    %v5768 = vxor.u32 %v5350, 2147483648
    %v5769 = vxor.u32 %v5355, 2147483648
    %v5770 = vxor.u32 %v5358, 2147483648
    %v5771 = vxor.u32 %v5363, 2147483648
    %v5772 = vxor.u32 %v5366, 2147483648
    %v5773 = vxor.u32 %v5371, 2147483648
    %v5774 = vxor.u32 %v5374, 2147483648
    %v5775 = vxor.u32 %v5379, 2147483648
    %v5776 = vxor.u32 %v5382, 2147483648
    %v5777 = vxor.u32 %v5387, 2147483648
    %v5778 = vxor.u32 %v5390, 2147483648
    %v5779 = vxor.u32 %v5395, 2147483648
    %v5780 = vxor.u32 %v5398, 2147483648
    %v5781 = vxor.u32 %v5403, 2147483648
    %v5782 = vxor.u32 %v5406, 2147483648
    %v5783 = vxor.u32 %v5411, 2147483648
    %v5784 = vxor.u32 %v5414, 2147483648
    %v5785 = vxor.u32 %v5419, 2147483648
    %v5786 = vxor.u32 %v5422, 2147483648
    %v5787 = vxor.u32 %v5427, 2147483648
    %v5788 = vxor.u32 %v5430, 2147483648
    %v5789 = vxor.u32 %v5435, 2147483648
    %v5790 = vxor.u32 %v5438, 2147483648
    %v5791 = vxor.u32 %v5443, 2147483648
    %v5792 = vxor.u32 %v5446, 2147483648
    %v5793 = vxor.u32 %v5451, 2147483648
    %v5794 = vxor.u32 %v5454, 2147483648
    %v5795 = vxor.u32 %v5459, 2147483648
    %v5796 = vxor.u32 %v5462, 2147483648
    %v5797 = vxor.u32 %v5467, 2147483648
    %v5798 = vxor.u32 %v5470, 2147483648
    %v5799 = vxor.u32 %v5475, 2147483648
    %v5800 = vxor.u32 %v5478, 2147483648
    %v5801 = vxor.u32 %v5483, 2147483648
    %v5802 = vxor.u32 %v5486, 2147483648
    %v5803 = vxor.u32 %v5491, 2147483648
    %v5804 = vxor.u32 %v5494, 2147483648
    %v5805 = vxor.u32 %v5499, 2147483648
    %v5806 = vxor.u32 %v5502, 2147483648
    %v5807 = vxor.u32 %v5507, 2147483648
    %v5808 = vxor.u32 %v5510, 2147483648
    %v5809 = vxor.u32 %v5515, 2147483648
    %v5810 = vxor.u32 %v5518, 2147483648
    %v5811 = vxor.u32 %v5523, 2147483648
    %v5812 = vxor.u32 %v5526, 2147483648
    %v5813 = vxor.u32 %v5531, 2147483648
    %v5814 = vxor.u32 %v5534, 2147483648
    %v5815 = vxor.u32 %v5539, 2147483648
    %v5816 = vxor.u32 %v5542, 2147483648
    %v5817 = vxor.u32 %v5547, 2147483648
    %v5818 = vxor.u32 %v5550, 2147483648
    %v5819 = vxor.u32 %v5555, 2147483648
    %v5820 = vxor.u32 %v5558, 2147483648
    %v5821 = vxor.u32 %v5563, 2147483648
    %v5822 = vxor.u32 %v5566, 2147483648
    %v5823 = vxor.u32 %v5571, 2147483648
    %v5824 = vxor.u32 %v5574, 2147483648
    %v5825 = vxor.u32 %v5579, 2147483648
    %v5826 = vxor.u32 %v5582, 2147483648
    %v5827 = vxor.u32 %v5587, 2147483648
    %v5828 = vxor.u32 %v5590, 2147483648
    %v5829 = vxor.u32 %v5595, 2147483648
    %v5830 = vxor.u32 %v5598, 2147483648
    %v5831 = vxor.u32 %v5603, 2147483648
    %v5832 = vxor.u32 %v5606, 2147483648
    %v5833 = vxor.u32 %v5611, 2147483648
    %v5834 = vxor.u32 %v5614, 2147483648
    %v5835 = vxor.u32 %v5619, 2147483648
    %v5836 = vxor.u32 %v5622, 2147483648
    %v5837 = vxor.u32 %v5627, 2147483648
    %v5838 = vxor.u32 %v5630, 2147483648
    %v5839 = vxor.u32 %v5635, 2147483648
    %v5840 = vxor.u32 %v5638, 2147483648
    %v5841 = vxor.u32 %v5643, 2147483648
    %v5842 = vxor.u32 %v5646, 2147483648
    %v5843 = vxor.u32 %v5651, 2147483648
    %v5844 = vxor.u32 %v5654, 2147483648
    %v5845 = vxor.u32 %v5659, 2147483648
    %v5846 = vxor.u32 %v5662, 2147483648
    %v5847 = vxor.u32 %v5667, 2147483648
    %v5848 = vxor.u32 %v5670, 2147483648
    %v5849 = vxor.u32 %v5675, 2147483648
    %v5850 = vxor.u32 %v5678, 2147483648
    %v5851 = vxor.u32 %v5683, 2147483648
    %v5852 = vxor.u32 %v5686, 2147483648
    %v5853 = vxor.u32 %v5691, 2147483648
    %v5854 = vxor.u32 %v5694, 2147483648
    %v5855 = vxor.u32 %v5699, 2147483648
    %v5856 = vxor.u32 %v5702, 2147483648
    %v5857 = vxor.u32 %v5707, 2147483648
    %v5858 = vxor.u32 %v5710, 2147483648
    %v5859 = vxor.u32 %v5715, 2147483648
    %v5860 = vxor.u32 %v5718, 2147483648
    %v5861 = vxor.u32 %v5723, 2147483648
    %v5862 = vxor.u32 %v5726, 2147483648
    %v5863 = vxor.u32 %v5731, 2147483648
    %v5864 = vxor.u32 %v5734, 2147483648
    %v5865 = vmul.f32 %v5737, 1.442695
    %v5866 = vpow.pop %v5865
    %v5867 = vmul.f32 %v5738, 1.442695
    %v5868 = vpow.pop %v5867
    %v5869 = vmul.f32 %v5739, 1.442695
    %v5870 = vpow.pop %v5869
    %v5871 = vmul.f32 %v5740, 1.442695
    %v5872 = vpow.pop %v5871
    %v5873 = vmul.f32 %v5741, 1.442695
    %v5874 = vpow.pop %v5873
    %v5875 = vmul.f32 %v5742, 1.442695
    %v5876 = vpow.pop %v5875
    %v5877 = vmul.f32 %v5743, 1.442695
    %v5878 = vpow.pop %v5877
    %v5879 = vmul.f32 %v5744, 1.442695
    %v5880 = vpow.pop %v5879
    %v5881 = vmul.f32 %v5745, 1.442695
    %v5882 = vpow.pop %v5881
    %v5883 = vmul.f32 %v5746, 1.442695
    %v5884 = vpow.pop %v5883
    %v5885 = vmul.f32 %v5747, 1.442695
    %v5886 = vpow.pop %v5885
    %v5887 = vmul.f32 %v5748, 1.442695
    %v5888 = vpow.pop %v5887
    %v5889 = vmul.f32 %v5749, 1.442695
    %v5890 = vpow.pop %v5889
    %v5891 = vmul.f32 %v5750, 1.442695
    %v5892 = vpow.pop %v5891
    %v5893 = vmul.f32 %v5751, 1.442695
    %v5894 = vpow.pop %v5893
    %v5895 = vmul.f32 %v5752, 1.442695
    %v5896 = vpow.pop %v5895
    %v5897 = vmul.f32 %v5753, 1.442695
    %v5898 = vpow.pop %v5897
    %v5899 = vmul.f32 %v5754, 1.442695
    %v5900 = vpow.pop %v5899
    %v5901 = vmul.f32 %v5755, 1.442695
    %v5902 = vpow.pop %v5901
    %v5903 = vmul.f32 %v5756, 1.442695
    %v5904 = vpow.pop %v5903
    %v5905 = vmul.f32 %v5757, 1.442695
    %v5906 = vpow.pop %v5905
    %v5907 = vmul.f32 %v5758, 1.442695
    %v5908 = vpow.pop %v5907
    %v5909 = vmul.f32 %v5759, 1.442695
    %v5910 = vpow.pop %v5909
    %v5911 = vmul.f32 %v5760, 1.442695
    %v5912 = vpow.pop %v5911
    %v5913 = vmul.f32 %v5761, 1.442695
    %v5914 = vpow.pop %v5913
    %v5915 = vmul.f32 %v5762, 1.442695
    %v5916 = vpow.pop %v5915
    %v5917 = vmul.f32 %v5763, 1.442695
    %v5918 = vpow.pop %v5917
    %v5919 = vmul.f32 %v5764, 1.442695
    %v5920 = vpow.pop %v5919
    %v5921 = vmul.f32 %v5765, 1.442695
    %v5922 = vpow.pop %v5921
    %v5923 = vmul.f32 %v5766, 1.442695
    %v5924 = vpow.pop %v5923
    %v5925 = vmul.f32 %v5767, 1.442695
    %v5926 = vpow.pop %v5925
    %v5927 = vmul.f32 %v5768, 1.442695
    %v5928 = vpow.pop %v5927
    %v5929 = vmul.f32 %v5769, 1.442695
    %v5930 = vpow.pop %v5929
    %v5931 = vmul.f32 %v5770, 1.442695
    %v5932 = vpow.pop %v5931
    %v5933 = vmul.f32 %v5771, 1.442695
    %v5934 = vpow.pop %v5933
    %v5935 = vmul.f32 %v5772, 1.442695
    %v5936 = vpow.pop %v5935
    %v5937 = vmul.f32 %v5773, 1.442695
    %v5938 = vpow.pop %v5937
    %v5939 = vmul.f32 %v5774, 1.442695
    %v5940 = vpow.pop %v5939
    %v5941 = vmul.f32 %v5775, 1.442695
    %v5942 = vpow.pop %v5941
    %v5943 = vmul.f32 %v5776, 1.442695
    %v5944 = vpow.pop %v5943
    %v5945 = vmul.f32 %v5777, 1.442695
    %v5946 = vpow.pop %v5945
    %v5947 = vmul.f32 %v5778, 1.442695
    %v5948 = vpow.pop %v5947
    %v5949 = vmul.f32 %v5779, 1.442695
    %v5950 = vpow.pop %v5949
    %v5951 = vmul.f32 %v5780, 1.442695
    %v5952 = vpow.pop %v5951
    %v5953 = vmul.f32 %v5781, 1.442695
    %v5954 = vpow.pop %v5953
    %v5955 = vmul.f32 %v5782, 1.442695
    %v5956 = vpow.pop %v5955
    %v5957 = vmul.f32 %v5783, 1.442695
    %v5958 = vpow.pop %v5957
    %v5959 = vmul.f32 %v5784, 1.442695
    %v5960 = vpow.pop %v5959
    %v5961 = vmul.f32 %v5785, 1.442695
    %v5962 = vpow.pop %v5961
    %v5963 = vmul.f32 %v5786, 1.442695
    %v5964 = vpow.pop %v5963
    %v5965 = vmul.f32 %v5787, 1.442695
    %v5966 = vpow.pop %v5965
    %v5967 = vmul.f32 %v5788, 1.442695
    %v5968 = vpow.pop %v5967
    %v5969 = vmul.f32 %v5789, 1.442695
    %v5970 = vpow.pop %v5969
    %v5971 = vmul.f32 %v5790, 1.442695
    %v5972 = vpow.pop %v5971
    %v5973 = vmul.f32 %v5791, 1.442695
    %v5974 = vpow.pop %v5973
    %v5975 = vmul.f32 %v5792, 1.442695
    %v5976 = vpow.pop %v5975
    %v5977 = vmul.f32 %v5793, 1.442695
    %v5978 = vpow.pop %v5977
    %v5979 = vmul.f32 %v5794, 1.442695
    %v5980 = vpow.pop %v5979
    %v5981 = vmul.f32 %v5795, 1.442695
    %v5982 = vpow.pop %v5981
    %v5983 = vmul.f32 %v5796, 1.442695
    %v5984 = vpow.pop %v5983
    %v5985 = vmul.f32 %v5797, 1.442695
    %v5986 = vpow.pop %v5985
    %v5987 = vmul.f32 %v5798, 1.442695
    %v5988 = vpow.pop %v5987
    %v5989 = vmul.f32 %v5799, 1.442695
    %v5990 = vpow.pop %v5989
    %v5991 = vmul.f32 %v5800, 1.442695
    %v5992 = vpow.pop %v5991
    %v5993 = vmul.f32 %v5801, 1.442695
    %v5994 = vpow.pop %v5993
    %v5995 = vmul.f32 %v5802, 1.442695
    %v5996 = vpow.pop %v5995
    %v5997 = vmul.f32 %v5803, 1.442695
    %v5998 = vpow.pop %v5997
    %v5999 = vmul.f32 %v5804, 1.442695
    %v6000 = vpow.pop %v5999
    %v6001 = vmul.f32 %v5805, 1.442695
    %v6002 = vpow.pop %v6001
    %v6003 = vmul.f32 %v5806, 1.442695
    %v6004 = vpow.pop %v6003
    %v6005 = vmul.f32 %v5807, 1.442695
    %v6006 = vpow.pop %v6005
    %v6007 = vmul.f32 %v5808, 1.442695
    %v6008 = vpow.pop %v6007
    %v6009 = vmul.f32 %v5809, 1.442695
    %v6010 = vpow.pop %v6009
    %v6011 = vmul.f32 %v5810, 1.442695
    %v6012 = vpow.pop %v6011
    %v6013 = vmul.f32 %v5811, 1.442695
    %v6014 = vpow.pop %v6013
    %v6015 = vmul.f32 %v5812, 1.442695
    %v6016 = vpow.pop %v6015
    %v6017 = vmul.f32 %v5813, 1.442695
    %v6018 = vpow.pop %v6017
    %v6019 = vmul.f32 %v5814, 1.442695
    %v6020 = vpow.pop %v6019
    %v6021 = vmul.f32 %v5815, 1.442695
    %v6022 = vpow.pop %v6021
    %v6023 = vmul.f32 %v5816, 1.442695
    %v6024 = vpow.pop %v6023
    %v6025 = vmul.f32 %v5817, 1.442695
    %v6026 = vpow.pop %v6025
    %v6027 = vmul.f32 %v5818, 1.442695
    %v6028 = vpow.pop %v6027
    %v6029 = vmul.f32 %v5819, 1.442695
    %v6030 = vpow.pop %v6029
    %v6031 = vmul.f32 %v5820, 1.442695
    %v6032 = vpow.pop %v6031
    %v6033 = vmul.f32 %v5821, 1.442695
    %v6034 = vpow.pop %v6033
    %v6035 = vmul.f32 %v5822, 1.442695
    %v6036 = vpow.pop %v6035
    %v6037 = vmul.f32 %v5823, 1.442695
    %v6038 = vpow.pop %v6037
    %v6039 = vmul.f32 %v5824, 1.442695
    %v6040 = vpow.pop %v6039
    %v6041 = vmul.f32 %v5825, 1.442695
    %v6042 = vpow.pop %v6041
    %v6043 = vmul.f32 %v5826, 1.442695
    %v6044 = vpow.pop %v6043
    %v6045 = vmul.f32 %v5827, 1.442695
    %v6046 = vpow.pop %v6045
    %v6047 = vmul.f32 %v5828, 1.442695
    %v6048 = vpow.pop %v6047
    %v6049 = vmul.f32 %v5829, 1.442695
    %v6050 = vpow.pop %v6049
    %v6051 = vmul.f32 %v5830, 1.442695
    %v6052 = vpow.pop %v6051
    %v6053 = vmul.f32 %v5831, 1.442695
    %v6054 = vpow.pop %v6053
    %v6055 = vmul.f32 %v5832, 1.442695
    %v6056 = vpow.pop %v6055
    %v6057 = vmul.f32 %v5833, 1.442695
    %v6058 = vpow.pop %v6057
    %v6059 = vmul.f32 %v5834, 1.442695
    %v6060 = vpow.pop %v6059
    %v6061 = vmul.f32 %v5835, 1.442695
    %v6062 = vpow.pop %v6061
    %v6063 = vmul.f32 %v5836, 1.442695
    %v6064 = vpow.pop %v6063
    %v6065 = vmul.f32 %v5837, 1.442695
    %v6066 = vpow.pop %v6065
    %v6067 = vmul.f32 %v5838, 1.442695
    %v6068 = vpow.pop %v6067
    %v6069 = vmul.f32 %v5839, 1.442695
    %v6070 = vpow.pop %v6069
    %v6071 = vmul.f32 %v5840, 1.442695
    %v6072 = vpow.pop %v6071
    %v6073 = vmul.f32 %v5841, 1.442695
    %v6074 = vpow.pop %v6073
    %v6075 = vmul.f32 %v5842, 1.442695
    %v6076 = vpow.pop %v6075
    %v6077 = vmul.f32 %v5843, 1.442695
    %v6078 = vpow.pop %v6077
    %v6079 = vmul.f32 %v5844, 1.442695
    %v6080 = vpow.pop %v6079
    %v6081 = vmul.f32 %v5845, 1.442695
    %v6082 = vpow.pop %v6081
    %v6083 = vmul.f32 %v5846, 1.442695
    %v6084 = vpow.pop %v6083
    %v6085 = vmul.f32 %v5847, 1.442695
    %v6086 = vpow.pop %v6085
    %v6087 = vmul.f32 %v5848, 1.442695
    %v6088 = vpow.pop %v6087
    %v6089 = vmul.f32 %v5849, 1.442695
    %v6090 = vpow.pop %v6089
    %v6091 = vmul.f32 %v5850, 1.442695
    %v6092 = vpow.pop %v6091
    %v6093 = vmul.f32 %v5851, 1.442695
    %v6094 = vpow.pop %v6093
    %v6095 = vmul.f32 %v5852, 1.442695
    %v6096 = vpow.pop %v6095
    %v6097 = vmul.f32 %v5853, 1.442695
    %v6098 = vpow.pop %v6097
    %v6099 = vmul.f32 %v5854, 1.442695
    %v6100 = vpow.pop %v6099
    %v6101 = vmul.f32 %v5855, 1.442695
    %v6102 = vpow.pop %v6101
    %v6103 = vmul.f32 %v5856, 1.442695
    %v6104 = vpow.pop %v6103
    %v6105 = vmul.f32 %v5857, 1.442695
    %v6106 = vpow.pop %v6105
    %v6107 = vmul.f32 %v5858, 1.442695
    %v6108 = vpow.pop %v6107
    %v6109 = vmul.f32 %v5859, 1.442695
    %v6110 = vpow.pop %v6109
    %v6111 = vmul.f32 %v5860, 1.442695
    %v6112 = vpow.pop %v6111
    %v6113 = vmul.f32 %v5861, 1.442695
    %v6114 = vpow.pop %v6113
    %v6115 = vmul.f32 %v5862, 1.442695
    %v6116 = vpow.pop %v6115
    %v6117 = vmul.f32 %v5863, 1.442695
    %v6118 = vpow.pop %v6117
    %v6119 = vmul.f32 %v5864, 1.442695
    %v6120 = vpow.pop %v6119
    %v6121 = vadd.f32 %v5866, 1.0
    %v6122 = vadd.f32 %v5868, 1.0
    %v6123 = vadd.f32 %v5870, 1.0
    %v6124 = vadd.f32 %v5872, 1.0
    %v6125 = vadd.f32 %v5874, 1.0
    %v6126 = vadd.f32 %v5876, 1.0
    %v6127 = vadd.f32 %v5878, 1.0
    %v6128 = vadd.f32 %v5880, 1.0
    %v6129 = vadd.f32 %v5882, 1.0
    %v6130 = vadd.f32 %v5884, 1.0
    %v6131 = vadd.f32 %v5886, 1.0
    %v6132 = vadd.f32 %v5888, 1.0
    %v6133 = vadd.f32 %v5890, 1.0
    %v6134 = vadd.f32 %v5892, 1.0
    %v6135 = vadd.f32 %v5894, 1.0
    %v6136 = vadd.f32 %v5896, 1.0
    %v6137 = vadd.f32 %v5898, 1.0
    %v6138 = vadd.f32 %v5900, 1.0
    %v6139 = vadd.f32 %v5902, 1.0
    %v6140 = vadd.f32 %v5904, 1.0
    %v6141 = vadd.f32 %v5906, 1.0
    %v6142 = vadd.f32 %v5908, 1.0
    %v6143 = vadd.f32 %v5910, 1.0
    %v6144 = vadd.f32 %v5912, 1.0
    %v6145 = vadd.f32 %v5914, 1.0
    %v6146 = vadd.f32 %v5916, 1.0
    %v6147 = vadd.f32 %v5918, 1.0
    %v6148 = vadd.f32 %v5920, 1.0
    %v6149 = vadd.f32 %v5922, 1.0
    %v6150 = vadd.f32 %v5924, 1.0
    %v6151 = vadd.f32 %v5926, 1.0
    %v6152 = vadd.f32 %v5928, 1.0
    %v6153 = vadd.f32 %v5930, 1.0
    %v6154 = vadd.f32 %v5932, 1.0
    %v6155 = vadd.f32 %v5934, 1.0
    %v6156 = vadd.f32 %v5936, 1.0
    %v6157 = vadd.f32 %v5938, 1.0
    %v6158 = vadd.f32 %v5940, 1.0
    %v6159 = vadd.f32 %v5942, 1.0
    %v6160 = vadd.f32 %v5944, 1.0
    %v6161 = vadd.f32 %v5946, 1.0
    %v6162 = vadd.f32 %v5948, 1.0
    %v6163 = vadd.f32 %v5950, 1.0
    %v6164 = vadd.f32 %v5952, 1.0
    %v6165 = vadd.f32 %v5954, 1.0
    %v6166 = vadd.f32 %v5956, 1.0
    %v6167 = vadd.f32 %v5958, 1.0
    %v6168 = vadd.f32 %v5960, 1.0
    %v6169 = vadd.f32 %v5962, 1.0
    %v6170 = vadd.f32 %v5964, 1.0
    %v6171 = vadd.f32 %v5966, 1.0
    %v6172 = vadd.f32 %v5968, 1.0
    %v6173 = vadd.f32 %v5970, 1.0
    %v6174 = vadd.f32 %v5972, 1.0
    %v6175 = vadd.f32 %v5974, 1.0
    %v6176 = vadd.f32 %v5976, 1.0
    %v6177 = vadd.f32 %v5978, 1.0
    %v6178 = vadd.f32 %v5980, 1.0
    %v6179 = vadd.f32 %v5982, 1.0
    %v6180 = vadd.f32 %v5984, 1.0
    %v6181 = vadd.f32 %v5986, 1.0
    %v6182 = vadd.f32 %v5988, 1.0
    %v6183 = vadd.f32 %v5990, 1.0
    %v6184 = vadd.f32 %v5992, 1.0
    %v6185 = vadd.f32 %v5994, 1.0
    %v6186 = vadd.f32 %v5996, 1.0
    %v6187 = vadd.f32 %v5998, 1.0
    %v6188 = vadd.f32 %v6000, 1.0
    %v6189 = vadd.f32 %v6002, 1.0
    %v6190 = vadd.f32 %v6004, 1.0
    %v6191 = vadd.f32 %v6006, 1.0
    %v6192 = vadd.f32 %v6008, 1.0
    %v6193 = vadd.f32 %v6010, 1.0
    %v6194 = vadd.f32 %v6012, 1.0
    %v6195 = vadd.f32 %v6014, 1.0
    %v6196 = vadd.f32 %v6016, 1.0
    %v6197 = vadd.f32 %v6018, 1.0
    %v6198 = vadd.f32 %v6020, 1.0
    %v6199 = vadd.f32 %v6022, 1.0
    %v6200 = vadd.f32 %v6024, 1.0
    %v6201 = vadd.f32 %v6026, 1.0
    %v6202 = vadd.f32 %v6028, 1.0
    %v6203 = vadd.f32 %v6030, 1.0
    %v6204 = vadd.f32 %v6032, 1.0
    %v6205 = vadd.f32 %v6034, 1.0
    %v6206 = vadd.f32 %v6036, 1.0
    %v6207 = vadd.f32 %v6038, 1.0
    %v6208 = vadd.f32 %v6040, 1.0
    %v6209 = vadd.f32 %v6042, 1.0
    %v6210 = vadd.f32 %v6044, 1.0
    %v6211 = vadd.f32 %v6046, 1.0
    %v6212 = vadd.f32 %v6048, 1.0
    %v6213 = vadd.f32 %v6050, 1.0
    %v6214 = vadd.f32 %v6052, 1.0
    %v6215 = vadd.f32 %v6054, 1.0
    %v6216 = vadd.f32 %v6056, 1.0
    %v6217 = vadd.f32 %v6058, 1.0
    %v6218 = vadd.f32 %v6060, 1.0
    %v6219 = vadd.f32 %v6062, 1.0
    %v6220 = vadd.f32 %v6064, 1.0
    %v6221 = vadd.f32 %v6066, 1.0
    %v6222 = vadd.f32 %v6068, 1.0
    %v6223 = vadd.f32 %v6070, 1.0
    %v6224 = vadd.f32 %v6072, 1.0
    %v6225 = vadd.f32 %v6074, 1.0
    %v6226 = vadd.f32 %v6076, 1.0
    %v6227 = vadd.f32 %v6078, 1.0
    %v6228 = vadd.f32 %v6080, 1.0
    %v6229 = vadd.f32 %v6082, 1.0
    %v6230 = vadd.f32 %v6084, 1.0
    %v6231 = vadd.f32 %v6086, 1.0
    %v6232 = vadd.f32 %v6088, 1.0
    %v6233 = vadd.f32 %v6090, 1.0
    %v6234 = vadd.f32 %v6092, 1.0
    %v6235 = vadd.f32 %v6094, 1.0
    %v6236 = vadd.f32 %v6096, 1.0
    %v6237 = vadd.f32 %v6098, 1.0
    %v6238 = vadd.f32 %v6100, 1.0
    %v6239 = vadd.f32 %v6102, 1.0
    %v6240 = vadd.f32 %v6104, 1.0
    %v6241 = vadd.f32 %v6106, 1.0
    %v6242 = vadd.f32 %v6108, 1.0
    %v6243 = vadd.f32 %v6110, 1.0
    %v6244 = vadd.f32 %v6112, 1.0
    %v6245 = vadd.f32 %v6114, 1.0
    %v6246 = vadd.f32 %v6116, 1.0
    %v6247 = vadd.f32 %v6118, 1.0
    %v6248 = vadd.f32 %v6120, 1.0
    %v6249 = vrcp.pop %v6121
    %v6250 = vmul.f32 1.0, %v6249
    %v6251 = vrcp.pop %v6122
    %v6252 = vmul.f32 1.0, %v6251
    %v6253 = vrcp.pop %v6123
    %v6254 = vmul.f32 1.0, %v6253
    %v6255 = vrcp.pop %v6124
    %v6256 = vmul.f32 1.0, %v6255
    %v6257 = vrcp.pop %v6125
    %v6258 = vmul.f32 1.0, %v6257
    %v6259 = vrcp.pop %v6126
    %v6260 = vmul.f32 1.0, %v6259
    %v6261 = vrcp.pop %v6127
    %v6262 = vmul.f32 1.0, %v6261
    %v6263 = vrcp.pop %v6128
    %v6264 = vmul.f32 1.0, %v6263
    %v6265 = vrcp.pop %v6129
    %v6266 = vmul.f32 1.0, %v6265
    %v6267 = vrcp.pop %v6130
    %v6268 = vmul.f32 1.0, %v6267
    %v6269 = vrcp.pop %v6131
    %v6270 = vmul.f32 1.0, %v6269
    %v6271 = vrcp.pop %v6132
    %v6272 = vmul.f32 1.0, %v6271
    %v6273 = vrcp.pop %v6133
    %v6274 = vmul.f32 1.0, %v6273
    %v6275 = vrcp.pop %v6134
    %v6276 = vmul.f32 1.0, %v6275
    %v6277 = vrcp.pop %v6135
    %v6278 = vmul.f32 1.0, %v6277
    %v6279 = vrcp.pop %v6136
    %v6280 = vmul.f32 1.0, %v6279
    %v6281 = vrcp.pop %v6137
    %v6282 = vmul.f32 1.0, %v6281
    %v6283 = vrcp.pop %v6138
    %v6284 = vmul.f32 1.0, %v6283
    %v6285 = vrcp.pop %v6139
    %v6286 = vmul.f32 1.0, %v6285
    %v6287 = vrcp.pop %v6140
    %v6288 = vmul.f32 1.0, %v6287
    %v6289 = vrcp.pop %v6141
    %v6290 = vmul.f32 1.0, %v6289
    %v6291 = vrcp.pop %v6142
    %v6292 = vmul.f32 1.0, %v6291
    %v6293 = vrcp.pop %v6143
    %v6294 = vmul.f32 1.0, %v6293
    %v6295 = vrcp.pop %v6144
    %v6296 = vmul.f32 1.0, %v6295
    %v6297 = vrcp.pop %v6145
    %v6298 = vmul.f32 1.0, %v6297
    %v6299 = vrcp.pop %v6146
    %v6300 = vmul.f32 1.0, %v6299
    %v6301 = vrcp.pop %v6147
    %v6302 = vmul.f32 1.0, %v6301
    %v6303 = vrcp.pop %v6148
    %v6304 = vmul.f32 1.0, %v6303
    %v6305 = vrcp.pop %v6149
    %v6306 = vmul.f32 1.0, %v6305
    %v6307 = vrcp.pop %v6150
    %v6308 = vmul.f32 1.0, %v6307
    %v6309 = vrcp.pop %v6151
    %v6310 = vmul.f32 1.0, %v6309
    %v6311 = vrcp.pop %v6152
    %v6312 = vmul.f32 1.0, %v6311
    %v6313 = vrcp.pop %v6153
    %v6314 = vmul.f32 1.0, %v6313
    %v6315 = vrcp.pop %v6154
    %v6316 = vmul.f32 1.0, %v6315
    %v6317 = vrcp.pop %v6155
    %v6318 = vmul.f32 1.0, %v6317
    %v6319 = vrcp.pop %v6156
    %v6320 = vmul.f32 1.0, %v6319
    %v6321 = vrcp.pop %v6157
    %v6322 = vmul.f32 1.0, %v6321
    %v6323 = vrcp.pop %v6158
    %v6324 = vmul.f32 1.0, %v6323
    %v6325 = vrcp.pop %v6159
    %v6326 = vmul.f32 1.0, %v6325
    %v6327 = vrcp.pop %v6160
    %v6328 = vmul.f32 1.0, %v6327
    %v6329 = vrcp.pop %v6161
    %v6330 = vmul.f32 1.0, %v6329
    %v6331 = vrcp.pop %v6162
    %v6332 = vmul.f32 1.0, %v6331
    %v6333 = vrcp.pop %v6163
    %v6334 = vmul.f32 1.0, %v6333
    %v6335 = vrcp.pop %v6164
    %v6336 = vmul.f32 1.0, %v6335
    %v6337 = vrcp.pop %v6165
    %v6338 = vmul.f32 1.0, %v6337
    %v6339 = vrcp.pop %v6166
    %v6340 = vmul.f32 1.0, %v6339
    %v6341 = vrcp.pop %v6167
    %v6342 = vmul.f32 1.0, %v6341
    %v6343 = vrcp.pop %v6168
    %v6344 = vmul.f32 1.0, %v6343
    %v6345 = vrcp.pop %v6169
    %v6346 = vmul.f32 1.0, %v6345
    %v6347 = vrcp.pop %v6170
    %v6348 = vmul.f32 1.0, %v6347
    %v6349 = vrcp.pop %v6171
    %v6350 = vmul.f32 1.0, %v6349
    %v6351 = vrcp.pop %v6172
    %v6352 = vmul.f32 1.0, %v6351
    %v6353 = vrcp.pop %v6173
    %v6354 = vmul.f32 1.0, %v6353
    %v6355 = vrcp.pop %v6174
    %v6356 = vmul.f32 1.0, %v6355
    %v6357 = vrcp.pop %v6175
    %v6358 = vmul.f32 1.0, %v6357
    %v6359 = vrcp.pop %v6176
    %v6360 = vmul.f32 1.0, %v6359
    %v6361 = vrcp.pop %v6177
    %v6362 = vmul.f32 1.0, %v6361
    %v6363 = vrcp.pop %v6178
    %v6364 = vmul.f32 1.0, %v6363
    %v6365 = vrcp.pop %v6179
    %v6366 = vmul.f32 1.0, %v6365
    %v6367 = vrcp.pop %v6180
    %v6368 = vmul.f32 1.0, %v6367
    %v6369 = vrcp.pop %v6181
    %v6370 = vmul.f32 1.0, %v6369
    %v6371 = vrcp.pop %v6182
    %v6372 = vmul.f32 1.0, %v6371
    %v6373 = vrcp.pop %v6183
    %v6374 = vmul.f32 1.0, %v6373
    %v6375 = vrcp.pop %v6184
    %v6376 = vmul.f32 1.0, %v6375
    %v6377 = vrcp.pop %v6185
    %v6378 = vmul.f32 1.0, %v6377
    %v6379 = vrcp.pop %v6186
    %v6380 = vmul.f32 1.0, %v6379
    %v6381 = vrcp.pop %v6187
    %v6382 = vmul.f32 1.0, %v6381
    %v6383 = vrcp.pop %v6188
    %v6384 = vmul.f32 1.0, %v6383
    %v6385 = vrcp.pop %v6189
    %v6386 = vmul.f32 1.0, %v6385
    %v6387 = vrcp.pop %v6190
    %v6388 = vmul.f32 1.0, %v6387
    %v6389 = vrcp.pop %v6191
    %v6390 = vmul.f32 1.0, %v6389
    %v6391 = vrcp.pop %v6192
    %v6392 = vmul.f32 1.0, %v6391
    %v6393 = vrcp.pop %v6193
    %v6394 = vmul.f32 1.0, %v6393
    %v6395 = vrcp.pop %v6194
    %v6396 = vmul.f32 1.0, %v6395
    %v6397 = vrcp.pop %v6195
    %v6398 = vmul.f32 1.0, %v6397
    %v6399 = vrcp.pop %v6196
    %v6400 = vmul.f32 1.0, %v6399
    %v6401 = vrcp.pop %v6197
    %v6402 = vmul.f32 1.0, %v6401
    %v6403 = vrcp.pop %v6198
    %v6404 = vmul.f32 1.0, %v6403
    %v6405 = vrcp.pop %v6199
    %v6406 = vmul.f32 1.0, %v6405
    %v6407 = vrcp.pop %v6200
    %v6408 = vmul.f32 1.0, %v6407
    %v6409 = vrcp.pop %v6201
    %v6410 = vmul.f32 1.0, %v6409
    %v6411 = vrcp.pop %v6202
    %v6412 = vmul.f32 1.0, %v6411
    %v6413 = vrcp.pop %v6203
    %v6414 = vmul.f32 1.0, %v6413
    %v6415 = vrcp.pop %v6204
    %v6416 = vmul.f32 1.0, %v6415
    %v6417 = vrcp.pop %v6205
    %v6418 = vmul.f32 1.0, %v6417
    %v6419 = vrcp.pop %v6206
    %v6420 = vmul.f32 1.0, %v6419
    %v6421 = vrcp.pop %v6207
    %v6422 = vmul.f32 1.0, %v6421
    %v6423 = vrcp.pop %v6208
    %v6424 = vmul.f32 1.0, %v6423
    %v6425 = vrcp.pop %v6209
    %v6426 = vmul.f32 1.0, %v6425
    %v6427 = vrcp.pop %v6210
    %v6428 = vmul.f32 1.0, %v6427
    %v6429 = vrcp.pop %v6211
    %v6430 = vmul.f32 1.0, %v6429
    %v6431 = vrcp.pop %v6212
    %v6432 = vmul.f32 1.0, %v6431
    %v6433 = vrcp.pop %v6213
    %v6434 = vmul.f32 1.0, %v6433
    %v6435 = vrcp.pop %v6214
    %v6436 = vmul.f32 1.0, %v6435
    %v6437 = vrcp.pop %v6215
    %v6438 = vmul.f32 1.0, %v6437
    %v6439 = vrcp.pop %v6216
    %v6440 = vmul.f32 1.0, %v6439
    %v6441 = vrcp.pop %v6217
    %v6442 = vmul.f32 1.0, %v6441
    %v6443 = vrcp.pop %v6218
    %v6444 = vmul.f32 1.0, %v6443
    %v6445 = vrcp.pop %v6219
    %v6446 = vmul.f32 1.0, %v6445
    %v6447 = vrcp.pop %v6220
    %v6448 = vmul.f32 1.0, %v6447
    %v6449 = vrcp.pop %v6221
    %v6450 = vmul.f32 1.0, %v6449
    %v6451 = vrcp.pop %v6222
    %v6452 = vmul.f32 1.0, %v6451
    %v6453 = vrcp.pop %v6223
    %v6454 = vmul.f32 1.0, %v6453
    %v6455 = vrcp.pop %v6224
    %v6456 = vmul.f32 1.0, %v6455
    %v6457 = vrcp.pop %v6225
    %v6458 = vmul.f32 1.0, %v6457
    %v6459 = vrcp.pop %v6226
    %v6460 = vmul.f32 1.0, %v6459
    %v6461 = vrcp.pop %v6227
    %v6462 = vmul.f32 1.0, %v6461
    %v6463 = vrcp.pop %v6228
    %v6464 = vmul.f32 1.0, %v6463
    %v6465 = vrcp.pop %v6229
    %v6466 = vmul.f32 1.0, %v6465
    %v6467 = vrcp.pop %v6230
    %v6468 = vmul.f32 1.0, %v6467
    %v6469 = vrcp.pop %v6231
    %v6470 = vmul.f32 1.0, %v6469
    %v6471 = vrcp.pop %v6232
    %v6472 = vmul.f32 1.0, %v6471
    %v6473 = vrcp.pop %v6233
    %v6474 = vmul.f32 1.0, %v6473
    %v6475 = vrcp.pop %v6234
    %v6476 = vmul.f32 1.0, %v6475
    %v6477 = vrcp.pop %v6235
    %v6478 = vmul.f32 1.0, %v6477
    %v6479 = vrcp.pop %v6236
    %v6480 = vmul.f32 1.0, %v6479
    %v6481 = vrcp.pop %v6237
    %v6482 = vmul.f32 1.0, %v6481
    %v6483 = vrcp.pop %v6238
    %v6484 = vmul.f32 1.0, %v6483
    %v6485 = vrcp.pop %v6239
    %v6486 = vmul.f32 1.0, %v6485
    %v6487 = vrcp.pop %v6240
    %v6488 = vmul.f32 1.0, %v6487
    %v6489 = vrcp.pop %v6241
    %v6490 = vmul.f32 1.0, %v6489
    %v6491 = vrcp.pop %v6242
    %v6492 = vmul.f32 1.0, %v6491
    %v6493 = vrcp.pop %v6243
    %v6494 = vmul.f32 1.0, %v6493
    %v6495 = vrcp.pop %v6244
    %v6496 = vmul.f32 1.0, %v6495
    %v6497 = vrcp.pop %v6245
    %v6498 = vmul.f32 1.0, %v6497
    %v6499 = vrcp.pop %v6246
    %v6500 = vmul.f32 1.0, %v6499
    %v6501 = vrcp.pop %v6247
    %v6502 = vmul.f32 1.0, %v6501
    %v6503 = vrcp.pop %v6248
    %v6504 = vmul.f32 1.0, %v6503
    %v6505 = vmul.f32 %v5227, %v6250
    %v6506 = vmul.f32 %v5230, %v6252
    %v6507 = vmul.f32 %v5235, %v6254
    %v6508 = vmul.f32 %v5238, %v6256
    %v6509 = vmul.f32 %v5243, %v6258
    %v6510 = vmul.f32 %v5246, %v6260
    %v6511 = vmul.f32 %v5251, %v6262
    %v6512 = vmul.f32 %v5254, %v6264
    %v6513 = vmul.f32 %v5259, %v6266
    %v6514 = vmul.f32 %v5262, %v6268
    %v6515 = vmul.f32 %v5267, %v6270
    %v6516 = vmul.f32 %v5270, %v6272
    %v6517 = vmul.f32 %v5275, %v6274
    %v6518 = vmul.f32 %v5278, %v6276
    %v6519 = vmul.f32 %v5283, %v6278
    %v6520 = vmul.f32 %v5286, %v6280
    %v6521 = vmul.f32 %v5291, %v6282
    %v6522 = vmul.f32 %v5294, %v6284
    %v6523 = vmul.f32 %v5299, %v6286
    %v6524 = vmul.f32 %v5302, %v6288
    %v6525 = vmul.f32 %v5307, %v6290
    %v6526 = vmul.f32 %v5310, %v6292
    %v6527 = vmul.f32 %v5315, %v6294
    %v6528 = vmul.f32 %v5318, %v6296
    %v6529 = vmul.f32 %v5323, %v6298
    %v6530 = vmul.f32 %v5326, %v6300
    %v6531 = vmul.f32 %v5331, %v6302
    %v6532 = vmul.f32 %v5334, %v6304
    %v6533 = vmul.f32 %v5339, %v6306
    %v6534 = vmul.f32 %v5342, %v6308
    %v6535 = vmul.f32 %v5347, %v6310
    %v6536 = vmul.f32 %v5350, %v6312
    %v6537 = vmul.f32 %v5355, %v6314
    %v6538 = vmul.f32 %v5358, %v6316
    %v6539 = vmul.f32 %v5363, %v6318
    %v6540 = vmul.f32 %v5366, %v6320
    %v6541 = vmul.f32 %v5371, %v6322
    %v6542 = vmul.f32 %v5374, %v6324
    %v6543 = vmul.f32 %v5379, %v6326
    %v6544 = vmul.f32 %v5382, %v6328
    %v6545 = vmul.f32 %v5387, %v6330
    %v6546 = vmul.f32 %v5390, %v6332
    %v6547 = vmul.f32 %v5395, %v6334
    %v6548 = vmul.f32 %v5398, %v6336
    %v6549 = vmul.f32 %v5403, %v6338
    %v6550 = vmul.f32 %v5406, %v6340
    %v6551 = vmul.f32 %v5411, %v6342
    %v6552 = vmul.f32 %v5414, %v6344
    %v6553 = vmul.f32 %v5419, %v6346
    %v6554 = vmul.f32 %v5422, %v6348
    %v6555 = vmul.f32 %v5427, %v6350
    %v6556 = vmul.f32 %v5430, %v6352
    %v6557 = vmul.f32 %v5435, %v6354
    %v6558 = vmul.f32 %v5438, %v6356
    %v6559 = vmul.f32 %v5443, %v6358
    %v6560 = vmul.f32 %v5446, %v6360
    %v6561 = vmul.f32 %v5451, %v6362
    %v6562 = vmul.f32 %v5454, %v6364
    %v6563 = vmul.f32 %v5459, %v6366
    %v6564 = vmul.f32 %v5462, %v6368
    %v6565 = vmul.f32 %v5467, %v6370
    %v6566 = vmul.f32 %v5470, %v6372
    %v6567 = vmul.f32 %v5475, %v6374
    %v6568 = vmul.f32 %v5478, %v6376
    %v6569 = vmul.f32 %v5483, %v6378
    %v6570 = vmul.f32 %v5486, %v6380
    %v6571 = vmul.f32 %v5491, %v6382
    %v6572 = vmul.f32 %v5494, %v6384
    %v6573 = vmul.f32 %v5499, %v6386
    %v6574 = vmul.f32 %v5502, %v6388
    %v6575 = vmul.f32 %v5507, %v6390
    %v6576 = vmul.f32 %v5510, %v6392
    %v6577 = vmul.f32 %v5515, %v6394
    %v6578 = vmul.f32 %v5518, %v6396
    %v6579 = vmul.f32 %v5523, %v6398
    %v6580 = vmul.f32 %v5526, %v6400
    %v6581 = vmul.f32 %v5531, %v6402
    %v6582 = vmul.f32 %v5534, %v6404
    %v6583 = vmul.f32 %v5539, %v6406
    %v6584 = vmul.f32 %v5542, %v6408
    %v6585 = vmul.f32 %v5547, %v6410
    %v6586 = vmul.f32 %v5550, %v6412
    %v6587 = vmul.f32 %v5555, %v6414
    %v6588 = vmul.f32 %v5558, %v6416
    %v6589 = vmul.f32 %v5563, %v6418
    %v6590 = vmul.f32 %v5566, %v6420
    %v6591 = vmul.f32 %v5571, %v6422
    %v6592 = vmul.f32 %v5574, %v6424
    %v6593 = vmul.f32 %v5579, %v6426
    %v6594 = vmul.f32 %v5582, %v6428
    %v6595 = vmul.f32 %v5587, %v6430
    %v6596 = vmul.f32 %v5590, %v6432
    %v6597 = vmul.f32 %v5595, %v6434
    %v6598 = vmul.f32 %v5598, %v6436
    %v6599 = vmul.f32 %v5603, %v6438
    %v6600 = vmul.f32 %v5606, %v6440
    %v6601 = vmul.f32 %v5611, %v6442
    %v6602 = vmul.f32 %v5614, %v6444
    %v6603 = vmul.f32 %v5619, %v6446
    %v6604 = vmul.f32 %v5622, %v6448
    %v6605 = vmul.f32 %v5627, %v6450
    %v6606 = vmul.f32 %v5630, %v6452
    %v6607 = vmul.f32 %v5635, %v6454
    %v6608 = vmul.f32 %v5638, %v6456
    %v6609 = vmul.f32 %v5643, %v6458
    %v6610 = vmul.f32 %v5646, %v6460
    %v6611 = vmul.f32 %v5651, %v6462
    %v6612 = vmul.f32 %v5654, %v6464
    %v6613 = vmul.f32 %v5659, %v6466
    %v6614 = vmul.f32 %v5662, %v6468
    %v6615 = vmul.f32 %v5667, %v6470
    %v6616 = vmul.f32 %v5670, %v6472
    %v6617 = vmul.f32 %v5675, %v6474
    %v6618 = vmul.f32 %v5678, %v6476
    %v6619 = vmul.f32 %v5683, %v6478
    %v6620 = vmul.f32 %v5686, %v6480
    %v6621 = vmul.f32 %v5691, %v6482
    %v6622 = vmul.f32 %v5694, %v6484
    %v6623 = vmul.f32 %v5699, %v6486
    %v6624 = vmul.f32 %v5702, %v6488
    %v6625 = vmul.f32 %v5707, %v6490
    %v6626 = vmul.f32 %v5710, %v6492
    %v6627 = vmul.f32 %v5715, %v6494
    %v6628 = vmul.f32 %v5718, %v6496
    %v6629 = vmul.f32 %v5723, %v6498
    %v6630 = vmul.f32 %v5726, %v6500
    %v6631 = vmul.f32 %v5731, %v6502
    %v6632 = vmul.f32 %v5734, %v6504
    %6761 = vrot.lane.b32.xlu0 %v6250, 64
    %v6762 = vpop.permute.xlu0 %6761
    %6763 = vrot.lane.b32.xlu0 %v6252, 64
    %v6764 = vpop.permute.xlu0 %6763
    %6765 = vrot.lane.b32.xlu0 %v6254, 64
    %v6766 = vpop.permute.xlu0 %6765
    %6767 = vrot.lane.b32.xlu0 %v6256, 64
    %v6768 = vpop.permute.xlu0 %6767
    %6769 = vrot.lane.b32.xlu0 %v6258, 64
    %v6770 = vpop.permute.xlu0 %6769
    %6771 = vrot.lane.b32.xlu0 %v6260, 64
    %v6772 = vpop.permute.xlu0 %6771
    %6773 = vrot.lane.b32.xlu0 %v6262, 64
    %v6774 = vpop.permute.xlu0 %6773
    %6775 = vrot.lane.b32.xlu0 %v6264, 64
    %v6776 = vpop.permute.xlu0 %6775
    %6777 = vrot.lane.b32.xlu0 %v6266, 64
    %v6778 = vpop.permute.xlu0 %6777
    %6779 = vrot.lane.b32.xlu0 %v6268, 64
    %v6780 = vpop.permute.xlu0 %6779
    %6781 = vrot.lane.b32.xlu0 %v6270, 64
    %v6782 = vpop.permute.xlu0 %6781
    %6783 = vrot.lane.b32.xlu0 %v6272, 64
    %v6784 = vpop.permute.xlu0 %6783
    %6785 = vrot.lane.b32.xlu0 %v6274, 64
    %v6786 = vpop.permute.xlu0 %6785
    %6787 = vrot.lane.b32.xlu0 %v6276, 64
    %v6788 = vpop.permute.xlu0 %6787
    %6789 = vrot.lane.b32.xlu0 %v6278, 64
    %v6790 = vpop.permute.xlu0 %6789
    %6791 = vrot.lane.b32.xlu0 %v6280, 64
    %v6792 = vpop.permute.xlu0 %6791
    %6793 = vrot.lane.b32.xlu0 %v6282, 64
    %v6794 = vpop.permute.xlu0 %6793
    %6795 = vrot.lane.b32.xlu0 %v6284, 64
    %v6796 = vpop.permute.xlu0 %6795
    %6797 = vrot.lane.b32.xlu0 %v6286, 64
    %v6798 = vpop.permute.xlu0 %6797
    %6799 = vrot.lane.b32.xlu0 %v6288, 64
    %v6800 = vpop.permute.xlu0 %6799
    %6801 = vrot.lane.b32.xlu0 %v6290, 64
    %v6802 = vpop.permute.xlu0 %6801
    %6803 = vrot.lane.b32.xlu0 %v6292, 64
    %v6804 = vpop.permute.xlu0 %6803
    %6805 = vrot.lane.b32.xlu0 %v6294, 64
    %v6806 = vpop.permute.xlu0 %6805
    %6807 = vrot.lane.b32.xlu0 %v6296, 64
    %v6808 = vpop.permute.xlu0 %6807
    %6809 = vrot.lane.b32.xlu0 %v6298, 64
    %v6810 = vpop.permute.xlu0 %6809
    %6811 = vrot.lane.b32.xlu0 %v6300, 64
    %v6812 = vpop.permute.xlu0 %6811
    %6813 = vrot.lane.b32.xlu0 %v6302, 64
    %v6814 = vpop.permute.xlu0 %6813
    %6815 = vrot.lane.b32.xlu0 %v6304, 64
    %v6816 = vpop.permute.xlu0 %6815
    %6817 = vrot.lane.b32.xlu0 %v6306, 64
    %v6818 = vpop.permute.xlu0 %6817
    %6819 = vrot.lane.b32.xlu0 %v6308, 64
    %v6820 = vpop.permute.xlu0 %6819
    %6821 = vrot.lane.b32.xlu0 %v6310, 64
    %v6822 = vpop.permute.xlu0 %6821
    %6823 = vrot.lane.b32.xlu0 %v6312, 64
    %v6824 = vpop.permute.xlu0 %6823
    %6825 = vrot.lane.b32.xlu0 %v6314, 64
    %v6826 = vpop.permute.xlu0 %6825
    %6827 = vrot.lane.b32.xlu0 %v6316, 64
    %v6828 = vpop.permute.xlu0 %6827
    %6829 = vrot.lane.b32.xlu0 %v6318, 64
    %v6830 = vpop.permute.xlu0 %6829
    %6831 = vrot.lane.b32.xlu0 %v6320, 64
    %v6832 = vpop.permute.xlu0 %6831
    %6833 = vrot.lane.b32.xlu0 %v6322, 64
    %v6834 = vpop.permute.xlu0 %6833
    %6835 = vrot.lane.b32.xlu0 %v6324, 64
    %v6836 = vpop.permute.xlu0 %6835
    %6837 = vrot.lane.b32.xlu0 %v6326, 64
    %v6838 = vpop.permute.xlu0 %6837
    %6839 = vrot.lane.b32.xlu0 %v6328, 64
    %v6840 = vpop.permute.xlu0 %6839
    %6841 = vrot.lane.b32.xlu0 %v6330, 64
    %v6842 = vpop.permute.xlu0 %6841
    %6843 = vrot.lane.b32.xlu0 %v6332, 64
    %v6844 = vpop.permute.xlu0 %6843
    %6845 = vrot.lane.b32.xlu0 %v6334, 64
    %v6846 = vpop.permute.xlu0 %6845
    %6847 = vrot.lane.b32.xlu0 %v6336, 64
    %v6848 = vpop.permute.xlu0 %6847
    %6849 = vrot.lane.b32.xlu0 %v6338, 64
    %v6850 = vpop.permute.xlu0 %6849
    %6851 = vrot.lane.b32.xlu0 %v6340, 64
    %v6852 = vpop.permute.xlu0 %6851
    %6853 = vrot.lane.b32.xlu0 %v6342, 64
    %v6854 = vpop.permute.xlu0 %6853
    %6855 = vrot.lane.b32.xlu0 %v6344, 64
    %v6856 = vpop.permute.xlu0 %6855
    %6857 = vrot.lane.b32.xlu0 %v6346, 64
    %v6858 = vpop.permute.xlu0 %6857
    %6859 = vrot.lane.b32.xlu0 %v6348, 64
    %v6860 = vpop.permute.xlu0 %6859
    %6861 = vrot.lane.b32.xlu0 %v6350, 64
    %v6862 = vpop.permute.xlu0 %6861
    %6863 = vrot.lane.b32.xlu0 %v6352, 64
    %v6864 = vpop.permute.xlu0 %6863
    %6865 = vrot.lane.b32.xlu0 %v6354, 64
    %v6866 = vpop.permute.xlu0 %6865
    %6867 = vrot.lane.b32.xlu0 %v6356, 64
    %v6868 = vpop.permute.xlu0 %6867
    %6869 = vrot.lane.b32.xlu0 %v6358, 64
    %v6870 = vpop.permute.xlu0 %6869
    %6871 = vrot.lane.b32.xlu0 %v6360, 64
    %v6872 = vpop.permute.xlu0 %6871
    %6873 = vrot.lane.b32.xlu0 %v6362, 64
    %v6874 = vpop.permute.xlu0 %6873
    %6875 = vrot.lane.b32.xlu0 %v6364, 64
    %v6876 = vpop.permute.xlu0 %6875
    %6877 = vrot.lane.b32.xlu0 %v6366, 64
    %v6878 = vpop.permute.xlu0 %6877
    %6879 = vrot.lane.b32.xlu0 %v6368, 64
    %v6880 = vpop.permute.xlu0 %6879
    %6881 = vrot.lane.b32.xlu0 %v6370, 64
    %v6882 = vpop.permute.xlu0 %6881
    %6883 = vrot.lane.b32.xlu0 %v6372, 64
    %v6884 = vpop.permute.xlu0 %6883
    %6885 = vrot.lane.b32.xlu0 %v6374, 64
    %v6886 = vpop.permute.xlu0 %6885
    %6887 = vrot.lane.b32.xlu0 %v6376, 64
    %v6888 = vpop.permute.xlu0 %6887
    %6889 = vrot.lane.b32.xlu0 %v6378, 64
    %v6890 = vpop.permute.xlu0 %6889
    %6891 = vrot.lane.b32.xlu0 %v6380, 64
    %v6892 = vpop.permute.xlu0 %6891
    %6893 = vrot.lane.b32.xlu0 %v6382, 64
    %v6894 = vpop.permute.xlu0 %6893
    %6895 = vrot.lane.b32.xlu0 %v6384, 64
    %v6896 = vpop.permute.xlu0 %6895
    %6897 = vrot.lane.b32.xlu0 %v6386, 64
    %v6898 = vpop.permute.xlu0 %6897
    %6899 = vrot.lane.b32.xlu0 %v6388, 64
    %v6900 = vpop.permute.xlu0 %6899
    %6901 = vrot.lane.b32.xlu0 %v6390, 64
    %v6902 = vpop.permute.xlu0 %6901
    %6903 = vrot.lane.b32.xlu0 %v6392, 64
    %v6904 = vpop.permute.xlu0 %6903
    %6905 = vrot.lane.b32.xlu0 %v6394, 64
    %v6906 = vpop.permute.xlu0 %6905
    %6907 = vrot.lane.b32.xlu0 %v6396, 64
    %v6908 = vpop.permute.xlu0 %6907
    %6909 = vrot.lane.b32.xlu0 %v6398, 64
    %v6910 = vpop.permute.xlu0 %6909
    %6911 = vrot.lane.b32.xlu0 %v6400, 64
    %v6912 = vpop.permute.xlu0 %6911
    %6913 = vrot.lane.b32.xlu0 %v6402, 64
    %v6914 = vpop.permute.xlu0 %6913
    %6915 = vrot.lane.b32.xlu0 %v6404, 64
    %v6916 = vpop.permute.xlu0 %6915
    %6917 = vrot.lane.b32.xlu0 %v6406, 64
    %v6918 = vpop.permute.xlu0 %6917
    %6919 = vrot.lane.b32.xlu0 %v6408, 64
    %v6920 = vpop.permute.xlu0 %6919
    %6921 = vrot.lane.b32.xlu0 %v6410, 64
    %v6922 = vpop.permute.xlu0 %6921
    %6923 = vrot.lane.b32.xlu0 %v6412, 64
    %v6924 = vpop.permute.xlu0 %6923
    %6925 = vrot.lane.b32.xlu0 %v6414, 64
    %v6926 = vpop.permute.xlu0 %6925
    %6927 = vrot.lane.b32.xlu0 %v6416, 64
    %v6928 = vpop.permute.xlu0 %6927
    %6929 = vrot.lane.b32.xlu0 %v6418, 64
    %v6930 = vpop.permute.xlu0 %6929
    %6931 = vrot.lane.b32.xlu0 %v6420, 64
    %v6932 = vpop.permute.xlu0 %6931
    %6933 = vrot.lane.b32.xlu0 %v6422, 64
    %v6934 = vpop.permute.xlu0 %6933
    %6935 = vrot.lane.b32.xlu0 %v6424, 64
    %v6936 = vpop.permute.xlu0 %6935
    %6937 = vrot.lane.b32.xlu0 %v6426, 64
    %v6938 = vpop.permute.xlu0 %6937
    %6939 = vrot.lane.b32.xlu0 %v6428, 64
    %v6940 = vpop.permute.xlu0 %6939
    %6941 = vrot.lane.b32.xlu0 %v6430, 64
    %v6942 = vpop.permute.xlu0 %6941
    %6943 = vrot.lane.b32.xlu0 %v6432, 64
    %v6944 = vpop.permute.xlu0 %6943
    %6945 = vrot.lane.b32.xlu0 %v6434, 64
    %v6946 = vpop.permute.xlu0 %6945
    %6947 = vrot.lane.b32.xlu0 %v6436, 64
    %v6948 = vpop.permute.xlu0 %6947
    %6949 = vrot.lane.b32.xlu0 %v6438, 64
    %v6950 = vpop.permute.xlu0 %6949
    %6951 = vrot.lane.b32.xlu0 %v6440, 64
    %v6952 = vpop.permute.xlu0 %6951
    %6953 = vrot.lane.b32.xlu0 %v6442, 64
    %v6954 = vpop.permute.xlu0 %6953
    %6955 = vrot.lane.b32.xlu0 %v6444, 64
    %v6956 = vpop.permute.xlu0 %6955
    %6957 = vrot.lane.b32.xlu0 %v6446, 64
    %v6958 = vpop.permute.xlu0 %6957
    %6959 = vrot.lane.b32.xlu0 %v6448, 64
    %v6960 = vpop.permute.xlu0 %6959
    %6961 = vrot.lane.b32.xlu0 %v6450, 64
    %v6962 = vpop.permute.xlu0 %6961
    %6963 = vrot.lane.b32.xlu0 %v6452, 64
    %v6964 = vpop.permute.xlu0 %6963
    %6965 = vrot.lane.b32.xlu0 %v6454, 64
    %v6966 = vpop.permute.xlu0 %6965
    %6967 = vrot.lane.b32.xlu0 %v6456, 64
    %v6968 = vpop.permute.xlu0 %6967
    %6969 = vrot.lane.b32.xlu0 %v6458, 64
    %v6970 = vpop.permute.xlu0 %6969
    %6971 = vrot.lane.b32.xlu0 %v6460, 64
    %v6972 = vpop.permute.xlu0 %6971
    %6973 = vrot.lane.b32.xlu0 %v6462, 64
    %v6974 = vpop.permute.xlu0 %6973
    %6975 = vrot.lane.b32.xlu0 %v6464, 64
    %v6976 = vpop.permute.xlu0 %6975
    %6977 = vrot.lane.b32.xlu0 %v6466, 64
    %v6978 = vpop.permute.xlu0 %6977
    %6979 = vrot.lane.b32.xlu0 %v6468, 64
    %v6980 = vpop.permute.xlu0 %6979
    %6981 = vrot.lane.b32.xlu0 %v6470, 64
    %v6982 = vpop.permute.xlu0 %6981
    %6983 = vrot.lane.b32.xlu0 %v6472, 64
    %v6984 = vpop.permute.xlu0 %6983
    %6985 = vrot.lane.b32.xlu0 %v6474, 64
    %v6986 = vpop.permute.xlu0 %6985
    %6987 = vrot.lane.b32.xlu0 %v6476, 64
    %v6988 = vpop.permute.xlu0 %6987
    %6989 = vrot.lane.b32.xlu0 %v6478, 64
    %v6990 = vpop.permute.xlu0 %6989
    %6991 = vrot.lane.b32.xlu0 %v6480, 64
    %v6992 = vpop.permute.xlu0 %6991
    %6993 = vrot.lane.b32.xlu0 %v6482, 64
    %v6994 = vpop.permute.xlu0 %6993
    %6995 = vrot.lane.b32.xlu0 %v6484, 64
    %v6996 = vpop.permute.xlu0 %6995
    %6997 = vrot.lane.b32.xlu0 %v6486, 64
    %v6998 = vpop.permute.xlu0 %6997
    %6999 = vrot.lane.b32.xlu0 %v6488, 64
    %v7000 = vpop.permute.xlu0 %6999
    %7001 = vrot.lane.b32.xlu0 %v6490, 64
    %v7002 = vpop.permute.xlu0 %7001
    %7003 = vrot.lane.b32.xlu0 %v6492, 64
    %v7004 = vpop.permute.xlu0 %7003
    %7005 = vrot.lane.b32.xlu0 %v6494, 64
    %v7006 = vpop.permute.xlu0 %7005
    %7007 = vrot.lane.b32.xlu0 %v6496, 64
    %v7008 = vpop.permute.xlu0 %7007
    %7009 = vrot.lane.b32.xlu0 %v6498, 64
    %v7010 = vpop.permute.xlu0 %7009
    %7011 = vrot.lane.b32.xlu0 %v6500, 64
    %v7012 = vpop.permute.xlu0 %7011
    %7013 = vrot.lane.b32.xlu0 %v6502, 64
    %v7014 = vpop.permute.xlu0 %7013
    %7015 = vrot.lane.b32.xlu0 %v6504, 64
    %v7016 = vpop.permute.xlu0 %7015
    %v7145 = vmul.f32 %v6505, %v6762
    %v7146 = vmul.f32 %v6506, %v6764
    %v7147 = vmul.f32 %v6507, %v6766
    %v7148 = vmul.f32 %v6508, %v6768
    %v7149 = vmul.f32 %v6509, %v6770
    %v7150 = vmul.f32 %v6510, %v6772
    %v7151 = vmul.f32 %v6511, %v6774
    %v7152 = vmul.f32 %v6512, %v6776
    %v7153 = vmul.f32 %v6513, %v6778
    %v7154 = vmul.f32 %v6514, %v6780
    %v7155 = vmul.f32 %v6515, %v6782
    %v7156 = vmul.f32 %v6516, %v6784
    %v7157 = vmul.f32 %v6517, %v6786
    %v7158 = vmul.f32 %v6518, %v6788
    %v7159 = vmul.f32 %v6519, %v6790
    %v7160 = vmul.f32 %v6520, %v6792
    %v7161 = vmul.f32 %v6521, %v6794
    %v7162 = vmul.f32 %v6522, %v6796
    %v7163 = vmul.f32 %v6523, %v6798
    %v7164 = vmul.f32 %v6524, %v6800
    %v7165 = vmul.f32 %v6525, %v6802
    %v7166 = vmul.f32 %v6526, %v6804
    %v7167 = vmul.f32 %v6527, %v6806
    %v7168 = vmul.f32 %v6528, %v6808
    %v7169 = vmul.f32 %v6529, %v6810
    %v7170 = vmul.f32 %v6530, %v6812
    %v7171 = vmul.f32 %v6531, %v6814
    %v7172 = vmul.f32 %v6532, %v6816
    %v7173 = vmul.f32 %v6533, %v6818
    %v7174 = vmul.f32 %v6534, %v6820
    %v7175 = vmul.f32 %v6535, %v6822
    %v7176 = vmul.f32 %v6536, %v6824
    %v7177 = vmul.f32 %v6537, %v6826
    %v7178 = vmul.f32 %v6538, %v6828
    %v7179 = vmul.f32 %v6539, %v6830
    %v7180 = vmul.f32 %v6540, %v6832
    %v7181 = vmul.f32 %v6541, %v6834
    %v7182 = vmul.f32 %v6542, %v6836
    %v7183 = vmul.f32 %v6543, %v6838
    %v7184 = vmul.f32 %v6544, %v6840
    %v7185 = vmul.f32 %v6545, %v6842
    %v7186 = vmul.f32 %v6546, %v6844
    %v7187 = vmul.f32 %v6547, %v6846
    %v7188 = vmul.f32 %v6548, %v6848
    %v7189 = vmul.f32 %v6549, %v6850
    %v7190 = vmul.f32 %v6550, %v6852
    %v7191 = vmul.f32 %v6551, %v6854
    %v7192 = vmul.f32 %v6552, %v6856
    %v7193 = vmul.f32 %v6553, %v6858
    %v7194 = vmul.f32 %v6554, %v6860
    %v7195 = vmul.f32 %v6555, %v6862
    %v7196 = vmul.f32 %v6556, %v6864
    %v7197 = vmul.f32 %v6557, %v6866
    %v7198 = vmul.f32 %v6558, %v6868
    %v7199 = vmul.f32 %v6559, %v6870
    %v7200 = vmul.f32 %v6560, %v6872
    %v7201 = vmul.f32 %v6561, %v6874
    %v7202 = vmul.f32 %v6562, %v6876
    %v7203 = vmul.f32 %v6563, %v6878
    %v7204 = vmul.f32 %v6564, %v6880
    %v7205 = vmul.f32 %v6565, %v6882
    %v7206 = vmul.f32 %v6566, %v6884
    %v7207 = vmul.f32 %v6567, %v6886
    %v7208 = vmul.f32 %v6568, %v6888
    %v7209 = vmul.f32 %v6569, %v6890
    %v7210 = vmul.f32 %v6570, %v6892
    %v7211 = vmul.f32 %v6571, %v6894
    %v7212 = vmul.f32 %v6572, %v6896
    %v7213 = vmul.f32 %v6573, %v6898
    %v7214 = vmul.f32 %v6574, %v6900
    %v7215 = vmul.f32 %v6575, %v6902
    %v7216 = vmul.f32 %v6576, %v6904
    %v7217 = vmul.f32 %v6577, %v6906
    %v7218 = vmul.f32 %v6578, %v6908
    %v7219 = vmul.f32 %v6579, %v6910
    %v7220 = vmul.f32 %v6580, %v6912
    %v7221 = vmul.f32 %v6581, %v6914
    %v7222 = vmul.f32 %v6582, %v6916
    %v7223 = vmul.f32 %v6583, %v6918
    %v7224 = vmul.f32 %v6584, %v6920
    %v7225 = vmul.f32 %v6585, %v6922
    %v7226 = vmul.f32 %v6586, %v6924
    %v7227 = vmul.f32 %v6587, %v6926
    %v7228 = vmul.f32 %v6588, %v6928
    %v7229 = vmul.f32 %v6589, %v6930
    %v7230 = vmul.f32 %v6590, %v6932
    %v7231 = vmul.f32 %v6591, %v6934
    %v7232 = vmul.f32 %v6592, %v6936
    %v7233 = vmul.f32 %v6593, %v6938
    %v7234 = vmul.f32 %v6594, %v6940
    %v7235 = vmul.f32 %v6595, %v6942
    %v7236 = vmul.f32 %v6596, %v6944
    %v7237 = vmul.f32 %v6597, %v6946
    %v7238 = vmul.f32 %v6598, %v6948
    %v7239 = vmul.f32 %v6599, %v6950
    %v7240 = vmul.f32 %v6600, %v6952
    %v7241 = vmul.f32 %v6601, %v6954
    %v7242 = vmul.f32 %v6602, %v6956
    %v7243 = vmul.f32 %v6603, %v6958
    %v7244 = vmul.f32 %v6604, %v6960
    %v7245 = vmul.f32 %v6605, %v6962
    %v7246 = vmul.f32 %v6606, %v6964
    %v7247 = vmul.f32 %v6607, %v6966
    %v7248 = vmul.f32 %v6608, %v6968
    %v7249 = vmul.f32 %v6609, %v6970
    %v7250 = vmul.f32 %v6610, %v6972
    %v7251 = vmul.f32 %v6611, %v6974
    %v7252 = vmul.f32 %v6612, %v6976
    %v7253 = vmul.f32 %v6613, %v6978
    %v7254 = vmul.f32 %v6614, %v6980
    %v7255 = vmul.f32 %v6615, %v6982
    %v7256 = vmul.f32 %v6616, %v6984
    %v7257 = vmul.f32 %v6617, %v6986
    %v7258 = vmul.f32 %v6618, %v6988
    %v7259 = vmul.f32 %v6619, %v6990
    %v7260 = vmul.f32 %v6620, %v6992
    %v7261 = vmul.f32 %v6621, %v6994
    %v7262 = vmul.f32 %v6622, %v6996
    %v7263 = vmul.f32 %v6623, %v6998
    %v7264 = vmul.f32 %v6624, %v7000
    %v7265 = vmul.f32 %v6625, %v7002
    %v7266 = vmul.f32 %v6626, %v7004
    %v7267 = vmul.f32 %v6627, %v7006
    %v7268 = vmul.f32 %v6628, %v7008
    %v7269 = vmul.f32 %v6629, %v7010
    %v7270 = vmul.f32 %v6630, %v7012
    %v7271 = vmul.f32 %v6631, %v7014
    %v7272 = vmul.f32 %v6632, %v7016
    %v7273 = vmul.f32 %v7145, %v2433
    %v7274 = vmul.f32 %v7146, %v2436
    %v7275 = vmul.f32 %v7147, %v2441
    %v7276 = vmul.f32 %v7148, %v2444
    %v7277 = vmul.f32 %v7149, %v2449
    %v7278 = vmul.f32 %v7150, %v2452
    %v7279 = vmul.f32 %v7151, %v2457
    %v7280 = vmul.f32 %v7152, %v2460
    %v7281 = vmul.f32 %v7153, %v2465
    %v7282 = vmul.f32 %v7154, %v2468
    %v7283 = vmul.f32 %v7155, %v2473
    %v7284 = vmul.f32 %v7156, %v2476
    %v7285 = vmul.f32 %v7157, %v2481
    %v7286 = vmul.f32 %v7158, %v2484
    %v7287 = vmul.f32 %v7159, %v2489
    %v7288 = vmul.f32 %v7160, %v2492
    %v7289 = vmul.f32 %v7161, %v2497
    %v7290 = vmul.f32 %v7162, %v2500
    %v7291 = vmul.f32 %v7163, %v2505
    %v7292 = vmul.f32 %v7164, %v2508
    %v7293 = vmul.f32 %v7165, %v2513
    %v7294 = vmul.f32 %v7166, %v2516
    %v7295 = vmul.f32 %v7167, %v2521
    %v7296 = vmul.f32 %v7168, %v2524
    %v7297 = vmul.f32 %v7169, %v2529
    %v7298 = vmul.f32 %v7170, %v2532
    %v7299 = vmul.f32 %v7171, %v2537
    %v7300 = vmul.f32 %v7172, %v2540
    %v7301 = vmul.f32 %v7173, %v2545
    %v7302 = vmul.f32 %v7174, %v2548
    %v7303 = vmul.f32 %v7175, %v2553
    %v7304 = vmul.f32 %v7176, %v2556
    %v7305 = vmul.f32 %v7177, %v2561
    %v7306 = vmul.f32 %v7178, %v2564
    %v7307 = vmul.f32 %v7179, %v2569
    %v7308 = vmul.f32 %v7180, %v2572
    %v7309 = vmul.f32 %v7181, %v2577
    %v7310 = vmul.f32 %v7182, %v2580
    %v7311 = vmul.f32 %v7183, %v2585
    %v7312 = vmul.f32 %v7184, %v2588
    %v7313 = vmul.f32 %v7185, %v2593
    %v7314 = vmul.f32 %v7186, %v2596
    %v7315 = vmul.f32 %v7187, %v2601
    %v7316 = vmul.f32 %v7188, %v2604
    %v7317 = vmul.f32 %v7189, %v2609
    %v7318 = vmul.f32 %v7190, %v2612
    %v7319 = vmul.f32 %v7191, %v2617
    %v7320 = vmul.f32 %v7192, %v2620
    %v7321 = vmul.f32 %v7193, %v2625
    %v7322 = vmul.f32 %v7194, %v2628
    %v7323 = vmul.f32 %v7195, %v2633
    %v7324 = vmul.f32 %v7196, %v2636
    %v7325 = vmul.f32 %v7197, %v2641
    %v7326 = vmul.f32 %v7198, %v2644
    %v7327 = vmul.f32 %v7199, %v2649
    %v7328 = vmul.f32 %v7200, %v2652
    %v7329 = vmul.f32 %v7201, %v2657
    %v7330 = vmul.f32 %v7202, %v2660
    %v7331 = vmul.f32 %v7203, %v2665
    %v7332 = vmul.f32 %v7204, %v2668
    %v7333 = vmul.f32 %v7205, %v2673
    %v7334 = vmul.f32 %v7206, %v2676
    %v7335 = vmul.f32 %v7207, %v2681
    %v7336 = vmul.f32 %v7208, %v2684
    %v7337 = vmul.f32 %v7209, %v2689
    %v7338 = vmul.f32 %v7210, %v2692
    %v7339 = vmul.f32 %v7211, %v2697
    %v7340 = vmul.f32 %v7212, %v2700
    %v7341 = vmul.f32 %v7213, %v2705
    %v7342 = vmul.f32 %v7214, %v2708
    %v7343 = vmul.f32 %v7215, %v2713
    %v7344 = vmul.f32 %v7216, %v2716
    %v7345 = vmul.f32 %v7217, %v2721
    %v7346 = vmul.f32 %v7218, %v2724
    %v7347 = vmul.f32 %v7219, %v2729
    %v7348 = vmul.f32 %v7220, %v2732
    %v7349 = vmul.f32 %v7221, %v2737
    %v7350 = vmul.f32 %v7222, %v2740
    %v7351 = vmul.f32 %v7223, %v2745
    %v7352 = vmul.f32 %v7224, %v2748
    %v7353 = vmul.f32 %v7225, %v2753
    %v7354 = vmul.f32 %v7226, %v2756
    %v7355 = vmul.f32 %v7227, %v2761
    %v7356 = vmul.f32 %v7228, %v2764
    %v7357 = vmul.f32 %v7229, %v2769
    %v7358 = vmul.f32 %v7230, %v2772
    %v7359 = vmul.f32 %v7231, %v2777
    %v7360 = vmul.f32 %v7232, %v2780
    %v7361 = vmul.f32 %v7233, %v2785
    %v7362 = vmul.f32 %v7234, %v2788
    %v7363 = vmul.f32 %v7235, %v2793
    %v7364 = vmul.f32 %v7236, %v2796
    %v7365 = vmul.f32 %v7237, %v2801
    %v7366 = vmul.f32 %v7238, %v2804
    %v7367 = vmul.f32 %v7239, %v2809
    %v7368 = vmul.f32 %v7240, %v2812
    %v7369 = vmul.f32 %v7241, %v2817
    %v7370 = vmul.f32 %v7242, %v2820
    %v7371 = vmul.f32 %v7243, %v2825
    %v7372 = vmul.f32 %v7244, %v2828
    %v7373 = vmul.f32 %v7245, %v2833
    %v7374 = vmul.f32 %v7246, %v2836
    %v7375 = vmul.f32 %v7247, %v2841
    %v7376 = vmul.f32 %v7248, %v2844
    %v7377 = vmul.f32 %v7249, %v2849
    %v7378 = vmul.f32 %v7250, %v2852
    %v7379 = vmul.f32 %v7251, %v2857
    %v7380 = vmul.f32 %v7252, %v2860
    %v7381 = vmul.f32 %v7253, %v2865
    %v7382 = vmul.f32 %v7254, %v2868
    %v7383 = vmul.f32 %v7255, %v2873
    %v7384 = vmul.f32 %v7256, %v2876
    %v7385 = vmul.f32 %v7257, %v2881
    %v7386 = vmul.f32 %v7258, %v2884
    %v7387 = vmul.f32 %v7259, %v2889
    %v7388 = vmul.f32 %v7260, %v2892
    %v7389 = vmul.f32 %v7261, %v2897
    %v7390 = vmul.f32 %v7262, %v2900
    %v7391 = vmul.f32 %v7263, %v2905
    %v7392 = vmul.f32 %v7264, %v2908
    %v7393 = vmul.f32 %v7265, %v2913
    %v7394 = vmul.f32 %v7266, %v2916
    %v7395 = vmul.f32 %v7267, %v2921
    %v7396 = vmul.f32 %v7268, %v2924
    %v7397 = vmul.f32 %v7269, %v2929
    %v7398 = vmul.f32 %v7270, %v2932
    %v7399 = vmul.f32 %v7271, %v2937
    %v7400 = vmul.f32 %v7272, %v2940
    %v7401 = vadd.f32 %v328, %v7273
    %v7402 = vadd.f32 %v329, %v7274
    %v7403 = vadd.f32 %v330, %v7275
    %v7404 = vadd.f32 %v331, %v7276
    %v7405 = vadd.f32 %v332, %v7277
    %v7406 = vadd.f32 %v333, %v7278
    %v7407 = vadd.f32 %v334, %v7279
    %v7408 = vadd.f32 %v335, %v7280
    %v7409 = vadd.f32 %v336, %v7281
    %v7410 = vadd.f32 %v337, %v7282
    %v7411 = vadd.f32 %v338, %v7283
    %v7412 = vadd.f32 %v339, %v7284
    %v7413 = vadd.f32 %v340, %v7285
    %v7414 = vadd.f32 %v341, %v7286
    %v7415 = vadd.f32 %v342, %v7287
    %v7416 = vadd.f32 %v343, %v7288
    %v7417 = vadd.f32 %v344, %v7289
    %v7418 = vadd.f32 %v345, %v7290
    %v7419 = vadd.f32 %v346, %v7291
    %v7420 = vadd.f32 %v347, %v7292
    %v7421 = vadd.f32 %v348, %v7293
    %v7422 = vadd.f32 %v349, %v7294
    %v7423 = vadd.f32 %v350, %v7295
    %v7424 = vadd.f32 %v351, %v7296
    %v7425 = vadd.f32 %v352, %v7297
    %v7426 = vadd.f32 %v353, %v7298
    %v7427 = vadd.f32 %v354, %v7299
    %v7428 = vadd.f32 %v355, %v7300
    %v7429 = vadd.f32 %v356, %v7301
    %v7430 = vadd.f32 %v357, %v7302
    %v7431 = vadd.f32 %v358, %v7303
    %v7432 = vadd.f32 %v359, %v7304
    %v7433 = vadd.f32 %v360, %v7305
    %v7434 = vadd.f32 %v361, %v7306
    %v7435 = vadd.f32 %v362, %v7307
    %v7436 = vadd.f32 %v363, %v7308
    %v7437 = vadd.f32 %v364, %v7309
    %v7438 = vadd.f32 %v365, %v7310
    %v7439 = vadd.f32 %v366, %v7311
    %v7440 = vadd.f32 %v367, %v7312
    %v7441 = vadd.f32 %v368, %v7313
    %v7442 = vadd.f32 %v369, %v7314
    %v7443 = vadd.f32 %v370, %v7315
    %v7444 = vadd.f32 %v371, %v7316
    %v7445 = vadd.f32 %v372, %v7317
    %v7446 = vadd.f32 %v373, %v7318
    %v7447 = vadd.f32 %v374, %v7319
    %v7448 = vadd.f32 %v375, %v7320
    %v7449 = vadd.f32 %v376, %v7321
    %v7450 = vadd.f32 %v377, %v7322
    %v7451 = vadd.f32 %v378, %v7323
    %v7452 = vadd.f32 %v379, %v7324
    %v7453 = vadd.f32 %v380, %v7325
    %v7454 = vadd.f32 %v381, %v7326
    %v7455 = vadd.f32 %v382, %v7327
    %v7456 = vadd.f32 %v383, %v7328
    %v7457 = vadd.f32 %v384, %v7329
    %v7458 = vadd.f32 %v385, %v7330
    %v7459 = vadd.f32 %v386, %v7331
    %v7460 = vadd.f32 %v387, %v7332
    %v7461 = vadd.f32 %v388, %v7333
    %v7462 = vadd.f32 %v389, %v7334
    %v7463 = vadd.f32 %v390, %v7335
    %v7464 = vadd.f32 %v391, %v7336
    %v7465 = vadd.f32 %v392, %v7337
    %v7466 = vadd.f32 %v393, %v7338
    %v7467 = vadd.f32 %v394, %v7339
    %v7468 = vadd.f32 %v395, %v7340
    %v7469 = vadd.f32 %v396, %v7341
    %v7470 = vadd.f32 %v397, %v7342
    %v7471 = vadd.f32 %v398, %v7343
    %v7472 = vadd.f32 %v399, %v7344
    %v7473 = vadd.f32 %v400, %v7345
    %v7474 = vadd.f32 %v401, %v7346
    %v7475 = vadd.f32 %v402, %v7347
    %v7476 = vadd.f32 %v403, %v7348
    %v7477 = vadd.f32 %v404, %v7349
    %v7478 = vadd.f32 %v405, %v7350
    %v7479 = vadd.f32 %v406, %v7351
    %v7480 = vadd.f32 %v407, %v7352
    %v7481 = vadd.f32 %v408, %v7353
    %v7482 = vadd.f32 %v409, %v7354
    %v7483 = vadd.f32 %v410, %v7355
    %v7484 = vadd.f32 %v411, %v7356
    %v7485 = vadd.f32 %v412, %v7357
    %v7486 = vadd.f32 %v413, %v7358
    %v7487 = vadd.f32 %v414, %v7359
    %v7488 = vadd.f32 %v415, %v7360
    %v7489 = vadd.f32 %v416, %v7361
    %v7490 = vadd.f32 %v417, %v7362
    %v7491 = vadd.f32 %v418, %v7363
    %v7492 = vadd.f32 %v419, %v7364
    %v7493 = vadd.f32 %v420, %v7365
    %v7494 = vadd.f32 %v421, %v7366
    %v7495 = vadd.f32 %v422, %v7367
    %v7496 = vadd.f32 %v423, %v7368
    %v7497 = vadd.f32 %v424, %v7369
    %v7498 = vadd.f32 %v425, %v7370
    %v7499 = vadd.f32 %v426, %v7371
    %v7500 = vadd.f32 %v427, %v7372
    %v7501 = vadd.f32 %v428, %v7373
    %v7502 = vadd.f32 %v429, %v7374
    %v7503 = vadd.f32 %v430, %v7375
    %v7504 = vadd.f32 %v431, %v7376
    %v7505 = vadd.f32 %v432, %v7377
    %v7506 = vadd.f32 %v433, %v7378
    %v7507 = vadd.f32 %v434, %v7379
    %v7508 = vadd.f32 %v435, %v7380
    %v7509 = vadd.f32 %v436, %v7381
    %v7510 = vadd.f32 %v437, %v7382
    %v7511 = vadd.f32 %v438, %v7383
    %v7512 = vadd.f32 %v439, %v7384
    %v7513 = vadd.f32 %v440, %v7385
    %v7514 = vadd.f32 %v441, %v7386
    %v7515 = vadd.f32 %v442, %v7387
    %v7516 = vadd.f32 %v443, %v7388
    %v7517 = vadd.f32 %v444, %v7389
    %v7518 = vadd.f32 %v445, %v7390
    %v7519 = vadd.f32 %v446, %v7391
    %v7520 = vadd.f32 %v447, %v7392
    %v7521 = vadd.f32 %v448, %v7393
    %v7522 = vadd.f32 %v449, %v7394
    %v7523 = vadd.f32 %v450, %v7395
    %v7524 = vadd.f32 %v451, %v7396
    %v7525 = vadd.f32 %v452, %v7397
    %v7526 = vadd.f32 %v453, %v7398
    %v7527 = vadd.f32 %v454, %v7399
    %v7528 = vadd.f32 %v455, %v7400
    %v7529 = vpack.c.bf16 %v7402, %v7401
    %v7530 = vpack.c.bf16 %v7404, %v7403
    %v7531 = vpack.c.bf16 %v7406, %v7405
    %v7532 = vpack.c.bf16 %v7408, %v7407
    %v7533 = vpack.c.bf16 %v7410, %v7409
    %v7534 = vpack.c.bf16 %v7412, %v7411
    %v7535 = vpack.c.bf16 %v7414, %v7413
    %v7536 = vpack.c.bf16 %v7416, %v7415
    %v7537 = vpack.c.bf16 %v7418, %v7417
    %v7538 = vpack.c.bf16 %v7420, %v7419
    %v7539 = vpack.c.bf16 %v7422, %v7421
    %v7540 = vpack.c.bf16 %v7424, %v7423
    %v7541 = vpack.c.bf16 %v7426, %v7425
    %v7542 = vpack.c.bf16 %v7428, %v7427
    %v7543 = vpack.c.bf16 %v7430, %v7429
    %v7544 = vpack.c.bf16 %v7432, %v7431
    %v7545 = vpack.c.bf16 %v7434, %v7433
    %v7546 = vpack.c.bf16 %v7436, %v7435
    %v7547 = vpack.c.bf16 %v7438, %v7437
    %v7548 = vpack.c.bf16 %v7440, %v7439
    %v7549 = vpack.c.bf16 %v7442, %v7441
    %v7550 = vpack.c.bf16 %v7444, %v7443
    %v7551 = vpack.c.bf16 %v7446, %v7445
    %v7552 = vpack.c.bf16 %v7448, %v7447
    %v7553 = vpack.c.bf16 %v7450, %v7449
    %v7554 = vpack.c.bf16 %v7452, %v7451
    %v7555 = vpack.c.bf16 %v7454, %v7453
    %v7556 = vpack.c.bf16 %v7456, %v7455
    %v7557 = vpack.c.bf16 %v7458, %v7457
    %v7558 = vpack.c.bf16 %v7460, %v7459
    %v7559 = vpack.c.bf16 %v7462, %v7461
    %v7560 = vpack.c.bf16 %v7464, %v7463
    %v7561 = vpack.c.bf16 %v7466, %v7465
    %v7562 = vpack.c.bf16 %v7468, %v7467
    %v7563 = vpack.c.bf16 %v7470, %v7469
    %v7564 = vpack.c.bf16 %v7472, %v7471
    %v7565 = vpack.c.bf16 %v7474, %v7473
    %v7566 = vpack.c.bf16 %v7476, %v7475
    %v7567 = vpack.c.bf16 %v7478, %v7477
    %v7568 = vpack.c.bf16 %v7480, %v7479
    %v7569 = vpack.c.bf16 %v7482, %v7481
    %v7570 = vpack.c.bf16 %v7484, %v7483
    %v7571 = vpack.c.bf16 %v7486, %v7485
    %v7572 = vpack.c.bf16 %v7488, %v7487
    %v7573 = vpack.c.bf16 %v7490, %v7489
    %v7574 = vpack.c.bf16 %v7492, %v7491
    %v7575 = vpack.c.bf16 %v7494, %v7493
    %v7576 = vpack.c.bf16 %v7496, %v7495
    %v7577 = vpack.c.bf16 %v7498, %v7497
    %v7578 = vpack.c.bf16 %v7500, %v7499
    %v7579 = vpack.c.bf16 %v7502, %v7501
    %v7580 = vpack.c.bf16 %v7504, %v7503
    %v7581 = vpack.c.bf16 %v7506, %v7505
    %v7582 = vpack.c.bf16 %v7508, %v7507
    %v7583 = vpack.c.bf16 %v7510, %v7509
    %v7584 = vpack.c.bf16 %v7512, %v7511
    %v7585 = vpack.c.bf16 %v7514, %v7513
    %v7586 = vpack.c.bf16 %v7516, %v7515
    %v7587 = vpack.c.bf16 %v7518, %v7517
    %v7588 = vpack.c.bf16 %v7520, %v7519
    %v7589 = vpack.c.bf16 %v7522, %v7521
    %v7590 = vpack.c.bf16 %v7524, %v7523
    %v7591 = vpack.c.bf16 %v7526, %v7525
    %v7592 = vpack.c.bf16 %v7528, %v7527
    %v7593 = vld [vmem:[#allocation11] sm:$0xf]
    %v7594 = vld [vmem:[#allocation11 + $0x4] sm:$0xf]
    %v7595 = vld [vmem:[#allocation11 + $0x8] sm:$0xf]
    %v7596 = vld [vmem:[#allocation11 + $0xc] sm:$0xf]
    %v7597 = vld [vmem:[#allocation11 + $0x10] sm:$0xf]
    %v7598 = vld [vmem:[#allocation11 + $0x14] sm:$0xf]
    %v7599 = vld [vmem:[#allocation11 + $0x18] sm:$0xf]
    %v7600 = vld [vmem:[#allocation11 + $0x1c] sm:$0xf]
    %v7609 = vunpack.c.l.b16 %v7593
    %v7610 = vunpack.c.l.b16 %v7594
    %v7611 = vunpack.c.l.b16 %v7595
    %v7612 = vunpack.c.l.b16 %v7596
    %v7613 = vunpack.c.l.b16 %v7597
    %v7614 = vunpack.c.l.b16 %v7598
    %v7615 = vunpack.c.l.b16 %v7599
    %v7616 = vunpack.c.l.b16 %v7600
    %v7617 = vpack.c.b16 %v7610, %v7609
    %v7618 = vpack.c.b16 %v7612, %v7611
    %v7619 = vpack.c.b16 %v7614, %v7613
    %v7620 = vpack.c.b16 %v7616, %v7615
    %v7626 = vsel %vm3295, %v7529, 0
    %v7629 = vsel %vm3295, %v7530, 0
    %v7632 = vsel %vm3295, %v7531, 0
    %v7635 = vsel %vm3295, %v7532, 0
    %v7638 = vsel %vm3295, %v7533, 0
    %v7641 = vsel %vm3295, %v7534, 0
    %v7644 = vsel %vm3295, %v7535, 0
    %v7647 = vsel %vm3295, %v7536, 0
    %v7650 = vsel %vm3295, %v7537, 0
    %v7653 = vsel %vm3295, %v7538, 0
    %v7656 = vsel %vm3295, %v7539, 0
    %v7659 = vsel %vm3295, %v7540, 0
    %v7662 = vsel %vm3295, %v7541, 0
    %v7665 = vsel %vm3295, %v7542, 0
    %v7668 = vsel %vm3295, %v7543, 0
    %v7671 = vsel %vm3295, %v7544, 0
    %v7674 = vsel %vm3295, %v7545, 0
    %v7677 = vsel %vm3295, %v7546, 0
    %v7680 = vsel %vm3295, %v7547, 0
    %v7683 = vsel %vm3295, %v7548, 0
    %v7686 = vsel %vm3295, %v7549, 0
    %v7689 = vsel %vm3295, %v7550, 0
    %v7692 = vsel %vm3295, %v7551, 0
    %v7695 = vsel %vm3295, %v7552, 0
    %v7698 = vsel %vm3295, %v7553, 0
    %v7701 = vsel %vm3295, %v7554, 0
    %v7704 = vsel %vm3295, %v7555, 0
    %v7707 = vsel %vm3295, %v7556, 0
    %v7710 = vsel %vm3295, %v7557, 0
    %v7713 = vsel %vm3295, %v7558, 0
    %v7716 = vsel %vm3295, %v7559, 0
    %v7719 = vsel %vm3295, %v7560, 0
    %v7722 = vsel %vm3295, %v7561, 0
    %v7725 = vsel %vm3295, %v7562, 0
    %v7728 = vsel %vm3295, %v7563, 0
    %v7731 = vsel %vm3295, %v7564, 0
    %v7734 = vsel %vm3295, %v7565, 0
    %v7737 = vsel %vm3295, %v7566, 0
    %v7740 = vsel %vm3295, %v7567, 0
    %v7743 = vsel %vm3295, %v7568, 0
    %v7746 = vsel %vm3295, %v7569, 0
    %v7749 = vsel %vm3295, %v7570, 0
    %v7752 = vsel %vm3295, %v7571, 0
    %v7755 = vsel %vm3295, %v7572, 0
    %v7758 = vsel %vm3295, %v7573, 0
    %v7761 = vsel %vm3295, %v7574, 0
    %v7764 = vsel %vm3295, %v7575, 0
    %v7767 = vsel %vm3295, %v7576, 0
    %v7770 = vsel %vm3295, %v7577, 0
    %v7773 = vsel %vm3295, %v7578, 0
    %v7776 = vsel %vm3295, %v7579, 0
    %v7779 = vsel %vm3295, %v7580, 0
    %v7782 = vsel %vm3295, %v7581, 0
    %v7785 = vsel %vm3295, %v7582, 0
    %v7788 = vsel %vm3295, %v7583, 0
    %v7791 = vsel %vm3295, %v7584, 0
    %v7794 = vsel %vm3295, %v7585, 0
    %v7797 = vsel %vm3295, %v7586, 0
    %v7800 = vsel %vm3295, %v7587, 0
    %v7803 = vsel %vm3295, %v7588, 0
    %v7806 = vsel %vm3295, %v7589, 0
    %v7809 = vsel %vm3295, %v7590, 0
    %v7812 = vsel %vm3295, %v7591, 0
    %v7815 = vsel %vm3295, %v7592, 0
    %7817 = vmatprep.subr.bf16.mxu0 0
    %7818 = vmatpush1.bf16.msra.mxu0 %v7617
    %7819 = vmatprep.subr.bf16.mxu0 0
    %7820 = vmatpush1.bf16.msra.mxu0 %v7618
    %7821 = vmatprep.subr.bf16.mxu0 0
    %7822 = vmatpush1.bf16.msra.mxu0 %v7619
    %7823 = vmatprep.subr.bf16.mxu0 0
    %7824 = vmatpush1.bf16.msra.mxu0 %v7620
    %7825 = vmatprep.subr.bf16.mxu0 0
    %7826 = vmatpush1.bf16.msra.mxu0 0
    %7827 = vmatprep.subr.bf16.mxu0 0
    %7828 = vmatpush1.bf16.msra.mxu0 0
    %7829 = vmatprep.subr.bf16.mxu0 0
    %7830 = vmatpush1.bf16.msra.mxu0 0
    %7831 = vmatprep.subr.bf16.mxu0 0
    %7832 = vmatpush1.bf16.msra.mxu0 0
    %7833 = vmatprep.subr.bf16.mxu0 0
    %7834 = vmatpush1.bf16.msra.mxu0 0
    %7835 = vmatprep.subr.bf16.mxu0 0
    %7836 = vmatpush1.bf16.msra.mxu0 0
    %7837 = vmatprep.subr.bf16.mxu0 0
    %7838 = vmatpush1.bf16.msra.mxu0 0
    %7839 = vmatprep.subr.bf16.mxu0 0
    %7840 = vmatpush1.bf16.msra.mxu0 0
    %7841 = vmatprep.subr.bf16.mxu0 0
    %7842 = vmatpush1.bf16.msra.mxu0 0
    %7843 = vmatprep.subr.bf16.mxu0 0
    %7844 = vmatpush1.bf16.msra.mxu0 0
    %7845 = vmatprep.subr.bf16.mxu0 0
    %7846 = vmatpush1.bf16.msra.mxu0 0
    %7847 = vmatprep.subr.bf16.mxu0 0
    %7848 = vmatpush1.bf16.msra.mxu0 0
    %7849 = vmatprep.mubr.bf16.mxu0 0
    %7850 = vmatmul.mubr.bf16.gmra.mrb[0].mxu0 %v7626
    %v7851 = vpop.f32.mrb[0].mxu0
    %v7852 = vadd.f32 0.0, %v7851
    %v7853 = vpop.f32.mrb[0].mxu0
    %v7854 = vpop.f32.mrb[0].mxu0
    %v7855 = vadd.f32 0.0, %v7854
    %v7856 = vpop.f32.mrb[0].mxu0
    %7857 = vmatprep.mubr.bf16.mxu0 0
    %7858 = vmatmul.mubr.bf16.gmra.mrb[0].mxu0 %v7629
    %v7859 = vpop.f32.mrb[0].mxu0
    %v7860 = vadd.f32 0.0, %v7859
    %v7861 = vpop.f32.mrb[0].mxu0
    %v7862 = vpop.f32.mrb[0].mxu0
    %v7863 = vadd.f32 0.0, %v7862
    %v7864 = vpop.f32.mrb[0].mxu0
    %7865 = vmatprep.mubr.bf16.mxu0 0
    %7866 = vmatmul.mubr.bf16.gmra.mrb[0].mxu0 %v7632
    %v7867 = vpop.f32.mrb[0].mxu0
    %v7868 = vadd.f32 0.0, %v7867
    %v7869 = vpop.f32.mrb[0].mxu0
    %v7870 = vpop.f32.mrb[0].mxu0
    %v7871 = vadd.f32 0.0, %v7870
    %v7872 = vpop.f32.mrb[0].mxu0
    %7873 = vmatprep.mubr.bf16.mxu0 0
    %7874 = vmatmul.mubr.bf16.gmra.mrb[0].mxu0 %v7635
    %v7875 = vpop.f32.mrb[0].mxu0
    %v7876 = vadd.f32 0.0, %v7875
    %v7877 = vpop.f32.mrb[0].mxu0
    %v7878 = vpop.f32.mrb[0].mxu0
    %v7879 = vadd.f32 0.0, %v7878
    %v7880 = vpop.f32.mrb[0].mxu0
    %7881 = vmatprep.mubr.bf16.mxu0 0
    %7882 = vmatmul.mubr.bf16.gmra.mrb[0].mxu0 %v7638
    %v7883 = vpop.f32.mrb[0].mxu0
    %v7884 = vadd.f32 0.0, %v7883
    %v7885 = vpop.f32.mrb[0].mxu0
    %v7886 = vpop.f32.mrb[0].mxu0
    %v7887 = vadd.f32 0.0, %v7886
    %v7888 = vpop.f32.mrb[0].mxu0
    %7889 = vmatprep.mubr.bf16.mxu0 0
    %7890 = vmatmul.mubr.bf16.gmra.mrb[0].mxu0 %v7641
    %v7891 = vpop.f32.mrb[0].mxu0
    %v7892 = vadd.f32 0.0, %v7891
    %v7893 = vpop.f32.mrb[0].mxu0
    %v7894 = vpop.f32.mrb[0].mxu0
    %v7895 = vadd.f32 0.0, %v7894
    %v7896 = vpop.f32.mrb[0].mxu0
    %7897 = vmatprep.mubr.bf16.mxu0 0
    %7898 = vmatmul.mubr.bf16.gmra.mrb[0].mxu0 %v7644
    %v7899 = vpop.f32.mrb[0].mxu0
    %v7900 = vadd.f32 0.0, %v7899
    %v7901 = vpop.f32.mrb[0].mxu0
    %v7902 = vpop.f32.mrb[0].mxu0
    %v7903 = vadd.f32 0.0, %v7902
    %v7904 = vpop.f32.mrb[0].mxu0
    %7905 = vmatprep.mubr.bf16.mxu0 0
    %7906 = vmatmul.mubr.bf16.gmra.mrb[0].mxu0 %v7647
    %v7907 = vpop.f32.mrb[0].mxu0
    %v7908 = vadd.f32 0.0, %v7907
    %v7909 = vpop.f32.mrb[0].mxu0
    %v7910 = vpop.f32.mrb[0].mxu0
    %v7911 = vadd.f32 0.0, %v7910
    %v7912 = vpop.f32.mrb[0].mxu0
    %7913 = vmatprep.mubr.bf16.mxu0 0
    %7914 = vmatmul.mubr.bf16.gmra.mrb[0].mxu0 %v7650
    %v7915 = vpop.f32.mrb[0].mxu0
    %v7916 = vadd.f32 0.0, %v7915
    %v7917 = vpop.f32.mrb[0].mxu0
    %v7918 = vpop.f32.mrb[0].mxu0
    %v7919 = vadd.f32 0.0, %v7918
    %v7920 = vpop.f32.mrb[0].mxu0
    %7921 = vmatprep.mubr.bf16.mxu0 0
    %7922 = vmatmul.mubr.bf16.gmra.mrb[0].mxu0 %v7653
    %v7923 = vpop.f32.mrb[0].mxu0
    %v7924 = vadd.f32 0.0, %v7923
    %v7925 = vpop.f32.mrb[0].mxu0
    %v7926 = vpop.f32.mrb[0].mxu0
    %v7927 = vadd.f32 0.0, %v7926
    %v7928 = vpop.f32.mrb[0].mxu0
    %7929 = vmatprep.mubr.bf16.mxu0 0
    %7930 = vmatmul.mubr.bf16.gmra.mrb[0].mxu0 %v7656
    %v7931 = vpop.f32.mrb[0].mxu0
    %v7932 = vadd.f32 0.0, %v7931
    %v7933 = vpop.f32.mrb[0].mxu0
    %v7934 = vpop.f32.mrb[0].mxu0
    %v7935 = vadd.f32 0.0, %v7934
    %v7936 = vpop.f32.mrb[0].mxu0
    %7937 = vmatprep.mubr.bf16.mxu0 0
    %7938 = vmatmul.mubr.bf16.gmra.mrb[0].mxu0 %v7659
    %v7939 = vpop.f32.mrb[0].mxu0
    %v7940 = vadd.f32 0.0, %v7939
    %v7941 = vpop.f32.mrb[0].mxu0
    %v7942 = vpop.f32.mrb[0].mxu0
    %v7943 = vadd.f32 0.0, %v7942
    %v7944 = vpop.f32.mrb[0].mxu0
    %7945 = vmatprep.mubr.bf16.mxu0 0
    %7946 = vmatmul.mubr.bf16.gmra.mrb[0].mxu0 %v7662
    %v7947 = vpop.f32.mrb[0].mxu0
    %v7948 = vadd.f32 0.0, %v7947
    %v7949 = vpop.f32.mrb[0].mxu0
    %v7950 = vpop.f32.mrb[0].mxu0
    %v7951 = vadd.f32 0.0, %v7950
    %v7952 = vpop.f32.mrb[0].mxu0
    %7953 = vmatprep.mubr.bf16.mxu0 0
    %7954 = vmatmul.mubr.bf16.gmra.mrb[0].mxu0 %v7665
    %v7955 = vpop.f32.mrb[0].mxu0
    %v7956 = vadd.f32 0.0, %v7955
    %v7957 = vpop.f32.mrb[0].mxu0
    %v7958 = vpop.f32.mrb[0].mxu0
    %v7959 = vadd.f32 0.0, %v7958
    %v7960 = vpop.f32.mrb[0].mxu0
    %7961 = vmatprep.mubr.bf16.mxu0 0
    %7962 = vmatmul.mubr.bf16.gmra.mrb[0].mxu0 %v7668
    %v7963 = vpop.f32.mrb[0].mxu0
    %v7964 = vadd.f32 0.0, %v7963
    %v7965 = vpop.f32.mrb[0].mxu0
    %v7966 = vpop.f32.mrb[0].mxu0
    %v7967 = vadd.f32 0.0, %v7966
    %v7968 = vpop.f32.mrb[0].mxu0
    %7969 = vmatprep.mubr.bf16.mxu0 0
    %7970 = vmatmul.mubr.bf16.gmra.mrb[0].mxu0 %v7671
    %v7971 = vpop.f32.mrb[0].mxu0
    %v7972 = vadd.f32 0.0, %v7971
    %v7973 = vpop.f32.mrb[0].mxu0
    %v7974 = vpop.f32.mrb[0].mxu0
    %v7975 = vadd.f32 0.0, %v7974
    %v7976 = vpop.f32.mrb[0].mxu0
    %7977 = vmatprep.mubr.bf16.mxu0 0
    %7978 = vmatmul.mubr.bf16.gmra.mrb[0].mxu0 %v7674
    %v7979 = vpop.f32.mrb[0].mxu0
    %v7980 = vadd.f32 0.0, %v7979
    %v7981 = vpop.f32.mrb[0].mxu0
    %v7982 = vpop.f32.mrb[0].mxu0
    %v7983 = vadd.f32 0.0, %v7982
    %v7984 = vpop.f32.mrb[0].mxu0
    %7985 = vmatprep.mubr.bf16.mxu0 0
    %7986 = vmatmul.mubr.bf16.gmra.mrb[0].mxu0 %v7677
    %v7987 = vpop.f32.mrb[0].mxu0
    %v7988 = vadd.f32 0.0, %v7987
    %v7989 = vpop.f32.mrb[0].mxu0
    %v7990 = vpop.f32.mrb[0].mxu0
    %v7991 = vadd.f32 0.0, %v7990
    %v7992 = vpop.f32.mrb[0].mxu0
    %7993 = vmatprep.mubr.bf16.mxu0 0
    %7994 = vmatmul.mubr.bf16.gmra.mrb[0].mxu0 %v7680
    %v7995 = vpop.f32.mrb[0].mxu0
    %v7996 = vadd.f32 0.0, %v7995
    %v7997 = vpop.f32.mrb[0].mxu0
    %v7998 = vpop.f32.mrb[0].mxu0
    %v7999 = vadd.f32 0.0, %v7998
    %v8000 = vpop.f32.mrb[0].mxu0
    %8001 = vmatprep.mubr.bf16.mxu0 0
    %8002 = vmatmul.mubr.bf16.gmra.mrb[0].mxu0 %v7683
    %v8003 = vpop.f32.mrb[0].mxu0
    %v8004 = vadd.f32 0.0, %v8003
    %v8005 = vpop.f32.mrb[0].mxu0
    %v8006 = vpop.f32.mrb[0].mxu0
    %v8007 = vadd.f32 0.0, %v8006
    %v8008 = vpop.f32.mrb[0].mxu0
    %8009 = vmatprep.mubr.bf16.mxu0 0
    %8010 = vmatmul.mubr.bf16.gmra.mrb[0].mxu0 %v7686
    %v8011 = vpop.f32.mrb[0].mxu0
    %v8012 = vadd.f32 0.0, %v8011
    %v8013 = vpop.f32.mrb[0].mxu0
    %v8014 = vpop.f32.mrb[0].mxu0
    %v8015 = vadd.f32 0.0, %v8014
    %v8016 = vpop.f32.mrb[0].mxu0
    %8017 = vmatprep.mubr.bf16.mxu0 0
    %8018 = vmatmul.mubr.bf16.gmra.mrb[0].mxu0 %v7689
    %v8019 = vpop.f32.mrb[0].mxu0
    %v8020 = vadd.f32 0.0, %v8019
    %v8021 = vpop.f32.mrb[0].mxu0
    %v8022 = vpop.f32.mrb[0].mxu0
    %v8023 = vadd.f32 0.0, %v8022
    %v8024 = vpop.f32.mrb[0].mxu0
    %8025 = vmatprep.mubr.bf16.mxu0 0
    %8026 = vmatmul.mubr.bf16.gmra.mrb[0].mxu0 %v7692
    %v8027 = vpop.f32.mrb[0].mxu0
    %v8028 = vadd.f32 0.0, %v8027
    %v8029 = vpop.f32.mrb[0].mxu0
    %v8030 = vpop.f32.mrb[0].mxu0
    %v8031 = vadd.f32 0.0, %v8030
    %v8032 = vpop.f32.mrb[0].mxu0
    %8033 = vmatprep.mubr.bf16.mxu0 0
    %8034 = vmatmul.mubr.bf16.gmra.mrb[0].mxu0 %v7695
    %v8035 = vpop.f32.mrb[0].mxu0
    %v8036 = vadd.f32 0.0, %v8035
    %v8037 = vpop.f32.mrb[0].mxu0
    %v8038 = vpop.f32.mrb[0].mxu0
    %v8039 = vadd.f32 0.0, %v8038
    %v8040 = vpop.f32.mrb[0].mxu0
    %8041 = vmatprep.mubr.bf16.mxu0 0
    %8042 = vmatmul.mubr.bf16.gmra.mrb[0].mxu0 %v7698
    %v8043 = vpop.f32.mrb[0].mxu0
    %v8044 = vadd.f32 0.0, %v8043
    %v8045 = vpop.f32.mrb[0].mxu0
    %v8046 = vpop.f32.mrb[0].mxu0
    %v8047 = vadd.f32 0.0, %v8046
    %v8048 = vpop.f32.mrb[0].mxu0
    %8049 = vmatprep.mubr.bf16.mxu0 0
    %8050 = vmatmul.mubr.bf16.gmra.mrb[0].mxu0 %v7701
    %v8051 = vpop.f32.mrb[0].mxu0
    %v8052 = vadd.f32 0.0, %v8051
    %v8053 = vpop.f32.mrb[0].mxu0
    %v8054 = vpop.f32.mrb[0].mxu0
    %v8055 = vadd.f32 0.0, %v8054
    %v8056 = vpop.f32.mrb[0].mxu0
    %8057 = vmatprep.mubr.bf16.mxu0 0
    %8058 = vmatmul.mubr.bf16.gmra.mrb[0].mxu0 %v7704
    %v8059 = vpop.f32.mrb[0].mxu0
    %v8060 = vadd.f32 0.0, %v8059
    %v8061 = vpop.f32.mrb[0].mxu0
    %v8062 = vpop.f32.mrb[0].mxu0
    %v8063 = vadd.f32 0.0, %v8062
    %v8064 = vpop.f32.mrb[0].mxu0
    %8065 = vmatprep.mubr.bf16.mxu0 0
    %8066 = vmatmul.mubr.bf16.gmra.mrb[0].mxu0 %v7707
    %v8067 = vpop.f32.mrb[0].mxu0
    %v8068 = vadd.f32 0.0, %v8067
    %v8069 = vpop.f32.mrb[0].mxu0
    %v8070 = vpop.f32.mrb[0].mxu0
    %v8071 = vadd.f32 0.0, %v8070
    %v8072 = vpop.f32.mrb[0].mxu0
    %8073 = vmatprep.mubr.bf16.mxu0 0
    %8074 = vmatmul.mubr.bf16.gmra.mrb[0].mxu0 %v7710
    %v8075 = vpop.f32.mrb[0].mxu0
    %v8076 = vadd.f32 0.0, %v8075
    %v8077 = vpop.f32.mrb[0].mxu0
    %v8078 = vpop.f32.mrb[0].mxu0
    %v8079 = vadd.f32 0.0, %v8078
    %v8080 = vpop.f32.mrb[0].mxu0
    %8081 = vmatprep.mubr.bf16.mxu0 0
    %8082 = vmatmul.mubr.bf16.gmra.mrb[0].mxu0 %v7713
    %v8083 = vpop.f32.mrb[0].mxu0
    %v8084 = vadd.f32 0.0, %v8083
    %v8085 = vpop.f32.mrb[0].mxu0
    %v8086 = vpop.f32.mrb[0].mxu0
    %v8087 = vadd.f32 0.0, %v8086
    %v8088 = vpop.f32.mrb[0].mxu0
    %8089 = vmatprep.mubr.bf16.mxu0 0
    %8090 = vmatmul.mubr.bf16.gmra.mrb[0].mxu0 %v7716
    %v8091 = vpop.f32.mrb[0].mxu0
    %v8092 = vadd.f32 0.0, %v8091
    %v8093 = vpop.f32.mrb[0].mxu0
    %v8094 = vpop.f32.mrb[0].mxu0
    %v8095 = vadd.f32 0.0, %v8094
    %v8096 = vpop.f32.mrb[0].mxu0
    %8097 = vmatprep.mubr.bf16.mxu0 0
    %8098 = vmatmul.mubr.bf16.gmra.mrb[0].mxu0 %v7719
    %v8099 = vpop.f32.mrb[0].mxu0
    %v8100 = vadd.f32 0.0, %v8099
    %v8101 = vpop.f32.mrb[0].mxu0
    %v8102 = vpop.f32.mrb[0].mxu0
    %v8103 = vadd.f32 0.0, %v8102
    %v8104 = vpop.f32.mrb[0].mxu0
    %8105 = vmatprep.mubr.bf16.mxu0 0
    %8106 = vmatmul.mubr.bf16.gmra.mrb[0].mxu0 %v7722
    %v8107 = vpop.f32.mrb[0].mxu0
    %v8108 = vadd.f32 0.0, %v8107
    %v8109 = vpop.f32.mrb[0].mxu0
    %v8110 = vpop.f32.mrb[0].mxu0
    %v8111 = vadd.f32 0.0, %v8110
    %v8112 = vpop.f32.mrb[0].mxu0
    %8113 = vmatprep.mubr.bf16.mxu0 0
    %8114 = vmatmul.mubr.bf16.gmra.mrb[0].mxu0 %v7725
    %v8115 = vpop.f32.mrb[0].mxu0
    %v8116 = vadd.f32 0.0, %v8115
    %v8117 = vpop.f32.mrb[0].mxu0
    %v8118 = vpop.f32.mrb[0].mxu0
    %v8119 = vadd.f32 0.0, %v8118
    %v8120 = vpop.f32.mrb[0].mxu0
    %8121 = vmatprep.mubr.bf16.mxu0 0
    %8122 = vmatmul.mubr.bf16.gmra.mrb[0].mxu0 %v7728
    %v8123 = vpop.f32.mrb[0].mxu0
    %v8124 = vadd.f32 0.0, %v8123
    %v8125 = vpop.f32.mrb[0].mxu0
    %v8126 = vpop.f32.mrb[0].mxu0
    %v8127 = vadd.f32 0.0, %v8126
    %v8128 = vpop.f32.mrb[0].mxu0
    %8129 = vmatprep.mubr.bf16.mxu0 0
    %8130 = vmatmul.mubr.bf16.gmra.mrb[0].mxu0 %v7731
    %v8131 = vpop.f32.mrb[0].mxu0
    %v8132 = vadd.f32 0.0, %v8131
    %v8133 = vpop.f32.mrb[0].mxu0
    %v8134 = vpop.f32.mrb[0].mxu0
    %v8135 = vadd.f32 0.0, %v8134
    %v8136 = vpop.f32.mrb[0].mxu0
    %8137 = vmatprep.mubr.bf16.mxu0 0
    %8138 = vmatmul.mubr.bf16.gmra.mrb[0].mxu0 %v7734
    %v8139 = vpop.f32.mrb[0].mxu0
    %v8140 = vadd.f32 0.0, %v8139
    %v8141 = vpop.f32.mrb[0].mxu0
    %v8142 = vpop.f32.mrb[0].mxu0
    %v8143 = vadd.f32 0.0, %v8142
    %v8144 = vpop.f32.mrb[0].mxu0
    %8145 = vmatprep.mubr.bf16.mxu0 0
    %8146 = vmatmul.mubr.bf16.gmra.mrb[0].mxu0 %v7737
    %v8147 = vpop.f32.mrb[0].mxu0
    %v8148 = vadd.f32 0.0, %v8147
    %v8149 = vpop.f32.mrb[0].mxu0
    %v8150 = vpop.f32.mrb[0].mxu0
    %v8151 = vadd.f32 0.0, %v8150
    %v8152 = vpop.f32.mrb[0].mxu0
    %8153 = vmatprep.mubr.bf16.mxu0 0
    %8154 = vmatmul.mubr.bf16.gmra.mrb[0].mxu0 %v7740
    %v8155 = vpop.f32.mrb[0].mxu0
    %v8156 = vadd.f32 0.0, %v8155
    %v8157 = vpop.f32.mrb[0].mxu0
    %v8158 = vpop.f32.mrb[0].mxu0
    %v8159 = vadd.f32 0.0, %v8158
    %v8160 = vpop.f32.mrb[0].mxu0
    %8161 = vmatprep.mubr.bf16.mxu0 0
    %8162 = vmatmul.mubr.bf16.gmra.mrb[0].mxu0 %v7743
    %v8163 = vpop.f32.mrb[0].mxu0
    %v8164 = vadd.f32 0.0, %v8163
    %v8165 = vpop.f32.mrb[0].mxu0
    %v8166 = vpop.f32.mrb[0].mxu0
    %v8167 = vadd.f32 0.0, %v8166
    %v8168 = vpop.f32.mrb[0].mxu0
    %8169 = vmatprep.mubr.bf16.mxu0 0
    %8170 = vmatmul.mubr.bf16.gmra.mrb[0].mxu0 %v7746
    %v8171 = vpop.f32.mrb[0].mxu0
    %v8172 = vadd.f32 0.0, %v8171
    %v8173 = vpop.f32.mrb[0].mxu0
    %v8174 = vpop.f32.mrb[0].mxu0
    %v8175 = vadd.f32 0.0, %v8174
    %v8176 = vpop.f32.mrb[0].mxu0
    %8177 = vmatprep.mubr.bf16.mxu0 0
    %8178 = vmatmul.mubr.bf16.gmra.mrb[0].mxu0 %v7749
    %v8179 = vpop.f32.mrb[0].mxu0
    %v8180 = vadd.f32 0.0, %v8179
    %v8181 = vpop.f32.mrb[0].mxu0
    %v8182 = vpop.f32.mrb[0].mxu0
    %v8183 = vadd.f32 0.0, %v8182
    %v8184 = vpop.f32.mrb[0].mxu0
    %8185 = vmatprep.mubr.bf16.mxu0 0
    %8186 = vmatmul.mubr.bf16.gmra.mrb[0].mxu0 %v7752
    %v8187 = vpop.f32.mrb[0].mxu0
    %v8188 = vadd.f32 0.0, %v8187
    %v8189 = vpop.f32.mrb[0].mxu0
    %v8190 = vpop.f32.mrb[0].mxu0
    %v8191 = vadd.f32 0.0, %v8190
    %v8192 = vpop.f32.mrb[0].mxu0
    %8193 = vmatprep.mubr.bf16.mxu0 0
    %8194 = vmatmul.mubr.bf16.gmra.mrb[0].mxu0 %v7755
    %v8195 = vpop.f32.mrb[0].mxu0
    %v8196 = vadd.f32 0.0, %v8195
    %v8197 = vpop.f32.mrb[0].mxu0
    %v8198 = vpop.f32.mrb[0].mxu0
    %v8199 = vadd.f32 0.0, %v8198
    %v8200 = vpop.f32.mrb[0].mxu0
    %8201 = vmatprep.mubr.bf16.mxu0 0
    %8202 = vmatmul.mubr.bf16.gmra.mrb[0].mxu0 %v7758
    %v8203 = vpop.f32.mrb[0].mxu0
    %v8204 = vadd.f32 0.0, %v8203
    %v8205 = vpop.f32.mrb[0].mxu0
    %v8206 = vpop.f32.mrb[0].mxu0
    %v8207 = vadd.f32 0.0, %v8206
    %v8208 = vpop.f32.mrb[0].mxu0
    %8209 = vmatprep.mubr.bf16.mxu0 0
    %8210 = vmatmul.mubr.bf16.gmra.mrb[0].mxu0 %v7761
    %v8211 = vpop.f32.mrb[0].mxu0
    %v8212 = vadd.f32 0.0, %v8211
    %v8213 = vpop.f32.mrb[0].mxu0
    %v8214 = vpop.f32.mrb[0].mxu0
    %v8215 = vadd.f32 0.0, %v8214
    %v8216 = vpop.f32.mrb[0].mxu0
    %8217 = vmatprep.mubr.bf16.mxu0 0
    %8218 = vmatmul.mubr.bf16.gmra.mrb[0].mxu0 %v7764
    %v8219 = vpop.f32.mrb[0].mxu0
    %v8220 = vadd.f32 0.0, %v8219
    %v8221 = vpop.f32.mrb[0].mxu0
    %v8222 = vpop.f32.mrb[0].mxu0
    %v8223 = vadd.f32 0.0, %v8222
    %v8224 = vpop.f32.mrb[0].mxu0
    %8225 = vmatprep.mubr.bf16.mxu0 0
    %8226 = vmatmul.mubr.bf16.gmra.mrb[0].mxu0 %v7767
    %v8227 = vpop.f32.mrb[0].mxu0
    %v8228 = vadd.f32 0.0, %v8227
    %v8229 = vpop.f32.mrb[0].mxu0
    %v8230 = vpop.f32.mrb[0].mxu0
    %v8231 = vadd.f32 0.0, %v8230
    %v8232 = vpop.f32.mrb[0].mxu0
    %8233 = vmatprep.mubr.bf16.mxu0 0
    %8234 = vmatmul.mubr.bf16.gmra.mrb[0].mxu0 %v7770
    %v8235 = vpop.f32.mrb[0].mxu0
    %v8236 = vadd.f32 0.0, %v8235
    %v8237 = vpop.f32.mrb[0].mxu0
    %v8238 = vpop.f32.mrb[0].mxu0
    %v8239 = vadd.f32 0.0, %v8238
    %v8240 = vpop.f32.mrb[0].mxu0
    %8241 = vmatprep.mubr.bf16.mxu0 0
    %8242 = vmatmul.mubr.bf16.gmra.mrb[0].mxu0 %v7773
    %v8243 = vpop.f32.mrb[0].mxu0
    %v8244 = vadd.f32 0.0, %v8243
    %v8245 = vpop.f32.mrb[0].mxu0
    %v8246 = vpop.f32.mrb[0].mxu0
    %v8247 = vadd.f32 0.0, %v8246
    %v8248 = vpop.f32.mrb[0].mxu0
    %8249 = vmatprep.mubr.bf16.mxu0 0
    %8250 = vmatmul.mubr.bf16.gmra.mrb[0].mxu0 %v7776
    %v8251 = vpop.f32.mrb[0].mxu0
    %v8252 = vadd.f32 0.0, %v8251
    %v8253 = vpop.f32.mrb[0].mxu0
    %v8254 = vpop.f32.mrb[0].mxu0
    %v8255 = vadd.f32 0.0, %v8254
    %v8256 = vpop.f32.mrb[0].mxu0
    %8257 = vmatprep.mubr.bf16.mxu0 0
    %8258 = vmatmul.mubr.bf16.gmra.mrb[0].mxu0 %v7779
    %v8259 = vpop.f32.mrb[0].mxu0
    %v8260 = vadd.f32 0.0, %v8259
    %v8261 = vpop.f32.mrb[0].mxu0
    %v8262 = vpop.f32.mrb[0].mxu0
    %v8263 = vadd.f32 0.0, %v8262
    %v8264 = vpop.f32.mrb[0].mxu0
    %8265 = vmatprep.mubr.bf16.mxu0 0
    %8266 = vmatmul.mubr.bf16.gmra.mrb[0].mxu0 %v7782
    %v8267 = vpop.f32.mrb[0].mxu0
    %v8268 = vadd.f32 0.0, %v8267
    %v8269 = vpop.f32.mrb[0].mxu0
    %v8270 = vpop.f32.mrb[0].mxu0
    %v8271 = vadd.f32 0.0, %v8270
    %v8272 = vpop.f32.mrb[0].mxu0
    %8273 = vmatprep.mubr.bf16.mxu0 0
    %8274 = vmatmul.mubr.bf16.gmra.mrb[0].mxu0 %v7785
    %v8275 = vpop.f32.mrb[0].mxu0
    %v8276 = vadd.f32 0.0, %v8275
    %v8277 = vpop.f32.mrb[0].mxu0
    %v8278 = vpop.f32.mrb[0].mxu0
    %v8279 = vadd.f32 0.0, %v8278
    %v8280 = vpop.f32.mrb[0].mxu0
    %8281 = vmatprep.mubr.bf16.mxu0 0
    %8282 = vmatmul.mubr.bf16.gmra.mrb[0].mxu0 %v7788
    %v8283 = vpop.f32.mrb[0].mxu0
    %v8284 = vadd.f32 0.0, %v8283
    %v8285 = vpop.f32.mrb[0].mxu0
    %v8286 = vpop.f32.mrb[0].mxu0
    %v8287 = vadd.f32 0.0, %v8286
    %v8288 = vpop.f32.mrb[0].mxu0
    %8289 = vmatprep.mubr.bf16.mxu0 0
    %8290 = vmatmul.mubr.bf16.gmra.mrb[0].mxu0 %v7791
    %v8291 = vpop.f32.mrb[0].mxu0
    %v8292 = vadd.f32 0.0, %v8291
    %v8293 = vpop.f32.mrb[0].mxu0
    %v8294 = vpop.f32.mrb[0].mxu0
    %v8295 = vadd.f32 0.0, %v8294
    %v8296 = vpop.f32.mrb[0].mxu0
    %8297 = vmatprep.mubr.bf16.mxu0 0
    %8298 = vmatmul.mubr.bf16.gmra.mrb[0].mxu0 %v7794
    %v8299 = vpop.f32.mrb[0].mxu0
    %v8300 = vadd.f32 0.0, %v8299
    %v8301 = vpop.f32.mrb[0].mxu0
    %v8302 = vpop.f32.mrb[0].mxu0
    %v8303 = vadd.f32 0.0, %v8302
    %v8304 = vpop.f32.mrb[0].mxu0
    %8305 = vmatprep.mubr.bf16.mxu0 0
    %8306 = vmatmul.mubr.bf16.gmra.mrb[0].mxu0 %v7797
    %v8307 = vpop.f32.mrb[0].mxu0
    %v8308 = vadd.f32 0.0, %v8307
    %v8309 = vpop.f32.mrb[0].mxu0
    %v8310 = vpop.f32.mrb[0].mxu0
    %v8311 = vadd.f32 0.0, %v8310
    %v8312 = vpop.f32.mrb[0].mxu0
    %8313 = vmatprep.mubr.bf16.mxu0 0
    %8314 = vmatmul.mubr.bf16.gmra.mrb[0].mxu0 %v7800
    %v8315 = vpop.f32.mrb[0].mxu0
    %v8316 = vadd.f32 0.0, %v8315
    %v8317 = vpop.f32.mrb[0].mxu0
    %v8318 = vpop.f32.mrb[0].mxu0
    %v8319 = vadd.f32 0.0, %v8318
    %v8320 = vpop.f32.mrb[0].mxu0
    %8321 = vmatprep.mubr.bf16.mxu0 0
    %8322 = vmatmul.mubr.bf16.gmra.mrb[0].mxu0 %v7803
    %v8323 = vpop.f32.mrb[0].mxu0
    %v8324 = vadd.f32 0.0, %v8323
    %v8325 = vpop.f32.mrb[0].mxu0
    %v8326 = vpop.f32.mrb[0].mxu0
    %v8327 = vadd.f32 0.0, %v8326
    %v8328 = vpop.f32.mrb[0].mxu0
    %8329 = vmatprep.mubr.bf16.mxu0 0
    %8330 = vmatmul.mubr.bf16.gmra.mrb[0].mxu0 %v7806
    %v8331 = vpop.f32.mrb[0].mxu0
    %v8332 = vadd.f32 0.0, %v8331
    %v8333 = vpop.f32.mrb[0].mxu0
    %v8334 = vpop.f32.mrb[0].mxu0
    %v8335 = vadd.f32 0.0, %v8334
    %v8336 = vpop.f32.mrb[0].mxu0
    %8337 = vmatprep.mubr.bf16.mxu0 0
    %8338 = vmatmul.mubr.bf16.gmra.mrb[0].mxu0 %v7809
    %v8339 = vpop.f32.mrb[0].mxu0
    %v8340 = vadd.f32 0.0, %v8339
    %v8341 = vpop.f32.mrb[0].mxu0
    %v8342 = vpop.f32.mrb[0].mxu0
    %v8343 = vadd.f32 0.0, %v8342
    %v8344 = vpop.f32.mrb[0].mxu0
    %8345 = vmatprep.mubr.bf16.mxu0 0
    %8346 = vmatmul.mubr.bf16.gmra.mrb[0].mxu0 %v7812
    %v8347 = vpop.f32.mrb[0].mxu0
    %v8348 = vadd.f32 0.0, %v8347
    %v8349 = vpop.f32.mrb[0].mxu0
    %v8350 = vpop.f32.mrb[0].mxu0
    %v8351 = vadd.f32 0.0, %v8350
    %v8352 = vpop.f32.mrb[0].mxu0
    %8353 = vmatprep.mubr.bf16.mxu0 0
    %8354 = vmatmul.mubr.bf16.gmra.mrb[0].mxu0 %v7815
    %v8355 = vpop.f32.mrb[0].mxu0
    %v8356 = vadd.f32 0.0, %v8355
    %v8357 = vpop.f32.mrb[0].mxu0
    %v8358 = vpop.f32.mrb[0].mxu0
    %v8359 = vadd.f32 0.0, %v8358
    %v8360 = vpop.f32.mrb[0].mxu0
    %8361 = vdwg.mxu0
    %v8362 = vadd.f32 %v1113, %v7852
    %v8363 = vadd.f32 %v1117, %v7855
    %v8364 = vadd.f32 %v1123, %v7860
    %v8365 = vadd.f32 %v1127, %v7863
    %v8366 = vadd.f32 %v1133, %v7868
    %v8367 = vadd.f32 %v1137, %v7871
    %v8368 = vadd.f32 %v1143, %v7876
    %v8369 = vadd.f32 %v1147, %v7879
    %v8370 = vadd.f32 %v1153, %v7884
    %v8371 = vadd.f32 %v1157, %v7887
    %v8372 = vadd.f32 %v1163, %v7892
    %v8373 = vadd.f32 %v1167, %v7895
    %v8374 = vadd.f32 %v1173, %v7900
    %v8375 = vadd.f32 %v1177, %v7903
    %v8376 = vadd.f32 %v1183, %v7908
    %v8377 = vadd.f32 %v1187, %v7911
    %v8378 = vadd.f32 %v1193, %v7916
    %v8379 = vadd.f32 %v1197, %v7919
    %v8380 = vadd.f32 %v1203, %v7924
    %v8381 = vadd.f32 %v1207, %v7927
    %v8382 = vadd.f32 %v1213, %v7932
    %v8383 = vadd.f32 %v1217, %v7935
    %v8384 = vadd.f32 %v1223, %v7940
    %v8385 = vadd.f32 %v1227, %v7943
    %v8386 = vadd.f32 %v1233, %v7948
    %v8387 = vadd.f32 %v1237, %v7951
    %v8388 = vadd.f32 %v1243, %v7956
    %v8389 = vadd.f32 %v1247, %v7959
    %v8390 = vadd.f32 %v1253, %v7964
    %v8391 = vadd.f32 %v1257, %v7967
    %v8392 = vadd.f32 %v1263, %v7972
    %v8393 = vadd.f32 %v1267, %v7975
    %v8394 = vadd.f32 %v1273, %v7980
    %v8395 = vadd.f32 %v1277, %v7983
    %v8396 = vadd.f32 %v1283, %v7988
    %v8397 = vadd.f32 %v1287, %v7991
    %v8398 = vadd.f32 %v1293, %v7996
    %v8399 = vadd.f32 %v1297, %v7999
    %v8400 = vadd.f32 %v1303, %v8004
    %v8401 = vadd.f32 %v1307, %v8007
    %v8402 = vadd.f32 %v1313, %v8012
    %v8403 = vadd.f32 %v1317, %v8015
    %v8404 = vadd.f32 %v1323, %v8020
    %v8405 = vadd.f32 %v1327, %v8023
    %v8406 = vadd.f32 %v1333, %v8028
    %v8407 = vadd.f32 %v1337, %v8031
    %v8408 = vadd.f32 %v1343, %v8036
    %v8409 = vadd.f32 %v1347, %v8039
    %v8410 = vadd.f32 %v1353, %v8044
    %v8411 = vadd.f32 %v1357, %v8047
    %v8412 = vadd.f32 %v1363, %v8052
    %v8413 = vadd.f32 %v1367, %v8055
    %v8414 = vadd.f32 %v1373, %v8060
    %v8415 = vadd.f32 %v1377, %v8063
    %v8416 = vadd.f32 %v1383, %v8068
    %v8417 = vadd.f32 %v1387, %v8071
    %v8418 = vadd.f32 %v1393, %v8076
    %v8419 = vadd.f32 %v1397, %v8079
    %v8420 = vadd.f32 %v1403, %v8084
    %v8421 = vadd.f32 %v1407, %v8087
    %v8422 = vadd.f32 %v1413, %v8092
    %v8423 = vadd.f32 %v1417, %v8095
    %v8424 = vadd.f32 %v1423, %v8100
    %v8425 = vadd.f32 %v1427, %v8103
    %v8426 = vadd.f32 %v1433, %v8108
    %v8427 = vadd.f32 %v1437, %v8111
    %v8428 = vadd.f32 %v1443, %v8116
    %v8429 = vadd.f32 %v1447, %v8119
    %v8430 = vadd.f32 %v1453, %v8124
    %v8431 = vadd.f32 %v1457, %v8127
    %v8432 = vadd.f32 %v1463, %v8132
    %v8433 = vadd.f32 %v1467, %v8135
    %v8434 = vadd.f32 %v1473, %v8140
    %v8435 = vadd.f32 %v1477, %v8143
    %v8436 = vadd.f32 %v1483, %v8148
    %v8437 = vadd.f32 %v1487, %v8151
    %v8438 = vadd.f32 %v1493, %v8156
    %v8439 = vadd.f32 %v1497, %v8159
    %v8440 = vadd.f32 %v1503, %v8164
    %v8441 = vadd.f32 %v1507, %v8167
    %v8442 = vadd.f32 %v1513, %v8172
    %v8443 = vadd.f32 %v1517, %v8175
    %v8444 = vadd.f32 %v1523, %v8180
    %v8445 = vadd.f32 %v1527, %v8183
    %v8446 = vadd.f32 %v1533, %v8188
    %v8447 = vadd.f32 %v1537, %v8191
    %v8448 = vadd.f32 %v1543, %v8196
    %v8449 = vadd.f32 %v1547, %v8199
    %v8450 = vadd.f32 %v1553, %v8204
    %v8451 = vadd.f32 %v1557, %v8207
    %v8452 = vadd.f32 %v1563, %v8212
    %v8453 = vadd.f32 %v1567, %v8215
    %v8454 = vadd.f32 %v1573, %v8220
    %v8455 = vadd.f32 %v1577, %v8223
    %v8456 = vadd.f32 %v1583, %v8228
    %v8457 = vadd.f32 %v1587, %v8231
    %v8458 = vadd.f32 %v1593, %v8236
    %v8459 = vadd.f32 %v1597, %v8239
    %v8460 = vadd.f32 %v1603, %v8244
    %v8461 = vadd.f32 %v1607, %v8247
    %v8462 = vadd.f32 %v1613, %v8252
    %v8463 = vadd.f32 %v1617, %v8255
    %v8464 = vadd.f32 %v1623, %v8260
    %v8465 = vadd.f32 %v1627, %v8263
    %v8466 = vadd.f32 %v1633, %v8268
    %v8467 = vadd.f32 %v1637, %v8271
    %v8468 = vadd.f32 %v1643, %v8276
    %v8469 = vadd.f32 %v1647, %v8279
    %v8470 = vadd.f32 %v1653, %v8284
    %v8471 = vadd.f32 %v1657, %v8287
    %v8472 = vadd.f32 %v1663, %v8292
    %v8473 = vadd.f32 %v1667, %v8295
    %v8474 = vadd.f32 %v1673, %v8300
    %v8475 = vadd.f32 %v1677, %v8303
    %v8476 = vadd.f32 %v1683, %v8308
    %v8477 = vadd.f32 %v1687, %v8311
    %v8478 = vadd.f32 %v1693, %v8316
    %v8479 = vadd.f32 %v1697, %v8319
    %v8480 = vadd.f32 %v1703, %v8324
    %v8481 = vadd.f32 %v1707, %v8327
    %v8482 = vadd.f32 %v1713, %v8332
    %v8483 = vadd.f32 %v1717, %v8335
    %v8484 = vadd.f32 %v1723, %v8340
    %v8485 = vadd.f32 %v1727, %v8343
    %v8486 = vadd.f32 %v1733, %v8348
    %v8487 = vadd.f32 %v1737, %v8351
    %v8488 = vadd.f32 %v1743, %v8356
    %v8489 = vadd.f32 %v1747, %v8359
    %v8490 = vxor.u32 %v8362, 2147483648
    %v8491 = vxor.u32 %v8363, 2147483648
    %v8492 = vxor.u32 %v8364, 2147483648
    %v8493 = vxor.u32 %v8365, 2147483648
    %v8494 = vxor.u32 %v8366, 2147483648
    %v8495 = vxor.u32 %v8367, 2147483648
    %v8496 = vxor.u32 %v8368, 2147483648
    %v8497 = vxor.u32 %v8369, 2147483648
    %v8498 = vxor.u32 %v8370, 2147483648
    %v8499 = vxor.u32 %v8371, 2147483648
    %v8500 = vxor.u32 %v8372, 2147483648
    %v8501 = vxor.u32 %v8373, 2147483648
    %v8502 = vxor.u32 %v8374, 2147483648
    %v8503 = vxor.u32 %v8375, 2147483648
    %v8504 = vxor.u32 %v8376, 2147483648
    %v8505 = vxor.u32 %v8377, 2147483648
    %v8506 = vxor.u32 %v8378, 2147483648
    %v8507 = vxor.u32 %v8379, 2147483648
    %v8508 = vxor.u32 %v8380, 2147483648
    %v8509 = vxor.u32 %v8381, 2147483648
    %v8510 = vxor.u32 %v8382, 2147483648
    %v8511 = vxor.u32 %v8383, 2147483648
    %v8512 = vxor.u32 %v8384, 2147483648
    %v8513 = vxor.u32 %v8385, 2147483648
    %v8514 = vxor.u32 %v8386, 2147483648
    %v8515 = vxor.u32 %v8387, 2147483648
    %v8516 = vxor.u32 %v8388, 2147483648
    %v8517 = vxor.u32 %v8389, 2147483648
    %v8518 = vxor.u32 %v8390, 2147483648
    %v8519 = vxor.u32 %v8391, 2147483648
    %v8520 = vxor.u32 %v8392, 2147483648
    %v8521 = vxor.u32 %v8393, 2147483648
    %v8522 = vxor.u32 %v8394, 2147483648
    %v8523 = vxor.u32 %v8395, 2147483648
    %v8524 = vxor.u32 %v8396, 2147483648
    %v8525 = vxor.u32 %v8397, 2147483648
    %v8526 = vxor.u32 %v8398, 2147483648
    %v8527 = vxor.u32 %v8399, 2147483648
    %v8528 = vxor.u32 %v8400, 2147483648
    %v8529 = vxor.u32 %v8401, 2147483648
    %v8530 = vxor.u32 %v8402, 2147483648
    %v8531 = vxor.u32 %v8403, 2147483648
    %v8532 = vxor.u32 %v8404, 2147483648
    %v8533 = vxor.u32 %v8405, 2147483648
    %v8534 = vxor.u32 %v8406, 2147483648
    %v8535 = vxor.u32 %v8407, 2147483648
    %v8536 = vxor.u32 %v8408, 2147483648
    %v8537 = vxor.u32 %v8409, 2147483648
    %v8538 = vxor.u32 %v8410, 2147483648
    %v8539 = vxor.u32 %v8411, 2147483648
    %v8540 = vxor.u32 %v8412, 2147483648
    %v8541 = vxor.u32 %v8413, 2147483648
    %v8542 = vxor.u32 %v8414, 2147483648
    %v8543 = vxor.u32 %v8415, 2147483648
    %v8544 = vxor.u32 %v8416, 2147483648
    %v8545 = vxor.u32 %v8417, 2147483648
    %v8546 = vxor.u32 %v8418, 2147483648
    %v8547 = vxor.u32 %v8419, 2147483648
    %v8548 = vxor.u32 %v8420, 2147483648
    %v8549 = vxor.u32 %v8421, 2147483648
    %v8550 = vxor.u32 %v8422, 2147483648
    %v8551 = vxor.u32 %v8423, 2147483648
    %v8552 = vxor.u32 %v8424, 2147483648
    %v8553 = vxor.u32 %v8425, 2147483648
    %v8554 = vxor.u32 %v8426, 2147483648
    %v8555 = vxor.u32 %v8427, 2147483648
    %v8556 = vxor.u32 %v8428, 2147483648
    %v8557 = vxor.u32 %v8429, 2147483648
    %v8558 = vxor.u32 %v8430, 2147483648
    %v8559 = vxor.u32 %v8431, 2147483648
    %v8560 = vxor.u32 %v8432, 2147483648
    %v8561 = vxor.u32 %v8433, 2147483648
    %v8562 = vxor.u32 %v8434, 2147483648
    %v8563 = vxor.u32 %v8435, 2147483648
    %v8564 = vxor.u32 %v8436, 2147483648
    %v8565 = vxor.u32 %v8437, 2147483648
    %v8566 = vxor.u32 %v8438, 2147483648
    %v8567 = vxor.u32 %v8439, 2147483648
    %v8568 = vxor.u32 %v8440, 2147483648
    %v8569 = vxor.u32 %v8441, 2147483648
    %v8570 = vxor.u32 %v8442, 2147483648
    %v8571 = vxor.u32 %v8443, 2147483648
    %v8572 = vxor.u32 %v8444, 2147483648
    %v8573 = vxor.u32 %v8445, 2147483648
    %v8574 = vxor.u32 %v8446, 2147483648
    %v8575 = vxor.u32 %v8447, 2147483648
    %v8576 = vxor.u32 %v8448, 2147483648
    %v8577 = vxor.u32 %v8449, 2147483648
    %v8578 = vxor.u32 %v8450, 2147483648
    %v8579 = vxor.u32 %v8451, 2147483648
    %v8580 = vxor.u32 %v8452, 2147483648
    %v8581 = vxor.u32 %v8453, 2147483648
    %v8582 = vxor.u32 %v8454, 2147483648
    %v8583 = vxor.u32 %v8455, 2147483648
    %v8584 = vxor.u32 %v8456, 2147483648
    %v8585 = vxor.u32 %v8457, 2147483648
    %v8586 = vxor.u32 %v8458, 2147483648
    %v8587 = vxor.u32 %v8459, 2147483648
    %v8588 = vxor.u32 %v8460, 2147483648
    %v8589 = vxor.u32 %v8461, 2147483648
    %v8590 = vxor.u32 %v8462, 2147483648
    %v8591 = vxor.u32 %v8463, 2147483648
    %v8592 = vxor.u32 %v8464, 2147483648
    %v8593 = vxor.u32 %v8465, 2147483648
    %v8594 = vxor.u32 %v8466, 2147483648
    %v8595 = vxor.u32 %v8467, 2147483648
    %v8596 = vxor.u32 %v8468, 2147483648
    %v8597 = vxor.u32 %v8469, 2147483648
    %v8598 = vxor.u32 %v8470, 2147483648
    %v8599 = vxor.u32 %v8471, 2147483648
    %v8600 = vxor.u32 %v8472, 2147483648
    %v8601 = vxor.u32 %v8473, 2147483648
    %v8602 = vxor.u32 %v8474, 2147483648
    %v8603 = vxor.u32 %v8475, 2147483648
    %v8604 = vxor.u32 %v8476, 2147483648
    %v8605 = vxor.u32 %v8477, 2147483648
    %v8606 = vxor.u32 %v8478, 2147483648
    %v8607 = vxor.u32 %v8479, 2147483648
    %v8608 = vxor.u32 %v8480, 2147483648
    %v8609 = vxor.u32 %v8481, 2147483648
    %v8610 = vxor.u32 %v8482, 2147483648
    %v8611 = vxor.u32 %v8483, 2147483648
    %v8612 = vxor.u32 %v8484, 2147483648
    %v8613 = vxor.u32 %v8485, 2147483648
    %v8614 = vxor.u32 %v8486, 2147483648
    %v8615 = vxor.u32 %v8487, 2147483648
    %v8616 = vxor.u32 %v8488, 2147483648
    %v8617 = vxor.u32 %v8489, 2147483648
    %v8618 = vmul.f32 %v8490, 1.442695
    %v8619 = vpow.pop %v8618
    %v8620 = vmul.f32 %v8491, 1.442695
    %v8621 = vpow.pop %v8620
    %v8622 = vmul.f32 %v8492, 1.442695
    %v8623 = vpow.pop %v8622
    %v8624 = vmul.f32 %v8493, 1.442695
    %v8625 = vpow.pop %v8624
    %v8626 = vmul.f32 %v8494, 1.442695
    %v8627 = vpow.pop %v8626
    %v8628 = vmul.f32 %v8495, 1.442695
    %v8629 = vpow.pop %v8628
    %v8630 = vmul.f32 %v8496, 1.442695
    %v8631 = vpow.pop %v8630
    %v8632 = vmul.f32 %v8497, 1.442695
    %v8633 = vpow.pop %v8632
    %v8634 = vmul.f32 %v8498, 1.442695
    %v8635 = vpow.pop %v8634
    %v8636 = vmul.f32 %v8499, 1.442695
    %v8637 = vpow.pop %v8636
    %v8638 = vmul.f32 %v8500, 1.442695
    %v8639 = vpow.pop %v8638
    %v8640 = vmul.f32 %v8501, 1.442695
    %v8641 = vpow.pop %v8640
    %v8642 = vmul.f32 %v8502, 1.442695
    %v8643 = vpow.pop %v8642
    %v8644 = vmul.f32 %v8503, 1.442695
    %v8645 = vpow.pop %v8644
    %v8646 = vmul.f32 %v8504, 1.442695
    %v8647 = vpow.pop %v8646
    %v8648 = vmul.f32 %v8505, 1.442695
    %v8649 = vpow.pop %v8648
    %v8650 = vmul.f32 %v8506, 1.442695
    %v8651 = vpow.pop %v8650
    %v8652 = vmul.f32 %v8507, 1.442695
    %v8653 = vpow.pop %v8652
    %v8654 = vmul.f32 %v8508, 1.442695
    %v8655 = vpow.pop %v8654
    %v8656 = vmul.f32 %v8509, 1.442695
    %v8657 = vpow.pop %v8656
    %v8658 = vmul.f32 %v8510, 1.442695
    %v8659 = vpow.pop %v8658
    %v8660 = vmul.f32 %v8511, 1.442695
    %v8661 = vpow.pop %v8660
    %v8662 = vmul.f32 %v8512, 1.442695
    %v8663 = vpow.pop %v8662
    %v8664 = vmul.f32 %v8513, 1.442695
    %v8665 = vpow.pop %v8664
    %v8666 = vmul.f32 %v8514, 1.442695
    %v8667 = vpow.pop %v8666
    %v8668 = vmul.f32 %v8515, 1.442695
    %v8669 = vpow.pop %v8668
    %v8670 = vmul.f32 %v8516, 1.442695
    %v8671 = vpow.pop %v8670
    %v8672 = vmul.f32 %v8517, 1.442695
    %v8673 = vpow.pop %v8672
    %v8674 = vmul.f32 %v8518, 1.442695
    %v8675 = vpow.pop %v8674
    %v8676 = vmul.f32 %v8519, 1.442695
    %v8677 = vpow.pop %v8676
    %v8678 = vmul.f32 %v8520, 1.442695
    %v8679 = vpow.pop %v8678
    %v8680 = vmul.f32 %v8521, 1.442695
    %v8681 = vpow.pop %v8680
    %v8682 = vmul.f32 %v8522, 1.442695
    %v8683 = vpow.pop %v8682
    %v8684 = vmul.f32 %v8523, 1.442695
    %v8685 = vpow.pop %v8684
    %v8686 = vmul.f32 %v8524, 1.442695
    %v8687 = vpow.pop %v8686
    %v8688 = vmul.f32 %v8525, 1.442695
    %v8689 = vpow.pop %v8688
    %v8690 = vmul.f32 %v8526, 1.442695
    %v8691 = vpow.pop %v8690
    %v8692 = vmul.f32 %v8527, 1.442695
    %v8693 = vpow.pop %v8692
    %v8694 = vmul.f32 %v8528, 1.442695
    %v8695 = vpow.pop %v8694
    %v8696 = vmul.f32 %v8529, 1.442695
    %v8697 = vpow.pop %v8696
    %v8698 = vmul.f32 %v8530, 1.442695
    %v8699 = vpow.pop %v8698
    %v8700 = vmul.f32 %v8531, 1.442695
    %v8701 = vpow.pop %v8700
    %v8702 = vmul.f32 %v8532, 1.442695
    %v8703 = vpow.pop %v8702
    %v8704 = vmul.f32 %v8533, 1.442695
    %v8705 = vpow.pop %v8704
    %v8706 = vmul.f32 %v8534, 1.442695
    %v8707 = vpow.pop %v8706
    %v8708 = vmul.f32 %v8535, 1.442695
    %v8709 = vpow.pop %v8708
    %v8710 = vmul.f32 %v8536, 1.442695
    %v8711 = vpow.pop %v8710
    %v8712 = vmul.f32 %v8537, 1.442695
    %v8713 = vpow.pop %v8712
    %v8714 = vmul.f32 %v8538, 1.442695
    %v8715 = vpow.pop %v8714
    %v8716 = vmul.f32 %v8539, 1.442695
    %v8717 = vpow.pop %v8716
    %v8718 = vmul.f32 %v8540, 1.442695
    %v8719 = vpow.pop %v8718
    %v8720 = vmul.f32 %v8541, 1.442695
    %v8721 = vpow.pop %v8720
    %v8722 = vmul.f32 %v8542, 1.442695
    %v8723 = vpow.pop %v8722
    %v8724 = vmul.f32 %v8543, 1.442695
    %v8725 = vpow.pop %v8724
    %v8726 = vmul.f32 %v8544, 1.442695
    %v8727 = vpow.pop %v8726
    %v8728 = vmul.f32 %v8545, 1.442695
    %v8729 = vpow.pop %v8728
    %v8730 = vmul.f32 %v8546, 1.442695
    %v8731 = vpow.pop %v8730
    %v8732 = vmul.f32 %v8547, 1.442695
    %v8733 = vpow.pop %v8732
    %v8734 = vmul.f32 %v8548, 1.442695
    %v8735 = vpow.pop %v8734
    %v8736 = vmul.f32 %v8549, 1.442695
    %v8737 = vpow.pop %v8736
    %v8738 = vmul.f32 %v8550, 1.442695
    %v8739 = vpow.pop %v8738
    %v8740 = vmul.f32 %v8551, 1.442695
    %v8741 = vpow.pop %v8740
    %v8742 = vmul.f32 %v8552, 1.442695
    %v8743 = vpow.pop %v8742
    %v8744 = vmul.f32 %v8553, 1.442695
    %v8745 = vpow.pop %v8744
    %v8746 = vmul.f32 %v8554, 1.442695
    %v8747 = vpow.pop %v8746
    %v8748 = vmul.f32 %v8555, 1.442695
    %v8749 = vpow.pop %v8748
    %v8750 = vmul.f32 %v8556, 1.442695
    %v8751 = vpow.pop %v8750
    %v8752 = vmul.f32 %v8557, 1.442695
    %v8753 = vpow.pop %v8752
    %v8754 = vmul.f32 %v8558, 1.442695
    %v8755 = vpow.pop %v8754
    %v8756 = vmul.f32 %v8559, 1.442695
    %v8757 = vpow.pop %v8756
    %v8758 = vmul.f32 %v8560, 1.442695
    %v8759 = vpow.pop %v8758
    %v8760 = vmul.f32 %v8561, 1.442695
    %v8761 = vpow.pop %v8760
    %v8762 = vmul.f32 %v8562, 1.442695
    %v8763 = vpow.pop %v8762
    %v8764 = vmul.f32 %v8563, 1.442695
    %v8765 = vpow.pop %v8764
    %v8766 = vmul.f32 %v8564, 1.442695
    %v8767 = vpow.pop %v8766
    %v8768 = vmul.f32 %v8565, 1.442695
    %v8769 = vpow.pop %v8768
    %v8770 = vmul.f32 %v8566, 1.442695
    %v8771 = vpow.pop %v8770
    %v8772 = vmul.f32 %v8567, 1.442695
    %v8773 = vpow.pop %v8772
    %v8774 = vmul.f32 %v8568, 1.442695
    %v8775 = vpow.pop %v8774
    %v8776 = vmul.f32 %v8569, 1.442695
    %v8777 = vpow.pop %v8776
    %v8778 = vmul.f32 %v8570, 1.442695
    %v8779 = vpow.pop %v8778
    %v8780 = vmul.f32 %v8571, 1.442695
    %v8781 = vpow.pop %v8780
    %v8782 = vmul.f32 %v8572, 1.442695
    %v8783 = vpow.pop %v8782
    %v8784 = vmul.f32 %v8573, 1.442695
    %v8785 = vpow.pop %v8784
    %v8786 = vmul.f32 %v8574, 1.442695
    %v8787 = vpow.pop %v8786
    %v8788 = vmul.f32 %v8575, 1.442695
    %v8789 = vpow.pop %v8788
    %v8790 = vmul.f32 %v8576, 1.442695
    %v8791 = vpow.pop %v8790
    %v8792 = vmul.f32 %v8577, 1.442695
    %v8793 = vpow.pop %v8792
    %v8794 = vmul.f32 %v8578, 1.442695
    %v8795 = vpow.pop %v8794
    %v8796 = vmul.f32 %v8579, 1.442695
    %v8797 = vpow.pop %v8796
    %v8798 = vmul.f32 %v8580, 1.442695
    %v8799 = vpow.pop %v8798
    %v8800 = vmul.f32 %v8581, 1.442695
    %v8801 = vpow.pop %v8800
    %v8802 = vmul.f32 %v8582, 1.442695
    %v8803 = vpow.pop %v8802
    %v8804 = vmul.f32 %v8583, 1.442695
    %v8805 = vpow.pop %v8804
    %v8806 = vmul.f32 %v8584, 1.442695
    %v8807 = vpow.pop %v8806
    %v8808 = vmul.f32 %v8585, 1.442695
    %v8809 = vpow.pop %v8808
    %v8810 = vmul.f32 %v8586, 1.442695
    %v8811 = vpow.pop %v8810
    %v8812 = vmul.f32 %v8587, 1.442695
    %v8813 = vpow.pop %v8812
    %v8814 = vmul.f32 %v8588, 1.442695
    %v8815 = vpow.pop %v8814
    %v8816 = vmul.f32 %v8589, 1.442695
    %v8817 = vpow.pop %v8816
    %v8818 = vmul.f32 %v8590, 1.442695
    %v8819 = vpow.pop %v8818
    %v8820 = vmul.f32 %v8591, 1.442695
    %v8821 = vpow.pop %v8820
    %v8822 = vmul.f32 %v8592, 1.442695
    %v8823 = vpow.pop %v8822
    %v8824 = vmul.f32 %v8593, 1.442695
    %v8825 = vpow.pop %v8824
    %v8826 = vmul.f32 %v8594, 1.442695
    %v8827 = vpow.pop %v8826
    %v8828 = vmul.f32 %v8595, 1.442695
    %v8829 = vpow.pop %v8828
    %v8830 = vmul.f32 %v8596, 1.442695
    %v8831 = vpow.pop %v8830
    %v8832 = vmul.f32 %v8597, 1.442695
    %v8833 = vpow.pop %v8832
    %v8834 = vmul.f32 %v8598, 1.442695
    %v8835 = vpow.pop %v8834
    %v8836 = vmul.f32 %v8599, 1.442695
    %v8837 = vpow.pop %v8836
    %v8838 = vmul.f32 %v8600, 1.442695
    %v8839 = vpow.pop %v8838
    %v8840 = vmul.f32 %v8601, 1.442695
    %v8841 = vpow.pop %v8840
    %v8842 = vmul.f32 %v8602, 1.442695
    %v8843 = vpow.pop %v8842
    %v8844 = vmul.f32 %v8603, 1.442695
    %v8845 = vpow.pop %v8844
    %v8846 = vmul.f32 %v8604, 1.442695
    %v8847 = vpow.pop %v8846
    %v8848 = vmul.f32 %v8605, 1.442695
    %v8849 = vpow.pop %v8848
    %v8850 = vmul.f32 %v8606, 1.442695
    %v8851 = vpow.pop %v8850
    %v8852 = vmul.f32 %v8607, 1.442695
    %v8853 = vpow.pop %v8852
    %v8854 = vmul.f32 %v8608, 1.442695
    %v8855 = vpow.pop %v8854
    %v8856 = vmul.f32 %v8609, 1.442695
    %v8857 = vpow.pop %v8856
    %v8858 = vmul.f32 %v8610, 1.442695
    %v8859 = vpow.pop %v8858
    %v8860 = vmul.f32 %v8611, 1.442695
    %v8861 = vpow.pop %v8860
    %v8862 = vmul.f32 %v8612, 1.442695
    %v8863 = vpow.pop %v8862
    %v8864 = vmul.f32 %v8613, 1.442695
    %v8865 = vpow.pop %v8864
    %v8866 = vmul.f32 %v8614, 1.442695
    %v8867 = vpow.pop %v8866
    %v8868 = vmul.f32 %v8615, 1.442695
    %v8869 = vpow.pop %v8868
    %v8870 = vmul.f32 %v8616, 1.442695
    %v8871 = vpow.pop %v8870
    %v8872 = vmul.f32 %v8617, 1.442695
    %v8873 = vpow.pop %v8872
    %v8874 = vadd.f32 %v8619, 1.0
    %v8875 = vadd.f32 %v8621, 1.0
    %v8876 = vadd.f32 %v8623, 1.0
    %v8877 = vadd.f32 %v8625, 1.0
    %v8878 = vadd.f32 %v8627, 1.0
    %v8879 = vadd.f32 %v8629, 1.0
    %v8880 = vadd.f32 %v8631, 1.0
    %v8881 = vadd.f32 %v8633, 1.0
    %v8882 = vadd.f32 %v8635, 1.0
    %v8883 = vadd.f32 %v8637, 1.0
    %v8884 = vadd.f32 %v8639, 1.0
    %v8885 = vadd.f32 %v8641, 1.0
    %v8886 = vadd.f32 %v8643, 1.0
    %v8887 = vadd.f32 %v8645, 1.0
    %v8888 = vadd.f32 %v8647, 1.0
    %v8889 = vadd.f32 %v8649, 1.0
    %v8890 = vadd.f32 %v8651, 1.0
    %v8891 = vadd.f32 %v8653, 1.0
    %v8892 = vadd.f32 %v8655, 1.0
    %v8893 = vadd.f32 %v8657, 1.0
    %v8894 = vadd.f32 %v8659, 1.0
    %v8895 = vadd.f32 %v8661, 1.0
    %v8896 = vadd.f32 %v8663, 1.0
    %v8897 = vadd.f32 %v8665, 1.0
    %v8898 = vadd.f32 %v8667, 1.0
    %v8899 = vadd.f32 %v8669, 1.0
    %v8900 = vadd.f32 %v8671, 1.0
    %v8901 = vadd.f32 %v8673, 1.0
    %v8902 = vadd.f32 %v8675, 1.0
    %v8903 = vadd.f32 %v8677, 1.0
    %v8904 = vadd.f32 %v8679, 1.0
    %v8905 = vadd.f32 %v8681, 1.0
    %v8906 = vadd.f32 %v8683, 1.0
    %v8907 = vadd.f32 %v8685, 1.0
    %v8908 = vadd.f32 %v8687, 1.0
    %v8909 = vadd.f32 %v8689, 1.0
    %v8910 = vadd.f32 %v8691, 1.0
    %v8911 = vadd.f32 %v8693, 1.0
    %v8912 = vadd.f32 %v8695, 1.0
    %v8913 = vadd.f32 %v8697, 1.0
    %v8914 = vadd.f32 %v8699, 1.0
    %v8915 = vadd.f32 %v8701, 1.0
    %v8916 = vadd.f32 %v8703, 1.0
    %v8917 = vadd.f32 %v8705, 1.0
    %v8918 = vadd.f32 %v8707, 1.0
    %v8919 = vadd.f32 %v8709, 1.0
    %v8920 = vadd.f32 %v8711, 1.0
    %v8921 = vadd.f32 %v8713, 1.0
    %v8922 = vadd.f32 %v8715, 1.0
    %v8923 = vadd.f32 %v8717, 1.0
    %v8924 = vadd.f32 %v8719, 1.0
    %v8925 = vadd.f32 %v8721, 1.0
    %v8926 = vadd.f32 %v8723, 1.0
    %v8927 = vadd.f32 %v8725, 1.0
    %v8928 = vadd.f32 %v8727, 1.0
    %v8929 = vadd.f32 %v8729, 1.0
    %v8930 = vadd.f32 %v8731, 1.0
    %v8931 = vadd.f32 %v8733, 1.0
    %v8932 = vadd.f32 %v8735, 1.0
    %v8933 = vadd.f32 %v8737, 1.0
    %v8934 = vadd.f32 %v8739, 1.0
    %v8935 = vadd.f32 %v8741, 1.0
    %v8936 = vadd.f32 %v8743, 1.0
    %v8937 = vadd.f32 %v8745, 1.0
    %v8938 = vadd.f32 %v8747, 1.0
    %v8939 = vadd.f32 %v8749, 1.0
    %v8940 = vadd.f32 %v8751, 1.0
    %v8941 = vadd.f32 %v8753, 1.0
    %v8942 = vadd.f32 %v8755, 1.0
    %v8943 = vadd.f32 %v8757, 1.0
    %v8944 = vadd.f32 %v8759, 1.0
    %v8945 = vadd.f32 %v8761, 1.0
    %v8946 = vadd.f32 %v8763, 1.0
    %v8947 = vadd.f32 %v8765, 1.0
    %v8948 = vadd.f32 %v8767, 1.0
    %v8949 = vadd.f32 %v8769, 1.0
    %v8950 = vadd.f32 %v8771, 1.0
    %v8951 = vadd.f32 %v8773, 1.0
    %v8952 = vadd.f32 %v8775, 1.0
    %v8953 = vadd.f32 %v8777, 1.0
    %v8954 = vadd.f32 %v8779, 1.0
    %v8955 = vadd.f32 %v8781, 1.0
    %v8956 = vadd.f32 %v8783, 1.0
    %v8957 = vadd.f32 %v8785, 1.0
    %v8958 = vadd.f32 %v8787, 1.0
    %v8959 = vadd.f32 %v8789, 1.0
    %v8960 = vadd.f32 %v8791, 1.0
    %v8961 = vadd.f32 %v8793, 1.0
    %v8962 = vadd.f32 %v8795, 1.0
    %v8963 = vadd.f32 %v8797, 1.0
    %v8964 = vadd.f32 %v8799, 1.0
    %v8965 = vadd.f32 %v8801, 1.0
    %v8966 = vadd.f32 %v8803, 1.0
    %v8967 = vadd.f32 %v8805, 1.0
    %v8968 = vadd.f32 %v8807, 1.0
    %v8969 = vadd.f32 %v8809, 1.0
    %v8970 = vadd.f32 %v8811, 1.0
    %v8971 = vadd.f32 %v8813, 1.0
    %v8972 = vadd.f32 %v8815, 1.0
    %v8973 = vadd.f32 %v8817, 1.0
    %v8974 = vadd.f32 %v8819, 1.0
    %v8975 = vadd.f32 %v8821, 1.0
    %v8976 = vadd.f32 %v8823, 1.0
    %v8977 = vadd.f32 %v8825, 1.0
    %v8978 = vadd.f32 %v8827, 1.0
    %v8979 = vadd.f32 %v8829, 1.0
    %v8980 = vadd.f32 %v8831, 1.0
    %v8981 = vadd.f32 %v8833, 1.0
    %v8982 = vadd.f32 %v8835, 1.0
    %v8983 = vadd.f32 %v8837, 1.0
    %v8984 = vadd.f32 %v8839, 1.0
    %v8985 = vadd.f32 %v8841, 1.0
    %v8986 = vadd.f32 %v8843, 1.0
    %v8987 = vadd.f32 %v8845, 1.0
    %v8988 = vadd.f32 %v8847, 1.0
    %v8989 = vadd.f32 %v8849, 1.0
    %v8990 = vadd.f32 %v8851, 1.0
    %v8991 = vadd.f32 %v8853, 1.0
    %v8992 = vadd.f32 %v8855, 1.0
    %v8993 = vadd.f32 %v8857, 1.0
    %v8994 = vadd.f32 %v8859, 1.0
    %v8995 = vadd.f32 %v8861, 1.0
    %v8996 = vadd.f32 %v8863, 1.0
    %v8997 = vadd.f32 %v8865, 1.0
    %v8998 = vadd.f32 %v8867, 1.0
    %v8999 = vadd.f32 %v8869, 1.0
    %v9000 = vadd.f32 %v8871, 1.0
    %v9001 = vadd.f32 %v8873, 1.0
    %v9002 = vrcp.pop %v8874
    %v9003 = vmul.f32 1.0, %v9002
    %v9004 = vrcp.pop %v8875
    %v9005 = vmul.f32 1.0, %v9004
    %v9006 = vrcp.pop %v8876
    %v9007 = vmul.f32 1.0, %v9006
    %v9008 = vrcp.pop %v8877
    %v9009 = vmul.f32 1.0, %v9008
    %v9010 = vrcp.pop %v8878
    %v9011 = vmul.f32 1.0, %v9010
    %v9012 = vrcp.pop %v8879
    %v9013 = vmul.f32 1.0, %v9012
    %v9014 = vrcp.pop %v8880
    %v9015 = vmul.f32 1.0, %v9014
    %v9016 = vrcp.pop %v8881
    %v9017 = vmul.f32 1.0, %v9016
    %v9018 = vrcp.pop %v8882
    %v9019 = vmul.f32 1.0, %v9018
    %v9020 = vrcp.pop %v8883
    %v9021 = vmul.f32 1.0, %v9020
    %v9022 = vrcp.pop %v8884
    %v9023 = vmul.f32 1.0, %v9022
    %v9024 = vrcp.pop %v8885
    %v9025 = vmul.f32 1.0, %v9024
    %v9026 = vrcp.pop %v8886
    %v9027 = vmul.f32 1.0, %v9026
    %v9028 = vrcp.pop %v8887
    %v9029 = vmul.f32 1.0, %v9028
    %v9030 = vrcp.pop %v8888
    %v9031 = vmul.f32 1.0, %v9030
    %v9032 = vrcp.pop %v8889
    %v9033 = vmul.f32 1.0, %v9032
    %v9034 = vrcp.pop %v8890
    %v9035 = vmul.f32 1.0, %v9034
    %v9036 = vrcp.pop %v8891
    %v9037 = vmul.f32 1.0, %v9036
    %v9038 = vrcp.pop %v8892
    %v9039 = vmul.f32 1.0, %v9038
    %v9040 = vrcp.pop %v8893
    %v9041 = vmul.f32 1.0, %v9040
    %v9042 = vrcp.pop %v8894
    %v9043 = vmul.f32 1.0, %v9042
    %v9044 = vrcp.pop %v8895
    %v9045 = vmul.f32 1.0, %v9044
    %v9046 = vrcp.pop %v8896
    %v9047 = vmul.f32 1.0, %v9046
    %v9048 = vrcp.pop %v8897
    %v9049 = vmul.f32 1.0, %v9048
    %v9050 = vrcp.pop %v8898
    %v9051 = vmul.f32 1.0, %v9050
    %v9052 = vrcp.pop %v8899
    %v9053 = vmul.f32 1.0, %v9052
    %v9054 = vrcp.pop %v8900
    %v9055 = vmul.f32 1.0, %v9054
    %v9056 = vrcp.pop %v8901
    %v9057 = vmul.f32 1.0, %v9056
    %v9058 = vrcp.pop %v8902
    %v9059 = vmul.f32 1.0, %v9058
    %v9060 = vrcp.pop %v8903
    %v9061 = vmul.f32 1.0, %v9060
    %v9062 = vrcp.pop %v8904
    %v9063 = vmul.f32 1.0, %v9062
    %v9064 = vrcp.pop %v8905
    %v9065 = vmul.f32 1.0, %v9064
    %v9066 = vrcp.pop %v8906
    %v9067 = vmul.f32 1.0, %v9066
    %v9068 = vrcp.pop %v8907
    %v9069 = vmul.f32 1.0, %v9068
    %v9070 = vrcp.pop %v8908
    %v9071 = vmul.f32 1.0, %v9070
    %v9072 = vrcp.pop %v8909
    %v9073 = vmul.f32 1.0, %v9072
    %v9074 = vrcp.pop %v8910
    %v9075 = vmul.f32 1.0, %v9074
    %v9076 = vrcp.pop %v8911
    %v9077 = vmul.f32 1.0, %v9076
    %v9078 = vrcp.pop %v8912
    %v9079 = vmul.f32 1.0, %v9078
    %v9080 = vrcp.pop %v8913
    %v9081 = vmul.f32 1.0, %v9080
    %v9082 = vrcp.pop %v8914
    %v9083 = vmul.f32 1.0, %v9082
    %v9084 = vrcp.pop %v8915
    %v9085 = vmul.f32 1.0, %v9084
    %v9086 = vrcp.pop %v8916
    %v9087 = vmul.f32 1.0, %v9086
    %v9088 = vrcp.pop %v8917
    %v9089 = vmul.f32 1.0, %v9088
    %v9090 = vrcp.pop %v8918
    %v9091 = vmul.f32 1.0, %v9090
    %v9092 = vrcp.pop %v8919
    %v9093 = vmul.f32 1.0, %v9092
    %v9094 = vrcp.pop %v8920
    %v9095 = vmul.f32 1.0, %v9094
    %v9096 = vrcp.pop %v8921
    %v9097 = vmul.f32 1.0, %v9096
    %v9098 = vrcp.pop %v8922
    %v9099 = vmul.f32 1.0, %v9098
    %v9100 = vrcp.pop %v8923
    %v9101 = vmul.f32 1.0, %v9100
    %v9102 = vrcp.pop %v8924
    %v9103 = vmul.f32 1.0, %v9102
    %v9104 = vrcp.pop %v8925
    %v9105 = vmul.f32 1.0, %v9104
    %v9106 = vrcp.pop %v8926
    %v9107 = vmul.f32 1.0, %v9106
    %v9108 = vrcp.pop %v8927
    %v9109 = vmul.f32 1.0, %v9108
    %v9110 = vrcp.pop %v8928
    %v9111 = vmul.f32 1.0, %v9110
    %v9112 = vrcp.pop %v8929
    %v9113 = vmul.f32 1.0, %v9112
    %v9114 = vrcp.pop %v8930
    %v9115 = vmul.f32 1.0, %v9114
    %v9116 = vrcp.pop %v8931
    %v9117 = vmul.f32 1.0, %v9116
    %v9118 = vrcp.pop %v8932
    %v9119 = vmul.f32 1.0, %v9118
    %v9120 = vrcp.pop %v8933
    %v9121 = vmul.f32 1.0, %v9120
    %v9122 = vrcp.pop %v8934
    %v9123 = vmul.f32 1.0, %v9122
    %v9124 = vrcp.pop %v8935
    %v9125 = vmul.f32 1.0, %v9124
    %v9126 = vrcp.pop %v8936
    %v9127 = vmul.f32 1.0, %v9126
    %v9128 = vrcp.pop %v8937
    %v9129 = vmul.f32 1.0, %v9128
    %v9130 = vrcp.pop %v8938
    %v9131 = vmul.f32 1.0, %v9130
    %v9132 = vrcp.pop %v8939
    %v9133 = vmul.f32 1.0, %v9132
    %v9134 = vrcp.pop %v8940
    %v9135 = vmul.f32 1.0, %v9134
    %v9136 = vrcp.pop %v8941
    %v9137 = vmul.f32 1.0, %v9136
    %v9138 = vrcp.pop %v8942
    %v9139 = vmul.f32 1.0, %v9138
    %v9140 = vrcp.pop %v8943
    %v9141 = vmul.f32 1.0, %v9140
    %v9142 = vrcp.pop %v8944
    %v9143 = vmul.f32 1.0, %v9142
    %v9144 = vrcp.pop %v8945
    %v9145 = vmul.f32 1.0, %v9144
    %v9146 = vrcp.pop %v8946
    %v9147 = vmul.f32 1.0, %v9146
    %v9148 = vrcp.pop %v8947
    %v9149 = vmul.f32 1.0, %v9148
    %v9150 = vrcp.pop %v8948
    %v9151 = vmul.f32 1.0, %v9150
    %v9152 = vrcp.pop %v8949
    %v9153 = vmul.f32 1.0, %v9152
    %v9154 = vrcp.pop %v8950
    %v9155 = vmul.f32 1.0, %v9154
    %v9156 = vrcp.pop %v8951
    %v9157 = vmul.f32 1.0, %v9156
    %v9158 = vrcp.pop %v8952
    %v9159 = vmul.f32 1.0, %v9158
    %v9160 = vrcp.pop %v8953
    %v9161 = vmul.f32 1.0, %v9160
    %v9162 = vrcp.pop %v8954
    %v9163 = vmul.f32 1.0, %v9162
    %v9164 = vrcp.pop %v8955
    %v9165 = vmul.f32 1.0, %v9164
    %v9166 = vrcp.pop %v8956
    %v9167 = vmul.f32 1.0, %v9166
    %v9168 = vrcp.pop %v8957
    %v9169 = vmul.f32 1.0, %v9168
    %v9170 = vrcp.pop %v8958
    %v9171 = vmul.f32 1.0, %v9170
    %v9172 = vrcp.pop %v8959
    %v9173 = vmul.f32 1.0, %v9172
    %v9174 = vrcp.pop %v8960
    %v9175 = vmul.f32 1.0, %v9174
    %v9176 = vrcp.pop %v8961
    %v9177 = vmul.f32 1.0, %v9176
    %v9178 = vrcp.pop %v8962
    %v9179 = vmul.f32 1.0, %v9178
    %v9180 = vrcp.pop %v8963
    %v9181 = vmul.f32 1.0, %v9180
    %v9182 = vrcp.pop %v8964
    %v9183 = vmul.f32 1.0, %v9182
    %v9184 = vrcp.pop %v8965
    %v9185 = vmul.f32 1.0, %v9184
    %v9186 = vrcp.pop %v8966
    %v9187 = vmul.f32 1.0, %v9186
    %v9188 = vrcp.pop %v8967
    %v9189 = vmul.f32 1.0, %v9188
    %v9190 = vrcp.pop %v8968
    %v9191 = vmul.f32 1.0, %v9190
    %v9192 = vrcp.pop %v8969
    %v9193 = vmul.f32 1.0, %v9192
    %v9194 = vrcp.pop %v8970
    %v9195 = vmul.f32 1.0, %v9194
    %v9196 = vrcp.pop %v8971
    %v9197 = vmul.f32 1.0, %v9196
    %v9198 = vrcp.pop %v8972
    %v9199 = vmul.f32 1.0, %v9198
    %v9200 = vrcp.pop %v8973
    %v9201 = vmul.f32 1.0, %v9200
    %v9202 = vrcp.pop %v8974
    %v9203 = vmul.f32 1.0, %v9202
    %v9204 = vrcp.pop %v8975
    %v9205 = vmul.f32 1.0, %v9204
    %v9206 = vrcp.pop %v8976
    %v9207 = vmul.f32 1.0, %v9206
    %v9208 = vrcp.pop %v8977
    %v9209 = vmul.f32 1.0, %v9208
    %v9210 = vrcp.pop %v8978
    %v9211 = vmul.f32 1.0, %v9210
    %v9212 = vrcp.pop %v8979
    %v9213 = vmul.f32 1.0, %v9212
    %v9214 = vrcp.pop %v8980
    %v9215 = vmul.f32 1.0, %v9214
    %v9216 = vrcp.pop %v8981
    %v9217 = vmul.f32 1.0, %v9216
    %v9218 = vrcp.pop %v8982
    %v9219 = vmul.f32 1.0, %v9218
    %v9220 = vrcp.pop %v8983
    %v9221 = vmul.f32 1.0, %v9220
    %v9222 = vrcp.pop %v8984
    %v9223 = vmul.f32 1.0, %v9222
    %v9224 = vrcp.pop %v8985
    %v9225 = vmul.f32 1.0, %v9224
    %v9226 = vrcp.pop %v8986
    %v9227 = vmul.f32 1.0, %v9226
    %v9228 = vrcp.pop %v8987
    %v9229 = vmul.f32 1.0, %v9228
    %v9230 = vrcp.pop %v8988
    %v9231 = vmul.f32 1.0, %v9230
    %v9232 = vrcp.pop %v8989
    %v9233 = vmul.f32 1.0, %v9232
    %v9234 = vrcp.pop %v8990
    %v9235 = vmul.f32 1.0, %v9234
    %v9236 = vrcp.pop %v8991
    %v9237 = vmul.f32 1.0, %v9236
    %v9238 = vrcp.pop %v8992
    %v9239 = vmul.f32 1.0, %v9238
    %v9240 = vrcp.pop %v8993
    %v9241 = vmul.f32 1.0, %v9240
    %v9242 = vrcp.pop %v8994
    %v9243 = vmul.f32 1.0, %v9242
    %v9244 = vrcp.pop %v8995
    %v9245 = vmul.f32 1.0, %v9244
    %v9246 = vrcp.pop %v8996
    %v9247 = vmul.f32 1.0, %v9246
    %v9248 = vrcp.pop %v8997
    %v9249 = vmul.f32 1.0, %v9248
    %v9250 = vrcp.pop %v8998
    %v9251 = vmul.f32 1.0, %v9250
    %v9252 = vrcp.pop %v8999
    %v9253 = vmul.f32 1.0, %v9252
    %v9254 = vrcp.pop %v9000
    %v9255 = vmul.f32 1.0, %v9254
    %v9256 = vrcp.pop %v9001
    %v9257 = vmul.f32 1.0, %v9256
    %v9258 = vmul.f32 %v8362, %v9003
    %v9259 = vmul.f32 %v8363, %v9005
    %v9260 = vmul.f32 %v8364, %v9007
    %v9261 = vmul.f32 %v8365, %v9009
    %v9262 = vmul.f32 %v8366, %v9011
    %v9263 = vmul.f32 %v8367, %v9013
    %v9264 = vmul.f32 %v8368, %v9015
    %v9265 = vmul.f32 %v8369, %v9017
    %v9266 = vmul.f32 %v8370, %v9019
    %v9267 = vmul.f32 %v8371, %v9021
    %v9268 = vmul.f32 %v8372, %v9023
    %v9269 = vmul.f32 %v8373, %v9025
    %v9270 = vmul.f32 %v8374, %v9027
    %v9271 = vmul.f32 %v8375, %v9029
    %v9272 = vmul.f32 %v8376, %v9031
    %v9273 = vmul.f32 %v8377, %v9033
    %v9274 = vmul.f32 %v8378, %v9035
    %v9275 = vmul.f32 %v8379, %v9037
    %v9276 = vmul.f32 %v8380, %v9039
    %v9277 = vmul.f32 %v8381, %v9041
    %v9278 = vmul.f32 %v8382, %v9043
    %v9279 = vmul.f32 %v8383, %v9045
    %v9280 = vmul.f32 %v8384, %v9047
    %v9281 = vmul.f32 %v8385, %v9049
    %v9282 = vmul.f32 %v8386, %v9051
    %v9283 = vmul.f32 %v8387, %v9053
    %v9284 = vmul.f32 %v8388, %v9055
    %v9285 = vmul.f32 %v8389, %v9057
    %v9286 = vmul.f32 %v8390, %v9059
    %v9287 = vmul.f32 %v8391, %v9061
    %v9288 = vmul.f32 %v8392, %v9063
    %v9289 = vmul.f32 %v8393, %v9065
    %v9290 = vmul.f32 %v8394, %v9067
    %v9291 = vmul.f32 %v8395, %v9069
    %v9292 = vmul.f32 %v8396, %v9071
    %v9293 = vmul.f32 %v8397, %v9073
    %v9294 = vmul.f32 %v8398, %v9075
    %v9295 = vmul.f32 %v8399, %v9077
    %v9296 = vmul.f32 %v8400, %v9079
    %v9297 = vmul.f32 %v8401, %v9081
    %v9298 = vmul.f32 %v8402, %v9083
    %v9299 = vmul.f32 %v8403, %v9085
    %v9300 = vmul.f32 %v8404, %v9087
    %v9301 = vmul.f32 %v8405, %v9089
    %v9302 = vmul.f32 %v8406, %v9091
    %v9303 = vmul.f32 %v8407, %v9093
    %v9304 = vmul.f32 %v8408, %v9095
    %v9305 = vmul.f32 %v8409, %v9097
    %v9306 = vmul.f32 %v8410, %v9099
    %v9307 = vmul.f32 %v8411, %v9101
    %v9308 = vmul.f32 %v8412, %v9103
    %v9309 = vmul.f32 %v8413, %v9105
    %v9310 = vmul.f32 %v8414, %v9107
    %v9311 = vmul.f32 %v8415, %v9109
    %v9312 = vmul.f32 %v8416, %v9111
    %v9313 = vmul.f32 %v8417, %v9113
    %v9314 = vmul.f32 %v8418, %v9115
    %v9315 = vmul.f32 %v8419, %v9117
    %v9316 = vmul.f32 %v8420, %v9119
    %v9317 = vmul.f32 %v8421, %v9121
    %v9318 = vmul.f32 %v8422, %v9123
    %v9319 = vmul.f32 %v8423, %v9125
    %v9320 = vmul.f32 %v8424, %v9127
    %v9321 = vmul.f32 %v8425, %v9129
    %v9322 = vmul.f32 %v8426, %v9131
    %v9323 = vmul.f32 %v8427, %v9133
    %v9324 = vmul.f32 %v8428, %v9135
    %v9325 = vmul.f32 %v8429, %v9137
    %v9326 = vmul.f32 %v8430, %v9139
    %v9327 = vmul.f32 %v8431, %v9141
    %v9328 = vmul.f32 %v8432, %v9143
    %v9329 = vmul.f32 %v8433, %v9145
    %v9330 = vmul.f32 %v8434, %v9147
    %v9331 = vmul.f32 %v8435, %v9149
    %v9332 = vmul.f32 %v8436, %v9151
    %v9333 = vmul.f32 %v8437, %v9153
    %v9334 = vmul.f32 %v8438, %v9155
    %v9335 = vmul.f32 %v8439, %v9157
    %v9336 = vmul.f32 %v8440, %v9159
    %v9337 = vmul.f32 %v8441, %v9161
    %v9338 = vmul.f32 %v8442, %v9163
    %v9339 = vmul.f32 %v8443, %v9165
    %v9340 = vmul.f32 %v8444, %v9167
    %v9341 = vmul.f32 %v8445, %v9169
    %v9342 = vmul.f32 %v8446, %v9171
    %v9343 = vmul.f32 %v8447, %v9173
    %v9344 = vmul.f32 %v8448, %v9175
    %v9345 = vmul.f32 %v8449, %v9177
    %v9346 = vmul.f32 %v8450, %v9179
    %v9347 = vmul.f32 %v8451, %v9181
    %v9348 = vmul.f32 %v8452, %v9183
    %v9349 = vmul.f32 %v8453, %v9185
    %v9350 = vmul.f32 %v8454, %v9187
    %v9351 = vmul.f32 %v8455, %v9189
    %v9352 = vmul.f32 %v8456, %v9191
    %v9353 = vmul.f32 %v8457, %v9193
    %v9354 = vmul.f32 %v8458, %v9195
    %v9355 = vmul.f32 %v8459, %v9197
    %v9356 = vmul.f32 %v8460, %v9199
    %v9357 = vmul.f32 %v8461, %v9201
    %v9358 = vmul.f32 %v8462, %v9203
    %v9359 = vmul.f32 %v8463, %v9205
    %v9360 = vmul.f32 %v8464, %v9207
    %v9361 = vmul.f32 %v8465, %v9209
    %v9362 = vmul.f32 %v8466, %v9211
    %v9363 = vmul.f32 %v8467, %v9213
    %v9364 = vmul.f32 %v8468, %v9215
    %v9365 = vmul.f32 %v8469, %v9217
    %v9366 = vmul.f32 %v8470, %v9219
    %v9367 = vmul.f32 %v8471, %v9221
    %v9368 = vmul.f32 %v8472, %v9223
    %v9369 = vmul.f32 %v8473, %v9225
    %v9370 = vmul.f32 %v8474, %v9227
    %v9371 = vmul.f32 %v8475, %v9229
    %v9372 = vmul.f32 %v8476, %v9231
    %v9373 = vmul.f32 %v8477, %v9233
    %v9374 = vmul.f32 %v8478, %v9235
    %v9375 = vmul.f32 %v8479, %v9237
    %v9376 = vmul.f32 %v8480, %v9239
    %v9377 = vmul.f32 %v8481, %v9241
    %v9378 = vmul.f32 %v8482, %v9243
    %v9379 = vmul.f32 %v8483, %v9245
    %v9380 = vmul.f32 %v8484, %v9247
    %v9381 = vmul.f32 %v8485, %v9249
    %v9382 = vmul.f32 %v8486, %v9251
    %v9383 = vmul.f32 %v8487, %v9253
    %v9384 = vmul.f32 %v8488, %v9255
    %v9385 = vmul.f32 %v8489, %v9257
    %v9386 = vpack.c.bf16 %v9259, %v9258
    %v9387 = vpack.c.bf16 %v9261, %v9260
    %v9388 = vpack.c.bf16 %v9263, %v9262
    %v9389 = vpack.c.bf16 %v9265, %v9264
    %v9390 = vpack.c.bf16 %v9267, %v9266
    %v9391 = vpack.c.bf16 %v9269, %v9268
    %v9392 = vpack.c.bf16 %v9271, %v9270
    %v9393 = vpack.c.bf16 %v9273, %v9272
    %v9394 = vpack.c.bf16 %v9275, %v9274
    %v9395 = vpack.c.bf16 %v9277, %v9276
    %v9396 = vpack.c.bf16 %v9279, %v9278
    %v9397 = vpack.c.bf16 %v9281, %v9280
    %v9398 = vpack.c.bf16 %v9283, %v9282
    %v9399 = vpack.c.bf16 %v9285, %v9284
    %v9400 = vpack.c.bf16 %v9287, %v9286
    %v9401 = vpack.c.bf16 %v9289, %v9288
    %v9402 = vpack.c.bf16 %v9291, %v9290
    %v9403 = vpack.c.bf16 %v9293, %v9292
    %v9404 = vpack.c.bf16 %v9295, %v9294
    %v9405 = vpack.c.bf16 %v9297, %v9296
    %v9406 = vpack.c.bf16 %v9299, %v9298
    %v9407 = vpack.c.bf16 %v9301, %v9300
    %v9408 = vpack.c.bf16 %v9303, %v9302
    %v9409 = vpack.c.bf16 %v9305, %v9304
    %v9410 = vpack.c.bf16 %v9307, %v9306
    %v9411 = vpack.c.bf16 %v9309, %v9308
    %v9412 = vpack.c.bf16 %v9311, %v9310
    %v9413 = vpack.c.bf16 %v9313, %v9312
    %v9414 = vpack.c.bf16 %v9315, %v9314
    %v9415 = vpack.c.bf16 %v9317, %v9316
    %v9416 = vpack.c.bf16 %v9319, %v9318
    %v9417 = vpack.c.bf16 %v9321, %v9320
    %v9418 = vpack.c.bf16 %v9323, %v9322
    %v9419 = vpack.c.bf16 %v9325, %v9324
    %v9420 = vpack.c.bf16 %v9327, %v9326
    %v9421 = vpack.c.bf16 %v9329, %v9328
    %v9422 = vpack.c.bf16 %v9331, %v9330
    %v9423 = vpack.c.bf16 %v9333, %v9332
    %v9424 = vpack.c.bf16 %v9335, %v9334
    %v9425 = vpack.c.bf16 %v9337, %v9336
    %v9426 = vpack.c.bf16 %v9339, %v9338
    %v9427 = vpack.c.bf16 %v9341, %v9340
    %v9428 = vpack.c.bf16 %v9343, %v9342
    %v9429 = vpack.c.bf16 %v9345, %v9344
    %v9430 = vpack.c.bf16 %v9347, %v9346
    %v9431 = vpack.c.bf16 %v9349, %v9348
    %v9432 = vpack.c.bf16 %v9351, %v9350
    %v9433 = vpack.c.bf16 %v9353, %v9352
    %v9434 = vpack.c.bf16 %v9355, %v9354
    %v9435 = vpack.c.bf16 %v9357, %v9356
    %v9436 = vpack.c.bf16 %v9359, %v9358
    %v9437 = vpack.c.bf16 %v9361, %v9360
    %v9438 = vpack.c.bf16 %v9363, %v9362
    %v9439 = vpack.c.bf16 %v9365, %v9364
    %v9440 = vpack.c.bf16 %v9367, %v9366
    %v9441 = vpack.c.bf16 %v9369, %v9368
    %v9442 = vpack.c.bf16 %v9371, %v9370
    %v9443 = vpack.c.bf16 %v9373, %v9372
    %v9444 = vpack.c.bf16 %v9375, %v9374
    %v9445 = vpack.c.bf16 %v9377, %v9376
    %v9446 = vpack.c.bf16 %v9379, %v9378
    %v9447 = vpack.c.bf16 %v9381, %v9380
    %v9448 = vpack.c.bf16 %v9383, %v9382
    %v9449 = vpack.c.bf16 %v9385, %v9384
    %v9450 = vld [vmem:[#allocation17] sm:$0xf]
    %v9451 = vld [vmem:[#allocation17 + $0x4] sm:$0xf]
    %v9452 = vld [vmem:[#allocation17 + $0x8] sm:$0xf]
    %v9453 = vld [vmem:[#allocation17 + $0xc] sm:$0xf]
    %v9454 = vld [vmem:[#allocation17 + $0x10] sm:$0xf]
    %v9455 = vld [vmem:[#allocation17 + $0x14] sm:$0xf]
    %v9456 = vld [vmem:[#allocation17 + $0x18] sm:$0xf]
    %v9457 = vld [vmem:[#allocation17 + $0x1c] sm:$0xf]
    %v9458 = vld [vmem:[#allocation17 + $0x20] sm:$0xf]
    %v9459 = vld [vmem:[#allocation17 + $0x24] sm:$0xf]
    %v9460 = vld [vmem:[#allocation17 + $0x28] sm:$0xf]
    %v9461 = vld [vmem:[#allocation17 + $0x2c] sm:$0xf]
    %v9462 = vld [vmem:[#allocation17 + $0x30] sm:$0xf]
    %v9463 = vld [vmem:[#allocation17 + $0x34] sm:$0xf]
    %v9464 = vld [vmem:[#allocation17 + $0x38] sm:$0xf]
    %v9465 = vld [vmem:[#allocation17 + $0x3c] sm:$0xf]
    %v9466 = vld [vmem:[#allocation19] sm:$0x1]
    %v9468 = vlaneseq
    %v9469 = vshrl.u32 %v9468, 7
    %v9470 = vsub.s32 0, %v9469
    %v9471 = vrot.slane %v9466, %v9470
    %v9489 = vunpack.c.l.b16 %v9450
    %v9490 = vunpack.c.l.b16 %v9451
    %v9491 = vunpack.c.l.b16 %v9452
    %v9492 = vunpack.c.l.b16 %v9453
    %v9493 = vunpack.c.l.b16 %v9454
    %v9494 = vunpack.c.l.b16 %v9455
    %v9495 = vunpack.c.l.b16 %v9456
    %v9496 = vunpack.c.l.b16 %v9457
    %v9497 = vunpack.c.l.b16 %v9458
    %v9498 = vunpack.c.l.b16 %v9459
    %v9499 = vunpack.c.l.b16 %v9460
    %v9500 = vunpack.c.l.b16 %v9461
    %v9501 = vunpack.c.l.b16 %v9462
    %v9502 = vunpack.c.l.b16 %v9463
    %v9503 = vunpack.c.l.b16 %v9464
    %v9504 = vunpack.c.l.b16 %v9465
    %v9505 = vpack.c.b16 %v9490, %v9489
    %v9506 = vpack.c.b16 %v9492, %v9491
    %v9507 = vpack.c.b16 %v9494, %v9493
    %v9508 = vpack.c.b16 %v9496, %v9495
    %v9509 = vpack.c.b16 %v9498, %v9497
    %v9510 = vpack.c.b16 %v9500, %v9499
    %v9511 = vpack.c.b16 %v9502, %v9501
    %v9512 = vpack.c.b16 %v9504, %v9503
    %9521 = vmatprep.subr.bf16.mxu0 0
    %9522 = vmatpush1.bf16.msra.mxu0 %v9505
    %9523 = vmatprep.subr.bf16.mxu0 0
    %9524 = vmatpush1.bf16.msra.mxu0 %v9506
    %9525 = vmatprep.subr.bf16.mxu0 0
    %9526 = vmatpush1.bf16.msra.mxu0 %v9507
    %9527 = vmatprep.subr.bf16.mxu0 0
    %9528 = vmatpush1.bf16.msra.mxu0 %v9508
    %9529 = vmatprep.subr.bf16.mxu0 0
    %9530 = vmatpush1.bf16.msra.mxu0 %v9509
    %9531 = vmatprep.subr.bf16.mxu0 0
    %9532 = vmatpush1.bf16.msra.mxu0 %v9510
    %9533 = vmatprep.subr.bf16.mxu0 0
    %9534 = vmatpush1.bf16.msra.mxu0 %v9511
    %9535 = vmatprep.subr.bf16.mxu0 0
    %9536 = vmatpush1.bf16.msra.mxu0 %v9512
    %9537 = vmatprep.subr.bf16.mxu0 0
    %9538 = vmatpush1.bf16.msra.mxu0 0
    %9539 = vmatprep.subr.bf16.mxu0 0
    %9540 = vmatpush1.bf16.msra.mxu0 0
    %9541 = vmatprep.subr.bf16.mxu0 0
    %9542 = vmatpush1.bf16.msra.mxu0 0
    %9543 = vmatprep.subr.bf16.mxu0 0
    %9544 = vmatpush1.bf16.msra.mxu0 0
    %9545 = vmatprep.subr.bf16.mxu0 0
    %9546 = vmatpush1.bf16.msra.mxu0 0
    %9547 = vmatprep.subr.bf16.mxu0 0
    %9548 = vmatpush1.bf16.msra.mxu0 0
    %9549 = vmatprep.subr.bf16.mxu0 0
    %9550 = vmatpush1.bf16.msra.mxu0 0
    %9551 = vmatprep.subr.bf16.mxu0 0
    %9552 = vmatpush1.bf16.msra.mxu0 0
    %9553 = vmatprep.mubr.bf16.mxu0 0
    %9554 = vmatmul.mubr.bf16.gmra.mrb[0].mxu0 %v9386
    %v9555 = vpop.f32.mrb[0].mxu0
    %v9556 = vadd.f32 %v9471, %v9555
    %v9557 = vpop.f32.mrb[0].mxu0
    %v9558 = vpop.f32.mrb[0].mxu0
    %v9559 = vadd.f32 %v9471, %v9558
    %v9560 = vpop.f32.mrb[0].mxu0
    %9561 = vmatprep.mubr.bf16.mxu0 0
    %9562 = vmatmul.mubr.bf16.gmra.mrb[0].mxu0 %v9387
    %v9563 = vpop.f32.mrb[0].mxu0
    %v9564 = vadd.f32 %v9471, %v9563
    %v9565 = vpop.f32.mrb[0].mxu0
    %v9566 = vpop.f32.mrb[0].mxu0
    %v9567 = vadd.f32 %v9471, %v9566
    %v9568 = vpop.f32.mrb[0].mxu0
    %9569 = vmatprep.mubr.bf16.mxu0 0
    %9570 = vmatmul.mubr.bf16.gmra.mrb[0].mxu0 %v9388
    %v9571 = vpop.f32.mrb[0].mxu0
    %v9572 = vadd.f32 %v9471, %v9571
    %v9573 = vpop.f32.mrb[0].mxu0
    %v9574 = vpop.f32.mrb[0].mxu0
    %v9575 = vadd.f32 %v9471, %v9574
    %v9576 = vpop.f32.mrb[0].mxu0
    %9577 = vmatprep.mubr.bf16.mxu0 0
    %9578 = vmatmul.mubr.bf16.gmra.mrb[0].mxu0 %v9389
    %v9579 = vpop.f32.mrb[0].mxu0
    %v9580 = vadd.f32 %v9471, %v9579
    %v9581 = vpop.f32.mrb[0].mxu0
    %v9582 = vpop.f32.mrb[0].mxu0
    %v9583 = vadd.f32 %v9471, %v9582
    %v9584 = vpop.f32.mrb[0].mxu0
    %9585 = vmatprep.mubr.bf16.mxu0 0
    %9586 = vmatmul.mubr.bf16.gmra.mrb[0].mxu0 %v9390
    %v9587 = vpop.f32.mrb[0].mxu0
    %v9588 = vadd.f32 %v9471, %v9587
    %v9589 = vpop.f32.mrb[0].mxu0
    %v9590 = vpop.f32.mrb[0].mxu0
    %v9591 = vadd.f32 %v9471, %v9590
    %v9592 = vpop.f32.mrb[0].mxu0
    %9593 = vmatprep.mubr.bf16.mxu0 0
    %9594 = vmatmul.mubr.bf16.gmra.mrb[0].mxu0 %v9391
    %v9595 = vpop.f32.mrb[0].mxu0
    %v9596 = vadd.f32 %v9471, %v9595
    %v9597 = vpop.f32.mrb[0].mxu0
    %v9598 = vpop.f32.mrb[0].mxu0
    %v9599 = vadd.f32 %v9471, %v9598
    %v9600 = vpop.f32.mrb[0].mxu0
    %9601 = vmatprep.mubr.bf16.mxu0 0
    %9602 = vmatmul.mubr.bf16.gmra.mrb[0].mxu0 %v9392
    %v9603 = vpop.f32.mrb[0].mxu0
    %v9604 = vadd.f32 %v9471, %v9603
    %v9605 = vpop.f32.mrb[0].mxu0
    %v9606 = vpop.f32.mrb[0].mxu0
    %v9607 = vadd.f32 %v9471, %v9606
    %v9608 = vpop.f32.mrb[0].mxu0
    %9609 = vmatprep.mubr.bf16.mxu0 0
    %9610 = vmatmul.mubr.bf16.gmra.mrb[0].mxu0 %v9393
    %v9611 = vpop.f32.mrb[0].mxu0
    %v9612 = vadd.f32 %v9471, %v9611
    %v9613 = vpop.f32.mrb[0].mxu0
    %v9614 = vpop.f32.mrb[0].mxu0
    %v9615 = vadd.f32 %v9471, %v9614
    %v9616 = vpop.f32.mrb[0].mxu0
    %9617 = vmatprep.mubr.bf16.mxu0 0
    %9618 = vmatmul.mubr.bf16.gmra.mrb[0].mxu0 %v9394
    %v9619 = vpop.f32.mrb[0].mxu0
    %v9620 = vadd.f32 %v9471, %v9619
    %v9621 = vpop.f32.mrb[0].mxu0
    %v9622 = vpop.f32.mrb[0].mxu0
    %v9623 = vadd.f32 %v9471, %v9622
    %v9624 = vpop.f32.mrb[0].mxu0
    %9625 = vmatprep.mubr.bf16.mxu0 0
    %9626 = vmatmul.mubr.bf16.gmra.mrb[0].mxu0 %v9395
    %v9627 = vpop.f32.mrb[0].mxu0
    %v9628 = vadd.f32 %v9471, %v9627
    %v9629 = vpop.f32.mrb[0].mxu0
    %v9630 = vpop.f32.mrb[0].mxu0
    %v9631 = vadd.f32 %v9471, %v9630
    %v9632 = vpop.f32.mrb[0].mxu0
    %9633 = vmatprep.mubr.bf16.mxu0 0
    %9634 = vmatmul.mubr.bf16.gmra.mrb[0].mxu0 %v9396
    %v9635 = vpop.f32.mrb[0].mxu0
    %v9636 = vadd.f32 %v9471, %v9635
    %v9637 = vpop.f32.mrb[0].mxu0
    %v9638 = vpop.f32.mrb[0].mxu0
    %v9639 = vadd.f32 %v9471, %v9638
    %v9640 = vpop.f32.mrb[0].mxu0
    %9641 = vmatprep.mubr.bf16.mxu0 0
    %9642 = vmatmul.mubr.bf16.gmra.mrb[0].mxu0 %v9397
    %v9643 = vpop.f32.mrb[0].mxu0
    %v9644 = vadd.f32 %v9471, %v9643
    %v9645 = vpop.f32.mrb[0].mxu0
    %v9646 = vpop.f32.mrb[0].mxu0
    %v9647 = vadd.f32 %v9471, %v9646
    %v9648 = vpop.f32.mrb[0].mxu0
    %9649 = vmatprep.mubr.bf16.mxu0 0
    %9650 = vmatmul.mubr.bf16.gmra.mrb[0].mxu0 %v9398
    %v9651 = vpop.f32.mrb[0].mxu0
    %v9652 = vadd.f32 %v9471, %v9651
    %v9653 = vpop.f32.mrb[0].mxu0
    %v9654 = vpop.f32.mrb[0].mxu0
    %v9655 = vadd.f32 %v9471, %v9654
    %v9656 = vpop.f32.mrb[0].mxu0
    %9657 = vmatprep.mubr.bf16.mxu0 0
    %9658 = vmatmul.mubr.bf16.gmra.mrb[0].mxu0 %v9399
    %v9659 = vpop.f32.mrb[0].mxu0
    %v9660 = vadd.f32 %v9471, %v9659
    %v9661 = vpop.f32.mrb[0].mxu0
    %v9662 = vpop.f32.mrb[0].mxu0
    %v9663 = vadd.f32 %v9471, %v9662
    %v9664 = vpop.f32.mrb[0].mxu0
    %9665 = vmatprep.mubr.bf16.mxu0 0
    %9666 = vmatmul.mubr.bf16.gmra.mrb[0].mxu0 %v9400
    %v9667 = vpop.f32.mrb[0].mxu0
    %v9668 = vadd.f32 %v9471, %v9667
    %v9669 = vpop.f32.mrb[0].mxu0
    %v9670 = vpop.f32.mrb[0].mxu0
    %v9671 = vadd.f32 %v9471, %v9670
    %v9672 = vpop.f32.mrb[0].mxu0
    %9673 = vmatprep.mubr.bf16.mxu0 0
    %9674 = vmatmul.mubr.bf16.gmra.mrb[0].mxu0 %v9401
    %v9675 = vpop.f32.mrb[0].mxu0
    %v9676 = vadd.f32 %v9471, %v9675
    %v9677 = vpop.f32.mrb[0].mxu0
    %v9678 = vpop.f32.mrb[0].mxu0
    %v9679 = vadd.f32 %v9471, %v9678
    %v9680 = vpop.f32.mrb[0].mxu0
    %9681 = vmatprep.mubr.bf16.mxu0 0
    %9682 = vmatmul.mubr.bf16.gmra.mrb[0].mxu0 %v9402
    %v9683 = vpop.f32.mrb[0].mxu0
    %v9684 = vadd.f32 %v9471, %v9683
    %v9685 = vpop.f32.mrb[0].mxu0
    %v9686 = vpop.f32.mrb[0].mxu0
    %v9687 = vadd.f32 %v9471, %v9686
    %v9688 = vpop.f32.mrb[0].mxu0
    %9689 = vmatprep.mubr.bf16.mxu0 0
    %9690 = vmatmul.mubr.bf16.gmra.mrb[0].mxu0 %v9403
    %v9691 = vpop.f32.mrb[0].mxu0
    %v9692 = vadd.f32 %v9471, %v9691
    %v9693 = vpop.f32.mrb[0].mxu0
    %v9694 = vpop.f32.mrb[0].mxu0
    %v9695 = vadd.f32 %v9471, %v9694
    %v9696 = vpop.f32.mrb[0].mxu0
    %9697 = vmatprep.mubr.bf16.mxu0 0
    %9698 = vmatmul.mubr.bf16.gmra.mrb[0].mxu0 %v9404
    %v9699 = vpop.f32.mrb[0].mxu0
    %v9700 = vadd.f32 %v9471, %v9699
    %v9701 = vpop.f32.mrb[0].mxu0
    %v9702 = vpop.f32.mrb[0].mxu0
    %v9703 = vadd.f32 %v9471, %v9702
    %v9704 = vpop.f32.mrb[0].mxu0
    %9705 = vmatprep.mubr.bf16.mxu0 0
    %9706 = vmatmul.mubr.bf16.gmra.mrb[0].mxu0 %v9405
    %v9707 = vpop.f32.mrb[0].mxu0
    %v9708 = vadd.f32 %v9471, %v9707
    %v9709 = vpop.f32.mrb[0].mxu0
    %v9710 = vpop.f32.mrb[0].mxu0
    %v9711 = vadd.f32 %v9471, %v9710
    %v9712 = vpop.f32.mrb[0].mxu0
    %9713 = vmatprep.mubr.bf16.mxu0 0
    %9714 = vmatmul.mubr.bf16.gmra.mrb[0].mxu0 %v9406
    %v9715 = vpop.f32.mrb[0].mxu0
    %v9716 = vadd.f32 %v9471, %v9715
    %v9717 = vpop.f32.mrb[0].mxu0
    %v9718 = vpop.f32.mrb[0].mxu0
    %v9719 = vadd.f32 %v9471, %v9718
    %v9720 = vpop.f32.mrb[0].mxu0
    %9721 = vmatprep.mubr.bf16.mxu0 0
    %9722 = vmatmul.mubr.bf16.gmra.mrb[0].mxu0 %v9407
    %v9723 = vpop.f32.mrb[0].mxu0
    %v9724 = vadd.f32 %v9471, %v9723
    %v9725 = vpop.f32.mrb[0].mxu0
    %v9726 = vpop.f32.mrb[0].mxu0
    %v9727 = vadd.f32 %v9471, %v9726
    %v9728 = vpop.f32.mrb[0].mxu0
    %9729 = vmatprep.mubr.bf16.mxu0 0
    %9730 = vmatmul.mubr.bf16.gmra.mrb[0].mxu0 %v9408
    %v9731 = vpop.f32.mrb[0].mxu0
    %v9732 = vadd.f32 %v9471, %v9731
    %v9733 = vpop.f32.mrb[0].mxu0
    %v9734 = vpop.f32.mrb[0].mxu0
    %v9735 = vadd.f32 %v9471, %v9734
    %v9736 = vpop.f32.mrb[0].mxu0
    %9737 = vmatprep.mubr.bf16.mxu0 0
    %9738 = vmatmul.mubr.bf16.gmra.mrb[0].mxu0 %v9409
    %v9739 = vpop.f32.mrb[0].mxu0
    %v9740 = vadd.f32 %v9471, %v9739
    %v9741 = vpop.f32.mrb[0].mxu0
    %v9742 = vpop.f32.mrb[0].mxu0
    %v9743 = vadd.f32 %v9471, %v9742
    %v9744 = vpop.f32.mrb[0].mxu0
    %9745 = vmatprep.mubr.bf16.mxu0 0
    %9746 = vmatmul.mubr.bf16.gmra.mrb[0].mxu0 %v9410
    %v9747 = vpop.f32.mrb[0].mxu0
    %v9748 = vadd.f32 %v9471, %v9747
    %v9749 = vpop.f32.mrb[0].mxu0
    %v9750 = vpop.f32.mrb[0].mxu0
    %v9751 = vadd.f32 %v9471, %v9750
    %v9752 = vpop.f32.mrb[0].mxu0
    %9753 = vmatprep.mubr.bf16.mxu0 0
    %9754 = vmatmul.mubr.bf16.gmra.mrb[0].mxu0 %v9411
    %v9755 = vpop.f32.mrb[0].mxu0
    %v9756 = vadd.f32 %v9471, %v9755
    %v9757 = vpop.f32.mrb[0].mxu0
    %v9758 = vpop.f32.mrb[0].mxu0
    %v9759 = vadd.f32 %v9471, %v9758
    %v9760 = vpop.f32.mrb[0].mxu0
    %9761 = vmatprep.mubr.bf16.mxu0 0
    %9762 = vmatmul.mubr.bf16.gmra.mrb[0].mxu0 %v9412
    %v9763 = vpop.f32.mrb[0].mxu0
    %v9764 = vadd.f32 %v9471, %v9763
    %v9765 = vpop.f32.mrb[0].mxu0
    %v9766 = vpop.f32.mrb[0].mxu0
    %v9767 = vadd.f32 %v9471, %v9766
    %v9768 = vpop.f32.mrb[0].mxu0
    %9769 = vmatprep.mubr.bf16.mxu0 0
    %9770 = vmatmul.mubr.bf16.gmra.mrb[0].mxu0 %v9413
    %v9771 = vpop.f32.mrb[0].mxu0
    %v9772 = vadd.f32 %v9471, %v9771
    %v9773 = vpop.f32.mrb[0].mxu0
    %v9774 = vpop.f32.mrb[0].mxu0
    %v9775 = vadd.f32 %v9471, %v9774
    %v9776 = vpop.f32.mrb[0].mxu0
    %9777 = vmatprep.mubr.bf16.mxu0 0
    %9778 = vmatmul.mubr.bf16.gmra.mrb[0].mxu0 %v9414
    %v9779 = vpop.f32.mrb[0].mxu0
    %v9780 = vadd.f32 %v9471, %v9779
    %v9781 = vpop.f32.mrb[0].mxu0
    %v9782 = vpop.f32.mrb[0].mxu0
    %v9783 = vadd.f32 %v9471, %v9782
    %v9784 = vpop.f32.mrb[0].mxu0
    %9785 = vmatprep.mubr.bf16.mxu0 0
    %9786 = vmatmul.mubr.bf16.gmra.mrb[0].mxu0 %v9415
    %v9787 = vpop.f32.mrb[0].mxu0
    %v9788 = vadd.f32 %v9471, %v9787
    %v9789 = vpop.f32.mrb[0].mxu0
    %v9790 = vpop.f32.mrb[0].mxu0
    %v9791 = vadd.f32 %v9471, %v9790
    %v9792 = vpop.f32.mrb[0].mxu0
    %9793 = vmatprep.mubr.bf16.mxu0 0
    %9794 = vmatmul.mubr.bf16.gmra.mrb[0].mxu0 %v9416
    %v9795 = vpop.f32.mrb[0].mxu0
    %v9796 = vadd.f32 %v9471, %v9795
    %v9797 = vpop.f32.mrb[0].mxu0
    %v9798 = vpop.f32.mrb[0].mxu0
    %v9799 = vadd.f32 %v9471, %v9798
    %v9800 = vpop.f32.mrb[0].mxu0
    %9801 = vmatprep.mubr.bf16.mxu0 0
    %9802 = vmatmul.mubr.bf16.gmra.mrb[0].mxu0 %v9417
    %v9803 = vpop.f32.mrb[0].mxu0
    %v9804 = vadd.f32 %v9471, %v9803
    %v9805 = vpop.f32.mrb[0].mxu0
    %v9806 = vpop.f32.mrb[0].mxu0
    %v9807 = vadd.f32 %v9471, %v9806
    %v9808 = vpop.f32.mrb[0].mxu0
    %9809 = vmatprep.mubr.bf16.mxu0 0
    %9810 = vmatmul.mubr.bf16.gmra.mrb[0].mxu0 %v9418
    %v9811 = vpop.f32.mrb[0].mxu0
    %v9812 = vadd.f32 %v9471, %v9811
    %v9813 = vpop.f32.mrb[0].mxu0
    %v9814 = vpop.f32.mrb[0].mxu0
    %v9815 = vadd.f32 %v9471, %v9814
    %v9816 = vpop.f32.mrb[0].mxu0
    %9817 = vmatprep.mubr.bf16.mxu0 0
    %9818 = vmatmul.mubr.bf16.gmra.mrb[0].mxu0 %v9419
    %v9819 = vpop.f32.mrb[0].mxu0
    %v9820 = vadd.f32 %v9471, %v9819
    %v9821 = vpop.f32.mrb[0].mxu0
    %v9822 = vpop.f32.mrb[0].mxu0
    %v9823 = vadd.f32 %v9471, %v9822
    %v9824 = vpop.f32.mrb[0].mxu0
    %9825 = vmatprep.mubr.bf16.mxu0 0
    %9826 = vmatmul.mubr.bf16.gmra.mrb[0].mxu0 %v9420
    %v9827 = vpop.f32.mrb[0].mxu0
    %v9828 = vadd.f32 %v9471, %v9827
    %v9829 = vpop.f32.mrb[0].mxu0
    %v9830 = vpop.f32.mrb[0].mxu0
    %v9831 = vadd.f32 %v9471, %v9830
    %v9832 = vpop.f32.mrb[0].mxu0
    %9833 = vmatprep.mubr.bf16.mxu0 0
    %9834 = vmatmul.mubr.bf16.gmra.mrb[0].mxu0 %v9421
    %v9835 = vpop.f32.mrb[0].mxu0
    %v9836 = vadd.f32 %v9471, %v9835
    %v9837 = vpop.f32.mrb[0].mxu0
    %v9838 = vpop.f32.mrb[0].mxu0
    %v9839 = vadd.f32 %v9471, %v9838
    %v9840 = vpop.f32.mrb[0].mxu0
    %9841 = vmatprep.mubr.bf16.mxu0 0
    %9842 = vmatmul.mubr.bf16.gmra.mrb[0].mxu0 %v9422
    %v9843 = vpop.f32.mrb[0].mxu0
    %v9844 = vadd.f32 %v9471, %v9843
    %v9845 = vpop.f32.mrb[0].mxu0
    %v9846 = vpop.f32.mrb[0].mxu0
    %v9847 = vadd.f32 %v9471, %v9846
    %v9848 = vpop.f32.mrb[0].mxu0
    %9849 = vmatprep.mubr.bf16.mxu0 0
    %9850 = vmatmul.mubr.bf16.gmra.mrb[0].mxu0 %v9423
    %v9851 = vpop.f32.mrb[0].mxu0
    %v9852 = vadd.f32 %v9471, %v9851
    %v9853 = vpop.f32.mrb[0].mxu0
    %v9854 = vpop.f32.mrb[0].mxu0
    %v9855 = vadd.f32 %v9471, %v9854
    %v9856 = vpop.f32.mrb[0].mxu0
    %9857 = vmatprep.mubr.bf16.mxu0 0
    %9858 = vmatmul.mubr.bf16.gmra.mrb[0].mxu0 %v9424
    %v9859 = vpop.f32.mrb[0].mxu0
    %v9860 = vadd.f32 %v9471, %v9859
    %v9861 = vpop.f32.mrb[0].mxu0
    %v9862 = vpop.f32.mrb[0].mxu0
    %v9863 = vadd.f32 %v9471, %v9862
    %v9864 = vpop.f32.mrb[0].mxu0
    %9865 = vmatprep.mubr.bf16.mxu0 0
    %9866 = vmatmul.mubr.bf16.gmra.mrb[0].mxu0 %v9425
    %v9867 = vpop.f32.mrb[0].mxu0
    %v9868 = vadd.f32 %v9471, %v9867
    %v9869 = vpop.f32.mrb[0].mxu0
    %v9870 = vpop.f32.mrb[0].mxu0
    %v9871 = vadd.f32 %v9471, %v9870
    %v9872 = vpop.f32.mrb[0].mxu0
    %9873 = vmatprep.mubr.bf16.mxu0 0
    %9874 = vmatmul.mubr.bf16.gmra.mrb[0].mxu0 %v9426
    %v9875 = vpop.f32.mrb[0].mxu0
    %v9876 = vadd.f32 %v9471, %v9875
    %v9877 = vpop.f32.mrb[0].mxu0
    %v9878 = vpop.f32.mrb[0].mxu0
    %v9879 = vadd.f32 %v9471, %v9878
    %v9880 = vpop.f32.mrb[0].mxu0
    %9881 = vmatprep.mubr.bf16.mxu0 0
    %9882 = vmatmul.mubr.bf16.gmra.mrb[0].mxu0 %v9427
    %v9883 = vpop.f32.mrb[0].mxu0
    %v9884 = vadd.f32 %v9471, %v9883
    %v9885 = vpop.f32.mrb[0].mxu0
    %v9886 = vpop.f32.mrb[0].mxu0
    %v9887 = vadd.f32 %v9471, %v9886
    %v9888 = vpop.f32.mrb[0].mxu0
    %9889 = vmatprep.mubr.bf16.mxu0 0
    %9890 = vmatmul.mubr.bf16.gmra.mrb[0].mxu0 %v9428
    %v9891 = vpop.f32.mrb[0].mxu0
    %v9892 = vadd.f32 %v9471, %v9891
    %v9893 = vpop.f32.mrb[0].mxu0
    %v9894 = vpop.f32.mrb[0].mxu0
    %v9895 = vadd.f32 %v9471, %v9894
    %v9896 = vpop.f32.mrb[0].mxu0
    %9897 = vmatprep.mubr.bf16.mxu0 0
    %9898 = vmatmul.mubr.bf16.gmra.mrb[0].mxu0 %v9429
    %v9899 = vpop.f32.mrb[0].mxu0
    %v9900 = vadd.f32 %v9471, %v9899
    %v9901 = vpop.f32.mrb[0].mxu0
    %v9902 = vpop.f32.mrb[0].mxu0
    %v9903 = vadd.f32 %v9471, %v9902
    %v9904 = vpop.f32.mrb[0].mxu0
    %9905 = vmatprep.mubr.bf16.mxu0 0
    %9906 = vmatmul.mubr.bf16.gmra.mrb[0].mxu0 %v9430
    %v9907 = vpop.f32.mrb[0].mxu0
    %v9908 = vadd.f32 %v9471, %v9907
    %v9909 = vpop.f32.mrb[0].mxu0
    %v9910 = vpop.f32.mrb[0].mxu0
    %v9911 = vadd.f32 %v9471, %v9910
    %v9912 = vpop.f32.mrb[0].mxu0
    %9913 = vmatprep.mubr.bf16.mxu0 0
    %9914 = vmatmul.mubr.bf16.gmra.mrb[0].mxu0 %v9431
    %v9915 = vpop.f32.mrb[0].mxu0
    %v9916 = vadd.f32 %v9471, %v9915
    %v9917 = vpop.f32.mrb[0].mxu0
    %v9918 = vpop.f32.mrb[0].mxu0
    %v9919 = vadd.f32 %v9471, %v9918
    %v9920 = vpop.f32.mrb[0].mxu0
    %9921 = vmatprep.mubr.bf16.mxu0 0
    %9922 = vmatmul.mubr.bf16.gmra.mrb[0].mxu0 %v9432
    %v9923 = vpop.f32.mrb[0].mxu0
    %v9924 = vadd.f32 %v9471, %v9923
    %v9925 = vpop.f32.mrb[0].mxu0
    %v9926 = vpop.f32.mrb[0].mxu0
    %v9927 = vadd.f32 %v9471, %v9926
    %v9928 = vpop.f32.mrb[0].mxu0
    %9929 = vmatprep.mubr.bf16.mxu0 0
    %9930 = vmatmul.mubr.bf16.gmra.mrb[0].mxu0 %v9433
    %v9931 = vpop.f32.mrb[0].mxu0
    %v9932 = vadd.f32 %v9471, %v9931
    %v9933 = vpop.f32.mrb[0].mxu0
    %v9934 = vpop.f32.mrb[0].mxu0
    %v9935 = vadd.f32 %v9471, %v9934
    %v9936 = vpop.f32.mrb[0].mxu0
    %9937 = vmatprep.mubr.bf16.mxu0 0
    %9938 = vmatmul.mubr.bf16.gmra.mrb[0].mxu0 %v9434
    %v9939 = vpop.f32.mrb[0].mxu0
    %v9940 = vadd.f32 %v9471, %v9939
    %v9941 = vpop.f32.mrb[0].mxu0
    %v9942 = vpop.f32.mrb[0].mxu0
    %v9943 = vadd.f32 %v9471, %v9942
    %v9944 = vpop.f32.mrb[0].mxu0
    %9945 = vmatprep.mubr.bf16.mxu0 0
    %9946 = vmatmul.mubr.bf16.gmra.mrb[0].mxu0 %v9435
    %v9947 = vpop.f32.mrb[0].mxu0
    %v9948 = vadd.f32 %v9471, %v9947
    %v9949 = vpop.f32.mrb[0].mxu0
    %v9950 = vpop.f32.mrb[0].mxu0
    %v9951 = vadd.f32 %v9471, %v9950
    %v9952 = vpop.f32.mrb[0].mxu0
    %9953 = vmatprep.mubr.bf16.mxu0 0
    %9954 = vmatmul.mubr.bf16.gmra.mrb[0].mxu0 %v9436
    %v9955 = vpop.f32.mrb[0].mxu0
    %v9956 = vadd.f32 %v9471, %v9955
    %v9957 = vpop.f32.mrb[0].mxu0
    %v9958 = vpop.f32.mrb[0].mxu0
    %v9959 = vadd.f32 %v9471, %v9958
    %v9960 = vpop.f32.mrb[0].mxu0
    %9961 = vmatprep.mubr.bf16.mxu0 0
    %9962 = vmatmul.mubr.bf16.gmra.mrb[0].mxu0 %v9437
    %v9963 = vpop.f32.mrb[0].mxu0
    %v9964 = vadd.f32 %v9471, %v9963
    %v9965 = vpop.f32.mrb[0].mxu0
    %v9966 = vpop.f32.mrb[0].mxu0
    %v9967 = vadd.f32 %v9471, %v9966
    %v9968 = vpop.f32.mrb[0].mxu0
    %9969 = vmatprep.mubr.bf16.mxu0 0
    %9970 = vmatmul.mubr.bf16.gmra.mrb[0].mxu0 %v9438
    %v9971 = vpop.f32.mrb[0].mxu0
    %v9972 = vadd.f32 %v9471, %v9971
    %v9973 = vpop.f32.mrb[0].mxu0
    %v9974 = vpop.f32.mrb[0].mxu0
    %v9975 = vadd.f32 %v9471, %v9974
    %v9976 = vpop.f32.mrb[0].mxu0
    %9977 = vmatprep.mubr.bf16.mxu0 0
    %9978 = vmatmul.mubr.bf16.gmra.mrb[0].mxu0 %v9439
    %v9979 = vpop.f32.mrb[0].mxu0
    %v9980 = vadd.f32 %v9471, %v9979
    %v9981 = vpop.f32.mrb[0].mxu0
    %v9982 = vpop.f32.mrb[0].mxu0
    %v9983 = vadd.f32 %v9471, %v9982
    %v9984 = vpop.f32.mrb[0].mxu0
    %9985 = vmatprep.mubr.bf16.mxu0 0
    %9986 = vmatmul.mubr.bf16.gmra.mrb[0].mxu0 %v9440
    %v9987 = vpop.f32.mrb[0].mxu0
    %v9988 = vadd.f32 %v9471, %v9987
    %v9989 = vpop.f32.mrb[0].mxu0
    %v9990 = vpop.f32.mrb[0].mxu0
    %v9991 = vadd.f32 %v9471, %v9990
    %v9992 = vpop.f32.mrb[0].mxu0
    %9993 = vmatprep.mubr.bf16.mxu0 0
    %9994 = vmatmul.mubr.bf16.gmra.mrb[0].mxu0 %v9441
    %v9995 = vpop.f32.mrb[0].mxu0
    %v9996 = vadd.f32 %v9471, %v9995
    %v9997 = vpop.f32.mrb[0].mxu0
    %v9998 = vpop.f32.mrb[0].mxu0
    %v9999 = vadd.f32 %v9471, %v9998
    %v10000 = vpop.f32.mrb[0].mxu0
    %10001 = vmatprep.mubr.bf16.mxu0 0
    %10002 = vmatmul.mubr.bf16.gmra.mrb[0].mxu0 %v9442
    %v10003 = vpop.f32.mrb[0].mxu0
    %v10004 = vadd.f32 %v9471, %v10003
    %v10005 = vpop.f32.mrb[0].mxu0
    %v10006 = vpop.f32.mrb[0].mxu0
    %v10007 = vadd.f32 %v9471, %v10006
    %v10008 = vpop.f32.mrb[0].mxu0
    %10009 = vmatprep.mubr.bf16.mxu0 0
    %10010 = vmatmul.mubr.bf16.gmra.mrb[0].mxu0 %v9443
    %v10011 = vpop.f32.mrb[0].mxu0
    %v10012 = vadd.f32 %v9471, %v10011
    %v10013 = vpop.f32.mrb[0].mxu0
    %v10014 = vpop.f32.mrb[0].mxu0
    %v10015 = vadd.f32 %v9471, %v10014
    %v10016 = vpop.f32.mrb[0].mxu0
    %10017 = vmatprep.mubr.bf16.mxu0 0
    %10018 = vmatmul.mubr.bf16.gmra.mrb[0].mxu0 %v9444
    %v10019 = vpop.f32.mrb[0].mxu0
    %v10020 = vadd.f32 %v9471, %v10019
    %v10021 = vpop.f32.mrb[0].mxu0
    %v10022 = vpop.f32.mrb[0].mxu0
    %v10023 = vadd.f32 %v9471, %v10022
    %v10024 = vpop.f32.mrb[0].mxu0
    %10025 = vmatprep.mubr.bf16.mxu0 0
    %10026 = vmatmul.mubr.bf16.gmra.mrb[0].mxu0 %v9445
    %v10027 = vpop.f32.mrb[0].mxu0
    %v10028 = vadd.f32 %v9471, %v10027
    %v10029 = vpop.f32.mrb[0].mxu0
    %v10030 = vpop.f32.mrb[0].mxu0
    %v10031 = vadd.f32 %v9471, %v10030
    %v10032 = vpop.f32.mrb[0].mxu0
    %10033 = vmatprep.mubr.bf16.mxu0 0
    %10034 = vmatmul.mubr.bf16.gmra.mrb[0].mxu0 %v9446
    %v10035 = vpop.f32.mrb[0].mxu0
    %v10036 = vadd.f32 %v9471, %v10035
    %v10037 = vpop.f32.mrb[0].mxu0
    %v10038 = vpop.f32.mrb[0].mxu0
    %v10039 = vadd.f32 %v9471, %v10038
    %v10040 = vpop.f32.mrb[0].mxu0
    %10041 = vmatprep.mubr.bf16.mxu0 0
    %10042 = vmatmul.mubr.bf16.gmra.mrb[0].mxu0 %v9447
    %v10043 = vpop.f32.mrb[0].mxu0
    %v10044 = vadd.f32 %v9471, %v10043
    %v10045 = vpop.f32.mrb[0].mxu0
    %v10046 = vpop.f32.mrb[0].mxu0
    %v10047 = vadd.f32 %v9471, %v10046
    %v10048 = vpop.f32.mrb[0].mxu0
    %10049 = vmatprep.mubr.bf16.mxu0 0
    %10050 = vmatmul.mubr.bf16.gmra.mrb[0].mxu0 %v9448
    %v10051 = vpop.f32.mrb[0].mxu0
    %v10052 = vadd.f32 %v9471, %v10051
    %v10053 = vpop.f32.mrb[0].mxu0
    %v10054 = vpop.f32.mrb[0].mxu0
    %v10055 = vadd.f32 %v9471, %v10054
    %v10056 = vpop.f32.mrb[0].mxu0
    %10057 = vmatprep.mubr.bf16.mxu0 0
    %10058 = vmatmul.mubr.bf16.gmra.mrb[0].mxu0 %v9449
    %v10059 = vpop.f32.mrb[0].mxu0
    %v10060 = vadd.f32 %v9471, %v10059
    %v10061 = vpop.f32.mrb[0].mxu0
    %v10062 = vpop.f32.mrb[0].mxu0
    %v10063 = vadd.f32 %v9471, %v10062
    %v10064 = vpop.f32.mrb[0].mxu0
    %10065 = vdwg.mxu0
    %v10066 = vxor.u32 %v9556, 2147483648
    %v10067 = vxor.u32 %v9559, 2147483648
    %v10068 = vxor.u32 %v9564, 2147483648
    %v10069 = vxor.u32 %v9567, 2147483648
    %v10070 = vxor.u32 %v9572, 2147483648
    %v10071 = vxor.u32 %v9575, 2147483648
    %v10072 = vxor.u32 %v9580, 2147483648
    %v10073 = vxor.u32 %v9583, 2147483648
    %v10074 = vxor.u32 %v9588, 2147483648
    %v10075 = vxor.u32 %v9591, 2147483648
    %v10076 = vxor.u32 %v9596, 2147483648
    %v10077 = vxor.u32 %v9599, 2147483648
    %v10078 = vxor.u32 %v9604, 2147483648
    %v10079 = vxor.u32 %v9607, 2147483648
    %v10080 = vxor.u32 %v9612, 2147483648
    %v10081 = vxor.u32 %v9615, 2147483648
    %v10082 = vxor.u32 %v9620, 2147483648
    %v10083 = vxor.u32 %v9623, 2147483648
    %v10084 = vxor.u32 %v9628, 2147483648
    %v10085 = vxor.u32 %v9631, 2147483648
    %v10086 = vxor.u32 %v9636, 2147483648
    %v10087 = vxor.u32 %v9639, 2147483648
    %v10088 = vxor.u32 %v9644, 2147483648
    %v10089 = vxor.u32 %v9647, 2147483648
    %v10090 = vxor.u32 %v9652, 2147483648
    %v10091 = vxor.u32 %v9655, 2147483648
    %v10092 = vxor.u32 %v9660, 2147483648
    %v10093 = vxor.u32 %v9663, 2147483648
    %v10094 = vxor.u32 %v9668, 2147483648
    %v10095 = vxor.u32 %v9671, 2147483648
    %v10096 = vxor.u32 %v9676, 2147483648
    %v10097 = vxor.u32 %v9679, 2147483648
    %v10098 = vxor.u32 %v9684, 2147483648
    %v10099 = vxor.u32 %v9687, 2147483648
    %v10100 = vxor.u32 %v9692, 2147483648
    %v10101 = vxor.u32 %v9695, 2147483648
    %v10102 = vxor.u32 %v9700, 2147483648
    %v10103 = vxor.u32 %v9703, 2147483648
    %v10104 = vxor.u32 %v9708, 2147483648
    %v10105 = vxor.u32 %v9711, 2147483648
    %v10106 = vxor.u32 %v9716, 2147483648
    %v10107 = vxor.u32 %v9719, 2147483648
    %v10108 = vxor.u32 %v9724, 2147483648
    %v10109 = vxor.u32 %v9727, 2147483648
    %v10110 = vxor.u32 %v9732, 2147483648
    %v10111 = vxor.u32 %v9735, 2147483648
    %v10112 = vxor.u32 %v9740, 2147483648
    %v10113 = vxor.u32 %v9743, 2147483648
    %v10114 = vxor.u32 %v9748, 2147483648
    %v10115 = vxor.u32 %v9751, 2147483648
    %v10116 = vxor.u32 %v9756, 2147483648
    %v10117 = vxor.u32 %v9759, 2147483648
    %v10118 = vxor.u32 %v9764, 2147483648
    %v10119 = vxor.u32 %v9767, 2147483648
    %v10120 = vxor.u32 %v9772, 2147483648
    %v10121 = vxor.u32 %v9775, 2147483648
    %v10122 = vxor.u32 %v9780, 2147483648
    %v10123 = vxor.u32 %v9783, 2147483648
    %v10124 = vxor.u32 %v9788, 2147483648
    %v10125 = vxor.u32 %v9791, 2147483648
    %v10126 = vxor.u32 %v9796, 2147483648
    %v10127 = vxor.u32 %v9799, 2147483648
    %v10128 = vxor.u32 %v9804, 2147483648
    %v10129 = vxor.u32 %v9807, 2147483648
    %v10130 = vxor.u32 %v9812, 2147483648
    %v10131 = vxor.u32 %v9815, 2147483648
    %v10132 = vxor.u32 %v9820, 2147483648
    %v10133 = vxor.u32 %v9823, 2147483648
    %v10134 = vxor.u32 %v9828, 2147483648
    %v10135 = vxor.u32 %v9831, 2147483648
    %v10136 = vxor.u32 %v9836, 2147483648
    %v10137 = vxor.u32 %v9839, 2147483648
    %v10138 = vxor.u32 %v9844, 2147483648
    %v10139 = vxor.u32 %v9847, 2147483648
    %v10140 = vxor.u32 %v9852, 2147483648
    %v10141 = vxor.u32 %v9855, 2147483648
    %v10142 = vxor.u32 %v9860, 2147483648
    %v10143 = vxor.u32 %v9863, 2147483648
    %v10144 = vxor.u32 %v9868, 2147483648
    %v10145 = vxor.u32 %v9871, 2147483648
    %v10146 = vxor.u32 %v9876, 2147483648
    %v10147 = vxor.u32 %v9879, 2147483648
    %v10148 = vxor.u32 %v9884, 2147483648
    %v10149 = vxor.u32 %v9887, 2147483648
    %v10150 = vxor.u32 %v9892, 2147483648
    %v10151 = vxor.u32 %v9895, 2147483648
    %v10152 = vxor.u32 %v9900, 2147483648
    %v10153 = vxor.u32 %v9903, 2147483648
    %v10154 = vxor.u32 %v9908, 2147483648
    %v10155 = vxor.u32 %v9911, 2147483648
    %v10156 = vxor.u32 %v9916, 2147483648
    %v10157 = vxor.u32 %v9919, 2147483648
    %v10158 = vxor.u32 %v9924, 2147483648
    %v10159 = vxor.u32 %v9927, 2147483648
    %v10160 = vxor.u32 %v9932, 2147483648
    %v10161 = vxor.u32 %v9935, 2147483648
    %v10162 = vxor.u32 %v9940, 2147483648
    %v10163 = vxor.u32 %v9943, 2147483648
    %v10164 = vxor.u32 %v9948, 2147483648
    %v10165 = vxor.u32 %v9951, 2147483648
    %v10166 = vxor.u32 %v9956, 2147483648
    %v10167 = vxor.u32 %v9959, 2147483648
    %v10168 = vxor.u32 %v9964, 2147483648
    %v10169 = vxor.u32 %v9967, 2147483648
    %v10170 = vxor.u32 %v9972, 2147483648
    %v10171 = vxor.u32 %v9975, 2147483648
    %v10172 = vxor.u32 %v9980, 2147483648
    %v10173 = vxor.u32 %v9983, 2147483648
    %v10174 = vxor.u32 %v9988, 2147483648
    %v10175 = vxor.u32 %v9991, 2147483648
    %v10176 = vxor.u32 %v9996, 2147483648
    %v10177 = vxor.u32 %v9999, 2147483648
    %v10178 = vxor.u32 %v10004, 2147483648
    %v10179 = vxor.u32 %v10007, 2147483648
    %v10180 = vxor.u32 %v10012, 2147483648
    %v10181 = vxor.u32 %v10015, 2147483648
    %v10182 = vxor.u32 %v10020, 2147483648
    %v10183 = vxor.u32 %v10023, 2147483648
    %v10184 = vxor.u32 %v10028, 2147483648
    %v10185 = vxor.u32 %v10031, 2147483648
    %v10186 = vxor.u32 %v10036, 2147483648
    %v10187 = vxor.u32 %v10039, 2147483648
    %v10188 = vxor.u32 %v10044, 2147483648
    %v10189 = vxor.u32 %v10047, 2147483648
    %v10190 = vxor.u32 %v10052, 2147483648
    %v10191 = vxor.u32 %v10055, 2147483648
    %v10192 = vxor.u32 %v10060, 2147483648
    %v10193 = vxor.u32 %v10063, 2147483648
    %v10194 = vmul.f32 %v10066, 1.442695
    %v10195 = vpow.pop %v10194
    %v10196 = vmul.f32 %v10067, 1.442695
    %v10197 = vpow.pop %v10196
    %v10198 = vmul.f32 %v10068, 1.442695
    %v10199 = vpow.pop %v10198
    %v10200 = vmul.f32 %v10069, 1.442695
    %v10201 = vpow.pop %v10200
    %v10202 = vmul.f32 %v10070, 1.442695
    %v10203 = vpow.pop %v10202
    %v10204 = vmul.f32 %v10071, 1.442695
    %v10205 = vpow.pop %v10204
    %v10206 = vmul.f32 %v10072, 1.442695
    %v10207 = vpow.pop %v10206
    %v10208 = vmul.f32 %v10073, 1.442695
    %v10209 = vpow.pop %v10208
    %v10210 = vmul.f32 %v10074, 1.442695
    %v10211 = vpow.pop %v10210
    %v10212 = vmul.f32 %v10075, 1.442695
    %v10213 = vpow.pop %v10212
    %v10214 = vmul.f32 %v10076, 1.442695
    %v10215 = vpow.pop %v10214
    %v10216 = vmul.f32 %v10077, 1.442695
    %v10217 = vpow.pop %v10216
    %v10218 = vmul.f32 %v10078, 1.442695
    %v10219 = vpow.pop %v10218
    %v10220 = vmul.f32 %v10079, 1.442695
    %v10221 = vpow.pop %v10220
    %v10222 = vmul.f32 %v10080, 1.442695
    %v10223 = vpow.pop %v10222
    %v10224 = vmul.f32 %v10081, 1.442695
    %v10225 = vpow.pop %v10224
    %v10226 = vmul.f32 %v10082, 1.442695
    %v10227 = vpow.pop %v10226
    %v10228 = vmul.f32 %v10083, 1.442695
    %v10229 = vpow.pop %v10228
    %v10230 = vmul.f32 %v10084, 1.442695
    %v10231 = vpow.pop %v10230
    %v10232 = vmul.f32 %v10085, 1.442695
    %v10233 = vpow.pop %v10232
    %v10234 = vmul.f32 %v10086, 1.442695
    %v10235 = vpow.pop %v10234
    %v10236 = vmul.f32 %v10087, 1.442695
    %v10237 = vpow.pop %v10236
    %v10238 = vmul.f32 %v10088, 1.442695
    %v10239 = vpow.pop %v10238
    %v10240 = vmul.f32 %v10089, 1.442695
    %v10241 = vpow.pop %v10240
    %v10242 = vmul.f32 %v10090, 1.442695
    %v10243 = vpow.pop %v10242
    %v10244 = vmul.f32 %v10091, 1.442695
    %v10245 = vpow.pop %v10244
    %v10246 = vmul.f32 %v10092, 1.442695
    %v10247 = vpow.pop %v10246
    %v10248 = vmul.f32 %v10093, 1.442695
    %v10249 = vpow.pop %v10248
    %v10250 = vmul.f32 %v10094, 1.442695
    %v10251 = vpow.pop %v10250
    %v10252 = vmul.f32 %v10095, 1.442695
    %v10253 = vpow.pop %v10252
    %v10254 = vmul.f32 %v10096, 1.442695
    %v10255 = vpow.pop %v10254
    %v10256 = vmul.f32 %v10097, 1.442695
    %v10257 = vpow.pop %v10256
    %v10258 = vmul.f32 %v10098, 1.442695
    %v10259 = vpow.pop %v10258
    %v10260 = vmul.f32 %v10099, 1.442695
    %v10261 = vpow.pop %v10260
    %v10262 = vmul.f32 %v10100, 1.442695
    %v10263 = vpow.pop %v10262
    %v10264 = vmul.f32 %v10101, 1.442695
    %v10265 = vpow.pop %v10264
    %v10266 = vmul.f32 %v10102, 1.442695
    %v10267 = vpow.pop %v10266
    %v10268 = vmul.f32 %v10103, 1.442695
    %v10269 = vpow.pop %v10268
    %v10270 = vmul.f32 %v10104, 1.442695
    %v10271 = vpow.pop %v10270
    %v10272 = vmul.f32 %v10105, 1.442695
    %v10273 = vpow.pop %v10272
    %v10274 = vmul.f32 %v10106, 1.442695
    %v10275 = vpow.pop %v10274
    %v10276 = vmul.f32 %v10107, 1.442695
    %v10277 = vpow.pop %v10276
    %v10278 = vmul.f32 %v10108, 1.442695
    %v10279 = vpow.pop %v10278
    %v10280 = vmul.f32 %v10109, 1.442695
    %v10281 = vpow.pop %v10280
    %v10282 = vmul.f32 %v10110, 1.442695
    %v10283 = vpow.pop %v10282
    %v10284 = vmul.f32 %v10111, 1.442695
    %v10285 = vpow.pop %v10284
    %v10286 = vmul.f32 %v10112, 1.442695
    %v10287 = vpow.pop %v10286
    %v10288 = vmul.f32 %v10113, 1.442695
    %v10289 = vpow.pop %v10288
    %v10290 = vmul.f32 %v10114, 1.442695
    %v10291 = vpow.pop %v10290
    %v10292 = vmul.f32 %v10115, 1.442695
    %v10293 = vpow.pop %v10292
    %v10294 = vmul.f32 %v10116, 1.442695
    %v10295 = vpow.pop %v10294
    %v10296 = vmul.f32 %v10117, 1.442695
    %v10297 = vpow.pop %v10296
    %v10298 = vmul.f32 %v10118, 1.442695
    %v10299 = vpow.pop %v10298
    %v10300 = vmul.f32 %v10119, 1.442695
    %v10301 = vpow.pop %v10300
    %v10302 = vmul.f32 %v10120, 1.442695
    %v10303 = vpow.pop %v10302
    %v10304 = vmul.f32 %v10121, 1.442695
    %v10305 = vpow.pop %v10304
    %v10306 = vmul.f32 %v10122, 1.442695
    %v10307 = vpow.pop %v10306
    %v10308 = vmul.f32 %v10123, 1.442695
    %v10309 = vpow.pop %v10308
    %v10310 = vmul.f32 %v10124, 1.442695
    %v10311 = vpow.pop %v10310
    %v10312 = vmul.f32 %v10125, 1.442695
    %v10313 = vpow.pop %v10312
    %v10314 = vmul.f32 %v10126, 1.442695
    %v10315 = vpow.pop %v10314
    %v10316 = vmul.f32 %v10127, 1.442695
    %v10317 = vpow.pop %v10316
    %v10318 = vmul.f32 %v10128, 1.442695
    %v10319 = vpow.pop %v10318
    %v10320 = vmul.f32 %v10129, 1.442695
    %v10321 = vpow.pop %v10320
    %v10322 = vmul.f32 %v10130, 1.442695
    %v10323 = vpow.pop %v10322
    %v10324 = vmul.f32 %v10131, 1.442695
    %v10325 = vpow.pop %v10324
    %v10326 = vmul.f32 %v10132, 1.442695
    %v10327 = vpow.pop %v10326
    %v10328 = vmul.f32 %v10133, 1.442695
    %v10329 = vpow.pop %v10328
    %v10330 = vmul.f32 %v10134, 1.442695
    %v10331 = vpow.pop %v10330
    %v10332 = vmul.f32 %v10135, 1.442695
    %v10333 = vpow.pop %v10332
    %v10334 = vmul.f32 %v10136, 1.442695
    %v10335 = vpow.pop %v10334
    %v10336 = vmul.f32 %v10137, 1.442695
    %v10337 = vpow.pop %v10336
    %v10338 = vmul.f32 %v10138, 1.442695
    %v10339 = vpow.pop %v10338
    %v10340 = vmul.f32 %v10139, 1.442695
    %v10341 = vpow.pop %v10340
    %v10342 = vmul.f32 %v10140, 1.442695
    %v10343 = vpow.pop %v10342
    %v10344 = vmul.f32 %v10141, 1.442695
    %v10345 = vpow.pop %v10344
    %v10346 = vmul.f32 %v10142, 1.442695
    %v10347 = vpow.pop %v10346
    %v10348 = vmul.f32 %v10143, 1.442695
    %v10349 = vpow.pop %v10348
    %v10350 = vmul.f32 %v10144, 1.442695
    %v10351 = vpow.pop %v10350
    %v10352 = vmul.f32 %v10145, 1.442695
    %v10353 = vpow.pop %v10352
    %v10354 = vmul.f32 %v10146, 1.442695
    %v10355 = vpow.pop %v10354
    %v10356 = vmul.f32 %v10147, 1.442695
    %v10357 = vpow.pop %v10356
    %v10358 = vmul.f32 %v10148, 1.442695
    %v10359 = vpow.pop %v10358
    %v10360 = vmul.f32 %v10149, 1.442695
    %v10361 = vpow.pop %v10360
    %v10362 = vmul.f32 %v10150, 1.442695
    %v10363 = vpow.pop %v10362
    %v10364 = vmul.f32 %v10151, 1.442695
    %v10365 = vpow.pop %v10364
    %v10366 = vmul.f32 %v10152, 1.442695
    %v10367 = vpow.pop %v10366
    %v10368 = vmul.f32 %v10153, 1.442695
    %v10369 = vpow.pop %v10368
    %v10370 = vmul.f32 %v10154, 1.442695
    %v10371 = vpow.pop %v10370
    %v10372 = vmul.f32 %v10155, 1.442695
    %v10373 = vpow.pop %v10372
    %v10374 = vmul.f32 %v10156, 1.442695
    %v10375 = vpow.pop %v10374
    %v10376 = vmul.f32 %v10157, 1.442695
    %v10377 = vpow.pop %v10376
    %v10378 = vmul.f32 %v10158, 1.442695
    %v10379 = vpow.pop %v10378
    %v10380 = vmul.f32 %v10159, 1.442695
    %v10381 = vpow.pop %v10380
    %v10382 = vmul.f32 %v10160, 1.442695
    %v10383 = vpow.pop %v10382
    %v10384 = vmul.f32 %v10161, 1.442695
    %v10385 = vpow.pop %v10384
    %v10386 = vmul.f32 %v10162, 1.442695
    %v10387 = vpow.pop %v10386
    %v10388 = vmul.f32 %v10163, 1.442695
    %v10389 = vpow.pop %v10388
    %v10390 = vmul.f32 %v10164, 1.442695
    %v10391 = vpow.pop %v10390
    %v10392 = vmul.f32 %v10165, 1.442695
    %v10393 = vpow.pop %v10392
    %v10394 = vmul.f32 %v10166, 1.442695
    %v10395 = vpow.pop %v10394
    %v10396 = vmul.f32 %v10167, 1.442695
    %v10397 = vpow.pop %v10396
    %v10398 = vmul.f32 %v10168, 1.442695
    %v10399 = vpow.pop %v10398
    %v10400 = vmul.f32 %v10169, 1.442695
    %v10401 = vpow.pop %v10400
    %v10402 = vmul.f32 %v10170, 1.442695
    %v10403 = vpow.pop %v10402
    %v10404 = vmul.f32 %v10171, 1.442695
    %v10405 = vpow.pop %v10404
    %v10406 = vmul.f32 %v10172, 1.442695
    %v10407 = vpow.pop %v10406
    %v10408 = vmul.f32 %v10173, 1.442695
    %v10409 = vpow.pop %v10408
    %v10410 = vmul.f32 %v10174, 1.442695
    %v10411 = vpow.pop %v10410
    %v10412 = vmul.f32 %v10175, 1.442695
    %v10413 = vpow.pop %v10412
    %v10414 = vmul.f32 %v10176, 1.442695
    %v10415 = vpow.pop %v10414
    %v10416 = vmul.f32 %v10177, 1.442695
    %v10417 = vpow.pop %v10416
    %v10418 = vmul.f32 %v10178, 1.442695
    %v10419 = vpow.pop %v10418
    %v10420 = vmul.f32 %v10179, 1.442695
    %v10421 = vpow.pop %v10420
    %v10422 = vmul.f32 %v10180, 1.442695
    %v10423 = vpow.pop %v10422
    %v10424 = vmul.f32 %v10181, 1.442695
    %v10425 = vpow.pop %v10424
    %v10426 = vmul.f32 %v10182, 1.442695
    %v10427 = vpow.pop %v10426
    %v10428 = vmul.f32 %v10183, 1.442695
    %v10429 = vpow.pop %v10428
    %v10430 = vmul.f32 %v10184, 1.442695
    %v10431 = vpow.pop %v10430
    %v10432 = vmul.f32 %v10185, 1.442695
    %v10433 = vpow.pop %v10432
    %v10434 = vmul.f32 %v10186, 1.442695
    %v10435 = vpow.pop %v10434
    %v10436 = vmul.f32 %v10187, 1.442695
    %v10437 = vpow.pop %v10436
    %v10438 = vmul.f32 %v10188, 1.442695
    %v10439 = vpow.pop %v10438
    %v10440 = vmul.f32 %v10189, 1.442695
    %v10441 = vpow.pop %v10440
    %v10442 = vmul.f32 %v10190, 1.442695
    %v10443 = vpow.pop %v10442
    %v10444 = vmul.f32 %v10191, 1.442695
    %v10445 = vpow.pop %v10444
    %v10446 = vmul.f32 %v10192, 1.442695
    %v10447 = vpow.pop %v10446
    %v10448 = vmul.f32 %v10193, 1.442695
    %v10449 = vpow.pop %v10448
    %v10450 = vadd.f32 %v10195, 1.0
    %v10451 = vadd.f32 %v10197, 1.0
    %v10452 = vadd.f32 %v10199, 1.0
    %v10453 = vadd.f32 %v10201, 1.0
    %v10454 = vadd.f32 %v10203, 1.0
    %v10455 = vadd.f32 %v10205, 1.0
    %v10456 = vadd.f32 %v10207, 1.0
    %v10457 = vadd.f32 %v10209, 1.0
    %v10458 = vadd.f32 %v10211, 1.0
    %v10459 = vadd.f32 %v10213, 1.0
    %v10460 = vadd.f32 %v10215, 1.0
    %v10461 = vadd.f32 %v10217, 1.0
    %v10462 = vadd.f32 %v10219, 1.0
    %v10463 = vadd.f32 %v10221, 1.0
    %v10464 = vadd.f32 %v10223, 1.0
    %v10465 = vadd.f32 %v10225, 1.0
    %v10466 = vadd.f32 %v10227, 1.0
    %v10467 = vadd.f32 %v10229, 1.0
    %v10468 = vadd.f32 %v10231, 1.0
    %v10469 = vadd.f32 %v10233, 1.0
    %v10470 = vadd.f32 %v10235, 1.0
    %v10471 = vadd.f32 %v10237, 1.0
    %v10472 = vadd.f32 %v10239, 1.0
    %v10473 = vadd.f32 %v10241, 1.0
    %v10474 = vadd.f32 %v10243, 1.0
    %v10475 = vadd.f32 %v10245, 1.0
    %v10476 = vadd.f32 %v10247, 1.0
    %v10477 = vadd.f32 %v10249, 1.0
    %v10478 = vadd.f32 %v10251, 1.0
    %v10479 = vadd.f32 %v10253, 1.0
    %v10480 = vadd.f32 %v10255, 1.0
    %v10481 = vadd.f32 %v10257, 1.0
    %v10482 = vadd.f32 %v10259, 1.0
    %v10483 = vadd.f32 %v10261, 1.0
    %v10484 = vadd.f32 %v10263, 1.0
    %v10485 = vadd.f32 %v10265, 1.0
    %v10486 = vadd.f32 %v10267, 1.0
    %v10487 = vadd.f32 %v10269, 1.0
    %v10488 = vadd.f32 %v10271, 1.0
    %v10489 = vadd.f32 %v10273, 1.0
    %v10490 = vadd.f32 %v10275, 1.0
    %v10491 = vadd.f32 %v10277, 1.0
    %v10492 = vadd.f32 %v10279, 1.0
    %v10493 = vadd.f32 %v10281, 1.0
    %v10494 = vadd.f32 %v10283, 1.0
    %v10495 = vadd.f32 %v10285, 1.0
    %v10496 = vadd.f32 %v10287, 1.0
    %v10497 = vadd.f32 %v10289, 1.0
    %v10498 = vadd.f32 %v10291, 1.0
    %v10499 = vadd.f32 %v10293, 1.0
    %v10500 = vadd.f32 %v10295, 1.0
    %v10501 = vadd.f32 %v10297, 1.0
    %v10502 = vadd.f32 %v10299, 1.0
    %v10503 = vadd.f32 %v10301, 1.0
    %v10504 = vadd.f32 %v10303, 1.0
    %v10505 = vadd.f32 %v10305, 1.0
    %v10506 = vadd.f32 %v10307, 1.0
    %v10507 = vadd.f32 %v10309, 1.0
    %v10508 = vadd.f32 %v10311, 1.0
    %v10509 = vadd.f32 %v10313, 1.0
    %v10510 = vadd.f32 %v10315, 1.0
    %v10511 = vadd.f32 %v10317, 1.0
    %v10512 = vadd.f32 %v10319, 1.0
    %v10513 = vadd.f32 %v10321, 1.0
    %v10514 = vadd.f32 %v10323, 1.0
    %v10515 = vadd.f32 %v10325, 1.0
    %v10516 = vadd.f32 %v10327, 1.0
    %v10517 = vadd.f32 %v10329, 1.0
    %v10518 = vadd.f32 %v10331, 1.0
    %v10519 = vadd.f32 %v10333, 1.0
    %v10520 = vadd.f32 %v10335, 1.0
    %v10521 = vadd.f32 %v10337, 1.0
    %v10522 = vadd.f32 %v10339, 1.0
    %v10523 = vadd.f32 %v10341, 1.0
    %v10524 = vadd.f32 %v10343, 1.0
    %v10525 = vadd.f32 %v10345, 1.0
    %v10526 = vadd.f32 %v10347, 1.0
    %v10527 = vadd.f32 %v10349, 1.0
    %v10528 = vadd.f32 %v10351, 1.0
    %v10529 = vadd.f32 %v10353, 1.0
    %v10530 = vadd.f32 %v10355, 1.0
    %v10531 = vadd.f32 %v10357, 1.0
    %v10532 = vadd.f32 %v10359, 1.0
    %v10533 = vadd.f32 %v10361, 1.0
    %v10534 = vadd.f32 %v10363, 1.0
    %v10535 = vadd.f32 %v10365, 1.0
    %v10536 = vadd.f32 %v10367, 1.0
    %v10537 = vadd.f32 %v10369, 1.0
    %v10538 = vadd.f32 %v10371, 1.0
    %v10539 = vadd.f32 %v10373, 1.0
    %v10540 = vadd.f32 %v10375, 1.0
    %v10541 = vadd.f32 %v10377, 1.0
    %v10542 = vadd.f32 %v10379, 1.0
    %v10543 = vadd.f32 %v10381, 1.0
    %v10544 = vadd.f32 %v10383, 1.0
    %v10545 = vadd.f32 %v10385, 1.0
    %v10546 = vadd.f32 %v10387, 1.0
    %v10547 = vadd.f32 %v10389, 1.0
    %v10548 = vadd.f32 %v10391, 1.0
    %v10549 = vadd.f32 %v10393, 1.0
    %v10550 = vadd.f32 %v10395, 1.0
    %v10551 = vadd.f32 %v10397, 1.0
    %v10552 = vadd.f32 %v10399, 1.0
    %v10553 = vadd.f32 %v10401, 1.0
    %v10554 = vadd.f32 %v10403, 1.0
    %v10555 = vadd.f32 %v10405, 1.0
    %v10556 = vadd.f32 %v10407, 1.0
    %v10557 = vadd.f32 %v10409, 1.0
    %v10558 = vadd.f32 %v10411, 1.0
    %v10559 = vadd.f32 %v10413, 1.0
    %v10560 = vadd.f32 %v10415, 1.0
    %v10561 = vadd.f32 %v10417, 1.0
    %v10562 = vadd.f32 %v10419, 1.0
    %v10563 = vadd.f32 %v10421, 1.0
    %v10564 = vadd.f32 %v10423, 1.0
    %v10565 = vadd.f32 %v10425, 1.0
    %v10566 = vadd.f32 %v10427, 1.0
    %v10567 = vadd.f32 %v10429, 1.0
    %v10568 = vadd.f32 %v10431, 1.0
    %v10569 = vadd.f32 %v10433, 1.0
    %v10570 = vadd.f32 %v10435, 1.0
    %v10571 = vadd.f32 %v10437, 1.0
    %v10572 = vadd.f32 %v10439, 1.0
    %v10573 = vadd.f32 %v10441, 1.0
    %v10574 = vadd.f32 %v10443, 1.0
    %v10575 = vadd.f32 %v10445, 1.0
    %v10576 = vadd.f32 %v10447, 1.0
    %v10577 = vadd.f32 %v10449, 1.0
    %v10578 = vrcp.pop %v10450
    %v10579 = vmul.f32 1.0, %v10578
    %v10580 = vrcp.pop %v10451
    %v10581 = vmul.f32 1.0, %v10580
    %v10582 = vrcp.pop %v10452
    %v10583 = vmul.f32 1.0, %v10582
    %v10584 = vrcp.pop %v10453
    %v10585 = vmul.f32 1.0, %v10584
    %v10586 = vrcp.pop %v10454
    %v10587 = vmul.f32 1.0, %v10586
    %v10588 = vrcp.pop %v10455
    %v10589 = vmul.f32 1.0, %v10588
    %v10590 = vrcp.pop %v10456
    %v10591 = vmul.f32 1.0, %v10590
    %v10592 = vrcp.pop %v10457
    %v10593 = vmul.f32 1.0, %v10592
    %v10594 = vrcp.pop %v10458
    %v10595 = vmul.f32 1.0, %v10594
    %v10596 = vrcp.pop %v10459
    %v10597 = vmul.f32 1.0, %v10596
    %v10598 = vrcp.pop %v10460
    %v10599 = vmul.f32 1.0, %v10598
    %v10600 = vrcp.pop %v10461
    %v10601 = vmul.f32 1.0, %v10600
    %v10602 = vrcp.pop %v10462
    %v10603 = vmul.f32 1.0, %v10602
    %v10604 = vrcp.pop %v10463
    %v10605 = vmul.f32 1.0, %v10604
    %v10606 = vrcp.pop %v10464
    %v10607 = vmul.f32 1.0, %v10606
    %v10608 = vrcp.pop %v10465
    %v10609 = vmul.f32 1.0, %v10608
    %v10610 = vrcp.pop %v10466
    %v10611 = vmul.f32 1.0, %v10610
    %v10612 = vrcp.pop %v10467
    %v10613 = vmul.f32 1.0, %v10612
    %v10614 = vrcp.pop %v10468
    %v10615 = vmul.f32 1.0, %v10614
    %v10616 = vrcp.pop %v10469
    %v10617 = vmul.f32 1.0, %v10616
    %v10618 = vrcp.pop %v10470
    %v10619 = vmul.f32 1.0, %v10618
    %v10620 = vrcp.pop %v10471
    %v10621 = vmul.f32 1.0, %v10620
    %v10622 = vrcp.pop %v10472
    %v10623 = vmul.f32 1.0, %v10622
    %v10624 = vrcp.pop %v10473
    %v10625 = vmul.f32 1.0, %v10624
    %v10626 = vrcp.pop %v10474
    %v10627 = vmul.f32 1.0, %v10626
    %v10628 = vrcp.pop %v10475
    %v10629 = vmul.f32 1.0, %v10628
    %v10630 = vrcp.pop %v10476
    %v10631 = vmul.f32 1.0, %v10630
    %v10632 = vrcp.pop %v10477
    %v10633 = vmul.f32 1.0, %v10632
    %v10634 = vrcp.pop %v10478
    %v10635 = vmul.f32 1.0, %v10634
    %v10636 = vrcp.pop %v10479
    %v10637 = vmul.f32 1.0, %v10636
    %v10638 = vrcp.pop %v10480
    %v10639 = vmul.f32 1.0, %v10638
    %v10640 = vrcp.pop %v10481
    %v10641 = vmul.f32 1.0, %v10640
    %v10642 = vrcp.pop %v10482
    %v10643 = vmul.f32 1.0, %v10642
    %v10644 = vrcp.pop %v10483
    %v10645 = vmul.f32 1.0, %v10644
    %v10646 = vrcp.pop %v10484
    %v10647 = vmul.f32 1.0, %v10646
    %v10648 = vrcp.pop %v10485
    %v10649 = vmul.f32 1.0, %v10648
    %v10650 = vrcp.pop %v10486
    %v10651 = vmul.f32 1.0, %v10650
    %v10652 = vrcp.pop %v10487
    %v10653 = vmul.f32 1.0, %v10652
    %v10654 = vrcp.pop %v10488
    %v10655 = vmul.f32 1.0, %v10654
    %v10656 = vrcp.pop %v10489
    %v10657 = vmul.f32 1.0, %v10656
    %v10658 = vrcp.pop %v10490
    %v10659 = vmul.f32 1.0, %v10658
    %v10660 = vrcp.pop %v10491
    %v10661 = vmul.f32 1.0, %v10660
    %v10662 = vrcp.pop %v10492
    %v10663 = vmul.f32 1.0, %v10662
    %v10664 = vrcp.pop %v10493
    %v10665 = vmul.f32 1.0, %v10664
    %v10666 = vrcp.pop %v10494
    %v10667 = vmul.f32 1.0, %v10666
    %v10668 = vrcp.pop %v10495
    %v10669 = vmul.f32 1.0, %v10668
    %v10670 = vrcp.pop %v10496
    %v10671 = vmul.f32 1.0, %v10670
    %v10672 = vrcp.pop %v10497
    %v10673 = vmul.f32 1.0, %v10672
    %v10674 = vrcp.pop %v10498
    %v10675 = vmul.f32 1.0, %v10674
    %v10676 = vrcp.pop %v10499
    %v10677 = vmul.f32 1.0, %v10676
    %v10678 = vrcp.pop %v10500
    %v10679 = vmul.f32 1.0, %v10678
    %v10680 = vrcp.pop %v10501
    %v10681 = vmul.f32 1.0, %v10680
    %v10682 = vrcp.pop %v10502
    %v10683 = vmul.f32 1.0, %v10682
    %v10684 = vrcp.pop %v10503
    %v10685 = vmul.f32 1.0, %v10684
    %v10686 = vrcp.pop %v10504
    %v10687 = vmul.f32 1.0, %v10686
    %v10688 = vrcp.pop %v10505
    %v10689 = vmul.f32 1.0, %v10688
    %v10690 = vrcp.pop %v10506
    %v10691 = vmul.f32 1.0, %v10690
    %v10692 = vrcp.pop %v10507
    %v10693 = vmul.f32 1.0, %v10692
    %v10694 = vrcp.pop %v10508
    %v10695 = vmul.f32 1.0, %v10694
    %v10696 = vrcp.pop %v10509
    %v10697 = vmul.f32 1.0, %v10696
    %v10698 = vrcp.pop %v10510
    %v10699 = vmul.f32 1.0, %v10698
    %v10700 = vrcp.pop %v10511
    %v10701 = vmul.f32 1.0, %v10700
    %v10702 = vrcp.pop %v10512
    %v10703 = vmul.f32 1.0, %v10702
    %v10704 = vrcp.pop %v10513
    %v10705 = vmul.f32 1.0, %v10704
    %v10706 = vrcp.pop %v10514
    %v10707 = vmul.f32 1.0, %v10706
    %v10708 = vrcp.pop %v10515
    %v10709 = vmul.f32 1.0, %v10708
    %v10710 = vrcp.pop %v10516
    %v10711 = vmul.f32 1.0, %v10710
    %v10712 = vrcp.pop %v10517
    %v10713 = vmul.f32 1.0, %v10712
    %v10714 = vrcp.pop %v10518
    %v10715 = vmul.f32 1.0, %v10714
    %v10716 = vrcp.pop %v10519
    %v10717 = vmul.f32 1.0, %v10716
    %v10718 = vrcp.pop %v10520
    %v10719 = vmul.f32 1.0, %v10718
    %v10720 = vrcp.pop %v10521
    %v10721 = vmul.f32 1.0, %v10720
    %v10722 = vrcp.pop %v10522
    %v10723 = vmul.f32 1.0, %v10722
    %v10724 = vrcp.pop %v10523
    %v10725 = vmul.f32 1.0, %v10724
    %v10726 = vrcp.pop %v10524
    %v10727 = vmul.f32 1.0, %v10726
    %v10728 = vrcp.pop %v10525
    %v10729 = vmul.f32 1.0, %v10728
    %v10730 = vrcp.pop %v10526
    %v10731 = vmul.f32 1.0, %v10730
    %v10732 = vrcp.pop %v10527
    %v10733 = vmul.f32 1.0, %v10732
    %v10734 = vrcp.pop %v10528
    %v10735 = vmul.f32 1.0, %v10734
    %v10736 = vrcp.pop %v10529
    %v10737 = vmul.f32 1.0, %v10736
    %v10738 = vrcp.pop %v10530
    %v10739 = vmul.f32 1.0, %v10738
    %v10740 = vrcp.pop %v10531
    %v10741 = vmul.f32 1.0, %v10740
    %v10742 = vrcp.pop %v10532
    %v10743 = vmul.f32 1.0, %v10742
    %v10744 = vrcp.pop %v10533
    %v10745 = vmul.f32 1.0, %v10744
    %v10746 = vrcp.pop %v10534
    %v10747 = vmul.f32 1.0, %v10746
    %v10748 = vrcp.pop %v10535
    %v10749 = vmul.f32 1.0, %v10748
    %v10750 = vrcp.pop %v10536
    %v10751 = vmul.f32 1.0, %v10750
    %v10752 = vrcp.pop %v10537
    %v10753 = vmul.f32 1.0, %v10752
    %v10754 = vrcp.pop %v10538
    %v10755 = vmul.f32 1.0, %v10754
    %v10756 = vrcp.pop %v10539
    %v10757 = vmul.f32 1.0, %v10756
    %v10758 = vrcp.pop %v10540
    %v10759 = vmul.f32 1.0, %v10758
    %v10760 = vrcp.pop %v10541
    %v10761 = vmul.f32 1.0, %v10760
    %v10762 = vrcp.pop %v10542
    %v10763 = vmul.f32 1.0, %v10762
    %v10764 = vrcp.pop %v10543
    %v10765 = vmul.f32 1.0, %v10764
    %v10766 = vrcp.pop %v10544
    %v10767 = vmul.f32 1.0, %v10766
    %v10768 = vrcp.pop %v10545
    %v10769 = vmul.f32 1.0, %v10768
    %v10770 = vrcp.pop %v10546
    %v10771 = vmul.f32 1.0, %v10770
    %v10772 = vrcp.pop %v10547
    %v10773 = vmul.f32 1.0, %v10772
    %v10774 = vrcp.pop %v10548
    %v10775 = vmul.f32 1.0, %v10774
    %v10776 = vrcp.pop %v10549
    %v10777 = vmul.f32 1.0, %v10776
    %v10778 = vrcp.pop %v10550
    %v10779 = vmul.f32 1.0, %v10778
    %v10780 = vrcp.pop %v10551
    %v10781 = vmul.f32 1.0, %v10780
    %v10782 = vrcp.pop %v10552
    %v10783 = vmul.f32 1.0, %v10782
    %v10784 = vrcp.pop %v10553
    %v10785 = vmul.f32 1.0, %v10784
    %v10786 = vrcp.pop %v10554
    %v10787 = vmul.f32 1.0, %v10786
    %v10788 = vrcp.pop %v10555
    %v10789 = vmul.f32 1.0, %v10788
    %v10790 = vrcp.pop %v10556
    %v10791 = vmul.f32 1.0, %v10790
    %v10792 = vrcp.pop %v10557
    %v10793 = vmul.f32 1.0, %v10792
    %v10794 = vrcp.pop %v10558
    %v10795 = vmul.f32 1.0, %v10794
    %v10796 = vrcp.pop %v10559
    %v10797 = vmul.f32 1.0, %v10796
    %v10798 = vrcp.pop %v10560
    %v10799 = vmul.f32 1.0, %v10798
    %v10800 = vrcp.pop %v10561
    %v10801 = vmul.f32 1.0, %v10800
    %v10802 = vrcp.pop %v10562
    %v10803 = vmul.f32 1.0, %v10802
    %v10804 = vrcp.pop %v10563
    %v10805 = vmul.f32 1.0, %v10804
    %v10806 = vrcp.pop %v10564
    %v10807 = vmul.f32 1.0, %v10806
    %v10808 = vrcp.pop %v10565
    %v10809 = vmul.f32 1.0, %v10808
    %v10810 = vrcp.pop %v10566
    %v10811 = vmul.f32 1.0, %v10810
    %v10812 = vrcp.pop %v10567
    %v10813 = vmul.f32 1.0, %v10812
    %v10814 = vrcp.pop %v10568
    %v10815 = vmul.f32 1.0, %v10814
    %v10816 = vrcp.pop %v10569
    %v10817 = vmul.f32 1.0, %v10816
    %v10818 = vrcp.pop %v10570
    %v10819 = vmul.f32 1.0, %v10818
    %v10820 = vrcp.pop %v10571
    %v10821 = vmul.f32 1.0, %v10820
    %v10822 = vrcp.pop %v10572
    %v10823 = vmul.f32 1.0, %v10822
    %v10824 = vrcp.pop %v10573
    %v10825 = vmul.f32 1.0, %v10824
    %v10826 = vrcp.pop %v10574
    %v10827 = vmul.f32 1.0, %v10826
    %v10828 = vrcp.pop %v10575
    %v10829 = vmul.f32 1.0, %v10828
    %v10830 = vrcp.pop %v10576
    %v10831 = vmul.f32 1.0, %v10830
    %v10832 = vrcp.pop %v10577
    %v10833 = vmul.f32 1.0, %v10832
    %v10834 = vmul.f32 %v9556, %v10579
    %v10835 = vmul.f32 %v9559, %v10581
    %v10836 = vmul.f32 %v9564, %v10583
    %v10837 = vmul.f32 %v9567, %v10585
    %v10838 = vmul.f32 %v9572, %v10587
    %v10839 = vmul.f32 %v9575, %v10589
    %v10840 = vmul.f32 %v9580, %v10591
    %v10841 = vmul.f32 %v9583, %v10593
    %v10842 = vmul.f32 %v9588, %v10595
    %v10843 = vmul.f32 %v9591, %v10597
    %v10844 = vmul.f32 %v9596, %v10599
    %v10845 = vmul.f32 %v9599, %v10601
    %v10846 = vmul.f32 %v9604, %v10603
    %v10847 = vmul.f32 %v9607, %v10605
    %v10848 = vmul.f32 %v9612, %v10607
    %v10849 = vmul.f32 %v9615, %v10609
    %v10850 = vmul.f32 %v9620, %v10611
    %v10851 = vmul.f32 %v9623, %v10613
    %v10852 = vmul.f32 %v9628, %v10615
    %v10853 = vmul.f32 %v9631, %v10617
    %v10854 = vmul.f32 %v9636, %v10619
    %v10855 = vmul.f32 %v9639, %v10621
    %v10856 = vmul.f32 %v9644, %v10623
    %v10857 = vmul.f32 %v9647, %v10625
    %v10858 = vmul.f32 %v9652, %v10627
    %v10859 = vmul.f32 %v9655, %v10629
    %v10860 = vmul.f32 %v9660, %v10631
    %v10861 = vmul.f32 %v9663, %v10633
    %v10862 = vmul.f32 %v9668, %v10635
    %v10863 = vmul.f32 %v9671, %v10637
    %v10864 = vmul.f32 %v9676, %v10639
    %v10865 = vmul.f32 %v9679, %v10641
    %v10866 = vmul.f32 %v9684, %v10643
    %v10867 = vmul.f32 %v9687, %v10645
    %v10868 = vmul.f32 %v9692, %v10647
    %v10869 = vmul.f32 %v9695, %v10649
    %v10870 = vmul.f32 %v9700, %v10651
    %v10871 = vmul.f32 %v9703, %v10653
    %v10872 = vmul.f32 %v9708, %v10655
    %v10873 = vmul.f32 %v9711, %v10657
    %v10874 = vmul.f32 %v9716, %v10659
    %v10875 = vmul.f32 %v9719, %v10661
    %v10876 = vmul.f32 %v9724, %v10663
    %v10877 = vmul.f32 %v9727, %v10665
    %v10878 = vmul.f32 %v9732, %v10667
    %v10879 = vmul.f32 %v9735, %v10669
    %v10880 = vmul.f32 %v9740, %v10671
    %v10881 = vmul.f32 %v9743, %v10673
    %v10882 = vmul.f32 %v9748, %v10675
    %v10883 = vmul.f32 %v9751, %v10677
    %v10884 = vmul.f32 %v9756, %v10679
    %v10885 = vmul.f32 %v9759, %v10681
    %v10886 = vmul.f32 %v9764, %v10683
    %v10887 = vmul.f32 %v9767, %v10685
    %v10888 = vmul.f32 %v9772, %v10687
    %v10889 = vmul.f32 %v9775, %v10689
    %v10890 = vmul.f32 %v9780, %v10691
    %v10891 = vmul.f32 %v9783, %v10693
    %v10892 = vmul.f32 %v9788, %v10695
    %v10893 = vmul.f32 %v9791, %v10697
    %v10894 = vmul.f32 %v9796, %v10699
    %v10895 = vmul.f32 %v9799, %v10701
    %v10896 = vmul.f32 %v9804, %v10703
    %v10897 = vmul.f32 %v9807, %v10705
    %v10898 = vmul.f32 %v9812, %v10707
    %v10899 = vmul.f32 %v9815, %v10709
    %v10900 = vmul.f32 %v9820, %v10711
    %v10901 = vmul.f32 %v9823, %v10713
    %v10902 = vmul.f32 %v9828, %v10715
    %v10903 = vmul.f32 %v9831, %v10717
    %v10904 = vmul.f32 %v9836, %v10719
    %v10905 = vmul.f32 %v9839, %v10721
    %v10906 = vmul.f32 %v9844, %v10723
    %v10907 = vmul.f32 %v9847, %v10725
    %v10908 = vmul.f32 %v9852, %v10727
    %v10909 = vmul.f32 %v9855, %v10729
    %v10910 = vmul.f32 %v9860, %v10731
    %v10911 = vmul.f32 %v9863, %v10733
    %v10912 = vmul.f32 %v9868, %v10735
    %v10913 = vmul.f32 %v9871, %v10737
    %v10914 = vmul.f32 %v9876, %v10739
    %v10915 = vmul.f32 %v9879, %v10741
    %v10916 = vmul.f32 %v9884, %v10743
    %v10917 = vmul.f32 %v9887, %v10745
    %v10918 = vmul.f32 %v9892, %v10747
    %v10919 = vmul.f32 %v9895, %v10749
    %v10920 = vmul.f32 %v9900, %v10751
    %v10921 = vmul.f32 %v9903, %v10753
    %v10922 = vmul.f32 %v9908, %v10755
    %v10923 = vmul.f32 %v9911, %v10757
    %v10924 = vmul.f32 %v9916, %v10759
    %v10925 = vmul.f32 %v9919, %v10761
    %v10926 = vmul.f32 %v9924, %v10763
    %v10927 = vmul.f32 %v9927, %v10765
    %v10928 = vmul.f32 %v9932, %v10767
    %v10929 = vmul.f32 %v9935, %v10769
    %v10930 = vmul.f32 %v9940, %v10771
    %v10931 = vmul.f32 %v9943, %v10773
    %v10932 = vmul.f32 %v9948, %v10775
    %v10933 = vmul.f32 %v9951, %v10777
    %v10934 = vmul.f32 %v9956, %v10779
    %v10935 = vmul.f32 %v9959, %v10781
    %v10936 = vmul.f32 %v9964, %v10783
    %v10937 = vmul.f32 %v9967, %v10785
    %v10938 = vmul.f32 %v9972, %v10787
    %v10939 = vmul.f32 %v9975, %v10789
    %v10940 = vmul.f32 %v9980, %v10791
    %v10941 = vmul.f32 %v9983, %v10793
    %v10942 = vmul.f32 %v9988, %v10795
    %v10943 = vmul.f32 %v9991, %v10797
    %v10944 = vmul.f32 %v9996, %v10799
    %v10945 = vmul.f32 %v9999, %v10801
    %v10946 = vmul.f32 %v10004, %v10803
    %v10947 = vmul.f32 %v10007, %v10805
    %v10948 = vmul.f32 %v10012, %v10807
    %v10949 = vmul.f32 %v10015, %v10809
    %v10950 = vmul.f32 %v10020, %v10811
    %v10951 = vmul.f32 %v10023, %v10813
    %v10952 = vmul.f32 %v10028, %v10815
    %v10953 = vmul.f32 %v10031, %v10817
    %v10954 = vmul.f32 %v10036, %v10819
    %v10955 = vmul.f32 %v10039, %v10821
    %v10956 = vmul.f32 %v10044, %v10823
    %v10957 = vmul.f32 %v10047, %v10825
    %v10958 = vmul.f32 %v10052, %v10827
    %v10959 = vmul.f32 %v10055, %v10829
    %v10960 = vmul.f32 %v10060, %v10831
    %v10961 = vmul.f32 %v10063, %v10833
    %11090 = vrot.lane.b32.xlu0 %v10579, 64
    %v11091 = vpop.permute.xlu0 %11090
    %11092 = vrot.lane.b32.xlu0 %v10581, 64
    %v11093 = vpop.permute.xlu0 %11092
    %11094 = vrot.lane.b32.xlu0 %v10583, 64
    %v11095 = vpop.permute.xlu0 %11094
    %11096 = vrot.lane.b32.xlu0 %v10585, 64
    %v11097 = vpop.permute.xlu0 %11096
    %11098 = vrot.lane.b32.xlu0 %v10587, 64
    %v11099 = vpop.permute.xlu0 %11098
    %11100 = vrot.lane.b32.xlu0 %v10589, 64
    %v11101 = vpop.permute.xlu0 %11100
    %11102 = vrot.lane.b32.xlu0 %v10591, 64
    %v11103 = vpop.permute.xlu0 %11102
    %11104 = vrot.lane.b32.xlu0 %v10593, 64
    %v11105 = vpop.permute.xlu0 %11104
    %11106 = vrot.lane.b32.xlu0 %v10595, 64
    %v11107 = vpop.permute.xlu0 %11106
    %11108 = vrot.lane.b32.xlu0 %v10597, 64
    %v11109 = vpop.permute.xlu0 %11108
    %11110 = vrot.lane.b32.xlu0 %v10599, 64
    %v11111 = vpop.permute.xlu0 %11110
    %11112 = vrot.lane.b32.xlu0 %v10601, 64
    %v11113 = vpop.permute.xlu0 %11112
    %11114 = vrot.lane.b32.xlu0 %v10603, 64
    %v11115 = vpop.permute.xlu0 %11114
    %11116 = vrot.lane.b32.xlu0 %v10605, 64
    %v11117 = vpop.permute.xlu0 %11116
    %11118 = vrot.lane.b32.xlu0 %v10607, 64
    %v11119 = vpop.permute.xlu0 %11118
    %11120 = vrot.lane.b32.xlu0 %v10609, 64
    %v11121 = vpop.permute.xlu0 %11120
    %11122 = vrot.lane.b32.xlu0 %v10611, 64
    %v11123 = vpop.permute.xlu0 %11122
    %11124 = vrot.lane.b32.xlu0 %v10613, 64
    %v11125 = vpop.permute.xlu0 %11124
    %11126 = vrot.lane.b32.xlu0 %v10615, 64
    %v11127 = vpop.permute.xlu0 %11126
    %11128 = vrot.lane.b32.xlu0 %v10617, 64
    %v11129 = vpop.permute.xlu0 %11128
    %11130 = vrot.lane.b32.xlu0 %v10619, 64
    %v11131 = vpop.permute.xlu0 %11130
    %11132 = vrot.lane.b32.xlu0 %v10621, 64
    %v11133 = vpop.permute.xlu0 %11132
    %11134 = vrot.lane.b32.xlu0 %v10623, 64
    %v11135 = vpop.permute.xlu0 %11134
    %11136 = vrot.lane.b32.xlu0 %v10625, 64
    %v11137 = vpop.permute.xlu0 %11136
    %11138 = vrot.lane.b32.xlu0 %v10627, 64
    %v11139 = vpop.permute.xlu0 %11138
    %11140 = vrot.lane.b32.xlu0 %v10629, 64
    %v11141 = vpop.permute.xlu0 %11140
    %11142 = vrot.lane.b32.xlu0 %v10631, 64
    %v11143 = vpop.permute.xlu0 %11142
    %11144 = vrot.lane.b32.xlu0 %v10633, 64
    %v11145 = vpop.permute.xlu0 %11144
    %11146 = vrot.lane.b32.xlu0 %v10635, 64
    %v11147 = vpop.permute.xlu0 %11146
    %11148 = vrot.lane.b32.xlu0 %v10637, 64
    %v11149 = vpop.permute.xlu0 %11148
    %11150 = vrot.lane.b32.xlu0 %v10639, 64
    %v11151 = vpop.permute.xlu0 %11150
    %11152 = vrot.lane.b32.xlu0 %v10641, 64
    %v11153 = vpop.permute.xlu0 %11152
    %11154 = vrot.lane.b32.xlu0 %v10643, 64
    %v11155 = vpop.permute.xlu0 %11154
    %11156 = vrot.lane.b32.xlu0 %v10645, 64
    %v11157 = vpop.permute.xlu0 %11156
    %11158 = vrot.lane.b32.xlu0 %v10647, 64
    %v11159 = vpop.permute.xlu0 %11158
    %11160 = vrot.lane.b32.xlu0 %v10649, 64
    %v11161 = vpop.permute.xlu0 %11160
    %11162 = vrot.lane.b32.xlu0 %v10651, 64
    %v11163 = vpop.permute.xlu0 %11162
    %11164 = vrot.lane.b32.xlu0 %v10653, 64
    %v11165 = vpop.permute.xlu0 %11164
    %11166 = vrot.lane.b32.xlu0 %v10655, 64
    %v11167 = vpop.permute.xlu0 %11166
    %11168 = vrot.lane.b32.xlu0 %v10657, 64
    %v11169 = vpop.permute.xlu0 %11168
    %11170 = vrot.lane.b32.xlu0 %v10659, 64
    %v11171 = vpop.permute.xlu0 %11170
    %11172 = vrot.lane.b32.xlu0 %v10661, 64
    %v11173 = vpop.permute.xlu0 %11172
    %11174 = vrot.lane.b32.xlu0 %v10663, 64
    %v11175 = vpop.permute.xlu0 %11174
    %11176 = vrot.lane.b32.xlu0 %v10665, 64
    %v11177 = vpop.permute.xlu0 %11176
    %11178 = vrot.lane.b32.xlu0 %v10667, 64
    %v11179 = vpop.permute.xlu0 %11178
    %11180 = vrot.lane.b32.xlu0 %v10669, 64
    %v11181 = vpop.permute.xlu0 %11180
    %11182 = vrot.lane.b32.xlu0 %v10671, 64
    %v11183 = vpop.permute.xlu0 %11182
    %11184 = vrot.lane.b32.xlu0 %v10673, 64
    %v11185 = vpop.permute.xlu0 %11184
    %11186 = vrot.lane.b32.xlu0 %v10675, 64
    %v11187 = vpop.permute.xlu0 %11186
    %11188 = vrot.lane.b32.xlu0 %v10677, 64
    %v11189 = vpop.permute.xlu0 %11188
    %11190 = vrot.lane.b32.xlu0 %v10679, 64
    %v11191 = vpop.permute.xlu0 %11190
    %11192 = vrot.lane.b32.xlu0 %v10681, 64
    %v11193 = vpop.permute.xlu0 %11192
    %11194 = vrot.lane.b32.xlu0 %v10683, 64
    %v11195 = vpop.permute.xlu0 %11194
    %11196 = vrot.lane.b32.xlu0 %v10685, 64
    %v11197 = vpop.permute.xlu0 %11196
    %11198 = vrot.lane.b32.xlu0 %v10687, 64
    %v11199 = vpop.permute.xlu0 %11198
    %11200 = vrot.lane.b32.xlu0 %v10689, 64
    %v11201 = vpop.permute.xlu0 %11200
    %11202 = vrot.lane.b32.xlu0 %v10691, 64
    %v11203 = vpop.permute.xlu0 %11202
    %11204 = vrot.lane.b32.xlu0 %v10693, 64
    %v11205 = vpop.permute.xlu0 %11204
    %11206 = vrot.lane.b32.xlu0 %v10695, 64
    %v11207 = vpop.permute.xlu0 %11206
    %11208 = vrot.lane.b32.xlu0 %v10697, 64
    %v11209 = vpop.permute.xlu0 %11208
    %11210 = vrot.lane.b32.xlu0 %v10699, 64
    %v11211 = vpop.permute.xlu0 %11210
    %11212 = vrot.lane.b32.xlu0 %v10701, 64
    %v11213 = vpop.permute.xlu0 %11212
    %11214 = vrot.lane.b32.xlu0 %v10703, 64
    %v11215 = vpop.permute.xlu0 %11214
    %11216 = vrot.lane.b32.xlu0 %v10705, 64
    %v11217 = vpop.permute.xlu0 %11216
    %11218 = vrot.lane.b32.xlu0 %v10707, 64
    %v11219 = vpop.permute.xlu0 %11218
    %11220 = vrot.lane.b32.xlu0 %v10709, 64
    %v11221 = vpop.permute.xlu0 %11220
    %11222 = vrot.lane.b32.xlu0 %v10711, 64
    %v11223 = vpop.permute.xlu0 %11222
    %11224 = vrot.lane.b32.xlu0 %v10713, 64
    %v11225 = vpop.permute.xlu0 %11224
    %11226 = vrot.lane.b32.xlu0 %v10715, 64
    %v11227 = vpop.permute.xlu0 %11226
    %11228 = vrot.lane.b32.xlu0 %v10717, 64
    %v11229 = vpop.permute.xlu0 %11228
    %11230 = vrot.lane.b32.xlu0 %v10719, 64
    %v11231 = vpop.permute.xlu0 %11230
    %11232 = vrot.lane.b32.xlu0 %v10721, 64
    %v11233 = vpop.permute.xlu0 %11232
    %11234 = vrot.lane.b32.xlu0 %v10723, 64
    %v11235 = vpop.permute.xlu0 %11234
    %11236 = vrot.lane.b32.xlu0 %v10725, 64
    %v11237 = vpop.permute.xlu0 %11236
    %11238 = vrot.lane.b32.xlu0 %v10727, 64
    %v11239 = vpop.permute.xlu0 %11238
    %11240 = vrot.lane.b32.xlu0 %v10729, 64
    %v11241 = vpop.permute.xlu0 %11240
    %11242 = vrot.lane.b32.xlu0 %v10731, 64
    %v11243 = vpop.permute.xlu0 %11242
    %11244 = vrot.lane.b32.xlu0 %v10733, 64
    %v11245 = vpop.permute.xlu0 %11244
    %11246 = vrot.lane.b32.xlu0 %v10735, 64
    %v11247 = vpop.permute.xlu0 %11246
    %11248 = vrot.lane.b32.xlu0 %v10737, 64
    %v11249 = vpop.permute.xlu0 %11248
    %11250 = vrot.lane.b32.xlu0 %v10739, 64
    %v11251 = vpop.permute.xlu0 %11250
    %11252 = vrot.lane.b32.xlu0 %v10741, 64
    %v11253 = vpop.permute.xlu0 %11252
    %11254 = vrot.lane.b32.xlu0 %v10743, 64
    %v11255 = vpop.permute.xlu0 %11254
    %11256 = vrot.lane.b32.xlu0 %v10745, 64
    %v11257 = vpop.permute.xlu0 %11256
    %11258 = vrot.lane.b32.xlu0 %v10747, 64
    %v11259 = vpop.permute.xlu0 %11258
    %11260 = vrot.lane.b32.xlu0 %v10749, 64
    %v11261 = vpop.permute.xlu0 %11260
    %11262 = vrot.lane.b32.xlu0 %v10751, 64
    %v11263 = vpop.permute.xlu0 %11262
    %11264 = vrot.lane.b32.xlu0 %v10753, 64
    %v11265 = vpop.permute.xlu0 %11264
    %11266 = vrot.lane.b32.xlu0 %v10755, 64
    %v11267 = vpop.permute.xlu0 %11266
    %11268 = vrot.lane.b32.xlu0 %v10757, 64
    %v11269 = vpop.permute.xlu0 %11268
    %11270 = vrot.lane.b32.xlu0 %v10759, 64
    %v11271 = vpop.permute.xlu0 %11270
    %11272 = vrot.lane.b32.xlu0 %v10761, 64
    %v11273 = vpop.permute.xlu0 %11272
    %11274 = vrot.lane.b32.xlu0 %v10763, 64
    %v11275 = vpop.permute.xlu0 %11274
    %11276 = vrot.lane.b32.xlu0 %v10765, 64
    %v11277 = vpop.permute.xlu0 %11276
    %11278 = vrot.lane.b32.xlu0 %v10767, 64
    %v11279 = vpop.permute.xlu0 %11278
    %11280 = vrot.lane.b32.xlu0 %v10769, 64
    %v11281 = vpop.permute.xlu0 %11280
    %11282 = vrot.lane.b32.xlu0 %v10771, 64
    %v11283 = vpop.permute.xlu0 %11282
    %11284 = vrot.lane.b32.xlu0 %v10773, 64
    %v11285 = vpop.permute.xlu0 %11284
    %11286 = vrot.lane.b32.xlu0 %v10775, 64
    %v11287 = vpop.permute.xlu0 %11286
    %11288 = vrot.lane.b32.xlu0 %v10777, 64
    %v11289 = vpop.permute.xlu0 %11288
    %11290 = vrot.lane.b32.xlu0 %v10779, 64
    %v11291 = vpop.permute.xlu0 %11290
    %11292 = vrot.lane.b32.xlu0 %v10781, 64
    %v11293 = vpop.permute.xlu0 %11292
    %11294 = vrot.lane.b32.xlu0 %v10783, 64
    %v11295 = vpop.permute.xlu0 %11294
    %11296 = vrot.lane.b32.xlu0 %v10785, 64
    %v11297 = vpop.permute.xlu0 %11296
    %11298 = vrot.lane.b32.xlu0 %v10787, 64
    %v11299 = vpop.permute.xlu0 %11298
    %11300 = vrot.lane.b32.xlu0 %v10789, 64
    %v11301 = vpop.permute.xlu0 %11300
    %11302 = vrot.lane.b32.xlu0 %v10791, 64
    %v11303 = vpop.permute.xlu0 %11302
    %11304 = vrot.lane.b32.xlu0 %v10793, 64
    %v11305 = vpop.permute.xlu0 %11304
    %11306 = vrot.lane.b32.xlu0 %v10795, 64
    %v11307 = vpop.permute.xlu0 %11306
    %11308 = vrot.lane.b32.xlu0 %v10797, 64
    %v11309 = vpop.permute.xlu0 %11308
    %11310 = vrot.lane.b32.xlu0 %v10799, 64
    %v11311 = vpop.permute.xlu0 %11310
    %11312 = vrot.lane.b32.xlu0 %v10801, 64
    %v11313 = vpop.permute.xlu0 %11312
    %11314 = vrot.lane.b32.xlu0 %v10803, 64
    %v11315 = vpop.permute.xlu0 %11314
    %11316 = vrot.lane.b32.xlu0 %v10805, 64
    %v11317 = vpop.permute.xlu0 %11316
    %11318 = vrot.lane.b32.xlu0 %v10807, 64
    %v11319 = vpop.permute.xlu0 %11318
    %11320 = vrot.lane.b32.xlu0 %v10809, 64
    %v11321 = vpop.permute.xlu0 %11320
    %11322 = vrot.lane.b32.xlu0 %v10811, 64
    %v11323 = vpop.permute.xlu0 %11322
    %11324 = vrot.lane.b32.xlu0 %v10813, 64
    %v11325 = vpop.permute.xlu0 %11324
    %11326 = vrot.lane.b32.xlu0 %v10815, 64
    %v11327 = vpop.permute.xlu0 %11326
    %11328 = vrot.lane.b32.xlu0 %v10817, 64
    %v11329 = vpop.permute.xlu0 %11328
    %11330 = vrot.lane.b32.xlu0 %v10819, 64
    %v11331 = vpop.permute.xlu0 %11330
    %11332 = vrot.lane.b32.xlu0 %v10821, 64
    %v11333 = vpop.permute.xlu0 %11332
    %11334 = vrot.lane.b32.xlu0 %v10823, 64
    %v11335 = vpop.permute.xlu0 %11334
    %11336 = vrot.lane.b32.xlu0 %v10825, 64
    %v11337 = vpop.permute.xlu0 %11336
    %11338 = vrot.lane.b32.xlu0 %v10827, 64
    %v11339 = vpop.permute.xlu0 %11338
    %11340 = vrot.lane.b32.xlu0 %v10829, 64
    %v11341 = vpop.permute.xlu0 %11340
    %11342 = vrot.lane.b32.xlu0 %v10831, 64
    %v11343 = vpop.permute.xlu0 %11342
    %11344 = vrot.lane.b32.xlu0 %v10833, 64
    %v11345 = vpop.permute.xlu0 %11344
    %v11474 = vmul.f32 %v10834, %v11091
    %v11475 = vmul.f32 %v10835, %v11093
    %v11476 = vmul.f32 %v10836, %v11095
    %v11477 = vmul.f32 %v10837, %v11097
    %v11478 = vmul.f32 %v10838, %v11099
    %v11479 = vmul.f32 %v10839, %v11101
    %v11480 = vmul.f32 %v10840, %v11103
    %v11481 = vmul.f32 %v10841, %v11105
    %v11482 = vmul.f32 %v10842, %v11107
    %v11483 = vmul.f32 %v10843, %v11109
    %v11484 = vmul.f32 %v10844, %v11111
    %v11485 = vmul.f32 %v10845, %v11113
    %v11486 = vmul.f32 %v10846, %v11115
    %v11487 = vmul.f32 %v10847, %v11117
    %v11488 = vmul.f32 %v10848, %v11119
    %v11489 = vmul.f32 %v10849, %v11121
    %v11490 = vmul.f32 %v10850, %v11123
    %v11491 = vmul.f32 %v10851, %v11125
    %v11492 = vmul.f32 %v10852, %v11127
    %v11493 = vmul.f32 %v10853, %v11129
    %v11494 = vmul.f32 %v10854, %v11131
    %v11495 = vmul.f32 %v10855, %v11133
    %v11496 = vmul.f32 %v10856, %v11135
    %v11497 = vmul.f32 %v10857, %v11137
    %v11498 = vmul.f32 %v10858, %v11139
    %v11499 = vmul.f32 %v10859, %v11141
    %v11500 = vmul.f32 %v10860, %v11143
    %v11501 = vmul.f32 %v10861, %v11145
    %v11502 = vmul.f32 %v10862, %v11147
    %v11503 = vmul.f32 %v10863, %v11149
    %v11504 = vmul.f32 %v10864, %v11151
    %v11505 = vmul.f32 %v10865, %v11153
    %v11506 = vmul.f32 %v10866, %v11155
    %v11507 = vmul.f32 %v10867, %v11157
    %v11508 = vmul.f32 %v10868, %v11159
    %v11509 = vmul.f32 %v10869, %v11161
    %v11510 = vmul.f32 %v10870, %v11163
    %v11511 = vmul.f32 %v10871, %v11165
    %v11512 = vmul.f32 %v10872, %v11167
    %v11513 = vmul.f32 %v10873, %v11169
    %v11514 = vmul.f32 %v10874, %v11171
    %v11515 = vmul.f32 %v10875, %v11173
    %v11516 = vmul.f32 %v10876, %v11175
    %v11517 = vmul.f32 %v10877, %v11177
    %v11518 = vmul.f32 %v10878, %v11179
    %v11519 = vmul.f32 %v10879, %v11181
    %v11520 = vmul.f32 %v10880, %v11183
    %v11521 = vmul.f32 %v10881, %v11185
    %v11522 = vmul.f32 %v10882, %v11187
    %v11523 = vmul.f32 %v10883, %v11189
    %v11524 = vmul.f32 %v10884, %v11191
    %v11525 = vmul.f32 %v10885, %v11193
    %v11526 = vmul.f32 %v10886, %v11195
    %v11527 = vmul.f32 %v10887, %v11197
    %v11528 = vmul.f32 %v10888, %v11199
    %v11529 = vmul.f32 %v10889, %v11201
    %v11530 = vmul.f32 %v10890, %v11203
    %v11531 = vmul.f32 %v10891, %v11205
    %v11532 = vmul.f32 %v10892, %v11207
    %v11533 = vmul.f32 %v10893, %v11209
    %v11534 = vmul.f32 %v10894, %v11211
    %v11535 = vmul.f32 %v10895, %v11213
    %v11536 = vmul.f32 %v10896, %v11215
    %v11537 = vmul.f32 %v10897, %v11217
    %v11538 = vmul.f32 %v10898, %v11219
    %v11539 = vmul.f32 %v10899, %v11221
    %v11540 = vmul.f32 %v10900, %v11223
    %v11541 = vmul.f32 %v10901, %v11225
    %v11542 = vmul.f32 %v10902, %v11227
    %v11543 = vmul.f32 %v10903, %v11229
    %v11544 = vmul.f32 %v10904, %v11231
    %v11545 = vmul.f32 %v10905, %v11233
    %v11546 = vmul.f32 %v10906, %v11235
    %v11547 = vmul.f32 %v10907, %v11237
    %v11548 = vmul.f32 %v10908, %v11239
    %v11549 = vmul.f32 %v10909, %v11241
    %v11550 = vmul.f32 %v10910, %v11243
    %v11551 = vmul.f32 %v10911, %v11245
    %v11552 = vmul.f32 %v10912, %v11247
    %v11553 = vmul.f32 %v10913, %v11249
    %v11554 = vmul.f32 %v10914, %v11251
    %v11555 = vmul.f32 %v10915, %v11253
    %v11556 = vmul.f32 %v10916, %v11255
    %v11557 = vmul.f32 %v10917, %v11257
    %v11558 = vmul.f32 %v10918, %v11259
    %v11559 = vmul.f32 %v10919, %v11261
    %v11560 = vmul.f32 %v10920, %v11263
    %v11561 = vmul.f32 %v10921, %v11265
    %v11562 = vmul.f32 %v10922, %v11267
    %v11563 = vmul.f32 %v10923, %v11269
    %v11564 = vmul.f32 %v10924, %v11271
    %v11565 = vmul.f32 %v10925, %v11273
    %v11566 = vmul.f32 %v10926, %v11275
    %v11567 = vmul.f32 %v10927, %v11277
    %v11568 = vmul.f32 %v10928, %v11279
    %v11569 = vmul.f32 %v10929, %v11281
    %v11570 = vmul.f32 %v10930, %v11283
    %v11571 = vmul.f32 %v10931, %v11285
    %v11572 = vmul.f32 %v10932, %v11287
    %v11573 = vmul.f32 %v10933, %v11289
    %v11574 = vmul.f32 %v10934, %v11291
    %v11575 = vmul.f32 %v10935, %v11293
    %v11576 = vmul.f32 %v10936, %v11295
    %v11577 = vmul.f32 %v10937, %v11297
    %v11578 = vmul.f32 %v10938, %v11299
    %v11579 = vmul.f32 %v10939, %v11301
    %v11580 = vmul.f32 %v10940, %v11303
    %v11581 = vmul.f32 %v10941, %v11305
    %v11582 = vmul.f32 %v10942, %v11307
    %v11583 = vmul.f32 %v10943, %v11309
    %v11584 = vmul.f32 %v10944, %v11311
    %v11585 = vmul.f32 %v10945, %v11313
    %v11586 = vmul.f32 %v10946, %v11315
    %v11587 = vmul.f32 %v10947, %v11317
    %v11588 = vmul.f32 %v10948, %v11319
    %v11589 = vmul.f32 %v10949, %v11321
    %v11590 = vmul.f32 %v10950, %v11323
    %v11591 = vmul.f32 %v10951, %v11325
    %v11592 = vmul.f32 %v10952, %v11327
    %v11593 = vmul.f32 %v10953, %v11329
    %v11594 = vmul.f32 %v10954, %v11331
    %v11595 = vmul.f32 %v10955, %v11333
    %v11596 = vmul.f32 %v10956, %v11335
    %v11597 = vmul.f32 %v10957, %v11337
    %v11598 = vmul.f32 %v10958, %v11339
    %v11599 = vmul.f32 %v10959, %v11341
    %v11600 = vmul.f32 %v10960, %v11343
    %v11601 = vmul.f32 %v10961, %v11345
    %11730 = vrot.lane.b32.xlu0 %v2433, 64
    %v11731 = vpop.permute.xlu0 %11730
    %11732 = vrot.lane.b32.xlu0 %v2436, 64
    %v11733 = vpop.permute.xlu0 %11732
    %11734 = vrot.lane.b32.xlu0 %v2441, 64
    %v11735 = vpop.permute.xlu0 %11734
    %11736 = vrot.lane.b32.xlu0 %v2444, 64
    %v11737 = vpop.permute.xlu0 %11736
    %11738 = vrot.lane.b32.xlu0 %v2449, 64
    %v11739 = vpop.permute.xlu0 %11738
    %11740 = vrot.lane.b32.xlu0 %v2452, 64
    %v11741 = vpop.permute.xlu0 %11740
    %11742 = vrot.lane.b32.xlu0 %v2457, 64
    %v11743 = vpop.permute.xlu0 %11742
    %11744 = vrot.lane.b32.xlu0 %v2460, 64
    %v11745 = vpop.permute.xlu0 %11744
    %11746 = vrot.lane.b32.xlu0 %v2465, 64
    %v11747 = vpop.permute.xlu0 %11746
    %11748 = vrot.lane.b32.xlu0 %v2468, 64
    %v11749 = vpop.permute.xlu0 %11748
    %11750 = vrot.lane.b32.xlu0 %v2473, 64
    %v11751 = vpop.permute.xlu0 %11750
    %11752 = vrot.lane.b32.xlu0 %v2476, 64
    %v11753 = vpop.permute.xlu0 %11752
    %11754 = vrot.lane.b32.xlu0 %v2481, 64
    %v11755 = vpop.permute.xlu0 %11754
    %11756 = vrot.lane.b32.xlu0 %v2484, 64
    %v11757 = vpop.permute.xlu0 %11756
    %11758 = vrot.lane.b32.xlu0 %v2489, 64
    %v11759 = vpop.permute.xlu0 %11758
    %11760 = vrot.lane.b32.xlu0 %v2492, 64
    %v11761 = vpop.permute.xlu0 %11760
    %11762 = vrot.lane.b32.xlu0 %v2497, 64
    %v11763 = vpop.permute.xlu0 %11762
    %11764 = vrot.lane.b32.xlu0 %v2500, 64
    %v11765 = vpop.permute.xlu0 %11764
    %11766 = vrot.lane.b32.xlu0 %v2505, 64
    %v11767 = vpop.permute.xlu0 %11766
    %11768 = vrot.lane.b32.xlu0 %v2508, 64
    %v11769 = vpop.permute.xlu0 %11768
    %11770 = vrot.lane.b32.xlu0 %v2513, 64
    %v11771 = vpop.permute.xlu0 %11770
    %11772 = vrot.lane.b32.xlu0 %v2516, 64
    %v11773 = vpop.permute.xlu0 %11772
    %11774 = vrot.lane.b32.xlu0 %v2521, 64
    %v11775 = vpop.permute.xlu0 %11774
    %11776 = vrot.lane.b32.xlu0 %v2524, 64
    %v11777 = vpop.permute.xlu0 %11776
    %11778 = vrot.lane.b32.xlu0 %v2529, 64
    %v11779 = vpop.permute.xlu0 %11778
    %11780 = vrot.lane.b32.xlu0 %v2532, 64
    %v11781 = vpop.permute.xlu0 %11780
    %11782 = vrot.lane.b32.xlu0 %v2537, 64
    %v11783 = vpop.permute.xlu0 %11782
    %11784 = vrot.lane.b32.xlu0 %v2540, 64
    %v11785 = vpop.permute.xlu0 %11784
    %11786 = vrot.lane.b32.xlu0 %v2545, 64
    %v11787 = vpop.permute.xlu0 %11786
    %11788 = vrot.lane.b32.xlu0 %v2548, 64
    %v11789 = vpop.permute.xlu0 %11788
    %11790 = vrot.lane.b32.xlu0 %v2553, 64
    %v11791 = vpop.permute.xlu0 %11790
    %11792 = vrot.lane.b32.xlu0 %v2556, 64
    %v11793 = vpop.permute.xlu0 %11792
    %11794 = vrot.lane.b32.xlu0 %v2561, 64
    %v11795 = vpop.permute.xlu0 %11794
    %11796 = vrot.lane.b32.xlu0 %v2564, 64
    %v11797 = vpop.permute.xlu0 %11796
    %11798 = vrot.lane.b32.xlu0 %v2569, 64
    %v11799 = vpop.permute.xlu0 %11798
    %11800 = vrot.lane.b32.xlu0 %v2572, 64
    %v11801 = vpop.permute.xlu0 %11800
    %11802 = vrot.lane.b32.xlu0 %v2577, 64
    %v11803 = vpop.permute.xlu0 %11802
    %11804 = vrot.lane.b32.xlu0 %v2580, 64
    %v11805 = vpop.permute.xlu0 %11804
    %11806 = vrot.lane.b32.xlu0 %v2585, 64
    %v11807 = vpop.permute.xlu0 %11806
    %11808 = vrot.lane.b32.xlu0 %v2588, 64
    %v11809 = vpop.permute.xlu0 %11808
    %11810 = vrot.lane.b32.xlu0 %v2593, 64
    %v11811 = vpop.permute.xlu0 %11810
    %11812 = vrot.lane.b32.xlu0 %v2596, 64
    %v11813 = vpop.permute.xlu0 %11812
    %11814 = vrot.lane.b32.xlu0 %v2601, 64
    %v11815 = vpop.permute.xlu0 %11814
    %11816 = vrot.lane.b32.xlu0 %v2604, 64
    %v11817 = vpop.permute.xlu0 %11816
    %11818 = vrot.lane.b32.xlu0 %v2609, 64
    %v11819 = vpop.permute.xlu0 %11818
    %11820 = vrot.lane.b32.xlu0 %v2612, 64
    %v11821 = vpop.permute.xlu0 %11820
    %11822 = vrot.lane.b32.xlu0 %v2617, 64
    %v11823 = vpop.permute.xlu0 %11822
    %11824 = vrot.lane.b32.xlu0 %v2620, 64
    %v11825 = vpop.permute.xlu0 %11824
    %11826 = vrot.lane.b32.xlu0 %v2625, 64
    %v11827 = vpop.permute.xlu0 %11826
    %11828 = vrot.lane.b32.xlu0 %v2628, 64
    %v11829 = vpop.permute.xlu0 %11828
    %11830 = vrot.lane.b32.xlu0 %v2633, 64
    %v11831 = vpop.permute.xlu0 %11830
    %11832 = vrot.lane.b32.xlu0 %v2636, 64
    %v11833 = vpop.permute.xlu0 %11832
    %11834 = vrot.lane.b32.xlu0 %v2641, 64
    %v11835 = vpop.permute.xlu0 %11834
    %11836 = vrot.lane.b32.xlu0 %v2644, 64
    %v11837 = vpop.permute.xlu0 %11836
    %11838 = vrot.lane.b32.xlu0 %v2649, 64
    %v11839 = vpop.permute.xlu0 %11838
    %11840 = vrot.lane.b32.xlu0 %v2652, 64
    %v11841 = vpop.permute.xlu0 %11840
    %11842 = vrot.lane.b32.xlu0 %v2657, 64
    %v11843 = vpop.permute.xlu0 %11842
    %11844 = vrot.lane.b32.xlu0 %v2660, 64
    %v11845 = vpop.permute.xlu0 %11844
    %11846 = vrot.lane.b32.xlu0 %v2665, 64
    %v11847 = vpop.permute.xlu0 %11846
    %11848 = vrot.lane.b32.xlu0 %v2668, 64
    %v11849 = vpop.permute.xlu0 %11848
    %11850 = vrot.lane.b32.xlu0 %v2673, 64
    %v11851 = vpop.permute.xlu0 %11850
    %11852 = vrot.lane.b32.xlu0 %v2676, 64
    %v11853 = vpop.permute.xlu0 %11852
    %11854 = vrot.lane.b32.xlu0 %v2681, 64
    %v11855 = vpop.permute.xlu0 %11854
    %11856 = vrot.lane.b32.xlu0 %v2684, 64
    %v11857 = vpop.permute.xlu0 %11856
    %11858 = vrot.lane.b32.xlu0 %v2689, 64
    %v11859 = vpop.permute.xlu0 %11858
    %11860 = vrot.lane.b32.xlu0 %v2692, 64
    %v11861 = vpop.permute.xlu0 %11860
    %11862 = vrot.lane.b32.xlu0 %v2697, 64
    %v11863 = vpop.permute.xlu0 %11862
    %11864 = vrot.lane.b32.xlu0 %v2700, 64
    %v11865 = vpop.permute.xlu0 %11864
    %11866 = vrot.lane.b32.xlu0 %v2705, 64
    %v11867 = vpop.permute.xlu0 %11866
    %11868 = vrot.lane.b32.xlu0 %v2708, 64
    %v11869 = vpop.permute.xlu0 %11868
    %11870 = vrot.lane.b32.xlu0 %v2713, 64
    %v11871 = vpop.permute.xlu0 %11870
    %11872 = vrot.lane.b32.xlu0 %v2716, 64
    %v11873 = vpop.permute.xlu0 %11872
    %11874 = vrot.lane.b32.xlu0 %v2721, 64
    %v11875 = vpop.permute.xlu0 %11874
    %11876 = vrot.lane.b32.xlu0 %v2724, 64
    %v11877 = vpop.permute.xlu0 %11876
    %11878 = vrot.lane.b32.xlu0 %v2729, 64
    %v11879 = vpop.permute.xlu0 %11878
    %11880 = vrot.lane.b32.xlu0 %v2732, 64
    %v11881 = vpop.permute.xlu0 %11880
    %11882 = vrot.lane.b32.xlu0 %v2737, 64
    %v11883 = vpop.permute.xlu0 %11882
    %11884 = vrot.lane.b32.xlu0 %v2740, 64
    %v11885 = vpop.permute.xlu0 %11884
    %11886 = vrot.lane.b32.xlu0 %v2745, 64
    %v11887 = vpop.permute.xlu0 %11886
    %11888 = vrot.lane.b32.xlu0 %v2748, 64
    %v11889 = vpop.permute.xlu0 %11888
    %11890 = vrot.lane.b32.xlu0 %v2753, 64
    %v11891 = vpop.permute.xlu0 %11890
    %11892 = vrot.lane.b32.xlu0 %v2756, 64
    %v11893 = vpop.permute.xlu0 %11892
    %11894 = vrot.lane.b32.xlu0 %v2761, 64
    %v11895 = vpop.permute.xlu0 %11894
    %11896 = vrot.lane.b32.xlu0 %v2764, 64
    %v11897 = vpop.permute.xlu0 %11896
    %11898 = vrot.lane.b32.xlu0 %v2769, 64
    %v11899 = vpop.permute.xlu0 %11898
    %11900 = vrot.lane.b32.xlu0 %v2772, 64
    %v11901 = vpop.permute.xlu0 %11900
    %11902 = vrot.lane.b32.xlu0 %v2777, 64
    %v11903 = vpop.permute.xlu0 %11902
    %11904 = vrot.lane.b32.xlu0 %v2780, 64
    %v11905 = vpop.permute.xlu0 %11904
    %11906 = vrot.lane.b32.xlu0 %v2785, 64
    %v11907 = vpop.permute.xlu0 %11906
    %11908 = vrot.lane.b32.xlu0 %v2788, 64
    %v11909 = vpop.permute.xlu0 %11908
    %11910 = vrot.lane.b32.xlu0 %v2793, 64
    %v11911 = vpop.permute.xlu0 %11910
    %11912 = vrot.lane.b32.xlu0 %v2796, 64
    %v11913 = vpop.permute.xlu0 %11912
    %11914 = vrot.lane.b32.xlu0 %v2801, 64
    %v11915 = vpop.permute.xlu0 %11914
    %11916 = vrot.lane.b32.xlu0 %v2804, 64
    %v11917 = vpop.permute.xlu0 %11916
    %11918 = vrot.lane.b32.xlu0 %v2809, 64
    %v11919 = vpop.permute.xlu0 %11918
    %11920 = vrot.lane.b32.xlu0 %v2812, 64
    %v11921 = vpop.permute.xlu0 %11920
    %11922 = vrot.lane.b32.xlu0 %v2817, 64
    %v11923 = vpop.permute.xlu0 %11922
    %11924 = vrot.lane.b32.xlu0 %v2820, 64
    %v11925 = vpop.permute.xlu0 %11924
    %11926 = vrot.lane.b32.xlu0 %v2825, 64
    %v11927 = vpop.permute.xlu0 %11926
    %11928 = vrot.lane.b32.xlu0 %v2828, 64
    %v11929 = vpop.permute.xlu0 %11928
    %11930 = vrot.lane.b32.xlu0 %v2833, 64
    %v11931 = vpop.permute.xlu0 %11930
    %11932 = vrot.lane.b32.xlu0 %v2836, 64
    %v11933 = vpop.permute.xlu0 %11932
    %11934 = vrot.lane.b32.xlu0 %v2841, 64
    %v11935 = vpop.permute.xlu0 %11934
    %11936 = vrot.lane.b32.xlu0 %v2844, 64
    %v11937 = vpop.permute.xlu0 %11936
    %11938 = vrot.lane.b32.xlu0 %v2849, 64
    %v11939 = vpop.permute.xlu0 %11938
    %11940 = vrot.lane.b32.xlu0 %v2852, 64
    %v11941 = vpop.permute.xlu0 %11940
    %11942 = vrot.lane.b32.xlu0 %v2857, 64
    %v11943 = vpop.permute.xlu0 %11942
    %11944 = vrot.lane.b32.xlu0 %v2860, 64
    %v11945 = vpop.permute.xlu0 %11944
    %11946 = vrot.lane.b32.xlu0 %v2865, 64
    %v11947 = vpop.permute.xlu0 %11946
    %11948 = vrot.lane.b32.xlu0 %v2868, 64
    %v11949 = vpop.permute.xlu0 %11948
    %11950 = vrot.lane.b32.xlu0 %v2873, 64
    %v11951 = vpop.permute.xlu0 %11950
    %11952 = vrot.lane.b32.xlu0 %v2876, 64
    %v11953 = vpop.permute.xlu0 %11952
    %11954 = vrot.lane.b32.xlu0 %v2881, 64
    %v11955 = vpop.permute.xlu0 %11954
    %11956 = vrot.lane.b32.xlu0 %v2884, 64
    %v11957 = vpop.permute.xlu0 %11956
    %11958 = vrot.lane.b32.xlu0 %v2889, 64
    %v11959 = vpop.permute.xlu0 %11958
    %11960 = vrot.lane.b32.xlu0 %v2892, 64
    %v11961 = vpop.permute.xlu0 %11960
    %11962 = vrot.lane.b32.xlu0 %v2897, 64
    %v11963 = vpop.permute.xlu0 %11962
    %11964 = vrot.lane.b32.xlu0 %v2900, 64
    %v11965 = vpop.permute.xlu0 %11964
    %11966 = vrot.lane.b32.xlu0 %v2905, 64
    %v11967 = vpop.permute.xlu0 %11966
    %11968 = vrot.lane.b32.xlu0 %v2908, 64
    %v11969 = vpop.permute.xlu0 %11968
    %11970 = vrot.lane.b32.xlu0 %v2913, 64
    %v11971 = vpop.permute.xlu0 %11970
    %11972 = vrot.lane.b32.xlu0 %v2916, 64
    %v11973 = vpop.permute.xlu0 %11972
    %11974 = vrot.lane.b32.xlu0 %v2921, 64
    %v11975 = vpop.permute.xlu0 %11974
    %11976 = vrot.lane.b32.xlu0 %v2924, 64
    %v11977 = vpop.permute.xlu0 %11976
    %11978 = vrot.lane.b32.xlu0 %v2929, 64
    %v11979 = vpop.permute.xlu0 %11978
    %11980 = vrot.lane.b32.xlu0 %v2932, 64
    %v11981 = vpop.permute.xlu0 %11980
    %11982 = vrot.lane.b32.xlu0 %v2937, 64
    %v11983 = vpop.permute.xlu0 %11982
    %11984 = vrot.lane.b32.xlu0 %v2940, 64
    %v11985 = vpop.permute.xlu0 %11984
    %v12114 = vmul.f32 %v11474, %v11731
    %v12115 = vmul.f32 %v11475, %v11733
    %v12116 = vmul.f32 %v11476, %v11735
    %v12117 = vmul.f32 %v11477, %v11737
    %v12118 = vmul.f32 %v11478, %v11739
    %v12119 = vmul.f32 %v11479, %v11741
    %v12120 = vmul.f32 %v11480, %v11743
    %v12121 = vmul.f32 %v11481, %v11745
    %v12122 = vmul.f32 %v11482, %v11747
    %v12123 = vmul.f32 %v11483, %v11749
    %v12124 = vmul.f32 %v11484, %v11751
    %v12125 = vmul.f32 %v11485, %v11753
    %v12126 = vmul.f32 %v11486, %v11755
    %v12127 = vmul.f32 %v11487, %v11757
    %v12128 = vmul.f32 %v11488, %v11759
    %v12129 = vmul.f32 %v11489, %v11761
    %v12130 = vmul.f32 %v11490, %v11763
    %v12131 = vmul.f32 %v11491, %v11765
    %v12132 = vmul.f32 %v11492, %v11767
    %v12133 = vmul.f32 %v11493, %v11769
    %v12134 = vmul.f32 %v11494, %v11771
    %v12135 = vmul.f32 %v11495, %v11773
    %v12136 = vmul.f32 %v11496, %v11775
    %v12137 = vmul.f32 %v11497, %v11777
    %v12138 = vmul.f32 %v11498, %v11779
    %v12139 = vmul.f32 %v11499, %v11781
    %v12140 = vmul.f32 %v11500, %v11783
    %v12141 = vmul.f32 %v11501, %v11785
    %v12142 = vmul.f32 %v11502, %v11787
    %v12143 = vmul.f32 %v11503, %v11789
    %v12144 = vmul.f32 %v11504, %v11791
    %v12145 = vmul.f32 %v11505, %v11793
    %v12146 = vmul.f32 %v11506, %v11795
    %v12147 = vmul.f32 %v11507, %v11797
    %v12148 = vmul.f32 %v11508, %v11799
    %v12149 = vmul.f32 %v11509, %v11801
    %v12150 = vmul.f32 %v11510, %v11803
    %v12151 = vmul.f32 %v11511, %v11805
    %v12152 = vmul.f32 %v11512, %v11807
    %v12153 = vmul.f32 %v11513, %v11809
    %v12154 = vmul.f32 %v11514, %v11811
    %v12155 = vmul.f32 %v11515, %v11813
    %v12156 = vmul.f32 %v11516, %v11815
    %v12157 = vmul.f32 %v11517, %v11817
    %v12158 = vmul.f32 %v11518, %v11819
    %v12159 = vmul.f32 %v11519, %v11821
    %v12160 = vmul.f32 %v11520, %v11823
    %v12161 = vmul.f32 %v11521, %v11825
    %v12162 = vmul.f32 %v11522, %v11827
    %v12163 = vmul.f32 %v11523, %v11829
    %v12164 = vmul.f32 %v11524, %v11831
    %v12165 = vmul.f32 %v11525, %v11833
    %v12166 = vmul.f32 %v11526, %v11835
    %v12167 = vmul.f32 %v11527, %v11837
    %v12168 = vmul.f32 %v11528, %v11839
    %v12169 = vmul.f32 %v11529, %v11841
    %v12170 = vmul.f32 %v11530, %v11843
    %v12171 = vmul.f32 %v11531, %v11845
    %v12172 = vmul.f32 %v11532, %v11847
    %v12173 = vmul.f32 %v11533, %v11849
    %v12174 = vmul.f32 %v11534, %v11851
    %v12175 = vmul.f32 %v11535, %v11853
    %v12176 = vmul.f32 %v11536, %v11855
    %v12177 = vmul.f32 %v11537, %v11857
    %v12178 = vmul.f32 %v11538, %v11859
    %v12179 = vmul.f32 %v11539, %v11861
    %v12180 = vmul.f32 %v11540, %v11863
    %v12181 = vmul.f32 %v11541, %v11865
    %v12182 = vmul.f32 %v11542, %v11867
    %v12183 = vmul.f32 %v11543, %v11869
    %v12184 = vmul.f32 %v11544, %v11871
    %v12185 = vmul.f32 %v11545, %v11873
    %v12186 = vmul.f32 %v11546, %v11875
    %v12187 = vmul.f32 %v11547, %v11877
    %v12188 = vmul.f32 %v11548, %v11879
    %v12189 = vmul.f32 %v11549, %v11881
    %v12190 = vmul.f32 %v11550, %v11883
    %v12191 = vmul.f32 %v11551, %v11885
    %v12192 = vmul.f32 %v11552, %v11887
    %v12193 = vmul.f32 %v11553, %v11889
    %v12194 = vmul.f32 %v11554, %v11891
    %v12195 = vmul.f32 %v11555, %v11893
    %v12196 = vmul.f32 %v11556, %v11895
    %v12197 = vmul.f32 %v11557, %v11897
    %v12198 = vmul.f32 %v11558, %v11899
    %v12199 = vmul.f32 %v11559, %v11901
    %v12200 = vmul.f32 %v11560, %v11903
    %v12201 = vmul.f32 %v11561, %v11905
    %v12202 = vmul.f32 %v11562, %v11907
    %v12203 = vmul.f32 %v11563, %v11909
    %v12204 = vmul.f32 %v11564, %v11911
    %v12205 = vmul.f32 %v11565, %v11913
    %v12206 = vmul.f32 %v11566, %v11915
    %v12207 = vmul.f32 %v11567, %v11917
    %v12208 = vmul.f32 %v11568, %v11919
    %v12209 = vmul.f32 %v11569, %v11921
    %v12210 = vmul.f32 %v11570, %v11923
    %v12211 = vmul.f32 %v11571, %v11925
    %v12212 = vmul.f32 %v11572, %v11927
    %v12213 = vmul.f32 %v11573, %v11929
    %v12214 = vmul.f32 %v11574, %v11931
    %v12215 = vmul.f32 %v11575, %v11933
    %v12216 = vmul.f32 %v11576, %v11935
    %v12217 = vmul.f32 %v11577, %v11937
    %v12218 = vmul.f32 %v11578, %v11939
    %v12219 = vmul.f32 %v11579, %v11941
    %v12220 = vmul.f32 %v11580, %v11943
    %v12221 = vmul.f32 %v11581, %v11945
    %v12222 = vmul.f32 %v11582, %v11947
    %v12223 = vmul.f32 %v11583, %v11949
    %v12224 = vmul.f32 %v11584, %v11951
    %v12225 = vmul.f32 %v11585, %v11953
    %v12226 = vmul.f32 %v11586, %v11955
    %v12227 = vmul.f32 %v11587, %v11957
    %v12228 = vmul.f32 %v11588, %v11959
    %v12229 = vmul.f32 %v11589, %v11961
    %v12230 = vmul.f32 %v11590, %v11963
    %v12231 = vmul.f32 %v11591, %v11965
    %v12232 = vmul.f32 %v11592, %v11967
    %v12233 = vmul.f32 %v11593, %v11969
    %v12234 = vmul.f32 %v11594, %v11971
    %v12235 = vmul.f32 %v11595, %v11973
    %v12236 = vmul.f32 %v11596, %v11975
    %v12237 = vmul.f32 %v11597, %v11977
    %v12238 = vmul.f32 %v11598, %v11979
    %v12239 = vmul.f32 %v11599, %v11981
    %v12240 = vmul.f32 %v11600, %v11983
    %v12241 = vmul.f32 %v11601, %v11985
    %12370 = vrot.lane.b32.xlu0 %v12114, 64
    %v12371 = vpop.permute.xlu0 %12370
    %12372 = vrot.lane.b32.xlu0 %v12115, 64
    %v12373 = vpop.permute.xlu0 %12372
    %12374 = vrot.lane.b32.xlu0 %v12116, 64
    %v12375 = vpop.permute.xlu0 %12374
    %12376 = vrot.lane.b32.xlu0 %v12117, 64
    %v12377 = vpop.permute.xlu0 %12376
    %12378 = vrot.lane.b32.xlu0 %v12118, 64
    %v12379 = vpop.permute.xlu0 %12378
    %12380 = vrot.lane.b32.xlu0 %v12119, 64
    %v12381 = vpop.permute.xlu0 %12380
    %12382 = vrot.lane.b32.xlu0 %v12120, 64
    %v12383 = vpop.permute.xlu0 %12382
    %12384 = vrot.lane.b32.xlu0 %v12121, 64
    %v12385 = vpop.permute.xlu0 %12384
    %12386 = vrot.lane.b32.xlu0 %v12122, 64
    %v12387 = vpop.permute.xlu0 %12386
    %12388 = vrot.lane.b32.xlu0 %v12123, 64
    %v12389 = vpop.permute.xlu0 %12388
    %12390 = vrot.lane.b32.xlu0 %v12124, 64
    %v12391 = vpop.permute.xlu0 %12390
    %12392 = vrot.lane.b32.xlu0 %v12125, 64
    %v12393 = vpop.permute.xlu0 %12392
    %12394 = vrot.lane.b32.xlu0 %v12126, 64
    %v12395 = vpop.permute.xlu0 %12394
    %12396 = vrot.lane.b32.xlu0 %v12127, 64
    %v12397 = vpop.permute.xlu0 %12396
    %12398 = vrot.lane.b32.xlu0 %v12128, 64
    %v12399 = vpop.permute.xlu0 %12398
    %12400 = vrot.lane.b32.xlu0 %v12129, 64
    %v12401 = vpop.permute.xlu0 %12400
    %12402 = vrot.lane.b32.xlu0 %v12130, 64
    %v12403 = vpop.permute.xlu0 %12402
    %12404 = vrot.lane.b32.xlu0 %v12131, 64
    %v12405 = vpop.permute.xlu0 %12404
    %12406 = vrot.lane.b32.xlu0 %v12132, 64
    %v12407 = vpop.permute.xlu0 %12406
    %12408 = vrot.lane.b32.xlu0 %v12133, 64
    %v12409 = vpop.permute.xlu0 %12408
    %12410 = vrot.lane.b32.xlu0 %v12134, 64
    %v12411 = vpop.permute.xlu0 %12410
    %12412 = vrot.lane.b32.xlu0 %v12135, 64
    %v12413 = vpop.permute.xlu0 %12412
    %12414 = vrot.lane.b32.xlu0 %v12136, 64
    %v12415 = vpop.permute.xlu0 %12414
    %12416 = vrot.lane.b32.xlu0 %v12137, 64
    %v12417 = vpop.permute.xlu0 %12416
    %12418 = vrot.lane.b32.xlu0 %v12138, 64
    %v12419 = vpop.permute.xlu0 %12418
    %12420 = vrot.lane.b32.xlu0 %v12139, 64
    %v12421 = vpop.permute.xlu0 %12420
    %12422 = vrot.lane.b32.xlu0 %v12140, 64
    %v12423 = vpop.permute.xlu0 %12422
    %12424 = vrot.lane.b32.xlu0 %v12141, 64
    %v12425 = vpop.permute.xlu0 %12424
    %12426 = vrot.lane.b32.xlu0 %v12142, 64
    %v12427 = vpop.permute.xlu0 %12426
    %12428 = vrot.lane.b32.xlu0 %v12143, 64
    %v12429 = vpop.permute.xlu0 %12428
    %12430 = vrot.lane.b32.xlu0 %v12144, 64
    %v12431 = vpop.permute.xlu0 %12430
    %12432 = vrot.lane.b32.xlu0 %v12145, 64
    %v12433 = vpop.permute.xlu0 %12432
    %12434 = vrot.lane.b32.xlu0 %v12146, 64
    %v12435 = vpop.permute.xlu0 %12434
    %12436 = vrot.lane.b32.xlu0 %v12147, 64
    %v12437 = vpop.permute.xlu0 %12436
    %12438 = vrot.lane.b32.xlu0 %v12148, 64
    %v12439 = vpop.permute.xlu0 %12438
    %12440 = vrot.lane.b32.xlu0 %v12149, 64
    %v12441 = vpop.permute.xlu0 %12440
    %12442 = vrot.lane.b32.xlu0 %v12150, 64
    %v12443 = vpop.permute.xlu0 %12442
    %12444 = vrot.lane.b32.xlu0 %v12151, 64
    %v12445 = vpop.permute.xlu0 %12444
    %12446 = vrot.lane.b32.xlu0 %v12152, 64
    %v12447 = vpop.permute.xlu0 %12446
    %12448 = vrot.lane.b32.xlu0 %v12153, 64
    %v12449 = vpop.permute.xlu0 %12448
    %12450 = vrot.lane.b32.xlu0 %v12154, 64
    %v12451 = vpop.permute.xlu0 %12450
    %12452 = vrot.lane.b32.xlu0 %v12155, 64
    %v12453 = vpop.permute.xlu0 %12452
    %12454 = vrot.lane.b32.xlu0 %v12156, 64
    %v12455 = vpop.permute.xlu0 %12454
    %12456 = vrot.lane.b32.xlu0 %v12157, 64
    %v12457 = vpop.permute.xlu0 %12456
    %12458 = vrot.lane.b32.xlu0 %v12158, 64
    %v12459 = vpop.permute.xlu0 %12458
    %12460 = vrot.lane.b32.xlu0 %v12159, 64
    %v12461 = vpop.permute.xlu0 %12460
    %12462 = vrot.lane.b32.xlu0 %v12160, 64
    %v12463 = vpop.permute.xlu0 %12462
    %12464 = vrot.lane.b32.xlu0 %v12161, 64
    %v12465 = vpop.permute.xlu0 %12464
    %12466 = vrot.lane.b32.xlu0 %v12162, 64
    %v12467 = vpop.permute.xlu0 %12466
    %12468 = vrot.lane.b32.xlu0 %v12163, 64
    %v12469 = vpop.permute.xlu0 %12468
    %12470 = vrot.lane.b32.xlu0 %v12164, 64
    %v12471 = vpop.permute.xlu0 %12470
    %12472 = vrot.lane.b32.xlu0 %v12165, 64
    %v12473 = vpop.permute.xlu0 %12472
    %12474 = vrot.lane.b32.xlu0 %v12166, 64
    %v12475 = vpop.permute.xlu0 %12474
    %12476 = vrot.lane.b32.xlu0 %v12167, 64
    %v12477 = vpop.permute.xlu0 %12476
    %12478 = vrot.lane.b32.xlu0 %v12168, 64
    %v12479 = vpop.permute.xlu0 %12478
    %12480 = vrot.lane.b32.xlu0 %v12169, 64
    %v12481 = vpop.permute.xlu0 %12480
    %12482 = vrot.lane.b32.xlu0 %v12170, 64
    %v12483 = vpop.permute.xlu0 %12482
    %12484 = vrot.lane.b32.xlu0 %v12171, 64
    %v12485 = vpop.permute.xlu0 %12484
    %12486 = vrot.lane.b32.xlu0 %v12172, 64
    %v12487 = vpop.permute.xlu0 %12486
    %12488 = vrot.lane.b32.xlu0 %v12173, 64
    %v12489 = vpop.permute.xlu0 %12488
    %12490 = vrot.lane.b32.xlu0 %v12174, 64
    %v12491 = vpop.permute.xlu0 %12490
    %12492 = vrot.lane.b32.xlu0 %v12175, 64
    %v12493 = vpop.permute.xlu0 %12492
    %12494 = vrot.lane.b32.xlu0 %v12176, 64
    %v12495 = vpop.permute.xlu0 %12494
    %12496 = vrot.lane.b32.xlu0 %v12177, 64
    %v12497 = vpop.permute.xlu0 %12496
    %12498 = vrot.lane.b32.xlu0 %v12178, 64
    %v12499 = vpop.permute.xlu0 %12498
    %12500 = vrot.lane.b32.xlu0 %v12179, 64
    %v12501 = vpop.permute.xlu0 %12500
    %12502 = vrot.lane.b32.xlu0 %v12180, 64
    %v12503 = vpop.permute.xlu0 %12502
    %12504 = vrot.lane.b32.xlu0 %v12181, 64
    %v12505 = vpop.permute.xlu0 %12504
    %12506 = vrot.lane.b32.xlu0 %v12182, 64
    %v12507 = vpop.permute.xlu0 %12506
    %12508 = vrot.lane.b32.xlu0 %v12183, 64
    %v12509 = vpop.permute.xlu0 %12508
    %12510 = vrot.lane.b32.xlu0 %v12184, 64
    %v12511 = vpop.permute.xlu0 %12510
    %12512 = vrot.lane.b32.xlu0 %v12185, 64
    %v12513 = vpop.permute.xlu0 %12512
    %12514 = vrot.lane.b32.xlu0 %v12186, 64
    %v12515 = vpop.permute.xlu0 %12514
    %12516 = vrot.lane.b32.xlu0 %v12187, 64
    %v12517 = vpop.permute.xlu0 %12516
    %12518 = vrot.lane.b32.xlu0 %v12188, 64
    %v12519 = vpop.permute.xlu0 %12518
    %12520 = vrot.lane.b32.xlu0 %v12189, 64
    %v12521 = vpop.permute.xlu0 %12520
    %12522 = vrot.lane.b32.xlu0 %v12190, 64
    %v12523 = vpop.permute.xlu0 %12522
    %12524 = vrot.lane.b32.xlu0 %v12191, 64
    %v12525 = vpop.permute.xlu0 %12524
    %12526 = vrot.lane.b32.xlu0 %v12192, 64
    %v12527 = vpop.permute.xlu0 %12526
    %12528 = vrot.lane.b32.xlu0 %v12193, 64
    %v12529 = vpop.permute.xlu0 %12528
    %12530 = vrot.lane.b32.xlu0 %v12194, 64
    %v12531 = vpop.permute.xlu0 %12530
    %12532 = vrot.lane.b32.xlu0 %v12195, 64
    %v12533 = vpop.permute.xlu0 %12532
    %12534 = vrot.lane.b32.xlu0 %v12196, 64
    %v12535 = vpop.permute.xlu0 %12534
    %12536 = vrot.lane.b32.xlu0 %v12197, 64
    %v12537 = vpop.permute.xlu0 %12536
    %12538 = vrot.lane.b32.xlu0 %v12198, 64
    %v12539 = vpop.permute.xlu0 %12538
    %12540 = vrot.lane.b32.xlu0 %v12199, 64
    %v12541 = vpop.permute.xlu0 %12540
    %12542 = vrot.lane.b32.xlu0 %v12200, 64
    %v12543 = vpop.permute.xlu0 %12542
    %12544 = vrot.lane.b32.xlu0 %v12201, 64
    %v12545 = vpop.permute.xlu0 %12544
    %12546 = vrot.lane.b32.xlu0 %v12202, 64
    %v12547 = vpop.permute.xlu0 %12546
    %12548 = vrot.lane.b32.xlu0 %v12203, 64
    %v12549 = vpop.permute.xlu0 %12548
    %12550 = vrot.lane.b32.xlu0 %v12204, 64
    %v12551 = vpop.permute.xlu0 %12550
    %12552 = vrot.lane.b32.xlu0 %v12205, 64
    %v12553 = vpop.permute.xlu0 %12552
    %12554 = vrot.lane.b32.xlu0 %v12206, 64
    %v12555 = vpop.permute.xlu0 %12554
    %12556 = vrot.lane.b32.xlu0 %v12207, 64
    %v12557 = vpop.permute.xlu0 %12556
    %12558 = vrot.lane.b32.xlu0 %v12208, 64
    %v12559 = vpop.permute.xlu0 %12558
    %12560 = vrot.lane.b32.xlu0 %v12209, 64
    %v12561 = vpop.permute.xlu0 %12560
    %12562 = vrot.lane.b32.xlu0 %v12210, 64
    %v12563 = vpop.permute.xlu0 %12562
    %12564 = vrot.lane.b32.xlu0 %v12211, 64
    %v12565 = vpop.permute.xlu0 %12564
    %12566 = vrot.lane.b32.xlu0 %v12212, 64
    %v12567 = vpop.permute.xlu0 %12566
    %12568 = vrot.lane.b32.xlu0 %v12213, 64
    %v12569 = vpop.permute.xlu0 %12568
    %12570 = vrot.lane.b32.xlu0 %v12214, 64
    %v12571 = vpop.permute.xlu0 %12570
    %12572 = vrot.lane.b32.xlu0 %v12215, 64
    %v12573 = vpop.permute.xlu0 %12572
    %12574 = vrot.lane.b32.xlu0 %v12216, 64
    %v12575 = vpop.permute.xlu0 %12574
    %12576 = vrot.lane.b32.xlu0 %v12217, 64
    %v12577 = vpop.permute.xlu0 %12576
    %12578 = vrot.lane.b32.xlu0 %v12218, 64
    %v12579 = vpop.permute.xlu0 %12578
    %12580 = vrot.lane.b32.xlu0 %v12219, 64
    %v12581 = vpop.permute.xlu0 %12580
    %12582 = vrot.lane.b32.xlu0 %v12220, 64
    %v12583 = vpop.permute.xlu0 %12582
    %12584 = vrot.lane.b32.xlu0 %v12221, 64
    %v12585 = vpop.permute.xlu0 %12584
    %12586 = vrot.lane.b32.xlu0 %v12222, 64
    %v12587 = vpop.permute.xlu0 %12586
    %12588 = vrot.lane.b32.xlu0 %v12223, 64
    %v12589 = vpop.permute.xlu0 %12588
    %12590 = vrot.lane.b32.xlu0 %v12224, 64
    %v12591 = vpop.permute.xlu0 %12590
    %12592 = vrot.lane.b32.xlu0 %v12225, 64
    %v12593 = vpop.permute.xlu0 %12592
    %12594 = vrot.lane.b32.xlu0 %v12226, 64
    %v12595 = vpop.permute.xlu0 %12594
    %12596 = vrot.lane.b32.xlu0 %v12227, 64
    %v12597 = vpop.permute.xlu0 %12596
    %12598 = vrot.lane.b32.xlu0 %v12228, 64
    %v12599 = vpop.permute.xlu0 %12598
    %12600 = vrot.lane.b32.xlu0 %v12229, 64
    %v12601 = vpop.permute.xlu0 %12600
    %12602 = vrot.lane.b32.xlu0 %v12230, 64
    %v12603 = vpop.permute.xlu0 %12602
    %12604 = vrot.lane.b32.xlu0 %v12231, 64
    %v12605 = vpop.permute.xlu0 %12604
    %12606 = vrot.lane.b32.xlu0 %v12232, 64
    %v12607 = vpop.permute.xlu0 %12606
    %12608 = vrot.lane.b32.xlu0 %v12233, 64
    %v12609 = vpop.permute.xlu0 %12608
    %12610 = vrot.lane.b32.xlu0 %v12234, 64
    %v12611 = vpop.permute.xlu0 %12610
    %12612 = vrot.lane.b32.xlu0 %v12235, 64
    %v12613 = vpop.permute.xlu0 %12612
    %12614 = vrot.lane.b32.xlu0 %v12236, 64
    %v12615 = vpop.permute.xlu0 %12614
    %12616 = vrot.lane.b32.xlu0 %v12237, 64
    %v12617 = vpop.permute.xlu0 %12616
    %12618 = vrot.lane.b32.xlu0 %v12238, 64
    %v12619 = vpop.permute.xlu0 %12618
    %12620 = vrot.lane.b32.xlu0 %v12239, 64
    %v12621 = vpop.permute.xlu0 %12620
    %12622 = vrot.lane.b32.xlu0 %v12240, 64
    %v12623 = vpop.permute.xlu0 %12622
    %12624 = vrot.lane.b32.xlu0 %v12241, 64
    %v12625 = vpop.permute.xlu0 %12624
    %v12754 = vsel %vm3295, %v7273, %v12371
    %v12755 = vsel %vm3295, %v7274, %v12373
    %v12756 = vsel %vm3295, %v7275, %v12375
    %v12757 = vsel %vm3295, %v7276, %v12377
    %v12758 = vsel %vm3295, %v7277, %v12379
    %v12759 = vsel %vm3295, %v7278, %v12381
    %v12760 = vsel %vm3295, %v7279, %v12383
    %v12761 = vsel %vm3295, %v7280, %v12385
    %v12762 = vsel %vm3295, %v7281, %v12387
    %v12763 = vsel %vm3295, %v7282, %v12389
    %v12764 = vsel %vm3295, %v7283, %v12391
    %v12765 = vsel %vm3295, %v7284, %v12393
    %v12766 = vsel %vm3295, %v7285, %v12395
    %v12767 = vsel %vm3295, %v7286, %v12397
    %v12768 = vsel %vm3295, %v7287, %v12399
    %v12769 = vsel %vm3295, %v7288, %v12401
    %v12770 = vsel %vm3295, %v7289, %v12403
    %v12771 = vsel %vm3295, %v7290, %v12405
    %v12772 = vsel %vm3295, %v7291, %v12407
    %v12773 = vsel %vm3295, %v7292, %v12409
    %v12774 = vsel %vm3295, %v7293, %v12411
    %v12775 = vsel %vm3295, %v7294, %v12413
    %v12776 = vsel %vm3295, %v7295, %v12415
    %v12777 = vsel %vm3295, %v7296, %v12417
    %v12778 = vsel %vm3295, %v7297, %v12419
    %v12779 = vsel %vm3295, %v7298, %v12421
    %v12780 = vsel %vm3295, %v7299, %v12423
    %v12781 = vsel %vm3295, %v7300, %v12425
    %v12782 = vsel %vm3295, %v7301, %v12427
    %v12783 = vsel %vm3295, %v7302, %v12429
    %v12784 = vsel %vm3295, %v7303, %v12431
    %v12785 = vsel %vm3295, %v7304, %v12433
    %v12786 = vsel %vm3295, %v7305, %v12435
    %v12787 = vsel %vm3295, %v7306, %v12437
    %v12788 = vsel %vm3295, %v7307, %v12439
    %v12789 = vsel %vm3295, %v7308, %v12441
    %v12790 = vsel %vm3295, %v7309, %v12443
    %v12791 = vsel %vm3295, %v7310, %v12445
    %v12792 = vsel %vm3295, %v7311, %v12447
    %v12793 = vsel %vm3295, %v7312, %v12449
    %v12794 = vsel %vm3295, %v7313, %v12451
    %v12795 = vsel %vm3295, %v7314, %v12453
    %v12796 = vsel %vm3295, %v7315, %v12455
    %v12797 = vsel %vm3295, %v7316, %v12457
    %v12798 = vsel %vm3295, %v7317, %v12459
    %v12799 = vsel %vm3295, %v7318, %v12461
    %v12800 = vsel %vm3295, %v7319, %v12463
    %v12801 = vsel %vm3295, %v7320, %v12465
    %v12802 = vsel %vm3295, %v7321, %v12467
    %v12803 = vsel %vm3295, %v7322, %v12469
    %v12804 = vsel %vm3295, %v7323, %v12471
    %v12805 = vsel %vm3295, %v7324, %v12473
    %v12806 = vsel %vm3295, %v7325, %v12475
    %v12807 = vsel %vm3295, %v7326, %v12477
    %v12808 = vsel %vm3295, %v7327, %v12479
    %v12809 = vsel %vm3295, %v7328, %v12481
    %v12810 = vsel %vm3295, %v7329, %v12483
    %v12811 = vsel %vm3295, %v7330, %v12485
    %v12812 = vsel %vm3295, %v7331, %v12487
    %v12813 = vsel %vm3295, %v7332, %v12489
    %v12814 = vsel %vm3295, %v7333, %v12491
    %v12815 = vsel %vm3295, %v7334, %v12493
    %v12816 = vsel %vm3295, %v7335, %v12495
    %v12817 = vsel %vm3295, %v7336, %v12497
    %v12818 = vsel %vm3295, %v7337, %v12499
    %v12819 = vsel %vm3295, %v7338, %v12501
    %v12820 = vsel %vm3295, %v7339, %v12503
    %v12821 = vsel %vm3295, %v7340, %v12505
    %v12822 = vsel %vm3295, %v7341, %v12507
    %v12823 = vsel %vm3295, %v7342, %v12509
    %v12824 = vsel %vm3295, %v7343, %v12511
    %v12825 = vsel %vm3295, %v7344, %v12513
    %v12826 = vsel %vm3295, %v7345, %v12515
    %v12827 = vsel %vm3295, %v7346, %v12517
    %v12828 = vsel %vm3295, %v7347, %v12519
    %v12829 = vsel %vm3295, %v7348, %v12521
    %v12830 = vsel %vm3295, %v7349, %v12523
    %v12831 = vsel %vm3295, %v7350, %v12525
    %v12832 = vsel %vm3295, %v7351, %v12527
    %v12833 = vsel %vm3295, %v7352, %v12529
    %v12834 = vsel %vm3295, %v7353, %v12531
    %v12835 = vsel %vm3295, %v7354, %v12533
    %v12836 = vsel %vm3295, %v7355, %v12535
    %v12837 = vsel %vm3295, %v7356, %v12537
    %v12838 = vsel %vm3295, %v7357, %v12539
    %v12839 = vsel %vm3295, %v7358, %v12541
    %v12840 = vsel %vm3295, %v7359, %v12543
    %v12841 = vsel %vm3295, %v7360, %v12545
    %v12842 = vsel %vm3295, %v7361, %v12547
    %v12843 = vsel %vm3295, %v7362, %v12549
    %v12844 = vsel %vm3295, %v7363, %v12551
    %v12845 = vsel %vm3295, %v7364, %v12553
    %v12846 = vsel %vm3295, %v7365, %v12555
    %v12847 = vsel %vm3295, %v7366, %v12557
    %v12848 = vsel %vm3295, %v7367, %v12559
    %v12849 = vsel %vm3295, %v7368, %v12561
    %v12850 = vsel %vm3295, %v7369, %v12563
    %v12851 = vsel %vm3295, %v7370, %v12565
    %v12852 = vsel %vm3295, %v7371, %v12567
    %v12853 = vsel %vm3295, %v7372, %v12569
    %v12854 = vsel %vm3295, %v7373, %v12571
    %v12855 = vsel %vm3295, %v7374, %v12573
    %v12856 = vsel %vm3295, %v7375, %v12575
    %v12857 = vsel %vm3295, %v7376, %v12577
    %v12858 = vsel %vm3295, %v7377, %v12579
    %v12859 = vsel %vm3295, %v7378, %v12581
    %v12860 = vsel %vm3295, %v7379, %v12583
    %v12861 = vsel %vm3295, %v7380, %v12585
    %v12862 = vsel %vm3295, %v7381, %v12587
    %v12863 = vsel %vm3295, %v7382, %v12589
    %v12864 = vsel %vm3295, %v7383, %v12591
    %v12865 = vsel %vm3295, %v7384, %v12593
    %v12866 = vsel %vm3295, %v7385, %v12595
    %v12867 = vsel %vm3295, %v7386, %v12597
    %v12868 = vsel %vm3295, %v7387, %v12599
    %v12869 = vsel %vm3295, %v7388, %v12601
    %v12870 = vsel %vm3295, %v7389, %v12603
    %v12871 = vsel %vm3295, %v7390, %v12605
    %v12872 = vsel %vm3295, %v7391, %v12607
    %v12873 = vsel %vm3295, %v7392, %v12609
    %v12874 = vsel %vm3295, %v7393, %v12611
    %v12875 = vsel %vm3295, %v7394, %v12613
    %v12876 = vsel %vm3295, %v7395, %v12615
    %v12877 = vsel %vm3295, %v7396, %v12617
    %v12878 = vsel %vm3295, %v7397, %v12619
    %v12879 = vsel %vm3295, %v7398, %v12621
    %v12880 = vsel %vm3295, %v7399, %v12623
    %v12881 = vsel %vm3295, %v7400, %v12625
    %12882 = vst [vmem:[#allocation22] sm:$0xff] %v12754
    %12883 = vst [vmem:[#allocation22 + $0x8] sm:$0xff] %v12755
    %12884 = vst [vmem:[#allocation22 + $0x10] sm:$0xff] %v12756
    %12885 = vst [vmem:[#allocation22 + $0x18] sm:$0xff] %v12757
    %12886 = vst [vmem:[#allocation22 + $0x20] sm:$0xff] %v12758
    %12887 = vst [vmem:[#allocation22 + $0x28] sm:$0xff] %v12759
    %12888 = vst [vmem:[#allocation22 + $0x30] sm:$0xff] %v12760
    %12889 = vst [vmem:[#allocation22 + $0x38] sm:$0xff] %v12761
    %12890 = vst [vmem:[#allocation22 + $0x40] sm:$0xff] %v12762
    %12891 = vst [vmem:[#allocation22 + $0x48] sm:$0xff] %v12763
    %12892 = vst [vmem:[#allocation22 + $0x50] sm:$0xff] %v12764
    %12893 = vst [vmem:[#allocation22 + $0x58] sm:$0xff] %v12765
    %12894 = vst [vmem:[#allocation22 + $0x60] sm:$0xff] %v12766
    %12895 = vst [vmem:[#allocation22 + $0x68] sm:$0xff] %v12767
    %12896 = vst [vmem:[#allocation22 + $0x70] sm:$0xff] %v12768
    %12897 = vst [vmem:[#allocation22 + $0x78] sm:$0xff] %v12769
    %12898 = vst [vmem:[#allocation22 + $0x80] sm:$0xff] %v12770
    %12899 = vst [vmem:[#allocation22 + $0x88] sm:$0xff] %v12771
    %12900 = vst [vmem:[#allocation22 + $0x90] sm:$0xff] %v12772
    %12901 = vst [vmem:[#allocation22 + $0x98] sm:$0xff] %v12773
    %12902 = vst [vmem:[#allocation22 + $0xa0] sm:$0xff] %v12774
    %12903 = vst [vmem:[#allocation22 + $0xa8] sm:$0xff] %v12775
    %12904 = vst [vmem:[#allocation22 + $0xb0] sm:$0xff] %v12776
    %12905 = vst [vmem:[#allocation22 + $0xb8] sm:$0xff] %v12777
    %12906 = vst [vmem:[#allocation22 + $0xc0] sm:$0xff] %v12778
    %12907 = vst [vmem:[#allocation22 + $0xc8] sm:$0xff] %v12779
    %12908 = vst [vmem:[#allocation22 + $0xd0] sm:$0xff] %v12780
    %12909 = vst [vmem:[#allocation22 + $0xd8] sm:$0xff] %v12781
    %12910 = vst [vmem:[#allocation22 + $0xe0] sm:$0xff] %v12782
    %12911 = vst [vmem:[#allocation22 + $0xe8] sm:$0xff] %v12783
    %12912 = vst [vmem:[#allocation22 + $0xf0] sm:$0xff] %v12784
    %12913 = vst [vmem:[#allocation22 + $0xf8] sm:$0xff] %v12785
    %12914 = vst [vmem:[#allocation22 + $0x100] sm:$0xff] %v12786
    %12915 = vst [vmem:[#allocation22 + $0x108] sm:$0xff] %v12787
    %12916 = vst [vmem:[#allocation22 + $0x110] sm:$0xff] %v12788
    %12917 = vst [vmem:[#allocation22 + $0x118] sm:$0xff] %v12789
    %12918 = vst [vmem:[#allocation22 + $0x120] sm:$0xff] %v12790
    %12919 = vst [vmem:[#allocation22 + $0x128] sm:$0xff] %v12791
    %12920 = vst [vmem:[#allocation22 + $0x130] sm:$0xff] %v12792
    %12921 = vst [vmem:[#allocation22 + $0x138] sm:$0xff] %v12793
    %12922 = vst [vmem:[#allocation22 + $0x140] sm:$0xff] %v12794
    %12923 = vst [vmem:[#allocation22 + $0x148] sm:$0xff] %v12795
    %12924 = vst [vmem:[#allocation22 + $0x150] sm:$0xff] %v12796
    %12925 = vst [vmem:[#allocation22 + $0x158] sm:$0xff] %v12797
    %12926 = vst [vmem:[#allocation22 + $0x160] sm:$0xff] %v12798
    %12927 = vst [vmem:[#allocation22 + $0x168] sm:$0xff] %v12799
    %12928 = vst [vmem:[#allocation22 + $0x170] sm:$0xff] %v12800
    %12929 = vst [vmem:[#allocation22 + $0x178] sm:$0xff] %v12801
    %12930 = vst [vmem:[#allocation22 + $0x180] sm:$0xff] %v12802
    %12931 = vst [vmem:[#allocation22 + $0x188] sm:$0xff] %v12803
    %12932 = vst [vmem:[#allocation22 + $0x190] sm:$0xff] %v12804
    %12933 = vst [vmem:[#allocation22 + $0x198] sm:$0xff] %v12805
    %12934 = vst [vmem:[#allocation22 + $0x1a0] sm:$0xff] %v12806
    %12935 = vst [vmem:[#allocation22 + $0x1a8] sm:$0xff] %v12807
    %12936 = vst [vmem:[#allocation22 + $0x1b0] sm:$0xff] %v12808
    %12937 = vst [vmem:[#allocation22 + $0x1b8] sm:$0xff] %v12809
    %12938 = vst [vmem:[#allocation22 + $0x1c0] sm:$0xff] %v12810
    %12939 = vst [vmem:[#allocation22 + $0x1c8] sm:$0xff] %v12811
    %12940 = vst [vmem:[#allocation22 + $0x1d0] sm:$0xff] %v12812
    %12941 = vst [vmem:[#allocation22 + $0x1d8] sm:$0xff] %v12813
    %12942 = vst [vmem:[#allocation22 + $0x1e0] sm:$0xff] %v12814
    %12943 = vst [vmem:[#allocation22 + $0x1e8] sm:$0xff] %v12815
    %12944 = vst [vmem:[#allocation22 + $0x1f0] sm:$0xff] %v12816
    %12945 = vst [vmem:[#allocation22 + $0x1f8] sm:$0xff] %v12817
    %12946 = vst [vmem:[#allocation22 + $0x200] sm:$0xff] %v12818
    %12947 = vst [vmem:[#allocation22 + $0x208] sm:$0xff] %v12819
    %12948 = vst [vmem:[#allocation22 + $0x210] sm:$0xff] %v12820
    %12949 = vst [vmem:[#allocation22 + $0x218] sm:$0xff] %v12821
    %12950 = vst [vmem:[#allocation22 + $0x220] sm:$0xff] %v12822
    %12951 = vst [vmem:[#allocation22 + $0x228] sm:$0xff] %v12823
    %12952 = vst [vmem:[#allocation22 + $0x230] sm:$0xff] %v12824
    %12953 = vst [vmem:[#allocation22 + $0x238] sm:$0xff] %v12825
    %12954 = vst [vmem:[#allocation22 + $0x240] sm:$0xff] %v12826
    %12955 = vst [vmem:[#allocation22 + $0x248] sm:$0xff] %v12827
    %12956 = vst [vmem:[#allocation22 + $0x250] sm:$0xff] %v12828
    %12957 = vst [vmem:[#allocation22 + $0x258] sm:$0xff] %v12829
    %12958 = vst [vmem:[#allocation22 + $0x260] sm:$0xff] %v12830
    %12959 = vst [vmem:[#allocation22 + $0x268] sm:$0xff] %v12831
    %12960 = vst [vmem:[#allocation22 + $0x270] sm:$0xff] %v12832
    %12961 = vst [vmem:[#allocation22 + $0x278] sm:$0xff] %v12833
    %12962 = vst [vmem:[#allocation22 + $0x280] sm:$0xff] %v12834
    %12963 = vst [vmem:[#allocation22 + $0x288] sm:$0xff] %v12835
    %12964 = vst [vmem:[#allocation22 + $0x290] sm:$0xff] %v12836
    %12965 = vst [vmem:[#allocation22 + $0x298] sm:$0xff] %v12837
    %12966 = vst [vmem:[#allocation22 + $0x2a0] sm:$0xff] %v12838
    %12967 = vst [vmem:[#allocation22 + $0x2a8] sm:$0xff] %v12839
    %12968 = vst [vmem:[#allocation22 + $0x2b0] sm:$0xff] %v12840
    %12969 = vst [vmem:[#allocation22 + $0x2b8] sm:$0xff] %v12841
    %12970 = vst [vmem:[#allocation22 + $0x2c0] sm:$0xff] %v12842
    %12971 = vst [vmem:[#allocation22 + $0x2c8] sm:$0xff] %v12843
    %12972 = vst [vmem:[#allocation22 + $0x2d0] sm:$0xff] %v12844
    %12973 = vst [vmem:[#allocation22 + $0x2d8] sm:$0xff] %v12845
    %12974 = vst [vmem:[#allocation22 + $0x2e0] sm:$0xff] %v12846
    %12975 = vst [vmem:[#allocation22 + $0x2e8] sm:$0xff] %v12847
    %12976 = vst [vmem:[#allocation22 + $0x2f0] sm:$0xff] %v12848
    %12977 = vst [vmem:[#allocation22 + $0x2f8] sm:$0xff] %v12849
    %12978 = vst [vmem:[#allocation22 + $0x300] sm:$0xff] %v12850
    %12979 = vst [vmem:[#allocation22 + $0x308] sm:$0xff] %v12851
    %12980 = vst [vmem:[#allocation22 + $0x310] sm:$0xff] %v12852
    %12981 = vst [vmem:[#allocation22 + $0x318] sm:$0xff] %v12853
    %12982 = vst [vmem:[#allocation22 + $0x320] sm:$0xff] %v12854
    %12983 = vst [vmem:[#allocation22 + $0x328] sm:$0xff] %v12855
    %12984 = vst [vmem:[#allocation22 + $0x330] sm:$0xff] %v12856
    %12985 = vst [vmem:[#allocation22 + $0x338] sm:$0xff] %v12857
    %12986 = vst [vmem:[#allocation22 + $0x340] sm:$0xff] %v12858
    %12987 = vst [vmem:[#allocation22 + $0x348] sm:$0xff] %v12859
    %12988 = vst [vmem:[#allocation22 + $0x350] sm:$0xff] %v12860
    %12989 = vst [vmem:[#allocation22 + $0x358] sm:$0xff] %v12861
    %12990 = vst [vmem:[#allocation22 + $0x360] sm:$0xff] %v12862
    %12991 = vst [vmem:[#allocation22 + $0x368] sm:$0xff] %v12863
    %12992 = vst [vmem:[#allocation22 + $0x370] sm:$0xff] %v12864
    %12993 = vst [vmem:[#allocation22 + $0x378] sm:$0xff] %v12865
    %12994 = vst [vmem:[#allocation22 + $0x380] sm:$0xff] %v12866
    %12995 = vst [vmem:[#allocation22 + $0x388] sm:$0xff] %v12867
    %12996 = vst [vmem:[#allocation22 + $0x390] sm:$0xff] %v12868
    %12997 = vst [vmem:[#allocation22 + $0x398] sm:$0xff] %v12869
    %12998 = vst [vmem:[#allocation22 + $0x3a0] sm:$0xff] %v12870
    %12999 = vst [vmem:[#allocation22 + $0x3a8] sm:$0xff] %v12871
    %13000 = vst [vmem:[#allocation22 + $0x3b0] sm:$0xff] %v12872
    %13001 = vst [vmem:[#allocation22 + $0x3b8] sm:$0xff] %v12873
    %13002 = vst [vmem:[#allocation22 + $0x3c0] sm:$0xff] %v12874
    %13003 = vst [vmem:[#allocation22 + $0x3c8] sm:$0xff] %v12875
    %13004 = vst [vmem:[#allocation22 + $0x3d0] sm:$0xff] %v12876
    %13005 = vst [vmem:[#allocation22 + $0x3d8] sm:$0xff] %v12877
    %13006 = vst [vmem:[#allocation22 + $0x3e0] sm:$0xff] %v12878
    %13007 = vst [vmem:[#allocation22 + $0x3e8] sm:$0xff] %v12879
    %13008 = vst [vmem:[#allocation22 + $0x3f0] sm:$0xff] %v12880
    %13009 = vst [vmem:[#allocation22 + $0x3f8] sm:$0xff] %v12881
    // Predicated region
    $region98: #{m3gnet_block_forward.1} parent=1 // pred_check
      _
    $region99: #{m3gnet_block_forward.1} parent=1 // pred_check_branch
      %13011 = sbr.rel (0) target = $region101
    $region100: #{m3gnet_block_forward.1} parent=1 // pred_region
      %s13013 = ssub.s32 16384, 16384
      %13014 = vsyncadd [#allocation4], %s13013
      %s13015 = sshll.u32 [#allocation22], 4
      %s13016 = int_to_ptr.vmem [resolvable:$true] %s13015
      %13021 = dma.vmem_to_hbm [thread:$0]  %s13016, 16384, %s12, [#allocation4], 128, 128, 8
    $region101: #{m3gnet_block_forward.1} parent=1 // pred_fallthru
      _
    // Predicated region
    $region102: #{m3gnet_block_forward.1} parent=1 // pred_check
      _
    $region103: #{m3gnet_block_forward.1} parent=1 // pred_check_branch
      %13023 = sbr.rel (0) target = $region105
    $region104: #{m3gnet_block_forward.1} parent=1 // pred_region
      %13024 = dma.done [#allocation4], 16384
    $region105: #{m3gnet_block_forward.1} parent=1 // pred_fallthru
      _
    %13025 = vsyncpa [#allocation3], 1
    %13026 = vsyncpa [#allocation6], 1
    %13027 = vsyncpa [#allocation9], 1
    %13028 = vsyncpa [#allocation12], 1
    %13029 = vsyncpa [#allocation15], 1
    %13030 = vsyncpa [#allocation18], 1
    %13031 = vsyncpa [#allocation21], 1
    %13032 = vsyncpa [#allocation4], 1

</llo_original>
